<compile_context>
chip_gen: v7x
topology: tpu7x:2x2x1
jax: 0.10.0
libtpu: 0.0.40
codegen_flags: <defaults>
</compile_context>

<pallas_src>
import functools

import jax
import jax.numpy as jnp
from jax.experimental import pallas as pl
from jax.experimental.pallas import tpu as pltpu

NEG_SLOPE = 0.01   # nn.LeakyReLU default
BN_EPS = 1e-5      # nn.BatchNorm3d default
CPAD = 128         # lane-dense channel padding


def _round_up(a, b):
    return (a + b - 1) // b * b


# ---------------------------------------------------------------------------
# Pallas kernels
# ---------------------------------------------------------------------------
def _matmul_bias_act_kernel(x_ref, w_ref, b_ref, o_ref, *, leaky):
    acc = jnp.dot(x_ref[...], w_ref[...], preferred_element_type=jnp.float32)
    acc = acc + b_ref[...]
    if leaky:
        acc = jnp.where(acc >= 0, acc, NEG_SLOPE * acc)
    o_ref[...] = acc.astype(o_ref.dtype)


def matmul_bias_act(x, w, b, *, leaky=False):
    """out = act(x @ w + b).  x: (M, K), w: (K, N) with N lane-dense, b: (N,)."""
    M, K = x.shape
    K2, N = w.shape
    assert K == K2
    # Row tile: prefer the largest tile that divides M (no pad / slice copies).
    for t in (512, 384, 256, 128):
        if M >= t and M % t == 0:
            tm, Mp = t, M
            break
    else:
        tm = min(256, _round_up(M, 8))
        Mp = _round_up(M, tm)
    if Mp != M:
        x = jnp.pad(x, ((0, Mp - M), (0, 0)))
    out = pl.pallas_call(
        functools.partial(_matmul_bias_act_kernel, leaky=leaky),
        out_shape=jax.ShapeDtypeStruct((Mp, N), jnp.float32),
        grid=(Mp // tm,),
        in_specs=[
            pl.BlockSpec((tm, K), lambda i: (i, 0)),
            pl.BlockSpec((K, N), lambda i: (0, 0)),
            pl.BlockSpec((1, N), lambda i: (0, 0)),
        ],
        out_specs=pl.BlockSpec((tm, N), lambda i: (i, 0)),
        compiler_params=pltpu.CompilerParams(dimension_semantics=("parallel",)),
    )(x.astype(jnp.bfloat16), w.astype(jnp.bfloat16),
      b.reshape(1, N).astype(jnp.float32))
    return out[:M]


def _maxpool_kernel(x_ref, o_ref):
    x = x_ref[...]                  # (1, 2, hp, 2, wp, 2, C)
    m = jnp.max(x, axis=1)          # (1, hp, 2, wp, 2, C)  D-pair
    m = jnp.max(m, axis=2)          # (1, hp, wp, 2, C)     H-pair
    m = jnp.max(m, axis=3)          # (1, hp, wp, C)        W-pair (sublane)
    o_ref[...] = m


def maxpool2x2x2(y):
    """y: (N, D, H, W, C) with even D/H/W, C lane-dense -> (N, D/2, H/2, W/2, C)."""
    n, d, h, w, c = y.shape
    dp, hp, wp = d // 2, h // 2, w // 2
    g = n * dp
    y7 = y.reshape(g, 2, hp, 2, wp, 2, c)   # pure dim split: no data movement
    out = pl.pallas_call(
        _maxpool_kernel,
        out_shape=jax.ShapeDtypeStruct((g, hp, wp, c), y.dtype),
        grid=(g,),
        in_specs=[pl.BlockSpec((1, 2, hp, 2, wp, 2, c),
                               lambda i: (i, 0, 0, 0, 0, 0, 0))],
        out_specs=pl.BlockSpec((1, hp, wp, c), lambda i: (i, 0, 0, 0)),
        compiler_params=pltpu.CompilerParams(dimension_semantics=("parallel",)),
    )(y7)
    return out.reshape(n, dp, hp, wp, c)


def _fc_head_kernel(x_ref, w1_ref, b1_ref, w2_ref, b2_ref, o_ref):
    h = jnp.dot(x_ref[...], w1_ref[...], preferred_element_type=jnp.float32)
    h = h + b1_ref[...]
    # Dropout(p=0.15) is identity in eval mode.
    o = jnp.dot(h.astype(w2_ref.dtype), w2_ref[...],
                preferred_element_type=jnp.float32)
    o_ref[...] = o + b2_ref[...]


def fc_head(flat, w1, b1, w2, b2, num_classes):
    """Fused fc1 -> dropout(identity) -> fc2.  All output dims pre-padded to 128."""
    m, k1 = flat.shape
    n1 = w1.shape[1]
    n2 = w2.shape[1]
    mp = _round_up(m, 8)
    x = jnp.pad(flat.astype(jnp.bfloat16), ((0, mp - m), (0, 0)))
    out = pl.pallas_call(
        _fc_head_kernel,
        out_shape=jax.ShapeDtypeStruct((mp, n2), jnp.float32),
        grid=(1,),
        in_specs=[
            pl.BlockSpec((mp, k1), lambda i: (0, 0)),
            pl.BlockSpec((k1, n1), lambda i: (0, 0)),
            pl.BlockSpec((1, n1), lambda i: (0, 0)),
            pl.BlockSpec((n1, n2), lambda i: (0, 0)),
            pl.BlockSpec((1, n2), lambda i: (0, 0)),
        ],
        out_specs=pl.BlockSpec((mp, n2), lambda i: (0, 0)),
    )(x, w1.astype(jnp.bfloat16), b1.reshape(1, n1).astype(jnp.float32),
      w2.astype(jnp.bfloat16), b2.reshape(1, n2).astype(jnp.float32))
    return out[:m, :num_classes]


# ---------------------------------------------------------------------------
# Glue: im2col, weight prep, conv block, BN fold
# ---------------------------------------------------------------------------
def im2col_3x3x3(x, k_rows):
    """x: (N, D, H, W, C) -> (N*Do*Ho*Wo, k_rows) valid-conv patches."""
    n, d, h, w, c = x.shape
    do, ho, wo = d - 2, h - 2, w - 2
    patches = []
    for kd in range(3):
        for kh in range(3):
            for kw in range(3):
                patches.append(x[:, kd:kd + do, kh:kh + ho, kw:kw + wo, :])
    p = jnp.stack(patches, axis=-2).reshape(n * do * ho * wo, 27 * c)
    if k_rows > 27 * c:
        p = jnp.pad(p, ((0, 0), (0, k_rows - 27 * c)))
    return p, (n, do, ho, wo)


def conv_weight_to_matmul(w_oikkk, cin_pad, cout_pad, k_rows):
    """PyTorch Conv3d weight (O, I, 3,3,3) -> (k_rows, cout_pad) matmul weight
    matching im2col column order (kd, kh, kw, cin), zero-padded."""
    o, i = w_oikkk.shape[0], w_oikkk.shape[1]
    w = jnp.transpose(w_oikkk, (2, 3, 4, 1, 0))                  # (3,3,3,I,O)
    w = jnp.pad(w, ((0, 0), (0, 0), (0, 0), (0, cin_pad - i), (0, cout_pad - o)))
    w = w.reshape(27 * cin_pad, cout_pad)
    if k_rows > w.shape[0]:
        w = jnp.pad(w, ((0, k_rows - w.shape[0]), (0, 0)))
    return w


def conv_block(x, w_pt, b_pt):
    """Conv3d(3x3x3, valid) -> LeakyReLU -> MaxPool3d(2) on NDHWC x.
    Output channels zero-padded to CPAD (padded channels stay exactly 0)."""
    cin = x.shape[-1]
    cout = w_pt.shape[0]
    k_rows = _round_up(27 * cin, 8)
    w_flat = conv_weight_to_matmul(w_pt, cin_pad=cin, cout_pad=CPAD, k_rows=k_rows)
    b = jnp.pad(b_pt, (0, CPAD - cout))
    patches, (n, do, ho, wo) = im2col_3x3x3(x.astype(jnp.bfloat16), k_rows)
    y = matmul_bias_act(patches, w_flat, b, leaky=True)          # fused conv+bias+lrelu
    y = y.reshape(n, do, ho, wo, CPAD)
    return maxpool2x2x2(y)


def fold_bn_into_fc1(fc1_w_pt, fc1_b, gamma, beta, mean, var, dp, hp, wp):
    """Fold eval-mode BatchNorm3d into fc1 and permute fc1's input rows from
    PyTorch's (c, d, h, w) flatten order to our (d, h, w, c_pad) layout."""
    c_real = gamma.shape[0]
    n_out = fc1_w_pt.shape[0]
    scale = gamma / jnp.sqrt(var + BN_EPS)                       # (c,)
    shift = beta - mean * scale                                  # (c,)
    W = fc1_w_pt.T.reshape(c_real, dp, hp, wp, n_out)            # (c,d,h,w,out)
    b1 = fc1_b + jnp.einsum('c,cdhwo->o', shift, W)              # shift folded
    Wf = W * scale[:, None, None, None, None]                    # scale folded
    Wp = jnp.transpose(Wf, (1, 2, 3, 0, 4))                      # (d,h,w,c,out)
    Wp = jnp.pad(Wp, ((0, 0), (0, 0), (0, 0), (0, CPAD - c_real), (0, 0)))
    w1 = Wp.reshape(dp * hp * wp * CPAD, n_out)
    return w1, b1


# ---------------------------------------------------------------------------
# Full model forward (eval mode)
# ---------------------------------------------------------------------------
def test_model_forward(x_ncdhw, params):
    num_classes = params["fc2_w"].shape[0]
    x = jnp.transpose(x_ncdhw, (0, 2, 3, 4, 1))                  # NCDHW -> NDHWC

    h1 = conv_block(x, params["conv1_w"], params["conv1_b"])
    h2 = conv_block(h1, params["conv2_w"], params["conv2_b"])

    n, dp, hp, wp, _ = h2.shape
    w1, b1 = fold_bn_into_fc1(params["fc1_w"], params["fc1_b"],
                              params["bn_gamma"], params["bn_beta"],
                              params["bn_mean"], params["bn_var"], dp, hp, wp)
    n_hidden = w1.shape[1]
    # Pad fc1/fc2 output dims to 128 lanes (zero weights/bias; sliced at end).
    w1 = jnp.pad(w1, ((0, 0), (0, CPAD - n_hidden)))
    b1 = jnp.pad(b1, (0, CPAD - n_hidden))
    w2 = jnp.pad(params["fc2_w"].T,
                 ((0, CPAD - n_hidden), (0, CPAD - num_classes)))
    b2 = jnp.pad(params["fc2_b"], (0, CPAD - num_classes))

    flat = h2.reshape(n, -1)                  # pure reshape: (n, dp*hp*wp*CPAD)
    # Dropout(p=0.15): eval-mode identity (inside the fused FC-head kernel).
    # TODO(synk): training-mode dropout / batch-statistics BN not implemented.
    return fc_head(flat, w1, b1, w2, b2, num_classes)


# ---------------------------------------------------------------------------
# Main
# ---------------------------------------------------------------------------
if __name__ == "__main__":
    num_channels, num_classes = 1, 3
    N, D, H, W = 2, 14, 14, 14   # small demo shapes (conv->pool twice => 2x2x2)

    key = jax.random.PRNGKey(0)
    ks = jax.random.split(key, 10)
    x = jax.random.normal(ks[0], (N, num_channels, D, H, W), jnp.float32)

    dp = ((D - 2) // 2 - 2) // 2  # 2
    hp = ((H - 2) // 2 - 2) // 2
    wp = ((W - 2) // 2 - 2) // 2
    fc1_in = 64 * dp * hp * wp    # 512 (orig spec hardcodes 64*18*22*18 for ~94^3)

    params = dict(
        conv1_w=0.05 * jax.random.normal(ks[1], (32, num_channels, 3, 3, 3), jnp.float32),
        conv1_b=0.05 * jax.random.normal(ks[2], (32,), jnp.float32),
        conv2_w=0.05 * jax.random.normal(ks[3], (64, 32, 3, 3, 3), jnp.float32),
        conv2_b=0.05 * jax.random.normal(ks[4], (64,), jnp.float32),
        bn_gamma=jnp.ones((64,), jnp.float32),
        bn_beta=jnp.zeros((64,), jnp.float32),
        bn_mean=jnp.zeros((64,), jnp.float32),
        bn_var=jnp.ones((64,), jnp.float32),
        fc1_w=0.02 * jax.random.normal(ks[5], (64, fc1_in), jnp.float32),
        fc1_b=0.02 * jax.random.normal(ks[6], (64,), jnp.float32),
        fc2_w=0.02 * jax.random.normal(ks[7], (num_classes, 64), jnp.float32),
        fc2_b=0.02 * jax.random.normal(ks[8], (num_classes,), jnp.float32),
    )

    out = jax.jit(test_model_forward)(x, params)
    out = jax.block_until_ready(out)
    assert out.shape == (N, num_classes), out.shape
    assert jnp.all(jnp.isfinite(out))
    print("KERNEL_OK")
</pallas_src>

<mosaic_0001>
module attributes {stable_mosaic.version = 11 : i64} {
  func.func @_matmul_bias_act_kernel(%arg0: i32, %arg1: memref<384x32xbf16, #tpu.memory_space<vmem>>, %arg2: memref<32x128xbf16, #tpu.memory_space<vmem>>, %arg3: memref<1x128xf32, #tpu.memory_space<vmem>>, %arg4: memref<384x128xf32, #tpu.memory_space<vmem>>) attributes {dimension_semantics = [#tpu.dimension_semantics<parallel>], iteration_bounds = array<i64: 9>, scalar_prefetch = 0 : i64, scratch_operands = 0 : i64, tpu.core_type = #tpu.core_type<tc>, window_params = [{transform_indices = @transform_0, window_bounds = array<i64: 384, 32>}, {pipeline_mode = #tpu.pipeline_mode<synchronous>, transform_indices = @transform_1, window_bounds = array<i64: 32, 128>}, {pipeline_mode = #tpu.pipeline_mode<synchronous>, transform_indices = @transform_2, window_bounds = array<i64: 1, 128>}, {transform_indices = @transform_3, window_bounds = array<i64: 384, 128>}]} {
    %c0 = arith.constant 0 : index
    %c0_0 = arith.constant 0 : index
    %0 = vector.load %arg1[%c0, %c0_0] : memref<384x32xbf16, #tpu.memory_space<vmem>>, vector<384x32xbf16>
    %c0_1 = arith.constant 0 : index
    %c0_2 = arith.constant 0 : index
    %1 = vector.load %arg2[%c0_1, %c0_2] : memref<32x128xbf16, #tpu.memory_space<vmem>>, vector<32x128xbf16>
    %cst = arith.constant dense<0.000000e+00> : vector<384x128xf32>
    %2 = tpu.matmul %0, %1, %cst {dimension_numbers = #tpu.dot_dimension_numbers<[1], [0], [0], [1], [0, 0, 1, 1], [], []>} : vector<384x32xbf16>, vector<32x128xbf16>, vector<384x128xf32> -> vector<384x128xf32>
    %c0_3 = arith.constant 0 : index
    %c0_4 = arith.constant 0 : index
    %3 = vector.load %arg3[%c0_3, %c0_4] : memref<1x128xf32, #tpu.memory_space<vmem>>, vector<1x128xf32>
    %4 = vector.broadcast %3 : vector<1x128xf32> to vector<384x128xf32>
    %5 = arith.addf %2, %4 : vector<384x128xf32>
    %cst_5 = arith.constant 0.000000e+00 : f32
    %6 = vector.broadcast %cst_5 : f32 to vector<384x128xf32>
    %7 = arith.cmpf oge, %5, %6 : vector<384x128xf32>
    %cst_6 = arith.constant 0.00999999977 : f32
    %8 = vector.broadcast %cst_6 : f32 to vector<384x128xf32>
    %9 = arith.mulf %8, %5 : vector<384x128xf32>
    %10 = arith.select %7, %5, %9 : vector<384x128xi1>, vector<384x128xf32>
    %c0_7 = arith.constant 0 : index
    %c0_8 = arith.constant 0 : index
    %11 = vector.load %arg4[%c0_7, %c0_8] : memref<384x128xf32, #tpu.memory_space<vmem>>, vector<384x128xf32>
    tpu.vector_store %arg4[%c0_7, %c0_8], %10 {strides = array<i32>} : memref<384x128xf32, #tpu.memory_space<vmem>>, vector<384x128xf32>,
    return
  }
  func.func @transform_0(%arg0: i32) -> (i32, i32) {
    %c0_i32 = arith.constant 0 : i32
    %c0_i32_0 = arith.constant 0 : i32
    return %arg0, %c0_i32 : i32, i32
  }
  func.func @transform_1(%arg0: i32) -> (i32, i32) {
    %c0_i32 = arith.constant 0 : i32
    %c0_i32_0 = arith.constant 0 : i32
    %c0_i32_1 = arith.constant 0 : i32
    return %c0_i32, %c0_i32_0 : i32, i32
  }
  func.func @transform_2(%arg0: i32) -> (i32, i32) {
    %c0_i32 = arith.constant 0 : i32
    %c0_i32_0 = arith.constant 0 : i32
    %c0_i32_1 = arith.constant 0 : i32
    return %c0_i32, %c0_i32_0 : i32, i32
  }
  func.func @transform_3(%arg0: i32) -> (i32, i32) {
    %c0_i32 = arith.constant 0 : i32
    %c0_i32_0 = arith.constant 0 : i32
    return %arg0, %c0_i32 : i32, i32
  }
}

module attributes {stable_mosaic.version = 11 : i64} {
  func.func @_maxpool_kernel(%arg0: i32, %arg1: memref<1x2x6x2x6x2x128xf32, #tpu.memory_space<vmem>>, %arg2: memref<1x6x6x128xf32, #tpu.memory_space<vmem>>) attributes {dimension_semantics = [#tpu.dimension_semantics<parallel>], iteration_bounds = array<i64: 12>, scalar_prefetch = 0 : i64, scratch_operands = 0 : i64, tpu.core_type = #tpu.core_type<tc>, window_params = [{transform_indices = @transform_0, window_bounds = array<i64: 1, 2, 6, 2, 6, 2, 128>}, {transform_indices = @transform_1, window_bounds = array<i64: 1, 6, 6, 128>}]} {
    %c0 = arith.constant 0 : index
    %c0_0 = arith.constant 0 : index
    %c0_1 = arith.constant 0 : index
    %c0_2 = arith.constant 0 : index
    %c0_3 = arith.constant 0 : index
    %c0_4 = arith.constant 0 : index
    %c0_5 = arith.constant 0 : index
    %0 = vector.load %arg1[%c0, %c0_0, %c0_1, %c0_2, %c0_3, %c0_4, %c0_5] : memref<1x2x6x2x6x2x128xf32, #tpu.memory_space<vmem>>, vector<1x2x6x2x6x2x128xf32>
    %cst = arith.constant dense<0xFF800000> : vector<1x6x2x6x2x128xf32>
    %1 = vector.multi_reduction <maximumf>, %0, %cst [1] : vector<1x2x6x2x6x2x128xf32> to vector<1x6x2x6x2x128xf32>
    %cst_6 = arith.constant dense<0xFF800000> : vector<1x6x6x2x128xf32>
    %2 = vector.multi_reduction <maximumf>, %1, %cst_6 [2] : vector<1x6x2x6x2x128xf32> to vector<1x6x6x2x128xf32>
    %cst_7 = arith.constant dense<0xFF800000> : vector<1x6x6x128xf32>
    %3 = vector.multi_reduction <maximumf>, %2, %cst_7 [3] : vector<1x6x6x2x128xf32> to vector<1x6x6x128xf32>
    %c0_8 = arith.constant 0 : index
    %c0_9 = arith.constant 0 : index
    %c0_10 = arith.constant 0 : index
    %c0_11 = arith.constant 0 : index
    %4 = vector.load %arg2[%c0_8, %c0_9, %c0_10, %c0_11] : memref<1x6x6x128xf32, #tpu.memory_space<vmem>>, vector<1x6x6x128xf32>
    tpu.vector_store %arg2[%c0_8, %c0_9, %c0_10, %c0_11], %3 {strides = array<i32>} : memref<1x6x6x128xf32, #tpu.memory_space<vmem>>, vector<1x6x6x128xf32>,
    return
  }
  func.func @transform_0(%arg0: i32) -> (i32, i32, i32, i32, i32, i32, i32) {
    %c0_i32 = arith.constant 0 : i32
    %c0_i32_0 = arith.constant 0 : i32
    %c0_i32_1 = arith.constant 0 : i32
    %c0_i32_2 = arith.constant 0 : i32
    %c0_i32_3 = arith.constant 0 : i32
    %c0_i32_4 = arith.constant 0 : i32
    %c0_i32_5 = arith.constant 0 : i32
    return %arg0, %c0_i32, %c0_i32_0, %c0_i32_1, %c0_i32_2, %c0_i32_3, %c0_i32_4 : i32, i32, i32, i32, i32, i32, i32
  }
  func.func @transform_1(%arg0: i32) -> (i32, i32, i32, i32) {
    %c0_i32 = arith.constant 0 : i32
    %c0_i32_0 = arith.constant 0 : i32
    %c0_i32_1 = arith.constant 0 : i32
    %c0_i32_2 = arith.constant 0 : i32
    return %arg0, %c0_i32, %c0_i32_0, %c0_i32_1 : i32, i32, i32, i32
  }
}

module attributes {stable_mosaic.version = 11 : i64} {
  func.func @_matmul_bias_act_kernel(%arg0: i32, %arg1: memref<128x3456xbf16, #tpu.memory_space<vmem>>, %arg2: memref<3456x128xbf16, #tpu.memory_space<vmem>>, %arg3: memref<1x128xf32, #tpu.memory_space<vmem>>, %arg4: memref<128x128xf32, #tpu.memory_space<vmem>>) attributes {dimension_semantics = [#tpu.dimension_semantics<parallel>], iteration_bounds = array<i64: 1>, scalar_prefetch = 0 : i64, scratch_operands = 0 : i64, tpu.core_type = #tpu.core_type<tc>, window_params = [{transform_indices = @transform_0, window_bounds = array<i64: 128, 3456>}, {pipeline_mode = #tpu.pipeline_mode<synchronous>, transform_indices = @transform_1, window_bounds = array<i64: 3456, 128>}, {pipeline_mode = #tpu.pipeline_mode<synchronous>, transform_indices = @transform_2, window_bounds = array<i64: 1, 128>}, {transform_indices = @transform_3, window_bounds = array<i64: 128, 128>}]} {
    %c0 = arith.constant 0 : index
    %c0_0 = arith.constant 0 : index
    %0 = vector.load %arg1[%c0, %c0_0] : memref<128x3456xbf16, #tpu.memory_space<vmem>>, vector<128x3456xbf16>
    %c0_1 = arith.constant 0 : index
    %c0_2 = arith.constant 0 : index
    %1 = vector.load %arg2[%c0_1, %c0_2] : memref<3456x128xbf16, #tpu.memory_space<vmem>>, vector<3456x128xbf16>
    %cst = arith.constant dense<0.000000e+00> : vector<128x128xf32>
    %2 = tpu.matmul %0, %1, %cst {dimension_numbers = #tpu.dot_dimension_numbers<[1], [0], [0], [1], [0, 0, 1, 1], [], []>} : vector<128x3456xbf16>, vector<3456x128xbf16>, vector<128x128xf32> -> vector<128x128xf32>
    %c0_3 = arith.constant 0 : index
    %c0_4 = arith.constant 0 : index
    %3 = vector.load %arg3[%c0_3, %c0_4] : memref<1x128xf32, #tpu.memory_space<vmem>>, vector<1x128xf32>
    %4 = vector.broadcast %3 : vector<1x128xf32> to vector<128x128xf32>
    %5 = arith.addf %2, %4 : vector<128x128xf32>
    %cst_5 = arith.constant 0.000000e+00 : f32
    %6 = vector.broadcast %cst_5 : f32 to vector<128x128xf32>
    %7 = arith.cmpf oge, %5, %6 : vector<128x128xf32>
    %cst_6 = arith.constant 0.00999999977 : f32
    %8 = vector.broadcast %cst_6 : f32 to vector<128x128xf32>
    %9 = arith.mulf %8, %5 : vector<128x128xf32>
    %10 = arith.select %7, %5, %9 : vector<128x128xi1>, vector<128x128xf32>
    %c0_7 = arith.constant 0 : index
    %c0_8 = arith.constant 0 : index
    %11 = vector.load %arg4[%c0_7, %c0_8] : memref<128x128xf32, #tpu.memory_space<vmem>>, vector<128x128xf32>
    tpu.vector_store %arg4[%c0_7, %c0_8], %10 {strides = array<i32>} : memref<128x128xf32, #tpu.memory_space<vmem>>, vector<128x128xf32>,
    return
  }
  func.func @transform_0(%arg0: i32) -> (i32, i32) {
    %c0_i32 = arith.constant 0 : i32
    %c0_i32_0 = arith.constant 0 : i32
    return %arg0, %c0_i32 : i32, i32
  }
  func.func @transform_1(%arg0: i32) -> (i32, i32) {
    %c0_i32 = arith.constant 0 : i32
    %c0_i32_0 = arith.constant 0 : i32
    %c0_i32_1 = arith.constant 0 : i32
    return %c0_i32, %c0_i32_0 : i32, i32
  }
  func.func @transform_2(%arg0: i32) -> (i32, i32) {
    %c0_i32 = arith.constant 0 : i32
    %c0_i32_0 = arith.constant 0 : i32
    %c0_i32_1 = arith.constant 0 : i32
    return %c0_i32, %c0_i32_0 : i32, i32
  }
  func.func @transform_3(%arg0: i32) -> (i32, i32) {
    %c0_i32 = arith.constant 0 : i32
    %c0_i32_0 = arith.constant 0 : i32
    return %arg0, %c0_i32 : i32, i32
  }
}

module attributes {stable_mosaic.version = 11 : i64} {
  func.func @_maxpool_kernel(%arg0: i32, %arg1: memref<1x2x2x2x2x2x128xf32, #tpu.memory_space<vmem>>, %arg2: memref<1x2x2x128xf32, #tpu.memory_space<vmem>>) attributes {dimension_semantics = [#tpu.dimension_semantics<parallel>], iteration_bounds = array<i64: 4>, scalar_prefetch = 0 : i64, scratch_operands = 0 : i64, tpu.core_type = #tpu.core_type<tc>, window_params = [{transform_indices = @transform_0, window_bounds = array<i64: 1, 2, 2, 2, 2, 2, 128>}, {transform_indices = @transform_1, window_bounds = array<i64: 1, 2, 2, 128>}]} {
    %c0 = arith.constant 0 : index
    %c0_0 = arith.constant 0 : index
    %c0_1 = arith.constant 0 : index
    %c0_2 = arith.constant 0 : index
    %c0_3 = arith.constant 0 : index
    %c0_4 = arith.constant 0 : index
    %c0_5 = arith.constant 0 : index
    %0 = vector.load %arg1[%c0, %c0_0, %c0_1, %c0_2, %c0_3, %c0_4, %c0_5] : memref<1x2x2x2x2x2x128xf32, #tpu.memory_space<vmem>>, vector<1x2x2x2x2x2x128xf32>
    %cst = arith.constant dense<0xFF800000> : vector<1x2x2x2x2x128xf32>
    %1 = vector.multi_reduction <maximumf>, %0, %cst [1] : vector<1x2x2x2x2x2x128xf32> to vector<1x2x2x2x2x128xf32>
    %cst_6 = arith.constant dense<0xFF800000> : vector<1x2x2x2x128xf32>
    %2 = vector.multi_reduction <maximumf>, %1, %cst_6 [2] : vector<1x2x2x2x2x128xf32> to vector<1x2x2x2x128xf32>
    %cst_7 = arith.constant dense<0xFF800000> : vector<1x2x2x128xf32>
    %3 = vector.multi_reduction <maximumf>, %2, %cst_7 [3] : vector<1x2x2x2x128xf32> to vector<1x2x2x128xf32>
    %c0_8 = arith.constant 0 : index
    %c0_9 = arith.constant 0 : index
    %c0_10 = arith.constant 0 : index
    %c0_11 = arith.constant 0 : index
    %4 = vector.load %arg2[%c0_8, %c0_9, %c0_10, %c0_11] : memref<1x2x2x128xf32, #tpu.memory_space<vmem>>, vector<1x2x2x128xf32>
    tpu.vector_store %arg2[%c0_8, %c0_9, %c0_10, %c0_11], %3 {strides = array<i32>} : memref<1x2x2x128xf32, #tpu.memory_space<vmem>>, vector<1x2x2x128xf32>,
    return
  }
  func.func @transform_0(%arg0: i32) -> (i32, i32, i32, i32, i32, i32, i32) {
    %c0_i32 = arith.constant 0 : i32
    %c0_i32_0 = arith.constant 0 : i32
    %c0_i32_1 = arith.constant 0 : i32
    %c0_i32_2 = arith.constant 0 : i32
    %c0_i32_3 = arith.constant 0 : i32
    %c0_i32_4 = arith.constant 0 : i32
    %c0_i32_5 = arith.constant 0 : i32
    return %arg0, %c0_i32, %c0_i32_0, %c0_i32_1, %c0_i32_2, %c0_i32_3, %c0_i32_4 : i32, i32, i32, i32, i32, i32, i32
  }
  func.func @transform_1(%arg0: i32) -> (i32, i32, i32, i32) {
    %c0_i32 = arith.constant 0 : i32
    %c0_i32_0 = arith.constant 0 : i32
    %c0_i32_1 = arith.constant 0 : i32
    %c0_i32_2 = arith.constant 0 : i32
    return %arg0, %c0_i32, %c0_i32_0, %c0_i32_1 : i32, i32, i32, i32
  }
}

module attributes {stable_mosaic.version = 11 : i64} {
  func.func @_fc_head_kernel(%arg0: i32, %arg1: memref<8x1024xbf16, #tpu.memory_space<vmem>>, %arg2: memref<1024x128xbf16, #tpu.memory_space<vmem>>, %arg3: memref<1x128xf32, #tpu.memory_space<vmem>>, %arg4: memref<128x128xbf16, #tpu.memory_space<vmem>>, %arg5: memref<1x128xf32, #tpu.memory_space<vmem>>, %arg6: memref<8x128xf32, #tpu.memory_space<vmem>>) attributes {dimension_semantics = [#tpu.dimension_semantics<arbitrary>], iteration_bounds = array<i64: 1>, scalar_prefetch = 0 : i64, scratch_operands = 0 : i64, tpu.core_type = #tpu.core_type<tc>, window_params = [{pipeline_mode = #tpu.pipeline_mode<synchronous>, transform_indices = @transform_0, window_bounds = array<i64: 8, 1024>}, {pipeline_mode = #tpu.pipeline_mode<synchronous>, transform_indices = @transform_1, window_bounds = array<i64: 1024, 128>}, {pipeline_mode = #tpu.pipeline_mode<synchronous>, transform_indices = @transform_2, window_bounds = array<i64: 1, 128>}, {pipeline_mode = #tpu.pipeline_mode<synchronous>, transform_indices = @transform_3, window_bounds = array<i64: 128, 128>}, {pipeline_mode = #tpu.pipeline_mode<synchronous>, transform_indices = @transform_4, window_bounds = array<i64: 1, 128>}, {pipeline_mode = #tpu.pipeline_mode<synchronous>, transform_indices = @transform_5, window_bounds = array<i64: 8, 128>}]} {
    %c0 = arith.constant 0 : index
    %c0_0 = arith.constant 0 : index
    %0 = vector.load %arg1[%c0, %c0_0] : memref<8x1024xbf16, #tpu.memory_space<vmem>>, vector<8x1024xbf16>
    %c0_1 = arith.constant 0 : index
    %c0_2 = arith.constant 0 : index
    %1 = vector.load %arg2[%c0_1, %c0_2] : memref<1024x128xbf16, #tpu.memory_space<vmem>>, vector<1024x128xbf16>
    %cst = arith.constant dense<0.000000e+00> : vector<8x128xf32>
    %2 = tpu.matmul %0, %1, %cst {dimension_numbers = #tpu.dot_dimension_numbers<[1], [0], [0], [1], [0, 0, 1, 1], [], []>} : vector<8x1024xbf16>, vector<1024x128xbf16>, vector<8x128xf32> -> vector<8x128xf32>
    %c0_3 = arith.constant 0 : index
    %c0_4 = arith.constant 0 : index
    %3 = vector.load %arg3[%c0_3, %c0_4] : memref<1x128xf32, #tpu.memory_space<vmem>>, vector<1x128xf32>
    %4 = vector.broadcast %3 : vector<1x128xf32> to vector<8x128xf32>
    %5 = arith.addf %2, %4 : vector<8x128xf32>
    %6 = arith.truncf %5 : vector<8x128xf32> to vector<8x128xbf16>
    %c0_5 = arith.constant 0 : index
    %c0_6 = arith.constant 0 : index
    %7 = vector.load %arg4[%c0_5, %c0_6] : memref<128x128xbf16, #tpu.memory_space<vmem>>, vector<128x128xbf16>
    %cst_7 = arith.constant dense<0.000000e+00> : vector<8x128xf32>
    %8 = tpu.matmul %6, %7, %cst_7 {dimension_numbers = #tpu.dot_dimension_numbers<[1], [0], [0], [1], [0, 0, 1, 1], [], []>} : vector<8x128xbf16>, vector<128x128xbf16>, vector<8x128xf32> -> vector<8x128xf32>
    %c0_8 = arith.constant 0 : index
    %c0_9 = arith.constant 0 : index
    %9 = vector.load %arg5[%c0_8, %c0_9] : memref<1x128xf32, #tpu.memory_space<vmem>>, vector<1x128xf32>
    %10 = vector.broadcast %9 : vector<1x128xf32> to vector<8x128xf32>
    %11 = arith.addf %8, %10 : vector<8x128xf32>
    %c0_10 = arith.constant 0 : index
    %c0_11 = arith.constant 0 : index
    %12 = vector.load %arg6[%c0_10, %c0_11] : memref<8x128xf32, #tpu.memory_space<vmem>>, vector<8x128xf32>
    tpu.vector_store %arg6[%c0_10, %c0_11], %11 {strides = array<i32>} : memref<8x128xf32, #tpu.memory_space<vmem>>, vector<8x128xf32>,
    return
  }
  func.func @transform_0(%arg0: i32) -> (i32, i32) {
    %c0_i32 = arith.constant 0 : i32
    %c0_i32_0 = arith.constant 0 : i32
    %c0_i32_1 = arith.constant 0 : i32
    return %c0_i32, %c0_i32_0 : i32, i32
  }
  func.func @transform_1(%arg0: i32) -> (i32, i32) {
    %c0_i32 = arith.constant 0 : i32
    %c0_i32_0 = arith.constant 0 : i32
    %c0_i32_1 = arith.constant 0 : i32
    return %c0_i32, %c0_i32_0 : i32, i32
  }
  func.func @transform_2(%arg0: i32) -> (i32, i32) {
    %c0_i32 = arith.constant 0 : i32
    %c0_i32_0 = arith.constant 0 : i32
    %c0_i32_1 = arith.constant 0 : i32
    return %c0_i32, %c0_i32_0 : i32, i32
  }
  func.func @transform_3(%arg0: i32) -> (i32, i32) {
    %c0_i32 = arith.constant 0 : i32
    %c0_i32_0 = arith.constant 0 : i32
    %c0_i32_1 = arith.constant 0 : i32
    return %c0_i32, %c0_i32_0 : i32, i32
  }
  func.func @transform_4(%arg0: i32) -> (i32, i32) {
    %c0_i32 = arith.constant 0 : i32
    %c0_i32_0 = arith.constant 0 : i32
    %c0_i32_1 = arith.constant 0 : i32
    return %c0_i32, %c0_i32_0 : i32, i32
  }
  func.func @transform_5(%arg0: i32) -> (i32, i32) {
    %c0_i32 = arith.constant 0 : i32
    %c0_i32_0 = arith.constant 0 : i32
    %c0_i32_1 = arith.constant 0 : i32
    return %c0_i32, %c0_i32_0 : i32, i32
  }
}

</mosaic_0001>

<llo_original>
// kernel: test_model_forward.5
$region0: #{test_model_forward.5}
  #allocation0 [shape = 'u32[]', space=smem, size = 0x4, offset = 0x4, fixed_abs, tag = 'smem constant byte address 0x4 - core index']
  #allocation1 [shape = 'u32[144,128]{1,0:T(1,128)}', space=vmem, size = 0x12000, scoped, tag = 'internal scratch']
  %s0 = inlined_call_operand.vmem [shape: bf16[3456,32], index: 0, kind: input, shape index: {}]
  %s1 = inlined_call_operand.vmem [shape: bf16[32,128], index: 1, kind: input, shape index: {}]
  %s2 = inlined_call_operand.vmem [shape: f32[1,128], index: 2, kind: input, shape index: {}]
  %s3 = inlined_call_operand.vmem [shape: f32[3456,128], index: 3, kind: output, shape index: {}]
  %s4 = sld [smem:[#allocation0]]
  $region45: #{test_model_forward.5} parent=0
    _
  %s6 = ssub.s32 1, %s4
  %s7 = scalar_select 0, %s6, %s4
  loop: start=0, step=1, limit=11
  $region2: #{test_model_forward.5} parent=0 // loop_pre_header
    _
  $region3: #{test_model_forward.5} parent=0 // loop_header
    %s9 = sphi 0, %s13
    %p10 = scmp.ge.s32.totalorder %s9, 11
    %s19 = sphi 0, %s21
    %s22 = sphi 0, %s19
    %s23 = sphi 0, %s22
    %s39 = sphi 0, %s23
    %s43 = sphi 0, %s43
    %s45 = sphi 0, %s43
    %s46 = sphi 0, %s45
    %s60 = sphi 0, %s46
    %s64 = sphi 0, %s64
    %s66 = sphi 0, %s64
    %s67 = sphi 0, %s66
    %s81 = sphi 0, %s67
    %s87 = sphi 0, %s89
    %s90 = sphi 0, %s87
    %s91 = sphi 0, %s90
    %s107 = sphi 0, %s91
  $region4: #{test_model_forward.5} parent=0 // loop_header_branch
    %12 = sbr.rel (%p10) target = $region8
  $region5: #{test_model_forward.5} parent=0 // loop_body
    %s14 = ssub.s32 %s9, 1
    %s15 = ssub.s32 %s9, 2
    %s16 = sadd.s32 %s9, 1
    %s17 = ssub.s32 %s9, %s16
    %p18 = scmp.eq.s32.totalorder %s17, 0
    %s20 = sadd.s32 %s19, 1
    %s21 = scalar_select %p18, %s19, %s20
    %p24 = pneg %p18
    %p25 = scmp.eq.s32.totalorder %s9, 8
    %p26 = por %p24, %p25
    %p27 = scmp.ne.s32.totalorder %s19, %s22
    %p28 = scmp.eq.s32.totalorder %s9, 0
    %p29 = por %p27, %p28
    %p30 = scmp.ne.s32.totalorder %s19, %s22
    %p31 = scmp.eq.s32.totalorder %s14, 8
    %p32 = por %p30, %p31
    %p33 = scmp.ne.s32.totalorder %s22, %s23
    %p34 = scmp.eq.s32.totalorder %s14, 0
    %p35 = por %p33, %p34
    %p36 = scmp.ne.s32.totalorder %s22, %s23
    %p37 = scmp.eq.s32.totalorder %s15, 8
    %p38 = por %p36, %p37
    %p40 = scmp.ne.s32.totalorder %s23, %s39
    %p41 = scmp.eq.s32.totalorder %s15, 0
    %p42 = por %p40, %p41
    %s44 = sadd.s32 %s43, 1
    %p47 = scmp.eq.s32.totalorder %s9, 8
    %p48 = scmp.ne.s32.totalorder %s43, %s45
    %p49 = scmp.eq.s32.totalorder %s9, 0
    %p50 = por %p48, %p49
    %p51 = scmp.ne.s32.totalorder %s43, %s45
    %p52 = scmp.eq.s32.totalorder %s14, 8
    %p53 = por %p51, %p52
    %p54 = scmp.ne.s32.totalorder %s45, %s46
    %p55 = scmp.eq.s32.totalorder %s14, 0
    %p56 = por %p54, %p55
    %p57 = scmp.ne.s32.totalorder %s45, %s46
    %p58 = scmp.eq.s32.totalorder %s15, 8
    %p59 = por %p57, %p58
    %p61 = scmp.ne.s32.totalorder %s46, %s60
    %p62 = scmp.eq.s32.totalorder %s15, 0
    %p63 = por %p61, %p62
    %s65 = sadd.s32 %s64, 1
    %p68 = scmp.eq.s32.totalorder %s9, 8
    %p69 = scmp.ne.s32.totalorder %s64, %s66
    %p70 = scmp.eq.s32.totalorder %s9, 0
    %p71 = por %p69, %p70
    %p72 = scmp.ne.s32.totalorder %s64, %s66
    %p73 = scmp.eq.s32.totalorder %s14, 8
    %p74 = por %p72, %p73
    %p75 = scmp.ne.s32.totalorder %s66, %s67
    %p76 = scmp.eq.s32.totalorder %s14, 0
    %p77 = por %p75, %p76
    %p78 = scmp.ne.s32.totalorder %s66, %s67
    %p79 = scmp.eq.s32.totalorder %s15, 8
    %p80 = por %p78, %p79
    %p82 = scmp.ne.s32.totalorder %s67, %s81
    %p83 = scmp.eq.s32.totalorder %s15, 0
    %p84 = por %p82, %p83
    %s85 = ssub.s32 %s9, %s16
    %p86 = scmp.eq.s32.totalorder %s85, 0
    %s88 = sadd.s32 %s87, 1
    %s89 = scalar_select %p86, %s87, %s88
    %p92 = pneg %p86
    %p93 = scmp.eq.s32.totalorder %s9, 8
    %p94 = por %p92, %p93
    %p95 = scmp.ne.s32.totalorder %s87, %s90
    %p96 = scmp.eq.s32.totalorder %s9, 0
    %p97 = por %p95, %p96
    %p98 = scmp.ne.s32.totalorder %s87, %s90
    %p99 = scmp.eq.s32.totalorder %s14, 8
    %p100 = por %p98, %p99
    %p101 = scmp.ne.s32.totalorder %s90, %s91
    %p102 = scmp.eq.s32.totalorder %s14, 0
    %p103 = por %p101, %p102
    %p104 = scmp.ne.s32.totalorder %s90, %s91
    %p105 = scmp.eq.s32.totalorder %s15, 8
    %p106 = por %p104, %p105
    %p108 = scmp.ne.s32.totalorder %s91, %s107
    %p109 = scmp.eq.s32.totalorder %s15, 0
    %p110 = por %p108, %p109
    %p111 = scmp.le.s32.totalorder 1, %s9
    %p112 = scmp.lt.s32.totalorder %s9, 10
    %p113 = pnand %p111, %p112
    %p114 = pneg %p113
    // Predicated region
    $region9: #{test_model_forward.5} parent=5 // pred_check
      _
    $region10: #{test_model_forward.5} parent=5 // pred_check_branch
      %116 = sbr.rel (%p113) target = $region12
    $region11: #{test_model_forward.5} parent=5 // pred_region
      %s117 = ssub.s32 %s9, 1
      // Predicated region
      $region13: #{test_model_forward.5} parent=11 // pred_check
        %p118 = pneg %p56
      $region14: #{test_model_forward.5} parent=11 // pred_check_branch
        %120 = sbr.rel (%p118) target = $region16
      $region15: #{test_model_forward.5} parent=11 // pred_region
        _
      $region16: #{test_model_forward.5} parent=11 // pred_fallthru
        _
      // Predicated region
      $region17: #{test_model_forward.5} parent=11 // pred_check
        %p121 = pneg %p77
      $region18: #{test_model_forward.5} parent=11 // pred_check_branch
        %123 = sbr.rel (%p121) target = $region20
      $region19: #{test_model_forward.5} parent=11 // pred_region
        _
      $region20: #{test_model_forward.5} parent=11 // pred_fallthru
        _
    $region12: #{test_model_forward.5} parent=5 // pred_fallthru
      _
    %p124 = scmp.lt.s32.totalorder %s9, 9
    // Predicated region
    $region21: #{test_model_forward.5} parent=5 // pred_check
      %p125 = pneg %p124
    $region22: #{test_model_forward.5} parent=5 // pred_check_branch
      %127 = sbr.rel (%p125) target = $region24
    $region23: #{test_model_forward.5} parent=5 // pred_region
      // Predicated region
      $region25: #{test_model_forward.5} parent=23 // pred_check
        %p128 = pneg %p29
      $region26: #{test_model_forward.5} parent=23 // pred_check_branch
        %130 = sbr.rel (%p128) target = $region28
      $region27: #{test_model_forward.5} parent=23 // pred_region
        %s131 = smul.u32 48, %s9
        %p132 = scmp.lt.s32.totalorder %s131, 431
        %s133 = scalar_select %p132, %s131, 431
        %s134 = smul.addr %s133, 4
        %s135 = scalar_lea.vmem %s0, %s134
        %s136 = smul.u32 48, %s9
      $region28: #{test_model_forward.5} parent=23 // pred_fallthru
        _
    $region24: #{test_model_forward.5} parent=5 // pred_fallthru
      _
    %p137 = scmp.le.s32.totalorder 1, %s9
    %p138 = scmp.lt.s32.totalorder %s9, 10
    %p139 = pnand %p137, %p138
    %p140 = pneg %p139
    // Predicated region
    $region29: #{test_model_forward.5} parent=5 // pred_check
      _
    $region30: #{test_model_forward.5} parent=5 // pred_check_branch
      %142 = sbr.rel (%p139) target = $region32
    $region31: #{test_model_forward.5} parent=5 // pred_region
      %s143 = ssub.s32 %s9, 1
      %s144 = smul.u32 48, %s14
      %p145 = scmp.lt.s32.totalorder %s144, 431
      %s146 = scalar_select %p145, %s144, 431
      %s147 = smul.addr %s146, 4
      %s148 = scalar_lea.vmem %s0, %s147
      %p149 = pneg %p35
      %p150 = pneg %p32
      %p151 = pneg %p56
      %p152 = pneg %p53
      %p153 = pneg %p77
      %p154 = pneg %p74
      %p155 = pneg %p103
      %p156 = pneg %p100
      %s157 = smul.u32 48, %s14
      %p158 = scmp.lt.s32.totalorder %s157, 431
      %s159 = scalar_select %p158, %s157, 431
      %s160 = smul.addr %s159, 8
      %s161 = scalar_lea.vmem %s3, %s160
      %s162 = smul.u32 48, %s14
      %p163 = scmp.lt.s32.totalorder %s162, 431
      %s164 = scalar_select %p163, %s162, 431
      %s165 = smul.addr %s164, 4
      %s166 = scalar_lea.vmem %s0, %s165
      %s167 = smul.u32 48, %s14
      %s168 = smul.u32 48, %s14
      %p169 = scmp.lt.s32.totalorder %s168, 431
      %s170 = scalar_select %p169, %s168, 431
      %s171 = smul.addr %s170, 8
      %s172 = scalar_lea.vmem %s3, %s171
      %s173 = smul.u32 48, %s14
      %v175 = vld [vmem:[%s166] sm:$0xf]
      %v176 = vld [vmem:[%s166 + $0x4] sm:$0xf]
      %v177 = vld [vmem:[%s166 + $0x8] sm:$0xf]
      %v178 = vld [vmem:[%s166 + $0xc] sm:$0xf]
      %v179 = vld [vmem:[%s166 + $0x10] sm:$0xf]
      %v180 = vld [vmem:[%s166 + $0x14] sm:$0xf]
      %v181 = vld [vmem:[%s166 + $0x18] sm:$0xf]
      %v182 = vld [vmem:[%s166 + $0x1c] sm:$0xf]
      %v183 = vld [vmem:[%s166 + $0x20] sm:$0xf]
      %v184 = vld [vmem:[%s166 + $0x24] sm:$0xf]
      %v185 = vld [vmem:[%s166 + $0x28] sm:$0xf]
      %v186 = vld [vmem:[%s166 + $0x2c] sm:$0xf]
      %v187 = vld [vmem:[%s166 + $0x30] sm:$0xf]
      %v188 = vld [vmem:[%s166 + $0x34] sm:$0xf]
      %v189 = vld [vmem:[%s166 + $0x38] sm:$0xf]
      %v190 = vld [vmem:[%s166 + $0x3c] sm:$0xf]
      %v191 = vld [vmem:[%s166 + $0x40] sm:$0xf]
      %v192 = vld [vmem:[%s166 + $0x44] sm:$0xf]
      %v193 = vld [vmem:[%s166 + $0x48] sm:$0xf]
      %v194 = vld [vmem:[%s166 + $0x4c] sm:$0xf]
      %v195 = vld [vmem:[%s166 + $0x50] sm:$0xf]
      %v196 = vld [vmem:[%s166 + $0x54] sm:$0xf]
      %v197 = vld [vmem:[%s166 + $0x58] sm:$0xf]
      %v198 = vld [vmem:[%s166 + $0x5c] sm:$0xf]
      %v199 = vld [vmem:[%s166 + $0x60] sm:$0xf]
      %v200 = vld [vmem:[%s166 + $0x64] sm:$0xf]
      %v201 = vld [vmem:[%s166 + $0x68] sm:$0xf]
      %v202 = vld [vmem:[%s166 + $0x6c] sm:$0xf]
      %v203 = vld [vmem:[%s166 + $0x70] sm:$0xf]
      %v204 = vld [vmem:[%s166 + $0x74] sm:$0xf]
      %v205 = vld [vmem:[%s166 + $0x78] sm:$0xf]
      %v206 = vld [vmem:[%s166 + $0x7c] sm:$0xf]
      %v207 = vld [vmem:[%s166 + $0x80] sm:$0xf]
      %v208 = vld [vmem:[%s166 + $0x84] sm:$0xf]
      %v209 = vld [vmem:[%s166 + $0x88] sm:$0xf]
      %v210 = vld [vmem:[%s166 + $0x8c] sm:$0xf]
      %v211 = vld [vmem:[%s166 + $0x90] sm:$0xf]
      %v212 = vld [vmem:[%s166 + $0x94] sm:$0xf]
      %v213 = vld [vmem:[%s166 + $0x98] sm:$0xf]
      %v214 = vld [vmem:[%s166 + $0x9c] sm:$0xf]
      %v215 = vld [vmem:[%s166 + $0xa0] sm:$0xf]
      %v216 = vld [vmem:[%s166 + $0xa4] sm:$0xf]
      %v217 = vld [vmem:[%s166 + $0xa8] sm:$0xf]
      %v218 = vld [vmem:[%s166 + $0xac] sm:$0xf]
      %v219 = vld [vmem:[%s166 + $0xb0] sm:$0xf]
      %v220 = vld [vmem:[%s166 + $0xb4] sm:$0xf]
      %v221 = vld [vmem:[%s166 + $0xb8] sm:$0xf]
      %v222 = vld [vmem:[%s166 + $0xbc] sm:$0xf]
      %v223 = vld [vmem:[%s1] sm:$0xf]
      %v224 = vld [vmem:[%s1 + $0x4] sm:$0xf]
      %v225 = vld [vmem:[%s1 + $0x8] sm:$0xf]
      %v226 = vld [vmem:[%s1 + $0xc] sm:$0xf]
      %v227 = vld [vmem:[%s2] sm:$0x1]
      %v229 = vlaneseq
      %v230 = vshrl.u32 %v229, 7
      %v231 = vsub.s32 0, %v230
      %v232 = vrot.slane %v227, %v231
      %v282 = vunpack.c.l.b16 %v175
      %v283 = vunpack.c.l.b16 %v176
      %v284 = vunpack.c.l.b16 %v177
      %v285 = vunpack.c.l.b16 %v178
      %v286 = vunpack.c.l.b16 %v179
      %v287 = vunpack.c.l.b16 %v180
      %v288 = vunpack.c.l.b16 %v181
      %v289 = vunpack.c.l.b16 %v182
      %v290 = vunpack.c.l.b16 %v183
      %v291 = vunpack.c.l.b16 %v184
      %v292 = vunpack.c.l.b16 %v185
      %v293 = vunpack.c.l.b16 %v186
      %v294 = vunpack.c.l.b16 %v187
      %v295 = vunpack.c.l.b16 %v188
      %v296 = vunpack.c.l.b16 %v189
      %v297 = vunpack.c.l.b16 %v190
      %v298 = vunpack.c.l.b16 %v191
      %v299 = vunpack.c.l.b16 %v192
      %v300 = vunpack.c.l.b16 %v193
      %v301 = vunpack.c.l.b16 %v194
      %v302 = vunpack.c.l.b16 %v195
      %v303 = vunpack.c.l.b16 %v196
      %v304 = vunpack.c.l.b16 %v197
      %v305 = vunpack.c.l.b16 %v198
      %v306 = vunpack.c.l.b16 %v199
      %v307 = vunpack.c.l.b16 %v200
      %v308 = vunpack.c.l.b16 %v201
      %v309 = vunpack.c.l.b16 %v202
      %v310 = vunpack.c.l.b16 %v203
      %v311 = vunpack.c.l.b16 %v204
      %v312 = vunpack.c.l.b16 %v205
      %v313 = vunpack.c.l.b16 %v206
      %v314 = vunpack.c.l.b16 %v207
      %v315 = vunpack.c.l.b16 %v208
      %v316 = vunpack.c.l.b16 %v209
      %v317 = vunpack.c.l.b16 %v210
      %v318 = vunpack.c.l.b16 %v211
      %v319 = vunpack.c.l.b16 %v212
      %v320 = vunpack.c.l.b16 %v213
      %v321 = vunpack.c.l.b16 %v214
      %v322 = vunpack.c.l.b16 %v215
      %v323 = vunpack.c.l.b16 %v216
      %v324 = vunpack.c.l.b16 %v217
      %v325 = vunpack.c.l.b16 %v218
      %v326 = vunpack.c.l.b16 %v219
      %v327 = vunpack.c.l.b16 %v220
      %v328 = vunpack.c.l.b16 %v221
      %v329 = vunpack.c.l.b16 %v222
      %v330 = vpack.c.b16 %v283, %v282
      %v331 = vpack.c.b16 %v285, %v284
      %v332 = vpack.c.b16 %v287, %v286
      %v333 = vpack.c.b16 %v289, %v288
      %v334 = vpack.c.b16 %v291, %v290
      %v335 = vpack.c.b16 %v293, %v292
      %v336 = vpack.c.b16 %v295, %v294
      %v337 = vpack.c.b16 %v297, %v296
      %v338 = vpack.c.b16 %v299, %v298
      %v339 = vpack.c.b16 %v301, %v300
      %v340 = vpack.c.b16 %v303, %v302
      %v341 = vpack.c.b16 %v305, %v304
      %v342 = vpack.c.b16 %v307, %v306
      %v343 = vpack.c.b16 %v309, %v308
      %v344 = vpack.c.b16 %v311, %v310
      %v345 = vpack.c.b16 %v313, %v312
      %v346 = vpack.c.b16 %v315, %v314
      %v347 = vpack.c.b16 %v317, %v316
      %v348 = vpack.c.b16 %v319, %v318
      %v349 = vpack.c.b16 %v321, %v320
      %v350 = vpack.c.b16 %v323, %v322
      %v351 = vpack.c.b16 %v325, %v324
      %v352 = vpack.c.b16 %v327, %v326
      %v353 = vpack.c.b16 %v329, %v328
      %v358 = vunpack.c.l.b16 %v223
      %v359 = vunpack.c.l.b16 %v224
      %v360 = vunpack.c.l.b16 %v225
      %v361 = vunpack.c.l.b16 %v226
      %v362 = vpack.c.b16 %v359, %v358
      %v363 = vpack.c.b16 %v361, %v360
      %vm366 = vcmask 261120
      %v368 = vsel %vm366, %v330, 0
      %v371 = vsel %vm366, %v331, 0
      %v374 = vsel %vm366, %v332, 0
      %v377 = vsel %vm366, %v333, 0
      %v380 = vsel %vm366, %v334, 0
      %v383 = vsel %vm366, %v335, 0
      %v386 = vsel %vm366, %v336, 0
      %v389 = vsel %vm366, %v337, 0
      %v392 = vsel %vm366, %v338, 0
      %v395 = vsel %vm366, %v339, 0
      %v398 = vsel %vm366, %v340, 0
      %v401 = vsel %vm366, %v341, 0
      %v404 = vsel %vm366, %v342, 0
      %v407 = vsel %vm366, %v343, 0
      %v410 = vsel %vm366, %v344, 0
      %v413 = vsel %vm366, %v345, 0
      %v416 = vsel %vm366, %v346, 0
      %v419 = vsel %vm366, %v347, 0
      %v422 = vsel %vm366, %v348, 0
      %v425 = vsel %vm366, %v349, 0
      %v428 = vsel %vm366, %v350, 0
      %v431 = vsel %vm366, %v351, 0
      %v434 = vsel %vm366, %v352, 0
      %v437 = vsel %vm366, %v353, 0
      %439 = vmatprep.subr.bf16.mxu0 0
      %440 = vmatpush1.bf16.msra.mxu0 %v362
      %441 = vmatprep.subr.bf16.mxu0 0
      %442 = vmatpush1.bf16.msra.mxu0 %v363
      %443 = vmatprep.subr.bf16.mxu0 0
      %444 = vmatpush1.bf16.msra.mxu0 0
      %445 = vmatprep.subr.bf16.mxu0 0
      %446 = vmatpush1.bf16.msra.mxu0 0
      %447 = vmatprep.subr.bf16.mxu0 0
      %448 = vmatpush1.bf16.msra.mxu0 0
      %449 = vmatprep.subr.bf16.mxu0 0
      %450 = vmatpush1.bf16.msra.mxu0 0
      %451 = vmatprep.subr.bf16.mxu0 0
      %452 = vmatpush1.bf16.msra.mxu0 0
      %453 = vmatprep.subr.bf16.mxu0 0
      %454 = vmatpush1.bf16.msra.mxu0 0
      %455 = vmatprep.subr.bf16.mxu0 0
      %456 = vmatpush1.bf16.msra.mxu0 0
      %457 = vmatprep.subr.bf16.mxu0 0
      %458 = vmatpush1.bf16.msra.mxu0 0
      %459 = vmatprep.subr.bf16.mxu0 0
      %460 = vmatpush1.bf16.msra.mxu0 0
      %461 = vmatprep.subr.bf16.mxu0 0
      %462 = vmatpush1.bf16.msra.mxu0 0
      %463 = vmatprep.subr.bf16.mxu0 0
      %464 = vmatpush1.bf16.msra.mxu0 0
      %465 = vmatprep.subr.bf16.mxu0 0
      %466 = vmatpush1.bf16.msra.mxu0 0
      %467 = vmatprep.subr.bf16.mxu0 0
      %468 = vmatpush1.bf16.msra.mxu0 0
      %469 = vmatprep.subr.bf16.mxu0 0
      %470 = vmatpush1.bf16.msra.mxu0 0
      %471 = vmatprep.mubr.bf16.mxu0 0
      %472 = vmatmul.mubr.bf16.gmra.mrb[0].mxu0 %v368
      %v473 = vpop.f32.mrb[0].mxu0
      %v474 = vadd.f32 %v232, %v473
      %v475 = vpop.f32.mrb[0].mxu0
      %v476 = vpop.f32.mrb[0].mxu0
      %v477 = vadd.f32 %v232, %v476
      %v478 = vpop.f32.mrb[0].mxu0
      %479 = vmatprep.mubr.bf16.mxu0 0
      %480 = vmatmul.mubr.bf16.gmra.mrb[0].mxu0 %v371
      %v481 = vpop.f32.mrb[0].mxu0
      %v482 = vadd.f32 %v232, %v481
      %v483 = vpop.f32.mrb[0].mxu0
      %v484 = vpop.f32.mrb[0].mxu0
      %v485 = vadd.f32 %v232, %v484
      %v486 = vpop.f32.mrb[0].mxu0
      %487 = vmatprep.mubr.bf16.mxu0 0
      %488 = vmatmul.mubr.bf16.gmra.mrb[0].mxu0 %v374
      %v489 = vpop.f32.mrb[0].mxu0
      %v490 = vadd.f32 %v232, %v489
      %v491 = vpop.f32.mrb[0].mxu0
      %v492 = vpop.f32.mrb[0].mxu0
      %v493 = vadd.f32 %v232, %v492
      %v494 = vpop.f32.mrb[0].mxu0
      %495 = vmatprep.mubr.bf16.mxu0 0
      %496 = vmatmul.mubr.bf16.gmra.mrb[0].mxu0 %v377
      %v497 = vpop.f32.mrb[0].mxu0
      %v498 = vadd.f32 %v232, %v497
      %v499 = vpop.f32.mrb[0].mxu0
      %v500 = vpop.f32.mrb[0].mxu0
      %v501 = vadd.f32 %v232, %v500
      %v502 = vpop.f32.mrb[0].mxu0
      %503 = vmatprep.mubr.bf16.mxu0 0
      %504 = vmatmul.mubr.bf16.gmra.mrb[0].mxu0 %v380
      %v505 = vpop.f32.mrb[0].mxu0
      %v506 = vadd.f32 %v232, %v505
      %v507 = vpop.f32.mrb[0].mxu0
      %v508 = vpop.f32.mrb[0].mxu0
      %v509 = vadd.f32 %v232, %v508
      %v510 = vpop.f32.mrb[0].mxu0
      %511 = vmatprep.mubr.bf16.mxu0 0
      %512 = vmatmul.mubr.bf16.gmra.mrb[0].mxu0 %v383
      %v513 = vpop.f32.mrb[0].mxu0
      %v514 = vadd.f32 %v232, %v513
      %v515 = vpop.f32.mrb[0].mxu0
      %v516 = vpop.f32.mrb[0].mxu0
      %v517 = vadd.f32 %v232, %v516
      %v518 = vpop.f32.mrb[0].mxu0
      %519 = vmatprep.mubr.bf16.mxu0 0
      %520 = vmatmul.mubr.bf16.gmra.mrb[0].mxu0 %v386
      %v521 = vpop.f32.mrb[0].mxu0
      %v522 = vadd.f32 %v232, %v521
      %v523 = vpop.f32.mrb[0].mxu0
      %v524 = vpop.f32.mrb[0].mxu0
      %v525 = vadd.f32 %v232, %v524
      %v526 = vpop.f32.mrb[0].mxu0
      %527 = vmatprep.mubr.bf16.mxu0 0
      %528 = vmatmul.mubr.bf16.gmra.mrb[0].mxu0 %v389
      %v529 = vpop.f32.mrb[0].mxu0
      %v530 = vadd.f32 %v232, %v529
      %v531 = vpop.f32.mrb[0].mxu0
      %v532 = vpop.f32.mrb[0].mxu0
      %v533 = vadd.f32 %v232, %v532
      %v534 = vpop.f32.mrb[0].mxu0
      %535 = vmatprep.mubr.bf16.mxu0 0
      %536 = vmatmul.mubr.bf16.gmra.mrb[0].mxu0 %v392
      %v537 = vpop.f32.mrb[0].mxu0
      %v538 = vadd.f32 %v232, %v537
      %v539 = vpop.f32.mrb[0].mxu0
      %v540 = vpop.f32.mrb[0].mxu0
      %v541 = vadd.f32 %v232, %v540
      %v542 = vpop.f32.mrb[0].mxu0
      %543 = vmatprep.mubr.bf16.mxu0 0
      %544 = vmatmul.mubr.bf16.gmra.mrb[0].mxu0 %v395
      %v545 = vpop.f32.mrb[0].mxu0
      %v546 = vadd.f32 %v232, %v545
      %v547 = vpop.f32.mrb[0].mxu0
      %v548 = vpop.f32.mrb[0].mxu0
      %v549 = vadd.f32 %v232, %v548
      %v550 = vpop.f32.mrb[0].mxu0
      %551 = vmatprep.mubr.bf16.mxu0 0
      %552 = vmatmul.mubr.bf16.gmra.mrb[0].mxu0 %v398
      %v553 = vpop.f32.mrb[0].mxu0
      %v554 = vadd.f32 %v232, %v553
      %v555 = vpop.f32.mrb[0].mxu0
      %v556 = vpop.f32.mrb[0].mxu0
      %v557 = vadd.f32 %v232, %v556
      %v558 = vpop.f32.mrb[0].mxu0
      %559 = vmatprep.mubr.bf16.mxu0 0
      %560 = vmatmul.mubr.bf16.gmra.mrb[0].mxu0 %v401
      %v561 = vpop.f32.mrb[0].mxu0
      %v562 = vadd.f32 %v232, %v561
      %v563 = vpop.f32.mrb[0].mxu0
      %v564 = vpop.f32.mrb[0].mxu0
      %v565 = vadd.f32 %v232, %v564
      %v566 = vpop.f32.mrb[0].mxu0
      %567 = vmatprep.mubr.bf16.mxu0 0
      %568 = vmatmul.mubr.bf16.gmra.mrb[0].mxu0 %v404
      %v569 = vpop.f32.mrb[0].mxu0
      %v570 = vadd.f32 %v232, %v569
      %v571 = vpop.f32.mrb[0].mxu0
      %v572 = vpop.f32.mrb[0].mxu0
      %v573 = vadd.f32 %v232, %v572
      %v574 = vpop.f32.mrb[0].mxu0
      %575 = vmatprep.mubr.bf16.mxu0 0
      %576 = vmatmul.mubr.bf16.gmra.mrb[0].mxu0 %v407
      %v577 = vpop.f32.mrb[0].mxu0
      %v578 = vadd.f32 %v232, %v577
      %v579 = vpop.f32.mrb[0].mxu0
      %v580 = vpop.f32.mrb[0].mxu0
      %v581 = vadd.f32 %v232, %v580
      %v582 = vpop.f32.mrb[0].mxu0
      %583 = vmatprep.mubr.bf16.mxu0 0
      %584 = vmatmul.mubr.bf16.gmra.mrb[0].mxu0 %v410
      %v585 = vpop.f32.mrb[0].mxu0
      %v586 = vadd.f32 %v232, %v585
      %v587 = vpop.f32.mrb[0].mxu0
      %v588 = vpop.f32.mrb[0].mxu0
      %v589 = vadd.f32 %v232, %v588
      %v590 = vpop.f32.mrb[0].mxu0
      %591 = vmatprep.mubr.bf16.mxu0 0
      %592 = vmatmul.mubr.bf16.gmra.mrb[0].mxu0 %v413
      %v593 = vpop.f32.mrb[0].mxu0
      %v594 = vadd.f32 %v232, %v593
      %v595 = vpop.f32.mrb[0].mxu0
      %v596 = vpop.f32.mrb[0].mxu0
      %v597 = vadd.f32 %v232, %v596
      %v598 = vpop.f32.mrb[0].mxu0
      %599 = vmatprep.mubr.bf16.mxu0 0
      %600 = vmatmul.mubr.bf16.gmra.mrb[0].mxu0 %v416
      %v601 = vpop.f32.mrb[0].mxu0
      %v602 = vadd.f32 %v232, %v601
      %v603 = vpop.f32.mrb[0].mxu0
      %v604 = vpop.f32.mrb[0].mxu0
      %v605 = vadd.f32 %v232, %v604
      %v606 = vpop.f32.mrb[0].mxu0
      %607 = vmatprep.mubr.bf16.mxu0 0
      %608 = vmatmul.mubr.bf16.gmra.mrb[0].mxu0 %v419
      %v609 = vpop.f32.mrb[0].mxu0
      %v610 = vadd.f32 %v232, %v609
      %v611 = vpop.f32.mrb[0].mxu0
      %v612 = vpop.f32.mrb[0].mxu0
      %v613 = vadd.f32 %v232, %v612
      %v614 = vpop.f32.mrb[0].mxu0
      %615 = vmatprep.mubr.bf16.mxu0 0
      %616 = vmatmul.mubr.bf16.gmra.mrb[0].mxu0 %v422
      %v617 = vpop.f32.mrb[0].mxu0
      %v618 = vadd.f32 %v232, %v617
      %v619 = vpop.f32.mrb[0].mxu0
      %v620 = vpop.f32.mrb[0].mxu0
      %v621 = vadd.f32 %v232, %v620
      %v622 = vpop.f32.mrb[0].mxu0
      %623 = vmatprep.mubr.bf16.mxu0 0
      %624 = vmatmul.mubr.bf16.gmra.mrb[0].mxu0 %v425
      %v625 = vpop.f32.mrb[0].mxu0
      %v626 = vadd.f32 %v232, %v625
      %v627 = vpop.f32.mrb[0].mxu0
      %v628 = vpop.f32.mrb[0].mxu0
      %v629 = vadd.f32 %v232, %v628
      %v630 = vpop.f32.mrb[0].mxu0
      %631 = vmatprep.mubr.bf16.mxu0 0
      %632 = vmatmul.mubr.bf16.gmra.mrb[0].mxu0 %v428
      %v633 = vpop.f32.mrb[0].mxu0
      %v634 = vadd.f32 %v232, %v633
      %v635 = vpop.f32.mrb[0].mxu0
      %v636 = vpop.f32.mrb[0].mxu0
      %v637 = vadd.f32 %v232, %v636
      %v638 = vpop.f32.mrb[0].mxu0
      %639 = vmatprep.mubr.bf16.mxu0 0
      %640 = vmatmul.mubr.bf16.gmra.mrb[0].mxu0 %v431
      %v641 = vpop.f32.mrb[0].mxu0
      %v642 = vadd.f32 %v232, %v641
      %v643 = vpop.f32.mrb[0].mxu0
      %v644 = vpop.f32.mrb[0].mxu0
      %v645 = vadd.f32 %v232, %v644
      %v646 = vpop.f32.mrb[0].mxu0
      %647 = vmatprep.mubr.bf16.mxu0 0
      %648 = vmatmul.mubr.bf16.gmra.mrb[0].mxu0 %v434
      %v649 = vpop.f32.mrb[0].mxu0
      %v650 = vadd.f32 %v232, %v649
      %v651 = vpop.f32.mrb[0].mxu0
      %v652 = vpop.f32.mrb[0].mxu0
      %v653 = vadd.f32 %v232, %v652
      %v654 = vpop.f32.mrb[0].mxu0
      %655 = vmatprep.mubr.bf16.mxu0 0
      %656 = vmatmul.mubr.bf16.gmra.mrb[0].mxu0 %v437
      %v657 = vpop.f32.mrb[0].mxu0
      %v658 = vadd.f32 %v232, %v657
      %v659 = vpop.f32.mrb[0].mxu0
      %v660 = vpop.f32.mrb[0].mxu0
      %v661 = vadd.f32 %v232, %v660
      %v662 = vpop.f32.mrb[0].mxu0
      %663 = vdwg.mxu0
      %vm664 = vcmp.ge.f32.partialorder %v474, 0.0
      %vm665 = vcmp.ge.f32.partialorder %v477, 0.0
      %vm666 = vcmp.ge.f32.partialorder %v482, 0.0
      %vm667 = vcmp.ge.f32.partialorder %v485, 0.0
      %vm668 = vcmp.ge.f32.partialorder %v490, 0.0
      %vm669 = vcmp.ge.f32.partialorder %v493, 0.0
      %vm670 = vcmp.ge.f32.partialorder %v498, 0.0
      %vm671 = vcmp.ge.f32.partialorder %v501, 0.0
      %vm672 = vcmp.ge.f32.partialorder %v506, 0.0
      %vm673 = vcmp.ge.f32.partialorder %v509, 0.0
      %vm674 = vcmp.ge.f32.partialorder %v514, 0.0
      %vm675 = vcmp.ge.f32.partialorder %v517, 0.0
      %vm676 = vcmp.ge.f32.partialorder %v522, 0.0
      %vm677 = vcmp.ge.f32.partialorder %v525, 0.0
      %vm678 = vcmp.ge.f32.partialorder %v530, 0.0
      %vm679 = vcmp.ge.f32.partialorder %v533, 0.0
      %vm680 = vcmp.ge.f32.partialorder %v538, 0.0
      %vm681 = vcmp.ge.f32.partialorder %v541, 0.0
      %vm682 = vcmp.ge.f32.partialorder %v546, 0.0
      %vm683 = vcmp.ge.f32.partialorder %v549, 0.0
      %vm684 = vcmp.ge.f32.partialorder %v554, 0.0
      %vm685 = vcmp.ge.f32.partialorder %v557, 0.0
      %vm686 = vcmp.ge.f32.partialorder %v562, 0.0
      %vm687 = vcmp.ge.f32.partialorder %v565, 0.0
      %vm688 = vcmp.ge.f32.partialorder %v570, 0.0
      %vm689 = vcmp.ge.f32.partialorder %v573, 0.0
      %vm690 = vcmp.ge.f32.partialorder %v578, 0.0
      %vm691 = vcmp.ge.f32.partialorder %v581, 0.0
      %vm692 = vcmp.ge.f32.partialorder %v586, 0.0
      %vm693 = vcmp.ge.f32.partialorder %v589, 0.0
      %vm694 = vcmp.ge.f32.partialorder %v594, 0.0
      %vm695 = vcmp.ge.f32.partialorder %v597, 0.0
      %vm696 = vcmp.ge.f32.partialorder %v602, 0.0
      %vm697 = vcmp.ge.f32.partialorder %v605, 0.0
      %vm698 = vcmp.ge.f32.partialorder %v610, 0.0
      %vm699 = vcmp.ge.f32.partialorder %v613, 0.0
      %vm700 = vcmp.ge.f32.partialorder %v618, 0.0
      %vm701 = vcmp.ge.f32.partialorder %v621, 0.0
      %vm702 = vcmp.ge.f32.partialorder %v626, 0.0
      %vm703 = vcmp.ge.f32.partialorder %v629, 0.0
      %vm704 = vcmp.ge.f32.partialorder %v634, 0.0
      %vm705 = vcmp.ge.f32.partialorder %v637, 0.0
      %vm706 = vcmp.ge.f32.partialorder %v642, 0.0
      %vm707 = vcmp.ge.f32.partialorder %v645, 0.0
      %vm708 = vcmp.ge.f32.partialorder %v650, 0.0
      %vm709 = vcmp.ge.f32.partialorder %v653, 0.0
      %vm710 = vcmp.ge.f32.partialorder %v658, 0.0
      %vm711 = vcmp.ge.f32.partialorder %v661, 0.0
      %v712 = vmul.f32 %v474, 0.01
      %v713 = vmul.f32 %v477, 0.01
      %v714 = vmul.f32 %v482, 0.01
      %v715 = vmul.f32 %v485, 0.01
      %v716 = vmul.f32 %v490, 0.01
      %v717 = vmul.f32 %v493, 0.01
      %v718 = vmul.f32 %v498, 0.01
      %v719 = vmul.f32 %v501, 0.01
      %v720 = vmul.f32 %v506, 0.01
      %v721 = vmul.f32 %v509, 0.01
      %v722 = vmul.f32 %v514, 0.01
      %v723 = vmul.f32 %v517, 0.01
      %v724 = vmul.f32 %v522, 0.01
      %v725 = vmul.f32 %v525, 0.01
      %v726 = vmul.f32 %v530, 0.01
      %v727 = vmul.f32 %v533, 0.01
      %v728 = vmul.f32 %v538, 0.01
      %v729 = vmul.f32 %v541, 0.01
      %v730 = vmul.f32 %v546, 0.01
      %v731 = vmul.f32 %v549, 0.01
      %v732 = vmul.f32 %v554, 0.01
      %v733 = vmul.f32 %v557, 0.01
      %v734 = vmul.f32 %v562, 0.01
      %v735 = vmul.f32 %v565, 0.01
      %v736 = vmul.f32 %v570, 0.01
      %v737 = vmul.f32 %v573, 0.01
      %v738 = vmul.f32 %v578, 0.01
      %v739 = vmul.f32 %v581, 0.01
      %v740 = vmul.f32 %v586, 0.01
      %v741 = vmul.f32 %v589, 0.01
      %v742 = vmul.f32 %v594, 0.01
      %v743 = vmul.f32 %v597, 0.01
      %v744 = vmul.f32 %v602, 0.01
      %v745 = vmul.f32 %v605, 0.01
      %v746 = vmul.f32 %v610, 0.01
      %v747 = vmul.f32 %v613, 0.01
      %v748 = vmul.f32 %v618, 0.01
      %v749 = vmul.f32 %v621, 0.01
      %v750 = vmul.f32 %v626, 0.01
      %v751 = vmul.f32 %v629, 0.01
      %v752 = vmul.f32 %v634, 0.01
      %v753 = vmul.f32 %v637, 0.01
      %v754 = vmul.f32 %v642, 0.01
      %v755 = vmul.f32 %v645, 0.01
      %v756 = vmul.f32 %v650, 0.01
      %v757 = vmul.f32 %v653, 0.01
      %v758 = vmul.f32 %v658, 0.01
      %v759 = vmul.f32 %v661, 0.01
      %v760 = vsel %vm664, %v474, %v712
      %v761 = vsel %vm665, %v477, %v713
      %v762 = vsel %vm666, %v482, %v714
      %v763 = vsel %vm667, %v485, %v715
      %v764 = vsel %vm668, %v490, %v716
      %v765 = vsel %vm669, %v493, %v717
      %v766 = vsel %vm670, %v498, %v718
      %v767 = vsel %vm671, %v501, %v719
      %v768 = vsel %vm672, %v506, %v720
      %v769 = vsel %vm673, %v509, %v721
      %v770 = vsel %vm674, %v514, %v722
      %v771 = vsel %vm675, %v517, %v723
      %v772 = vsel %vm676, %v522, %v724
      %v773 = vsel %vm677, %v525, %v725
      %v774 = vsel %vm678, %v530, %v726
      %v775 = vsel %vm679, %v533, %v727
      %v776 = vsel %vm680, %v538, %v728
      %v777 = vsel %vm681, %v541, %v729
      %v778 = vsel %vm682, %v546, %v730
      %v779 = vsel %vm683, %v549, %v731
      %v780 = vsel %vm684, %v554, %v732
      %v781 = vsel %vm685, %v557, %v733
      %v782 = vsel %vm686, %v562, %v734
      %v783 = vsel %vm687, %v565, %v735
      %v784 = vsel %vm688, %v570, %v736
      %v785 = vsel %vm689, %v573, %v737
      %v786 = vsel %vm690, %v578, %v738
      %v787 = vsel %vm691, %v581, %v739
      %v788 = vsel %vm692, %v586, %v740
      %v789 = vsel %vm693, %v589, %v741
      %v790 = vsel %vm694, %v594, %v742
      %v791 = vsel %vm695, %v597, %v743
      %v792 = vsel %vm696, %v602, %v744
      %v793 = vsel %vm697, %v605, %v745
      %v794 = vsel %vm698, %v610, %v746
      %v795 = vsel %vm699, %v613, %v747
      %v796 = vsel %vm700, %v618, %v748
      %v797 = vsel %vm701, %v621, %v749
      %v798 = vsel %vm702, %v626, %v750
      %v799 = vsel %vm703, %v629, %v751
      %v800 = vsel %vm704, %v634, %v752
      %v801 = vsel %vm705, %v637, %v753
      %v802 = vsel %vm706, %v642, %v754
      %v803 = vsel %vm707, %v645, %v755
      %v804 = vsel %vm708, %v650, %v756
      %v805 = vsel %vm709, %v653, %v757
      %v806 = vsel %vm710, %v658, %v758
      %v807 = vsel %vm711, %v661, %v759
      %808 = vst [vmem:[%s172] sm:$0xff] %v760
      %809 = vst [vmem:[%s172 + $0x8] sm:$0xff] %v761
      %810 = vst [vmem:[%s172 + $0x10] sm:$0xff] %v762
      %811 = vst [vmem:[%s172 + $0x18] sm:$0xff] %v763
      %812 = vst [vmem:[%s172 + $0x20] sm:$0xff] %v764
      %813 = vst [vmem:[%s172 + $0x28] sm:$0xff] %v765
      %814 = vst [vmem:[%s172 + $0x30] sm:$0xff] %v766
      %815 = vst [vmem:[%s172 + $0x38] sm:$0xff] %v767
      %816 = vst [vmem:[%s172 + $0x40] sm:$0xff] %v768
      %817 = vst [vmem:[%s172 + $0x48] sm:$0xff] %v769
      %818 = vst [vmem:[%s172 + $0x50] sm:$0xff] %v770
      %819 = vst [vmem:[%s172 + $0x58] sm:$0xff] %v771
      %820 = vst [vmem:[%s172 + $0x60] sm:$0xff] %v772
      %821 = vst [vmem:[%s172 + $0x68] sm:$0xff] %v773
      %822 = vst [vmem:[%s172 + $0x70] sm:$0xff] %v774
      %823 = vst [vmem:[%s172 + $0x78] sm:$0xff] %v775
      %824 = vst [vmem:[%s172 + $0x80] sm:$0xff] %v776
      %825 = vst [vmem:[%s172 + $0x88] sm:$0xff] %v777
      %826 = vst [vmem:[%s172 + $0x90] sm:$0xff] %v778
      %827 = vst [vmem:[%s172 + $0x98] sm:$0xff] %v779
      %828 = vst [vmem:[%s172 + $0xa0] sm:$0xff] %v780
      %829 = vst [vmem:[%s172 + $0xa8] sm:$0xff] %v781
      %830 = vst [vmem:[%s172 + $0xb0] sm:$0xff] %v782
      %831 = vst [vmem:[%s172 + $0xb8] sm:$0xff] %v783
      %832 = vst [vmem:[%s172 + $0xc0] sm:$0xff] %v784
      %833 = vst [vmem:[%s172 + $0xc8] sm:$0xff] %v785
      %834 = vst [vmem:[%s172 + $0xd0] sm:$0xff] %v786
      %835 = vst [vmem:[%s172 + $0xd8] sm:$0xff] %v787
      %836 = vst [vmem:[%s172 + $0xe0] sm:$0xff] %v788
      %837 = vst [vmem:[%s172 + $0xe8] sm:$0xff] %v789
      %838 = vst [vmem:[%s172 + $0xf0] sm:$0xff] %v790
      %839 = vst [vmem:[%s172 + $0xf8] sm:$0xff] %v791
      %840 = vst [vmem:[%s172 + $0x100] sm:$0xff] %v792
      %841 = vst [vmem:[%s172 + $0x108] sm:$0xff] %v793
      %842 = vst [vmem:[%s172 + $0x110] sm:$0xff] %v794
      %843 = vst [vmem:[%s172 + $0x118] sm:$0xff] %v795
      %844 = vst [vmem:[%s172 + $0x120] sm:$0xff] %v796
      %845 = vst [vmem:[%s172 + $0x128] sm:$0xff] %v797
      %846 = vst [vmem:[%s172 + $0x130] sm:$0xff] %v798
      %847 = vst [vmem:[%s172 + $0x138] sm:$0xff] %v799
      %848 = vst [vmem:[%s172 + $0x140] sm:$0xff] %v800
      %849 = vst [vmem:[%s172 + $0x148] sm:$0xff] %v801
      %850 = vst [vmem:[%s172 + $0x150] sm:$0xff] %v802
      %851 = vst [vmem:[%s172 + $0x158] sm:$0xff] %v803
      %852 = vst [vmem:[%s172 + $0x160] sm:$0xff] %v804
      %853 = vst [vmem:[%s172 + $0x168] sm:$0xff] %v805
      %854 = vst [vmem:[%s172 + $0x170] sm:$0xff] %v806
      %855 = vst [vmem:[%s172 + $0x178] sm:$0xff] %v807
      %s856 = smul.u32 48, %s14
      %p857 = scmp.lt.s32.totalorder %s856, 431
      %s858 = scalar_select %p857, %s856, 431
      %s859 = smul.addr %s858, 8
      %s860 = scalar_lea.vmem %s3, %s859
      // Predicated region
      $region33: #{test_model_forward.5} parent=31 // pred_check
        %p861 = pneg %p100
      $region34: #{test_model_forward.5} parent=31 // pred_check_branch
        %863 = sbr.rel (%p861) target = $region36
      $region35: #{test_model_forward.5} parent=31 // pred_region
        %s864 = smul.u32 48, %s14
      $region36: #{test_model_forward.5} parent=31 // pred_fallthru
        _
    $region32: #{test_model_forward.5} parent=5 // pred_fallthru
      _
    %p865 = scmp.le.s32.totalorder 2, %s9
    // Predicated region
    $region37: #{test_model_forward.5} parent=5 // pred_check
      %p866 = pneg %p865
    $region38: #{test_model_forward.5} parent=5 // pred_check_branch
      %868 = sbr.rel (%p866) target = $region40
    $region39: #{test_model_forward.5} parent=5 // pred_region
      %s869 = ssub.s32 %s9, 2
      // Predicated region
      $region41: #{test_model_forward.5} parent=39 // pred_check
        %p870 = pneg %p106
      $region42: #{test_model_forward.5} parent=39 // pred_check_branch
        %872 = sbr.rel (%p870) target = $region44
      $region43: #{test_model_forward.5} parent=39 // pred_region
        %s873 = smul.u32 48, %s15
        %p874 = scmp.lt.s32.totalorder %s873, 431
        %s875 = scalar_select %p874, %s873, 431
        %s876 = smul.addr %s875, 8
        %s877 = scalar_lea.vmem %s3, %s876
      $region44: #{test_model_forward.5} parent=39 // pred_fallthru
        _
    $region40: #{test_model_forward.5} parent=5 // pred_fallthru
      _
  $region6: #{test_model_forward.5} parent=0 // loop_footer
    %s13 = sadd.s32 1, %s9
  $region7: #{test_model_forward.5} parent=0 // loop_footer_branch
    %8 = sbr.rel target = $region3
  $region8: #{test_model_forward.5} parent=0 // loop_exit
    _

// kernel: test_model_forward.6
$region0: #{test_model_forward.6}
  #allocation0 [shape = 'u32[]', space=smem, size = 0x4, offset = 0x4, fixed_abs, tag = 'smem constant byte address 0x4 - core index']
  #allocation1 [shape = 'u32[144,128]{1,0:T(1,128)}', space=vmem, size = 0x12000, scoped, tag = 'internal scratch']
  %s0 = inlined_call_operand.vmem [shape: f32[12,2,6,2,6,2,128], index: 0, kind: input, shape index: {}]
  %s1 = inlined_call_operand.vmem [shape: f32[12,6,6,128], index: 1, kind: output, shape index: {}]
  %s2 = sld [smem:[#allocation0]]
  $region37: #{test_model_forward.6} parent=0
    _
  %s4 = ssub.s32 1, %s2
  %s5 = scalar_select 0, %s4, %s2
  loop: start=0, step=1, limit=14
  $region2: #{test_model_forward.6} parent=0 // loop_pre_header
    _
  $region3: #{test_model_forward.6} parent=0 // loop_header
    %s7 = sphi 0, %s11
    %p8 = scmp.ge.s32.totalorder %s7, 14
    %s17 = sphi 0, %s19
    %s20 = sphi 0, %s17
    %s21 = sphi 0, %s20
    %s37 = sphi 0, %s21
    %s43 = sphi 0, %s45
    %s46 = sphi 0, %s43
    %s47 = sphi 0, %s46
    %s63 = sphi 0, %s47
  $region4: #{test_model_forward.6} parent=0 // loop_header_branch
    %10 = sbr.rel (%p8) target = $region8
  $region5: #{test_model_forward.6} parent=0 // loop_body
    %s12 = ssub.s32 %s7, 1
    %s13 = ssub.s32 %s7, 2
    %s14 = sadd.s32 %s7, 1
    %s15 = ssub.s32 %s7, %s14
    %p16 = scmp.eq.s32.totalorder %s15, 0
    %s18 = sadd.s32 %s17, 1
    %s19 = scalar_select %p16, %s17, %s18
    %p22 = pneg %p16
    %p23 = scmp.eq.s32.totalorder %s7, 11
    %p24 = por %p22, %p23
    %p25 = scmp.ne.s32.totalorder %s17, %s20
    %p26 = scmp.eq.s32.totalorder %s7, 0
    %p27 = por %p25, %p26
    %p28 = scmp.ne.s32.totalorder %s17, %s20
    %p29 = scmp.eq.s32.totalorder %s12, 11
    %p30 = por %p28, %p29
    %p31 = scmp.ne.s32.totalorder %s20, %s21
    %p32 = scmp.eq.s32.totalorder %s12, 0
    %p33 = por %p31, %p32
    %p34 = scmp.ne.s32.totalorder %s20, %s21
    %p35 = scmp.eq.s32.totalorder %s13, 11
    %p36 = por %p34, %p35
    %p38 = scmp.ne.s32.totalorder %s21, %s37
    %p39 = scmp.eq.s32.totalorder %s13, 0
    %p40 = por %p38, %p39
    %s41 = ssub.s32 %s7, %s14
    %p42 = scmp.eq.s32.totalorder %s41, 0
    %s44 = sadd.s32 %s43, 1
    %s45 = scalar_select %p42, %s43, %s44
    %p48 = pneg %p42
    %p49 = scmp.eq.s32.totalorder %s7, 11
    %p50 = por %p48, %p49
    %p51 = scmp.ne.s32.totalorder %s43, %s46
    %p52 = scmp.eq.s32.totalorder %s7, 0
    %p53 = por %p51, %p52
    %p54 = scmp.ne.s32.totalorder %s43, %s46
    %p55 = scmp.eq.s32.totalorder %s12, 11
    %p56 = por %p54, %p55
    %p57 = scmp.ne.s32.totalorder %s46, %s47
    %p58 = scmp.eq.s32.totalorder %s12, 0
    %p59 = por %p57, %p58
    %p60 = scmp.ne.s32.totalorder %s46, %s47
    %p61 = scmp.eq.s32.totalorder %s13, 11
    %p62 = por %p60, %p61
    %p64 = scmp.ne.s32.totalorder %s47, %s63
    %p65 = scmp.eq.s32.totalorder %s13, 0
    %p66 = por %p64, %p65
    %p67 = scmp.le.s32.totalorder 1, %s7
    %p68 = scmp.lt.s32.totalorder %s7, 13
    %p69 = pnand %p67, %p68
    %p70 = pneg %p69
    // Predicated region
    $region9: #{test_model_forward.6} parent=5 // pred_check
      _
    $region10: #{test_model_forward.6} parent=5 // pred_check_branch
      %72 = sbr.rel (%p69) target = $region12
    $region11: #{test_model_forward.6} parent=5 // pred_region
      %s73 = ssub.s32 %s7, 1
    $region12: #{test_model_forward.6} parent=5 // pred_fallthru
      _
    %p74 = scmp.lt.s32.totalorder %s7, 12
    // Predicated region
    $region13: #{test_model_forward.6} parent=5 // pred_check
      %p75 = pneg %p74
    $region14: #{test_model_forward.6} parent=5 // pred_check_branch
      %77 = sbr.rel (%p75) target = $region16
    $region15: #{test_model_forward.6} parent=5 // pred_region
      // Predicated region
      $region17: #{test_model_forward.6} parent=15 // pred_check
        %p78 = pneg %p27
      $region18: #{test_model_forward.6} parent=15 // pred_check_branch
        %80 = sbr.rel (%p78) target = $region20
      $region19: #{test_model_forward.6} parent=15 // pred_region
        %p81 = scmp.lt.s32.totalorder %s7, 11
        %s82 = scalar_select %p81, %s7, 11
        %s83 = smul.addr %s82, 144
        %s84 = smul.addr %s83, 2
        %s85 = scalar_lea.vmem %s0, %s84
      $region20: #{test_model_forward.6} parent=15 // pred_fallthru
        _
    $region16: #{test_model_forward.6} parent=5 // pred_fallthru
      _
    %p86 = scmp.le.s32.totalorder 1, %s7
    %p87 = scmp.lt.s32.totalorder %s7, 13
    %p88 = pnand %p86, %p87
    %p89 = pneg %p88
    // Predicated region
    $region21: #{test_model_forward.6} parent=5 // pred_check
      _
    $region22: #{test_model_forward.6} parent=5 // pred_check_branch
      %91 = sbr.rel (%p88) target = $region24
    $region23: #{test_model_forward.6} parent=5 // pred_region
      %s92 = ssub.s32 %s7, 1
      %p93 = scmp.lt.s32.totalorder %s12, 11
      %s94 = scalar_select %p93, %s12, 11
      %s95 = smul.addr %s94, 144
      %s96 = smul.addr %s95, 2
      %s97 = scalar_lea.vmem %s0, %s96
      %p98 = pneg %p33
      %p99 = pneg %p30
      %p100 = pneg %p59
      %p101 = pneg %p56
      %p102 = scmp.lt.s32.totalorder %s12, 11
      %s103 = scalar_select %p102, %s12, 11
      %s104 = smul.addr %s103, 6
      %s105 = smul.addr %s104, 8
      %s106 = scalar_lea.vmem %s1, %s105
      %p107 = scmp.lt.s32.totalorder %s12, 11
      %s108 = scalar_select %p107, %s12, 11
      %s109 = smul.addr %s108, 144
      %s110 = smul.addr %s109, 2
      %s111 = scalar_lea.vmem %s0, %s110
      %p112 = scmp.lt.s32.totalorder %s12, 11
      %s113 = scalar_select %p112, %s12, 11
      %s114 = smul.addr %s113, 6
      %s115 = smul.addr %s114, 8
      %s116 = scalar_lea.vmem %s1, %s115
      %v117 = vld [vmem:[%s111] sm:$0x3]
      %v118 = vld [vmem:[%s111 + $0x2] sm:$0x3]
      %v119 = vld [vmem:[%s111 + $0x4] sm:$0x3]
      %v120 = vld [vmem:[%s111 + $0x6] sm:$0x3]
      %v121 = vld [vmem:[%s111 + $0x8] sm:$0x3]
      %v122 = vld [vmem:[%s111 + $0xa] sm:$0x3]
      %v123 = vld [vmem:[%s111 + $0xc] sm:$0x3]
      %v124 = vld [vmem:[%s111 + $0xe] sm:$0x3]
      %v125 = vld [vmem:[%s111 + $0x10] sm:$0x3]
      %v126 = vld [vmem:[%s111 + $0x12] sm:$0x3]
      %v127 = vld [vmem:[%s111 + $0x14] sm:$0x3]
      %v128 = vld [vmem:[%s111 + $0x16] sm:$0x3]
      %v129 = vld [vmem:[%s111 + $0x18] sm:$0x3]
      %v130 = vld [vmem:[%s111 + $0x1a] sm:$0x3]
      %v131 = vld [vmem:[%s111 + $0x1c] sm:$0x3]
      %v132 = vld [vmem:[%s111 + $0x1e] sm:$0x3]
      %v133 = vld [vmem:[%s111 + $0x20] sm:$0x3]
      %v134 = vld [vmem:[%s111 + $0x22] sm:$0x3]
      %v135 = vld [vmem:[%s111 + $0x24] sm:$0x3]
      %v136 = vld [vmem:[%s111 + $0x26] sm:$0x3]
      %v137 = vld [vmem:[%s111 + $0x28] sm:$0x3]
      %v138 = vld [vmem:[%s111 + $0x2a] sm:$0x3]
      %v139 = vld [vmem:[%s111 + $0x2c] sm:$0x3]
      %v140 = vld [vmem:[%s111 + $0x2e] sm:$0x3]
      %v141 = vld [vmem:[%s111 + $0x30] sm:$0x3]
      %v142 = vld [vmem:[%s111 + $0x32] sm:$0x3]
      %v143 = vld [vmem:[%s111 + $0x34] sm:$0x3]
      %v144 = vld [vmem:[%s111 + $0x36] sm:$0x3]
      %v145 = vld [vmem:[%s111 + $0x38] sm:$0x3]
      %v146 = vld [vmem:[%s111 + $0x3a] sm:$0x3]
      %v147 = vld [vmem:[%s111 + $0x3c] sm:$0x3]
      %v148 = vld [vmem:[%s111 + $0x3e] sm:$0x3]
      %v149 = vld [vmem:[%s111 + $0x40] sm:$0x3]
      %v150 = vld [vmem:[%s111 + $0x42] sm:$0x3]
      %v151 = vld [vmem:[%s111 + $0x44] sm:$0x3]
      %v152 = vld [vmem:[%s111 + $0x46] sm:$0x3]
      %v153 = vld [vmem:[%s111 + $0x48] sm:$0x3]
      %v154 = vld [vmem:[%s111 + $0x4a] sm:$0x3]
      %v155 = vld [vmem:[%s111 + $0x4c] sm:$0x3]
      %v156 = vld [vmem:[%s111 + $0x4e] sm:$0x3]
      %v157 = vld [vmem:[%s111 + $0x50] sm:$0x3]
      %v158 = vld [vmem:[%s111 + $0x52] sm:$0x3]
      %v159 = vld [vmem:[%s111 + $0x54] sm:$0x3]
      %v160 = vld [vmem:[%s111 + $0x56] sm:$0x3]
      %v161 = vld [vmem:[%s111 + $0x58] sm:$0x3]
      %v162 = vld [vmem:[%s111 + $0x5a] sm:$0x3]
      %v163 = vld [vmem:[%s111 + $0x5c] sm:$0x3]
      %v164 = vld [vmem:[%s111 + $0x5e] sm:$0x3]
      %v165 = vld [vmem:[%s111 + $0x60] sm:$0x3]
      %v166 = vld [vmem:[%s111 + $0x62] sm:$0x3]
      %v167 = vld [vmem:[%s111 + $0x64] sm:$0x3]
      %v168 = vld [vmem:[%s111 + $0x66] sm:$0x3]
      %v169 = vld [vmem:[%s111 + $0x68] sm:$0x3]
      %v170 = vld [vmem:[%s111 + $0x6a] sm:$0x3]
      %v171 = vld [vmem:[%s111 + $0x6c] sm:$0x3]
      %v172 = vld [vmem:[%s111 + $0x6e] sm:$0x3]
      %v173 = vld [vmem:[%s111 + $0x70] sm:$0x3]
      %v174 = vld [vmem:[%s111 + $0x72] sm:$0x3]
      %v175 = vld [vmem:[%s111 + $0x74] sm:$0x3]
      %v176 = vld [vmem:[%s111 + $0x76] sm:$0x3]
      %v177 = vld [vmem:[%s111 + $0x78] sm:$0x3]
      %v178 = vld [vmem:[%s111 + $0x7a] sm:$0x3]
      %v179 = vld [vmem:[%s111 + $0x7c] sm:$0x3]
      %v180 = vld [vmem:[%s111 + $0x7e] sm:$0x3]
      %v181 = vld [vmem:[%s111 + $0x80] sm:$0x3]
      %v182 = vld [vmem:[%s111 + $0x82] sm:$0x3]
      %v183 = vld [vmem:[%s111 + $0x84] sm:$0x3]
      %v184 = vld [vmem:[%s111 + $0x86] sm:$0x3]
      %v185 = vld [vmem:[%s111 + $0x88] sm:$0x3]
      %v186 = vld [vmem:[%s111 + $0x8a] sm:$0x3]
      %v187 = vld [vmem:[%s111 + $0x8c] sm:$0x3]
      %v188 = vld [vmem:[%s111 + $0x8e] sm:$0x3]
      %v189 = vld [vmem:[%s111 + $0x90] sm:$0x3]
      %v190 = vld [vmem:[%s111 + $0x92] sm:$0x3]
      %v191 = vld [vmem:[%s111 + $0x94] sm:$0x3]
      %v192 = vld [vmem:[%s111 + $0x96] sm:$0x3]
      %v193 = vld [vmem:[%s111 + $0x98] sm:$0x3]
      %v194 = vld [vmem:[%s111 + $0x9a] sm:$0x3]
      %v195 = vld [vmem:[%s111 + $0x9c] sm:$0x3]
      %v196 = vld [vmem:[%s111 + $0x9e] sm:$0x3]
      %v197 = vld [vmem:[%s111 + $0xa0] sm:$0x3]
      %v198 = vld [vmem:[%s111 + $0xa2] sm:$0x3]
      %v199 = vld [vmem:[%s111 + $0xa4] sm:$0x3]
      %v200 = vld [vmem:[%s111 + $0xa6] sm:$0x3]
      %v201 = vld [vmem:[%s111 + $0xa8] sm:$0x3]
      %v202 = vld [vmem:[%s111 + $0xaa] sm:$0x3]
      %v203 = vld [vmem:[%s111 + $0xac] sm:$0x3]
      %v204 = vld [vmem:[%s111 + $0xae] sm:$0x3]
      %v205 = vld [vmem:[%s111 + $0xb0] sm:$0x3]
      %v206 = vld [vmem:[%s111 + $0xb2] sm:$0x3]
      %v207 = vld [vmem:[%s111 + $0xb4] sm:$0x3]
      %v208 = vld [vmem:[%s111 + $0xb6] sm:$0x3]
      %v209 = vld [vmem:[%s111 + $0xb8] sm:$0x3]
      %v210 = vld [vmem:[%s111 + $0xba] sm:$0x3]
      %v211 = vld [vmem:[%s111 + $0xbc] sm:$0x3]
      %v212 = vld [vmem:[%s111 + $0xbe] sm:$0x3]
      %v213 = vld [vmem:[%s111 + $0xc0] sm:$0x3]
      %v214 = vld [vmem:[%s111 + $0xc2] sm:$0x3]
      %v215 = vld [vmem:[%s111 + $0xc4] sm:$0x3]
      %v216 = vld [vmem:[%s111 + $0xc6] sm:$0x3]
      %v217 = vld [vmem:[%s111 + $0xc8] sm:$0x3]
      %v218 = vld [vmem:[%s111 + $0xca] sm:$0x3]
      %v219 = vld [vmem:[%s111 + $0xcc] sm:$0x3]
      %v220 = vld [vmem:[%s111 + $0xce] sm:$0x3]
      %v221 = vld [vmem:[%s111 + $0xd0] sm:$0x3]
      %v222 = vld [vmem:[%s111 + $0xd2] sm:$0x3]
      %v223 = vld [vmem:[%s111 + $0xd4] sm:$0x3]
      %v224 = vld [vmem:[%s111 + $0xd6] sm:$0x3]
      %v225 = vld [vmem:[%s111 + $0xd8] sm:$0x3]
      %v226 = vld [vmem:[%s111 + $0xda] sm:$0x3]
      %v227 = vld [vmem:[%s111 + $0xdc] sm:$0x3]
      %v228 = vld [vmem:[%s111 + $0xde] sm:$0x3]
      %v229 = vld [vmem:[%s111 + $0xe0] sm:$0x3]
      %v230 = vld [vmem:[%s111 + $0xe2] sm:$0x3]
      %v231 = vld [vmem:[%s111 + $0xe4] sm:$0x3]
      %v232 = vld [vmem:[%s111 + $0xe6] sm:$0x3]
      %v233 = vld [vmem:[%s111 + $0xe8] sm:$0x3]
      %v234 = vld [vmem:[%s111 + $0xea] sm:$0x3]
      %v235 = vld [vmem:[%s111 + $0xec] sm:$0x3]
      %v236 = vld [vmem:[%s111 + $0xee] sm:$0x3]
      %v237 = vld [vmem:[%s111 + $0xf0] sm:$0x3]
      %v238 = vld [vmem:[%s111 + $0xf2] sm:$0x3]
      %v239 = vld [vmem:[%s111 + $0xf4] sm:$0x3]
      %v240 = vld [vmem:[%s111 + $0xf6] sm:$0x3]
      %v241 = vld [vmem:[%s111 + $0xf8] sm:$0x3]
      %v242 = vld [vmem:[%s111 + $0xfa] sm:$0x3]
      %v243 = vld [vmem:[%s111 + $0xfc] sm:$0x3]
      %v244 = vld [vmem:[%s111 + $0xfe] sm:$0x3]
      %v245 = vld [vmem:[%s111 + $0x100] sm:$0x3]
      %v246 = vld [vmem:[%s111 + $0x102] sm:$0x3]
      %v247 = vld [vmem:[%s111 + $0x104] sm:$0x3]
      %v248 = vld [vmem:[%s111 + $0x106] sm:$0x3]
      %v249 = vld [vmem:[%s111 + $0x108] sm:$0x3]
      %v250 = vld [vmem:[%s111 + $0x10a] sm:$0x3]
      %v251 = vld [vmem:[%s111 + $0x10c] sm:$0x3]
      %v252 = vld [vmem:[%s111 + $0x10e] sm:$0x3]
      %v253 = vld [vmem:[%s111 + $0x110] sm:$0x3]
      %v254 = vld [vmem:[%s111 + $0x112] sm:$0x3]
      %v255 = vld [vmem:[%s111 + $0x114] sm:$0x3]
      %v256 = vld [vmem:[%s111 + $0x116] sm:$0x3]
      %v257 = vld [vmem:[%s111 + $0x118] sm:$0x3]
      %v258 = vld [vmem:[%s111 + $0x11a] sm:$0x3]
      %v259 = vld [vmem:[%s111 + $0x11c] sm:$0x3]
      %v260 = vld [vmem:[%s111 + $0x11e] sm:$0x3]
      %vm261 = vcmask 1041408
      %v262 = vsel %vm261, %v117, -inf
      %v263 = vsel %vm261, %v189, -inf
      %v264 = vmax.f32 %v262, %v263
      %v265 = vsel %vm261, %v118, -inf
      %v266 = vsel %vm261, %v190, -inf
      %v267 = vmax.f32 %v265, %v266
      %v268 = vsel %vm261, %v119, -inf
      %v269 = vsel %vm261, %v191, -inf
      %v270 = vmax.f32 %v268, %v269
      %v271 = vsel %vm261, %v120, -inf
      %v272 = vsel %vm261, %v192, -inf
      %v273 = vmax.f32 %v271, %v272
      %v274 = vsel %vm261, %v121, -inf
      %v275 = vsel %vm261, %v193, -inf
      %v276 = vmax.f32 %v274, %v275
      %v277 = vsel %vm261, %v122, -inf
      %v278 = vsel %vm261, %v194, -inf
      %v279 = vmax.f32 %v277, %v278
      %v280 = vsel %vm261, %v123, -inf
      %v281 = vsel %vm261, %v195, -inf
      %v282 = vmax.f32 %v280, %v281
      %v283 = vsel %vm261, %v124, -inf
      %v284 = vsel %vm261, %v196, -inf
      %v285 = vmax.f32 %v283, %v284
      %v286 = vsel %vm261, %v125, -inf
      %v287 = vsel %vm261, %v197, -inf
      %v288 = vmax.f32 %v286, %v287
      %v289 = vsel %vm261, %v126, -inf
      %v290 = vsel %vm261, %v198, -inf
      %v291 = vmax.f32 %v289, %v290
      %v292 = vsel %vm261, %v127, -inf
      %v293 = vsel %vm261, %v199, -inf
      %v294 = vmax.f32 %v292, %v293
      %v295 = vsel %vm261, %v128, -inf
      %v296 = vsel %vm261, %v200, -inf
      %v297 = vmax.f32 %v295, %v296
      %v298 = vsel %vm261, %v129, -inf
      %v299 = vsel %vm261, %v201, -inf
      %v300 = vmax.f32 %v298, %v299
      %v301 = vsel %vm261, %v130, -inf
      %v302 = vsel %vm261, %v202, -inf
      %v303 = vmax.f32 %v301, %v302
      %v304 = vsel %vm261, %v131, -inf
      %v305 = vsel %vm261, %v203, -inf
      %v306 = vmax.f32 %v304, %v305
      %v307 = vsel %vm261, %v132, -inf
      %v308 = vsel %vm261, %v204, -inf
      %v309 = vmax.f32 %v307, %v308
      %v310 = vsel %vm261, %v133, -inf
      %v311 = vsel %vm261, %v205, -inf
      %v312 = vmax.f32 %v310, %v311
      %v313 = vsel %vm261, %v134, -inf
      %v314 = vsel %vm261, %v206, -inf
      %v315 = vmax.f32 %v313, %v314
      %v316 = vsel %vm261, %v135, -inf
      %v317 = vsel %vm261, %v207, -inf
      %v318 = vmax.f32 %v316, %v317
      %v319 = vsel %vm261, %v136, -inf
      %v320 = vsel %vm261, %v208, -inf
      %v321 = vmax.f32 %v319, %v320
      %v322 = vsel %vm261, %v137, -inf
      %v323 = vsel %vm261, %v209, -inf
      %v324 = vmax.f32 %v322, %v323
      %v325 = vsel %vm261, %v138, -inf
      %v326 = vsel %vm261, %v210, -inf
      %v327 = vmax.f32 %v325, %v326
      %v328 = vsel %vm261, %v139, -inf
      %v329 = vsel %vm261, %v211, -inf
      %v330 = vmax.f32 %v328, %v329
      %v331 = vsel %vm261, %v140, -inf
      %v332 = vsel %vm261, %v212, -inf
      %v333 = vmax.f32 %v331, %v332
      %v334 = vsel %vm261, %v141, -inf
      %v335 = vsel %vm261, %v213, -inf
      %v336 = vmax.f32 %v334, %v335
      %v337 = vsel %vm261, %v142, -inf
      %v338 = vsel %vm261, %v214, -inf
      %v339 = vmax.f32 %v337, %v338
      %v340 = vsel %vm261, %v143, -inf
      %v341 = vsel %vm261, %v215, -inf
      %v342 = vmax.f32 %v340, %v341
      %v343 = vsel %vm261, %v144, -inf
      %v344 = vsel %vm261, %v216, -inf
      %v345 = vmax.f32 %v343, %v344
      %v346 = vsel %vm261, %v145, -inf
      %v347 = vsel %vm261, %v217, -inf
      %v348 = vmax.f32 %v346, %v347
      %v349 = vsel %vm261, %v146, -inf
      %v350 = vsel %vm261, %v218, -inf
      %v351 = vmax.f32 %v349, %v350
      %v352 = vsel %vm261, %v147, -inf
      %v353 = vsel %vm261, %v219, -inf
      %v354 = vmax.f32 %v352, %v353
      %v355 = vsel %vm261, %v148, -inf
      %v356 = vsel %vm261, %v220, -inf
      %v357 = vmax.f32 %v355, %v356
      %v358 = vsel %vm261, %v149, -inf
      %v359 = vsel %vm261, %v221, -inf
      %v360 = vmax.f32 %v358, %v359
      %v361 = vsel %vm261, %v150, -inf
      %v362 = vsel %vm261, %v222, -inf
      %v363 = vmax.f32 %v361, %v362
      %v364 = vsel %vm261, %v151, -inf
      %v365 = vsel %vm261, %v223, -inf
      %v366 = vmax.f32 %v364, %v365
      %v367 = vsel %vm261, %v152, -inf
      %v368 = vsel %vm261, %v224, -inf
      %v369 = vmax.f32 %v367, %v368
      %v370 = vsel %vm261, %v153, -inf
      %v371 = vsel %vm261, %v225, -inf
      %v372 = vmax.f32 %v370, %v371
      %v373 = vsel %vm261, %v154, -inf
      %v374 = vsel %vm261, %v226, -inf
      %v375 = vmax.f32 %v373, %v374
      %v376 = vsel %vm261, %v155, -inf
      %v377 = vsel %vm261, %v227, -inf
      %v378 = vmax.f32 %v376, %v377
      %v379 = vsel %vm261, %v156, -inf
      %v380 = vsel %vm261, %v228, -inf
      %v381 = vmax.f32 %v379, %v380
      %v382 = vsel %vm261, %v157, -inf
      %v383 = vsel %vm261, %v229, -inf
      %v384 = vmax.f32 %v382, %v383
      %v385 = vsel %vm261, %v158, -inf
      %v386 = vsel %vm261, %v230, -inf
      %v387 = vmax.f32 %v385, %v386
      %v388 = vsel %vm261, %v159, -inf
      %v389 = vsel %vm261, %v231, -inf
      %v390 = vmax.f32 %v388, %v389
      %v391 = vsel %vm261, %v160, -inf
      %v392 = vsel %vm261, %v232, -inf
      %v393 = vmax.f32 %v391, %v392
      %v394 = vsel %vm261, %v161, -inf
      %v395 = vsel %vm261, %v233, -inf
      %v396 = vmax.f32 %v394, %v395
      %v397 = vsel %vm261, %v162, -inf
      %v398 = vsel %vm261, %v234, -inf
      %v399 = vmax.f32 %v397, %v398
      %v400 = vsel %vm261, %v163, -inf
      %v401 = vsel %vm261, %v235, -inf
      %v402 = vmax.f32 %v400, %v401
      %v403 = vsel %vm261, %v164, -inf
      %v404 = vsel %vm261, %v236, -inf
      %v405 = vmax.f32 %v403, %v404
      %v406 = vsel %vm261, %v165, -inf
      %v407 = vsel %vm261, %v237, -inf
      %v408 = vmax.f32 %v406, %v407
      %v409 = vsel %vm261, %v166, -inf
      %v410 = vsel %vm261, %v238, -inf
      %v411 = vmax.f32 %v409, %v410
      %v412 = vsel %vm261, %v167, -inf
      %v413 = vsel %vm261, %v239, -inf
      %v414 = vmax.f32 %v412, %v413
      %v415 = vsel %vm261, %v168, -inf
      %v416 = vsel %vm261, %v240, -inf
      %v417 = vmax.f32 %v415, %v416
      %v418 = vsel %vm261, %v169, -inf
      %v419 = vsel %vm261, %v241, -inf
      %v420 = vmax.f32 %v418, %v419
      %v421 = vsel %vm261, %v170, -inf
      %v422 = vsel %vm261, %v242, -inf
      %v423 = vmax.f32 %v421, %v422
      %v424 = vsel %vm261, %v171, -inf
      %v425 = vsel %vm261, %v243, -inf
      %v426 = vmax.f32 %v424, %v425
      %v427 = vsel %vm261, %v172, -inf
      %v428 = vsel %vm261, %v244, -inf
      %v429 = vmax.f32 %v427, %v428
      %v430 = vsel %vm261, %v173, -inf
      %v431 = vsel %vm261, %v245, -inf
      %v432 = vmax.f32 %v430, %v431
      %v433 = vsel %vm261, %v174, -inf
      %v434 = vsel %vm261, %v246, -inf
      %v435 = vmax.f32 %v433, %v434
      %v436 = vsel %vm261, %v175, -inf
      %v437 = vsel %vm261, %v247, -inf
      %v438 = vmax.f32 %v436, %v437
      %v439 = vsel %vm261, %v176, -inf
      %v440 = vsel %vm261, %v248, -inf
      %v441 = vmax.f32 %v439, %v440
      %v442 = vsel %vm261, %v177, -inf
      %v443 = vsel %vm261, %v249, -inf
      %v444 = vmax.f32 %v442, %v443
      %v445 = vsel %vm261, %v178, -inf
      %v446 = vsel %vm261, %v250, -inf
      %v447 = vmax.f32 %v445, %v446
      %v448 = vsel %vm261, %v179, -inf
      %v449 = vsel %vm261, %v251, -inf
      %v450 = vmax.f32 %v448, %v449
      %v451 = vsel %vm261, %v180, -inf
      %v452 = vsel %vm261, %v252, -inf
      %v453 = vmax.f32 %v451, %v452
      %v454 = vsel %vm261, %v181, -inf
      %v455 = vsel %vm261, %v253, -inf
      %v456 = vmax.f32 %v454, %v455
      %v457 = vsel %vm261, %v182, -inf
      %v458 = vsel %vm261, %v254, -inf
      %v459 = vmax.f32 %v457, %v458
      %v460 = vsel %vm261, %v183, -inf
      %v461 = vsel %vm261, %v255, -inf
      %v462 = vmax.f32 %v460, %v461
      %v463 = vsel %vm261, %v184, -inf
      %v464 = vsel %vm261, %v256, -inf
      %v465 = vmax.f32 %v463, %v464
      %v466 = vsel %vm261, %v185, -inf
      %v467 = vsel %vm261, %v257, -inf
      %v468 = vmax.f32 %v466, %v467
      %v469 = vsel %vm261, %v186, -inf
      %v470 = vsel %vm261, %v258, -inf
      %v471 = vmax.f32 %v469, %v470
      %v472 = vsel %vm261, %v187, -inf
      %v473 = vsel %vm261, %v259, -inf
      %v474 = vmax.f32 %v472, %v473
      %v475 = vsel %vm261, %v188, -inf
      %v476 = vsel %vm261, %v260, -inf
      %v477 = vmax.f32 %v475, %v476
      %v478 = vsel %vm261, %v264, -inf
      %v479 = vsel %vm261, %v282, -inf
      %v480 = vmax.f32 %v478, %v479
      %v481 = vsel %vm261, %v267, -inf
      %v482 = vsel %vm261, %v285, -inf
      %v483 = vmax.f32 %v481, %v482
      %v484 = vsel %vm261, %v270, -inf
      %v485 = vsel %vm261, %v288, -inf
      %v486 = vmax.f32 %v484, %v485
      %v487 = vsel %vm261, %v273, -inf
      %v488 = vsel %vm261, %v291, -inf
      %v489 = vmax.f32 %v487, %v488
      %v490 = vsel %vm261, %v276, -inf
      %v491 = vsel %vm261, %v294, -inf
      %v492 = vmax.f32 %v490, %v491
      %v493 = vsel %vm261, %v279, -inf
      %v494 = vsel %vm261, %v297, -inf
      %v495 = vmax.f32 %v493, %v494
      %v496 = vsel %vm261, %v300, -inf
      %v497 = vsel %vm261, %v318, -inf
      %v498 = vmax.f32 %v496, %v497
      %v499 = vsel %vm261, %v303, -inf
      %v500 = vsel %vm261, %v321, -inf
      %v501 = vmax.f32 %v499, %v500
      %v502 = vsel %vm261, %v306, -inf
      %v503 = vsel %vm261, %v324, -inf
      %v504 = vmax.f32 %v502, %v503
      %v505 = vsel %vm261, %v309, -inf
      %v506 = vsel %vm261, %v327, -inf
      %v507 = vmax.f32 %v505, %v506
      %v508 = vsel %vm261, %v312, -inf
      %v509 = vsel %vm261, %v330, -inf
      %v510 = vmax.f32 %v508, %v509
      %v511 = vsel %vm261, %v315, -inf
      %v512 = vsel %vm261, %v333, -inf
      %v513 = vmax.f32 %v511, %v512
      %v514 = vsel %vm261, %v336, -inf
      %v515 = vsel %vm261, %v354, -inf
      %v516 = vmax.f32 %v514, %v515
      %v517 = vsel %vm261, %v339, -inf
      %v518 = vsel %vm261, %v357, -inf
      %v519 = vmax.f32 %v517, %v518
      %v520 = vsel %vm261, %v342, -inf
      %v521 = vsel %vm261, %v360, -inf
      %v522 = vmax.f32 %v520, %v521
      %v523 = vsel %vm261, %v345, -inf
      %v524 = vsel %vm261, %v363, -inf
      %v525 = vmax.f32 %v523, %v524
      %v526 = vsel %vm261, %v348, -inf
      %v527 = vsel %vm261, %v366, -inf
      %v528 = vmax.f32 %v526, %v527
      %v529 = vsel %vm261, %v351, -inf
      %v530 = vsel %vm261, %v369, -inf
      %v531 = vmax.f32 %v529, %v530
      %v532 = vsel %vm261, %v372, -inf
      %v533 = vsel %vm261, %v390, -inf
      %v534 = vmax.f32 %v532, %v533
      %v535 = vsel %vm261, %v375, -inf
      %v536 = vsel %vm261, %v393, -inf
      %v537 = vmax.f32 %v535, %v536
      %v538 = vsel %vm261, %v378, -inf
      %v539 = vsel %vm261, %v396, -inf
      %v540 = vmax.f32 %v538, %v539
      %v541 = vsel %vm261, %v381, -inf
      %v542 = vsel %vm261, %v399, -inf
      %v543 = vmax.f32 %v541, %v542
      %v544 = vsel %vm261, %v384, -inf
      %v545 = vsel %vm261, %v402, -inf
      %v546 = vmax.f32 %v544, %v545
      %v547 = vsel %vm261, %v387, -inf
      %v548 = vsel %vm261, %v405, -inf
      %v549 = vmax.f32 %v547, %v548
      %v550 = vsel %vm261, %v408, -inf
      %v551 = vsel %vm261, %v426, -inf
      %v552 = vmax.f32 %v550, %v551
      %v553 = vsel %vm261, %v411, -inf
      %v554 = vsel %vm261, %v429, -inf
      %v555 = vmax.f32 %v553, %v554
      %v556 = vsel %vm261, %v414, -inf
      %v557 = vsel %vm261, %v432, -inf
      %v558 = vmax.f32 %v556, %v557
      %v559 = vsel %vm261, %v417, -inf
      %v560 = vsel %vm261, %v435, -inf
      %v561 = vmax.f32 %v559, %v560
      %v562 = vsel %vm261, %v420, -inf
      %v563 = vsel %vm261, %v438, -inf
      %v564 = vmax.f32 %v562, %v563
      %v565 = vsel %vm261, %v423, -inf
      %v566 = vsel %vm261, %v441, -inf
      %v567 = vmax.f32 %v565, %v566
      %v568 = vsel %vm261, %v444, -inf
      %v569 = vsel %vm261, %v462, -inf
      %v570 = vmax.f32 %v568, %v569
      %v571 = vsel %vm261, %v447, -inf
      %v572 = vsel %vm261, %v465, -inf
      %v573 = vmax.f32 %v571, %v572
      %v574 = vsel %vm261, %v450, -inf
      %v575 = vsel %vm261, %v468, -inf
      %v576 = vmax.f32 %v574, %v575
      %v577 = vsel %vm261, %v453, -inf
      %v578 = vsel %vm261, %v471, -inf
      %v579 = vmax.f32 %v577, %v578
      %v580 = vsel %vm261, %v456, -inf
      %v581 = vsel %vm261, %v474, -inf
      %v582 = vmax.f32 %v580, %v581
      %v583 = vsel %vm261, %v459, -inf
      %v584 = vsel %vm261, %v477, -inf
      %v585 = vmax.f32 %v583, %v584
      %v586 = vsel %vm261, %v480, -inf
      %v587 = vrot.slane %v586, 4
      %v588 = vmax.f32 %v586, %v587
      %v589 = vrot.slane %v588, 2
      %v590 = vmax.f32 %v588, %v589
      %v591 = vrot.slane %v590, 1
      %v592 = vmax.f32 %v590, %v591
      %v593 = vsel %vm261, %v483, -inf
      %v594 = vrot.slane %v593, 4
      %v595 = vmax.f32 %v593, %v594
      %v596 = vrot.slane %v595, 2
      %v597 = vmax.f32 %v595, %v596
      %v598 = vrot.slane %v597, 1
      %v599 = vmax.f32 %v597, %v598
      %v600 = vsel %vm261, %v486, -inf
      %v601 = vrot.slane %v600, 4
      %v602 = vmax.f32 %v600, %v601
      %v603 = vrot.slane %v602, 2
      %v604 = vmax.f32 %v602, %v603
      %v605 = vrot.slane %v604, 1
      %v606 = vmax.f32 %v604, %v605
      %v607 = vsel %vm261, %v489, -inf
      %v608 = vrot.slane %v607, 4
      %v609 = vmax.f32 %v607, %v608
      %v610 = vrot.slane %v609, 2
      %v611 = vmax.f32 %v609, %v610
      %v612 = vrot.slane %v611, 1
      %v613 = vmax.f32 %v611, %v612
      %v614 = vsel %vm261, %v492, -inf
      %v615 = vrot.slane %v614, 4
      %v616 = vmax.f32 %v614, %v615
      %v617 = vrot.slane %v616, 2
      %v618 = vmax.f32 %v616, %v617
      %v619 = vrot.slane %v618, 1
      %v620 = vmax.f32 %v618, %v619
      %v621 = vsel %vm261, %v495, -inf
      %v622 = vrot.slane %v621, 4
      %v623 = vmax.f32 %v621, %v622
      %v624 = vrot.slane %v623, 2
      %v625 = vmax.f32 %v623, %v624
      %v626 = vrot.slane %v625, 1
      %v627 = vmax.f32 %v625, %v626
      %v628 = vsel %vm261, %v498, -inf
      %v629 = vrot.slane %v628, 4
      %v630 = vmax.f32 %v628, %v629
      %v631 = vrot.slane %v630, 2
      %v632 = vmax.f32 %v630, %v631
      %v633 = vrot.slane %v632, 1
      %v634 = vmax.f32 %v632, %v633
      %v635 = vsel %vm261, %v501, -inf
      %v636 = vrot.slane %v635, 4
      %v637 = vmax.f32 %v635, %v636
      %v638 = vrot.slane %v637, 2
      %v639 = vmax.f32 %v637, %v638
      %v640 = vrot.slane %v639, 1
      %v641 = vmax.f32 %v639, %v640
      %v642 = vsel %vm261, %v504, -inf
      %v643 = vrot.slane %v642, 4
      %v644 = vmax.f32 %v642, %v643
      %v645 = vrot.slane %v644, 2
      %v646 = vmax.f32 %v644, %v645
      %v647 = vrot.slane %v646, 1
      %v648 = vmax.f32 %v646, %v647
      %v649 = vsel %vm261, %v507, -inf
      %v650 = vrot.slane %v649, 4
      %v651 = vmax.f32 %v649, %v650
      %v652 = vrot.slane %v651, 2
      %v653 = vmax.f32 %v651, %v652
      %v654 = vrot.slane %v653, 1
      %v655 = vmax.f32 %v653, %v654
      %v656 = vsel %vm261, %v510, -inf
      %v657 = vrot.slane %v656, 4
      %v658 = vmax.f32 %v656, %v657
      %v659 = vrot.slane %v658, 2
      %v660 = vmax.f32 %v658, %v659
      %v661 = vrot.slane %v660, 1
      %v662 = vmax.f32 %v660, %v661
      %v663 = vsel %vm261, %v513, -inf
      %v664 = vrot.slane %v663, 4
      %v665 = vmax.f32 %v663, %v664
      %v666 = vrot.slane %v665, 2
      %v667 = vmax.f32 %v665, %v666
      %v668 = vrot.slane %v667, 1
      %v669 = vmax.f32 %v667, %v668
      %v670 = vsel %vm261, %v516, -inf
      %v671 = vrot.slane %v670, 4
      %v672 = vmax.f32 %v670, %v671
      %v673 = vrot.slane %v672, 2
      %v674 = vmax.f32 %v672, %v673
      %v675 = vrot.slane %v674, 1
      %v676 = vmax.f32 %v674, %v675
      %v677 = vsel %vm261, %v519, -inf
      %v678 = vrot.slane %v677, 4
      %v679 = vmax.f32 %v677, %v678
      %v680 = vrot.slane %v679, 2
      %v681 = vmax.f32 %v679, %v680
      %v682 = vrot.slane %v681, 1
      %v683 = vmax.f32 %v681, %v682
      %v684 = vsel %vm261, %v522, -inf
      %v685 = vrot.slane %v684, 4
      %v686 = vmax.f32 %v684, %v685
      %v687 = vrot.slane %v686, 2
      %v688 = vmax.f32 %v686, %v687
      %v689 = vrot.slane %v688, 1
      %v690 = vmax.f32 %v688, %v689
      %v691 = vsel %vm261, %v525, -inf
      %v692 = vrot.slane %v691, 4
      %v693 = vmax.f32 %v691, %v692
      %v694 = vrot.slane %v693, 2
      %v695 = vmax.f32 %v693, %v694
      %v696 = vrot.slane %v695, 1
      %v697 = vmax.f32 %v695, %v696
      %v698 = vsel %vm261, %v528, -inf
      %v699 = vrot.slane %v698, 4
      %v700 = vmax.f32 %v698, %v699
      %v701 = vrot.slane %v700, 2
      %v702 = vmax.f32 %v700, %v701
      %v703 = vrot.slane %v702, 1
      %v704 = vmax.f32 %v702, %v703
      %v705 = vsel %vm261, %v531, -inf
      %v706 = vrot.slane %v705, 4
      %v707 = vmax.f32 %v705, %v706
      %v708 = vrot.slane %v707, 2
      %v709 = vmax.f32 %v707, %v708
      %v710 = vrot.slane %v709, 1
      %v711 = vmax.f32 %v709, %v710
      %v712 = vsel %vm261, %v534, -inf
      %v713 = vrot.slane %v712, 4
      %v714 = vmax.f32 %v712, %v713
      %v715 = vrot.slane %v714, 2
      %v716 = vmax.f32 %v714, %v715
      %v717 = vrot.slane %v716, 1
      %v718 = vmax.f32 %v716, %v717
      %v719 = vsel %vm261, %v537, -inf
      %v720 = vrot.slane %v719, 4
      %v721 = vmax.f32 %v719, %v720
      %v722 = vrot.slane %v721, 2
      %v723 = vmax.f32 %v721, %v722
      %v724 = vrot.slane %v723, 1
      %v725 = vmax.f32 %v723, %v724
      %v726 = vsel %vm261, %v540, -inf
      %v727 = vrot.slane %v726, 4
      %v728 = vmax.f32 %v726, %v727
      %v729 = vrot.slane %v728, 2
      %v730 = vmax.f32 %v728, %v729
      %v731 = vrot.slane %v730, 1
      %v732 = vmax.f32 %v730, %v731
      %v733 = vsel %vm261, %v543, -inf
      %v734 = vrot.slane %v733, 4
      %v735 = vmax.f32 %v733, %v734
      %v736 = vrot.slane %v735, 2
      %v737 = vmax.f32 %v735, %v736
      %v738 = vrot.slane %v737, 1
      %v739 = vmax.f32 %v737, %v738
      %v740 = vsel %vm261, %v546, -inf
      %v741 = vrot.slane %v740, 4
      %v742 = vmax.f32 %v740, %v741
      %v743 = vrot.slane %v742, 2
      %v744 = vmax.f32 %v742, %v743
      %v745 = vrot.slane %v744, 1
      %v746 = vmax.f32 %v744, %v745
      %v747 = vsel %vm261, %v549, -inf
      %v748 = vrot.slane %v747, 4
      %v749 = vmax.f32 %v747, %v748
      %v750 = vrot.slane %v749, 2
      %v751 = vmax.f32 %v749, %v750
      %v752 = vrot.slane %v751, 1
      %v753 = vmax.f32 %v751, %v752
      %v754 = vsel %vm261, %v552, -inf
      %v755 = vrot.slane %v754, 4
      %v756 = vmax.f32 %v754, %v755
      %v757 = vrot.slane %v756, 2
      %v758 = vmax.f32 %v756, %v757
      %v759 = vrot.slane %v758, 1
      %v760 = vmax.f32 %v758, %v759
      %v761 = vsel %vm261, %v555, -inf
      %v762 = vrot.slane %v761, 4
      %v763 = vmax.f32 %v761, %v762
      %v764 = vrot.slane %v763, 2
      %v765 = vmax.f32 %v763, %v764
      %v766 = vrot.slane %v765, 1
      %v767 = vmax.f32 %v765, %v766
      %v768 = vsel %vm261, %v558, -inf
      %v769 = vrot.slane %v768, 4
      %v770 = vmax.f32 %v768, %v769
      %v771 = vrot.slane %v770, 2
      %v772 = vmax.f32 %v770, %v771
      %v773 = vrot.slane %v772, 1
      %v774 = vmax.f32 %v772, %v773
      %v775 = vsel %vm261, %v561, -inf
      %v776 = vrot.slane %v775, 4
      %v777 = vmax.f32 %v775, %v776
      %v778 = vrot.slane %v777, 2
      %v779 = vmax.f32 %v777, %v778
      %v780 = vrot.slane %v779, 1
      %v781 = vmax.f32 %v779, %v780
      %v782 = vsel %vm261, %v564, -inf
      %v783 = vrot.slane %v782, 4
      %v784 = vmax.f32 %v782, %v783
      %v785 = vrot.slane %v784, 2
      %v786 = vmax.f32 %v784, %v785
      %v787 = vrot.slane %v786, 1
      %v788 = vmax.f32 %v786, %v787
      %v789 = vsel %vm261, %v567, -inf
      %v790 = vrot.slane %v789, 4
      %v791 = vmax.f32 %v789, %v790
      %v792 = vrot.slane %v791, 2
      %v793 = vmax.f32 %v791, %v792
      %v794 = vrot.slane %v793, 1
      %v795 = vmax.f32 %v793, %v794
      %v796 = vsel %vm261, %v570, -inf
      %v797 = vrot.slane %v796, 4
      %v798 = vmax.f32 %v796, %v797
      %v799 = vrot.slane %v798, 2
      %v800 = vmax.f32 %v798, %v799
      %v801 = vrot.slane %v800, 1
      %v802 = vmax.f32 %v800, %v801
      %v803 = vsel %vm261, %v573, -inf
      %v804 = vrot.slane %v803, 4
      %v805 = vmax.f32 %v803, %v804
      %v806 = vrot.slane %v805, 2
      %v807 = vmax.f32 %v805, %v806
      %v808 = vrot.slane %v807, 1
      %v809 = vmax.f32 %v807, %v808
      %v810 = vsel %vm261, %v576, -inf
      %v811 = vrot.slane %v810, 4
      %v812 = vmax.f32 %v810, %v811
      %v813 = vrot.slane %v812, 2
      %v814 = vmax.f32 %v812, %v813
      %v815 = vrot.slane %v814, 1
      %v816 = vmax.f32 %v814, %v815
      %v817 = vsel %vm261, %v579, -inf
      %v818 = vrot.slane %v817, 4
      %v819 = vmax.f32 %v817, %v818
      %v820 = vrot.slane %v819, 2
      %v821 = vmax.f32 %v819, %v820
      %v822 = vrot.slane %v821, 1
      %v823 = vmax.f32 %v821, %v822
      %v824 = vsel %vm261, %v582, -inf
      %v825 = vrot.slane %v824, 4
      %v826 = vmax.f32 %v824, %v825
      %v827 = vrot.slane %v826, 2
      %v828 = vmax.f32 %v826, %v827
      %v829 = vrot.slane %v828, 1
      %v830 = vmax.f32 %v828, %v829
      %v831 = vsel %vm261, %v585, -inf
      %v832 = vrot.slane %v831, 4
      %v833 = vmax.f32 %v831, %v832
      %v834 = vrot.slane %v833, 2
      %v835 = vmax.f32 %v833, %v834
      %v836 = vrot.slane %v835, 1
      %v837 = vmax.f32 %v835, %v836
      %vm874 = vcmask 1041409
      %v875 = vsel %vm874, %v599, %v592
      %vm876 = vcmask 1042434
      %v877 = vsel %vm876, %v606, %v875
      %vm878 = vcmask 1043459
      %v879 = vsel %vm878, %v613, %v877
      %vm880 = vcmask 1044484
      %v881 = vsel %vm880, %v620, %v879
      %vm882 = vcmask 1045509
      %v883 = vsel %vm882, %v627, %v881
      %v884 = vsel %vm874, %v641, %v634
      %v885 = vsel %vm876, %v648, %v884
      %v886 = vsel %vm878, %v655, %v885
      %v887 = vsel %vm880, %v662, %v886
      %v888 = vsel %vm882, %v669, %v887
      %v889 = vsel %vm874, %v683, %v676
      %v890 = vsel %vm876, %v690, %v889
      %v891 = vsel %vm878, %v697, %v890
      %v892 = vsel %vm880, %v704, %v891
      %v893 = vsel %vm882, %v711, %v892
      %v894 = vsel %vm874, %v725, %v718
      %v895 = vsel %vm876, %v732, %v894
      %v896 = vsel %vm878, %v739, %v895
      %v897 = vsel %vm880, %v746, %v896
      %v898 = vsel %vm882, %v753, %v897
      %v899 = vsel %vm874, %v767, %v760
      %v900 = vsel %vm876, %v774, %v899
      %v901 = vsel %vm878, %v781, %v900
      %v902 = vsel %vm880, %v788, %v901
      %v903 = vsel %vm882, %v795, %v902
      %v904 = vsel %vm874, %v809, %v802
      %v905 = vsel %vm876, %v816, %v904
      %v906 = vsel %vm878, %v823, %v905
      %v907 = vsel %vm880, %v830, %v906
      %v908 = vsel %vm882, %v837, %v907
      %915 = vst [vmem:[%s116] sm:$0x3f] %v883
      %916 = vst [vmem:[%s116 + $0x8] sm:$0x3f] %v888
      %917 = vst [vmem:[%s116 + $0x10] sm:$0x3f] %v893
      %918 = vst [vmem:[%s116 + $0x18] sm:$0x3f] %v898
      %919 = vst [vmem:[%s116 + $0x20] sm:$0x3f] %v903
      %920 = vst [vmem:[%s116 + $0x28] sm:$0x3f] %v908
      %p921 = scmp.lt.s32.totalorder %s12, 11
      %s922 = scalar_select %p921, %s12, 11
      %s923 = smul.addr %s922, 6
      %s924 = smul.addr %s923, 8
      %s925 = scalar_lea.vmem %s1, %s924
      // Predicated region
      $region25: #{test_model_forward.6} parent=23 // pred_check
        %p926 = pneg %p56
      $region26: #{test_model_forward.6} parent=23 // pred_check_branch
        %928 = sbr.rel (%p926) target = $region28
      $region27: #{test_model_forward.6} parent=23 // pred_region
        _
      $region28: #{test_model_forward.6} parent=23 // pred_fallthru
        _
    $region24: #{test_model_forward.6} parent=5 // pred_fallthru
      _
    %p929 = scmp.le.s32.totalorder 2, %s7
    // Predicated region
    $region29: #{test_model_forward.6} parent=5 // pred_check
      %p930 = pneg %p929
    $region30: #{test_model_forward.6} parent=5 // pred_check_branch
      %932 = sbr.rel (%p930) target = $region32
    $region31: #{test_model_forward.6} parent=5 // pred_region
      %s933 = ssub.s32 %s7, 2
      // Predicated region
      $region33: #{test_model_forward.6} parent=31 // pred_check
        %p934 = pneg %p62
      $region34: #{test_model_forward.6} parent=31 // pred_check_branch
        %936 = sbr.rel (%p934) target = $region36
      $region35: #{test_model_forward.6} parent=31 // pred_region
        %p937 = scmp.lt.s32.totalorder %s13, 11
        %s938 = scalar_select %p937, %s13, 11
        %s939 = smul.addr %s938, 6
        %s940 = smul.addr %s939, 8
        %s941 = scalar_lea.vmem %s1, %s940
      $region36: #{test_model_forward.6} parent=31 // pred_fallthru
        _
    $region32: #{test_model_forward.6} parent=5 // pred_fallthru
      _
  $region6: #{test_model_forward.6} parent=0 // loop_footer
    %s11 = sadd.s32 1, %s7
  $region7: #{test_model_forward.6} parent=0 // loop_footer_branch
    %6 = sbr.rel target = $region3
  $region8: #{test_model_forward.6} parent=0 // loop_exit
    _

// kernel: test_model_forward.7
$region0: #{test_model_forward.7}
  #allocation0 [shape = 'u32[]', space=smem, size = 0x4, offset = 0x4, fixed_abs, tag = 'smem constant byte address 0x4 - core index']
  #allocation1 [shape = 'u32[144,128]{1,0:T(1,128)}', space=vmem, size = 0x12000, scoped, tag = 'internal scratch']
  %s0 = inlined_call_operand.vmem [shape: bf16[128,3456], index: 0, kind: input, shape index: {}]
  %s1 = inlined_call_operand.vmem [shape: bf16[3456,128], index: 1, kind: input, shape index: {}]
  %s2 = inlined_call_operand.vmem [shape: f32[1,128], index: 2, kind: input, shape index: {}]
  %s3 = inlined_call_operand.vmem [shape: f32[128,128], index: 3, kind: output, shape index: {}]
  %s4 = sld [smem:[#allocation0]]
  $region22: #{test_model_forward.7} parent=0
    _
  %s6 = ssub.s32 1, %s4
  %s7 = scalar_select 0, %s6, %s4
  // Predicated region
  $region2: #{test_model_forward.7} parent=0 // pred_check
    _
  $region3: #{test_model_forward.7} parent=0 // pred_check_branch
    %9 = sbr.rel (0) target = $region5
  $region4: #{test_model_forward.7} parent=0 // pred_region
    _
  $region5: #{test_model_forward.7} parent=0 // pred_fallthru
    _
  // Predicated region
  $region6: #{test_model_forward.7} parent=0 // pred_check
    _
  $region7: #{test_model_forward.7} parent=0 // pred_check_branch
    %11 = sbr.rel (0) target = $region9
  $region8: #{test_model_forward.7} parent=0 // pred_region
    _
  $region9: #{test_model_forward.7} parent=0 // pred_fallthru
    _
  // Predicated region
  $region10: #{test_model_forward.7} parent=0 // pred_check
    _
  $region11: #{test_model_forward.7} parent=0 // pred_check_branch
    %13 = sbr.rel (0) target = $region13
  $region12: #{test_model_forward.7} parent=0 // pred_region
    _
  $region13: #{test_model_forward.7} parent=0 // pred_fallthru
    _
  %v15 = vld [vmem:[%s0] sm:$0xff]
  %v16 = vld [vmem:[%s0 + $0x8] sm:$0xff]
  %v17 = vld [vmem:[%s0 + $0x10] sm:$0xff]
  %v18 = vld [vmem:[%s0 + $0x18] sm:$0xff]
  %v19 = vld [vmem:[%s0 + $0x20] sm:$0xff]
  %v20 = vld [vmem:[%s0 + $0x28] sm:$0xff]
  %v21 = vld [vmem:[%s0 + $0x30] sm:$0xff]
  %v22 = vld [vmem:[%s0 + $0x38] sm:$0xff]
  %v23 = vld [vmem:[%s0 + $0x40] sm:$0xff]
  %v24 = vld [vmem:[%s0 + $0x48] sm:$0xff]
  %v25 = vld [vmem:[%s0 + $0x50] sm:$0xff]
  %v26 = vld [vmem:[%s0 + $0x58] sm:$0xff]
  %v27 = vld [vmem:[%s0 + $0x60] sm:$0xff]
  %v28 = vld [vmem:[%s0 + $0x68] sm:$0xf]
  %v29 = vld [vmem:[%s0 + $0x6c] sm:$0xff]
  %v30 = vld [vmem:[%s0 + $0x74] sm:$0xff]
  %v31 = vld [vmem:[%s0 + $0x7c] sm:$0xff]
  %v32 = vld [vmem:[%s0 + $0x84] sm:$0xff]
  %v33 = vld [vmem:[%s0 + $0x8c] sm:$0xff]
  %v34 = vld [vmem:[%s0 + $0x94] sm:$0xff]
  %v35 = vld [vmem:[%s0 + $0x9c] sm:$0xff]
  %v36 = vld [vmem:[%s0 + $0xa4] sm:$0xff]
  %v37 = vld [vmem:[%s0 + $0xac] sm:$0xff]
  %v38 = vld [vmem:[%s0 + $0xb4] sm:$0xff]
  %v39 = vld [vmem:[%s0 + $0xbc] sm:$0xff]
  %v40 = vld [vmem:[%s0 + $0xc4] sm:$0xff]
  %v41 = vld [vmem:[%s0 + $0xcc] sm:$0xff]
  %v42 = vld [vmem:[%s0 + $0xd4] sm:$0xf]
  %v43 = vld [vmem:[%s0 + $0xd8] sm:$0xff]
  %v44 = vld [vmem:[%s0 + $0xe0] sm:$0xff]
  %v45 = vld [vmem:[%s0 + $0xe8] sm:$0xff]
  %v46 = vld [vmem:[%s0 + $0xf0] sm:$0xff]
  %v47 = vld [vmem:[%s0 + $0xf8] sm:$0xff]
  %v48 = vld [vmem:[%s0 + $0x100] sm:$0xff]
  %v49 = vld [vmem:[%s0 + $0x108] sm:$0xff]
  %v50 = vld [vmem:[%s0 + $0x110] sm:$0xff]
  %v51 = vld [vmem:[%s0 + $0x118] sm:$0xff]
  %v52 = vld [vmem:[%s0 + $0x120] sm:$0xff]
  %v53 = vld [vmem:[%s0 + $0x128] sm:$0xff]
  %v54 = vld [vmem:[%s0 + $0x130] sm:$0xff]
  %v55 = vld [vmem:[%s0 + $0x138] sm:$0xff]
  %v56 = vld [vmem:[%s0 + $0x140] sm:$0xf]
  %v57 = vld [vmem:[%s0 + $0x144] sm:$0xff]
  %v58 = vld [vmem:[%s0 + $0x14c] sm:$0xff]
  %v59 = vld [vmem:[%s0 + $0x154] sm:$0xff]
  %v60 = vld [vmem:[%s0 + $0x15c] sm:$0xff]
  %v61 = vld [vmem:[%s0 + $0x164] sm:$0xff]
  %v62 = vld [vmem:[%s0 + $0x16c] sm:$0xff]
  %v63 = vld [vmem:[%s0 + $0x174] sm:$0xff]
  %v64 = vld [vmem:[%s0 + $0x17c] sm:$0xff]
  %v65 = vld [vmem:[%s0 + $0x184] sm:$0xff]
  %v66 = vld [vmem:[%s0 + $0x18c] sm:$0xff]
  %v67 = vld [vmem:[%s0 + $0x194] sm:$0xff]
  %v68 = vld [vmem:[%s0 + $0x19c] sm:$0xff]
  %v69 = vld [vmem:[%s0 + $0x1a4] sm:$0xff]
  %v70 = vld [vmem:[%s0 + $0x1ac] sm:$0xf]
  %v71 = vld [vmem:[%s0 + $0x1b0] sm:$0xff]
  %v72 = vld [vmem:[%s0 + $0x1b8] sm:$0xff]
  %v73 = vld [vmem:[%s0 + $0x1c0] sm:$0xff]
  %v74 = vld [vmem:[%s0 + $0x1c8] sm:$0xff]
  %v75 = vld [vmem:[%s0 + $0x1d0] sm:$0xff]
  %v76 = vld [vmem:[%s0 + $0x1d8] sm:$0xff]
  %v77 = vld [vmem:[%s0 + $0x1e0] sm:$0xff]
  %v78 = vld [vmem:[%s0 + $0x1e8] sm:$0xff]
  %v79 = vld [vmem:[%s0 + $0x1f0] sm:$0xff]
  %v80 = vld [vmem:[%s0 + $0x1f8] sm:$0xff]
  %v81 = vld [vmem:[%s0 + $0x200] sm:$0xff]
  %v82 = vld [vmem:[%s0 + $0x208] sm:$0xff]
  %v83 = vld [vmem:[%s0 + $0x210] sm:$0xff]
  %v84 = vld [vmem:[%s0 + $0x218] sm:$0xf]
  %v85 = vld [vmem:[%s0 + $0x21c] sm:$0xff]
  %v86 = vld [vmem:[%s0 + $0x224] sm:$0xff]
  %v87 = vld [vmem:[%s0 + $0x22c] sm:$0xff]
  %v88 = vld [vmem:[%s0 + $0x234] sm:$0xff]
  %v89 = vld [vmem:[%s0 + $0x23c] sm:$0xff]
  %v90 = vld [vmem:[%s0 + $0x244] sm:$0xff]
  %v91 = vld [vmem:[%s0 + $0x24c] sm:$0xff]
  %v92 = vld [vmem:[%s0 + $0x254] sm:$0xff]
  %v93 = vld [vmem:[%s0 + $0x25c] sm:$0xff]
  %v94 = vld [vmem:[%s0 + $0x264] sm:$0xff]
  %v95 = vld [vmem:[%s0 + $0x26c] sm:$0xff]
  %v96 = vld [vmem:[%s0 + $0x274] sm:$0xff]
  %v97 = vld [vmem:[%s0 + $0x27c] sm:$0xff]
  %v98 = vld [vmem:[%s0 + $0x284] sm:$0xf]
  %v99 = vld [vmem:[%s0 + $0x288] sm:$0xff]
  %v100 = vld [vmem:[%s0 + $0x290] sm:$0xff]
  %v101 = vld [vmem:[%s0 + $0x298] sm:$0xff]
  %v102 = vld [vmem:[%s0 + $0x2a0] sm:$0xff]
  %v103 = vld [vmem:[%s0 + $0x2a8] sm:$0xff]
  %v104 = vld [vmem:[%s0 + $0x2b0] sm:$0xff]
  %v105 = vld [vmem:[%s0 + $0x2b8] sm:$0xff]
  %v106 = vld [vmem:[%s0 + $0x2c0] sm:$0xff]
  %v107 = vld [vmem:[%s0 + $0x2c8] sm:$0xff]
  %v108 = vld [vmem:[%s0 + $0x2d0] sm:$0xff]
  %v109 = vld [vmem:[%s0 + $0x2d8] sm:$0xff]
  %v110 = vld [vmem:[%s0 + $0x2e0] sm:$0xff]
  %v111 = vld [vmem:[%s0 + $0x2e8] sm:$0xff]
  %v112 = vld [vmem:[%s0 + $0x2f0] sm:$0xf]
  %v113 = vld [vmem:[%s0 + $0x2f4] sm:$0xff]
  %v114 = vld [vmem:[%s0 + $0x2fc] sm:$0xff]
  %v115 = vld [vmem:[%s0 + $0x304] sm:$0xff]
  %v116 = vld [vmem:[%s0 + $0x30c] sm:$0xff]
  %v117 = vld [vmem:[%s0 + $0x314] sm:$0xff]
  %v118 = vld [vmem:[%s0 + $0x31c] sm:$0xff]
  %v119 = vld [vmem:[%s0 + $0x324] sm:$0xff]
  %v120 = vld [vmem:[%s0 + $0x32c] sm:$0xff]
  %v121 = vld [vmem:[%s0 + $0x334] sm:$0xff]
  %v122 = vld [vmem:[%s0 + $0x33c] sm:$0xff]
  %v123 = vld [vmem:[%s0 + $0x344] sm:$0xff]
  %v124 = vld [vmem:[%s0 + $0x34c] sm:$0xff]
  %v125 = vld [vmem:[%s0 + $0x354] sm:$0xff]
  %v126 = vld [vmem:[%s0 + $0x35c] sm:$0xf]
  %v127 = vld [vmem:[%s0 + $0x360] sm:$0xff]
  %v128 = vld [vmem:[%s0 + $0x368] sm:$0xff]
  %v129 = vld [vmem:[%s0 + $0x370] sm:$0xff]
  %v130 = vld [vmem:[%s0 + $0x378] sm:$0xff]
  %v131 = vld [vmem:[%s0 + $0x380] sm:$0xff]
  %v132 = vld [vmem:[%s0 + $0x388] sm:$0xff]
  %v133 = vld [vmem:[%s0 + $0x390] sm:$0xff]
  %v134 = vld [vmem:[%s0 + $0x398] sm:$0xff]
  %v135 = vld [vmem:[%s0 + $0x3a0] sm:$0xff]
  %v136 = vld [vmem:[%s0 + $0x3a8] sm:$0xff]
  %v137 = vld [vmem:[%s0 + $0x3b0] sm:$0xff]
  %v138 = vld [vmem:[%s0 + $0x3b8] sm:$0xff]
  %v139 = vld [vmem:[%s0 + $0x3c0] sm:$0xff]
  %v140 = vld [vmem:[%s0 + $0x3c8] sm:$0xf]
  %v141 = vld [vmem:[%s0 + $0x3cc] sm:$0xff]
  %v142 = vld [vmem:[%s0 + $0x3d4] sm:$0xff]
  %v143 = vld [vmem:[%s0 + $0x3dc] sm:$0xff]
  %v144 = vld [vmem:[%s0 + $0x3e4] sm:$0xff]
  %v145 = vld [vmem:[%s0 + $0x3ec] sm:$0xff]
  %v146 = vld [vmem:[%s0 + $0x3f4] sm:$0xff]
  %v147 = vld [vmem:[%s0 + $0x3fc] sm:$0xff]
  %v148 = vld [vmem:[%s0 + $0x404] sm:$0xff]
  %v149 = vld [vmem:[%s0 + $0x40c] sm:$0xff]
  %v150 = vld [vmem:[%s0 + $0x414] sm:$0xff]
  %v151 = vld [vmem:[%s0 + $0x41c] sm:$0xff]
  %v152 = vld [vmem:[%s0 + $0x424] sm:$0xff]
  %v153 = vld [vmem:[%s0 + $0x42c] sm:$0xff]
  %v154 = vld [vmem:[%s0 + $0x434] sm:$0xf]
  %v155 = vld [vmem:[%s0 + $0x438] sm:$0xff]
  %v156 = vld [vmem:[%s0 + $0x440] sm:$0xff]
  %v157 = vld [vmem:[%s0 + $0x448] sm:$0xff]
  %v158 = vld [vmem:[%s0 + $0x450] sm:$0xff]
  %v159 = vld [vmem:[%s0 + $0x458] sm:$0xff]
  %v160 = vld [vmem:[%s0 + $0x460] sm:$0xff]
  %v161 = vld [vmem:[%s0 + $0x468] sm:$0xff]
  %v162 = vld [vmem:[%s0 + $0x470] sm:$0xff]
  %v163 = vld [vmem:[%s0 + $0x478] sm:$0xff]
  %v164 = vld [vmem:[%s0 + $0x480] sm:$0xff]
  %v165 = vld [vmem:[%s0 + $0x488] sm:$0xff]
  %v166 = vld [vmem:[%s0 + $0x490] sm:$0xff]
  %v167 = vld [vmem:[%s0 + $0x498] sm:$0xff]
  %v168 = vld [vmem:[%s0 + $0x4a0] sm:$0xf]
  %v169 = vld [vmem:[%s0 + $0x4a4] sm:$0xff]
  %v170 = vld [vmem:[%s0 + $0x4ac] sm:$0xff]
  %v171 = vld [vmem:[%s0 + $0x4b4] sm:$0xff]
  %v172 = vld [vmem:[%s0 + $0x4bc] sm:$0xff]
  %v173 = vld [vmem:[%s0 + $0x4c4] sm:$0xff]
  %v174 = vld [vmem:[%s0 + $0x4cc] sm:$0xff]
  %v175 = vld [vmem:[%s0 + $0x4d4] sm:$0xff]
  %v176 = vld [vmem:[%s0 + $0x4dc] sm:$0xff]
  %v177 = vld [vmem:[%s0 + $0x4e4] sm:$0xff]
  %v178 = vld [vmem:[%s0 + $0x4ec] sm:$0xff]
  %v179 = vld [vmem:[%s0 + $0x4f4] sm:$0xff]
  %v180 = vld [vmem:[%s0 + $0x4fc] sm:$0xff]
  %v181 = vld [vmem:[%s0 + $0x504] sm:$0xff]
  %v182 = vld [vmem:[%s0 + $0x50c] sm:$0xf]
  %v183 = vld [vmem:[%s0 + $0x510] sm:$0xff]
  %v184 = vld [vmem:[%s0 + $0x518] sm:$0xff]
  %v185 = vld [vmem:[%s0 + $0x520] sm:$0xff]
  %v186 = vld [vmem:[%s0 + $0x528] sm:$0xff]
  %v187 = vld [vmem:[%s0 + $0x530] sm:$0xff]
  %v188 = vld [vmem:[%s0 + $0x538] sm:$0xff]
  %v189 = vld [vmem:[%s0 + $0x540] sm:$0xff]
  %v190 = vld [vmem:[%s0 + $0x548] sm:$0xff]
  %v191 = vld [vmem:[%s0 + $0x550] sm:$0xff]
  %v192 = vld [vmem:[%s0 + $0x558] sm:$0xff]
  %v193 = vld [vmem:[%s0 + $0x560] sm:$0xff]
  %v194 = vld [vmem:[%s0 + $0x568] sm:$0xff]
  %v195 = vld [vmem:[%s0 + $0x570] sm:$0xff]
  %v196 = vld [vmem:[%s0 + $0x578] sm:$0xf]
  %v197 = vld [vmem:[%s0 + $0x57c] sm:$0xff]
  %v198 = vld [vmem:[%s0 + $0x584] sm:$0xff]
  %v199 = vld [vmem:[%s0 + $0x58c] sm:$0xff]
  %v200 = vld [vmem:[%s0 + $0x594] sm:$0xff]
  %v201 = vld [vmem:[%s0 + $0x59c] sm:$0xff]
  %v202 = vld [vmem:[%s0 + $0x5a4] sm:$0xff]
  %v203 = vld [vmem:[%s0 + $0x5ac] sm:$0xff]
  %v204 = vld [vmem:[%s0 + $0x5b4] sm:$0xff]
  %v205 = vld [vmem:[%s0 + $0x5bc] sm:$0xff]
  %v206 = vld [vmem:[%s0 + $0x5c4] sm:$0xff]
  %v207 = vld [vmem:[%s0 + $0x5cc] sm:$0xff]
  %v208 = vld [vmem:[%s0 + $0x5d4] sm:$0xff]
  %v209 = vld [vmem:[%s0 + $0x5dc] sm:$0xff]
  %v210 = vld [vmem:[%s0 + $0x5e4] sm:$0xf]
  %v211 = vld [vmem:[%s0 + $0x5e8] sm:$0xff]
  %v212 = vld [vmem:[%s0 + $0x5f0] sm:$0xff]
  %v213 = vld [vmem:[%s0 + $0x5f8] sm:$0xff]
  %v214 = vld [vmem:[%s0 + $0x600] sm:$0xff]
  %v215 = vld [vmem:[%s0 + $0x608] sm:$0xff]
  %v216 = vld [vmem:[%s0 + $0x610] sm:$0xff]
  %v217 = vld [vmem:[%s0 + $0x618] sm:$0xff]
  %v218 = vld [vmem:[%s0 + $0x620] sm:$0xff]
  %v219 = vld [vmem:[%s0 + $0x628] sm:$0xff]
  %v220 = vld [vmem:[%s0 + $0x630] sm:$0xff]
  %v221 = vld [vmem:[%s0 + $0x638] sm:$0xff]
  %v222 = vld [vmem:[%s0 + $0x640] sm:$0xff]
  %v223 = vld [vmem:[%s0 + $0x648] sm:$0xff]
  %v224 = vld [vmem:[%s0 + $0x650] sm:$0xf]
  %v225 = vld [vmem:[%s0 + $0x654] sm:$0xff]
  %v226 = vld [vmem:[%s0 + $0x65c] sm:$0xff]
  %v227 = vld [vmem:[%s0 + $0x664] sm:$0xff]
  %v228 = vld [vmem:[%s0 + $0x66c] sm:$0xff]
  %v229 = vld [vmem:[%s0 + $0x674] sm:$0xff]
  %v230 = vld [vmem:[%s0 + $0x67c] sm:$0xff]
  %v231 = vld [vmem:[%s0 + $0x684] sm:$0xff]
  %v232 = vld [vmem:[%s0 + $0x68c] sm:$0xff]
  %v233 = vld [vmem:[%s0 + $0x694] sm:$0xff]
  %v234 = vld [vmem:[%s0 + $0x69c] sm:$0xff]
  %v235 = vld [vmem:[%s0 + $0x6a4] sm:$0xff]
  %v236 = vld [vmem:[%s0 + $0x6ac] sm:$0xff]
  %v237 = vld [vmem:[%s0 + $0x6b4] sm:$0xff]
  %v238 = vld [vmem:[%s0 + $0x6bc] sm:$0xf]
  %v239 = vld [vmem:[%s1] sm:$0xf]
  %v240 = vld [vmem:[%s1 + $0x4] sm:$0xf]
  %v241 = vld [vmem:[%s1 + $0x8] sm:$0xf]
  %v242 = vld [vmem:[%s1 + $0xc] sm:$0xf]
  %v243 = vld [vmem:[%s1 + $0x10] sm:$0xf]
  %v244 = vld [vmem:[%s1 + $0x14] sm:$0xf]
  %v245 = vld [vmem:[%s1 + $0x18] sm:$0xf]
  %v246 = vld [vmem:[%s1 + $0x1c] sm:$0xf]
  %v247 = vld [vmem:[%s1 + $0x20] sm:$0xf]
  %v248 = vld [vmem:[%s1 + $0x24] sm:$0xf]
  %v249 = vld [vmem:[%s1 + $0x28] sm:$0xf]
  %v250 = vld [vmem:[%s1 + $0x2c] sm:$0xf]
  %v251 = vld [vmem:[%s1 + $0x30] sm:$0xf]
  %v252 = vld [vmem:[%s1 + $0x34] sm:$0xf]
  %v253 = vld [vmem:[%s1 + $0x38] sm:$0xf]
  %v254 = vld [vmem:[%s1 + $0x3c] sm:$0xf]
  %v255 = vld [vmem:[%s1 + $0x40] sm:$0xf]
  %v256 = vld [vmem:[%s1 + $0x44] sm:$0xf]
  %v257 = vld [vmem:[%s1 + $0x48] sm:$0xf]
  %v258 = vld [vmem:[%s1 + $0x4c] sm:$0xf]
  %v259 = vld [vmem:[%s1 + $0x50] sm:$0xf]
  %v260 = vld [vmem:[%s1 + $0x54] sm:$0xf]
  %v261 = vld [vmem:[%s1 + $0x58] sm:$0xf]
  %v262 = vld [vmem:[%s1 + $0x5c] sm:$0xf]
  %v263 = vld [vmem:[%s1 + $0x60] sm:$0xf]
  %v264 = vld [vmem:[%s1 + $0x64] sm:$0xf]
  %v265 = vld [vmem:[%s1 + $0x68] sm:$0xf]
  %v266 = vld [vmem:[%s1 + $0x6c] sm:$0xf]
  %v267 = vld [vmem:[%s1 + $0x70] sm:$0xf]
  %v268 = vld [vmem:[%s1 + $0x74] sm:$0xf]
  %v269 = vld [vmem:[%s1 + $0x78] sm:$0xf]
  %v270 = vld [vmem:[%s1 + $0x7c] sm:$0xf]
  %v271 = vld [vmem:[%s1 + $0x80] sm:$0xf]
  %v272 = vld [vmem:[%s1 + $0x84] sm:$0xf]
  %v273 = vld [vmem:[%s1 + $0x88] sm:$0xf]
  %v274 = vld [vmem:[%s1 + $0x8c] sm:$0xf]
  %v275 = vld [vmem:[%s1 + $0x90] sm:$0xf]
  %v276 = vld [vmem:[%s1 + $0x94] sm:$0xf]
  %v277 = vld [vmem:[%s1 + $0x98] sm:$0xf]
  %v278 = vld [vmem:[%s1 + $0x9c] sm:$0xf]
  %v279 = vld [vmem:[%s1 + $0xa0] sm:$0xf]
  %v280 = vld [vmem:[%s1 + $0xa4] sm:$0xf]
  %v281 = vld [vmem:[%s1 + $0xa8] sm:$0xf]
  %v282 = vld [vmem:[%s1 + $0xac] sm:$0xf]
  %v283 = vld [vmem:[%s1 + $0xb0] sm:$0xf]
  %v284 = vld [vmem:[%s1 + $0xb4] sm:$0xf]
  %v285 = vld [vmem:[%s1 + $0xb8] sm:$0xf]
  %v286 = vld [vmem:[%s1 + $0xbc] sm:$0xf]
  %v287 = vld [vmem:[%s1 + $0xc0] sm:$0xf]
  %v288 = vld [vmem:[%s1 + $0xc4] sm:$0xf]
  %v289 = vld [vmem:[%s1 + $0xc8] sm:$0xf]
  %v290 = vld [vmem:[%s1 + $0xcc] sm:$0xf]
  %v291 = vld [vmem:[%s1 + $0xd0] sm:$0xf]
  %v292 = vld [vmem:[%s1 + $0xd4] sm:$0xf]
  %v293 = vld [vmem:[%s1 + $0xd8] sm:$0xf]
  %v294 = vld [vmem:[%s1 + $0xdc] sm:$0xf]
  %v295 = vld [vmem:[%s1 + $0xe0] sm:$0xf]
  %v296 = vld [vmem:[%s1 + $0xe4] sm:$0xf]
  %v297 = vld [vmem:[%s1 + $0xe8] sm:$0xf]
  %v298 = vld [vmem:[%s1 + $0xec] sm:$0xf]
  %v299 = vld [vmem:[%s1 + $0xf0] sm:$0xf]
  %v300 = vld [vmem:[%s1 + $0xf4] sm:$0xf]
  %v301 = vld [vmem:[%s1 + $0xf8] sm:$0xf]
  %v302 = vld [vmem:[%s1 + $0xfc] sm:$0xf]
  %v303 = vld [vmem:[%s1 + $0x100] sm:$0xf]
  %v304 = vld [vmem:[%s1 + $0x104] sm:$0xf]
  %v305 = vld [vmem:[%s1 + $0x108] sm:$0xf]
  %v306 = vld [vmem:[%s1 + $0x10c] sm:$0xf]
  %v307 = vld [vmem:[%s1 + $0x110] sm:$0xf]
  %v308 = vld [vmem:[%s1 + $0x114] sm:$0xf]
  %v309 = vld [vmem:[%s1 + $0x118] sm:$0xf]
  %v310 = vld [vmem:[%s1 + $0x11c] sm:$0xf]
  %v311 = vld [vmem:[%s1 + $0x120] sm:$0xf]
  %v312 = vld [vmem:[%s1 + $0x124] sm:$0xf]
  %v313 = vld [vmem:[%s1 + $0x128] sm:$0xf]
  %v314 = vld [vmem:[%s1 + $0x12c] sm:$0xf]
  %v315 = vld [vmem:[%s1 + $0x130] sm:$0xf]
  %v316 = vld [vmem:[%s1 + $0x134] sm:$0xf]
  %v317 = vld [vmem:[%s1 + $0x138] sm:$0xf]
  %v318 = vld [vmem:[%s1 + $0x13c] sm:$0xf]
  %v319 = vld [vmem:[%s1 + $0x140] sm:$0xf]
  %v320 = vld [vmem:[%s1 + $0x144] sm:$0xf]
  %v321 = vld [vmem:[%s1 + $0x148] sm:$0xf]
  %v322 = vld [vmem:[%s1 + $0x14c] sm:$0xf]
  %v323 = vld [vmem:[%s1 + $0x150] sm:$0xf]
  %v324 = vld [vmem:[%s1 + $0x154] sm:$0xf]
  %v325 = vld [vmem:[%s1 + $0x158] sm:$0xf]
  %v326 = vld [vmem:[%s1 + $0x15c] sm:$0xf]
  %v327 = vld [vmem:[%s1 + $0x160] sm:$0xf]
  %v328 = vld [vmem:[%s1 + $0x164] sm:$0xf]
  %v329 = vld [vmem:[%s1 + $0x168] sm:$0xf]
  %v330 = vld [vmem:[%s1 + $0x16c] sm:$0xf]
  %v331 = vld [vmem:[%s1 + $0x170] sm:$0xf]
  %v332 = vld [vmem:[%s1 + $0x174] sm:$0xf]
  %v333 = vld [vmem:[%s1 + $0x178] sm:$0xf]
  %v334 = vld [vmem:[%s1 + $0x17c] sm:$0xf]
  %v335 = vld [vmem:[%s1 + $0x180] sm:$0xf]
  %v336 = vld [vmem:[%s1 + $0x184] sm:$0xf]
  %v337 = vld [vmem:[%s1 + $0x188] sm:$0xf]
  %v338 = vld [vmem:[%s1 + $0x18c] sm:$0xf]
  %v339 = vld [vmem:[%s1 + $0x190] sm:$0xf]
  %v340 = vld [vmem:[%s1 + $0x194] sm:$0xf]
  %v341 = vld [vmem:[%s1 + $0x198] sm:$0xf]
  %v342 = vld [vmem:[%s1 + $0x19c] sm:$0xf]
  %v343 = vld [vmem:[%s1 + $0x1a0] sm:$0xf]
  %v344 = vld [vmem:[%s1 + $0x1a4] sm:$0xf]
  %v345 = vld [vmem:[%s1 + $0x1a8] sm:$0xf]
  %v346 = vld [vmem:[%s1 + $0x1ac] sm:$0xf]
  %v347 = vld [vmem:[%s1 + $0x1b0] sm:$0xf]
  %v348 = vld [vmem:[%s1 + $0x1b4] sm:$0xf]
  %v349 = vld [vmem:[%s1 + $0x1b8] sm:$0xf]
  %v350 = vld [vmem:[%s1 + $0x1bc] sm:$0xf]
  %v351 = vld [vmem:[%s1 + $0x1c0] sm:$0xf]
  %v352 = vld [vmem:[%s1 + $0x1c4] sm:$0xf]
  %v353 = vld [vmem:[%s1 + $0x1c8] sm:$0xf]
  %v354 = vld [vmem:[%s1 + $0x1cc] sm:$0xf]
  %v355 = vld [vmem:[%s1 + $0x1d0] sm:$0xf]
  %v356 = vld [vmem:[%s1 + $0x1d4] sm:$0xf]
  %v357 = vld [vmem:[%s1 + $0x1d8] sm:$0xf]
  %v358 = vld [vmem:[%s1 + $0x1dc] sm:$0xf]
  %v359 = vld [vmem:[%s1 + $0x1e0] sm:$0xf]
  %v360 = vld [vmem:[%s1 + $0x1e4] sm:$0xf]
  %v361 = vld [vmem:[%s1 + $0x1e8] sm:$0xf]
  %v362 = vld [vmem:[%s1 + $0x1ec] sm:$0xf]
  %v363 = vld [vmem:[%s1 + $0x1f0] sm:$0xf]
  %v364 = vld [vmem:[%s1 + $0x1f4] sm:$0xf]
  %v365 = vld [vmem:[%s1 + $0x1f8] sm:$0xf]
  %v366 = vld [vmem:[%s1 + $0x1fc] sm:$0xf]
  %v367 = vld [vmem:[%s1 + $0x200] sm:$0xf]
  %v368 = vld [vmem:[%s1 + $0x204] sm:$0xf]
  %v369 = vld [vmem:[%s1 + $0x208] sm:$0xf]
  %v370 = vld [vmem:[%s1 + $0x20c] sm:$0xf]
  %v371 = vld [vmem:[%s1 + $0x210] sm:$0xf]
  %v372 = vld [vmem:[%s1 + $0x214] sm:$0xf]
  %v373 = vld [vmem:[%s1 + $0x218] sm:$0xf]
  %v374 = vld [vmem:[%s1 + $0x21c] sm:$0xf]
  %v375 = vld [vmem:[%s1 + $0x220] sm:$0xf]
  %v376 = vld [vmem:[%s1 + $0x224] sm:$0xf]
  %v377 = vld [vmem:[%s1 + $0x228] sm:$0xf]
  %v378 = vld [vmem:[%s1 + $0x22c] sm:$0xf]
  %v379 = vld [vmem:[%s1 + $0x230] sm:$0xf]
  %v380 = vld [vmem:[%s1 + $0x234] sm:$0xf]
  %v381 = vld [vmem:[%s1 + $0x238] sm:$0xf]
  %v382 = vld [vmem:[%s1 + $0x23c] sm:$0xf]
  %v383 = vld [vmem:[%s1 + $0x240] sm:$0xf]
  %v384 = vld [vmem:[%s1 + $0x244] sm:$0xf]
  %v385 = vld [vmem:[%s1 + $0x248] sm:$0xf]
  %v386 = vld [vmem:[%s1 + $0x24c] sm:$0xf]
  %v387 = vld [vmem:[%s1 + $0x250] sm:$0xf]
  %v388 = vld [vmem:[%s1 + $0x254] sm:$0xf]
  %v389 = vld [vmem:[%s1 + $0x258] sm:$0xf]
  %v390 = vld [vmem:[%s1 + $0x25c] sm:$0xf]
  %v391 = vld [vmem:[%s1 + $0x260] sm:$0xf]
  %v392 = vld [vmem:[%s1 + $0x264] sm:$0xf]
  %v393 = vld [vmem:[%s1 + $0x268] sm:$0xf]
  %v394 = vld [vmem:[%s1 + $0x26c] sm:$0xf]
  %v395 = vld [vmem:[%s1 + $0x270] sm:$0xf]
  %v396 = vld [vmem:[%s1 + $0x274] sm:$0xf]
  %v397 = vld [vmem:[%s1 + $0x278] sm:$0xf]
  %v398 = vld [vmem:[%s1 + $0x27c] sm:$0xf]
  %v399 = vld [vmem:[%s1 + $0x280] sm:$0xf]
  %v400 = vld [vmem:[%s1 + $0x284] sm:$0xf]
  %v401 = vld [vmem:[%s1 + $0x288] sm:$0xf]
  %v402 = vld [vmem:[%s1 + $0x28c] sm:$0xf]
  %v403 = vld [vmem:[%s1 + $0x290] sm:$0xf]
  %v404 = vld [vmem:[%s1 + $0x294] sm:$0xf]
  %v405 = vld [vmem:[%s1 + $0x298] sm:$0xf]
  %v406 = vld [vmem:[%s1 + $0x29c] sm:$0xf]
  %v407 = vld [vmem:[%s1 + $0x2a0] sm:$0xf]
  %v408 = vld [vmem:[%s1 + $0x2a4] sm:$0xf]
  %v409 = vld [vmem:[%s1 + $0x2a8] sm:$0xf]
  %v410 = vld [vmem:[%s1 + $0x2ac] sm:$0xf]
  %v411 = vld [vmem:[%s1 + $0x2b0] sm:$0xf]
  %v412 = vld [vmem:[%s1 + $0x2b4] sm:$0xf]
  %v413 = vld [vmem:[%s1 + $0x2b8] sm:$0xf]
  %v414 = vld [vmem:[%s1 + $0x2bc] sm:$0xf]
  %v415 = vld [vmem:[%s1 + $0x2c0] sm:$0xf]
  %v416 = vld [vmem:[%s1 + $0x2c4] sm:$0xf]
  %v417 = vld [vmem:[%s1 + $0x2c8] sm:$0xf]
  %v418 = vld [vmem:[%s1 + $0x2cc] sm:$0xf]
  %v419 = vld [vmem:[%s1 + $0x2d0] sm:$0xf]
  %v420 = vld [vmem:[%s1 + $0x2d4] sm:$0xf]
  %v421 = vld [vmem:[%s1 + $0x2d8] sm:$0xf]
  %v422 = vld [vmem:[%s1 + $0x2dc] sm:$0xf]
  %v423 = vld [vmem:[%s1 + $0x2e0] sm:$0xf]
  %v424 = vld [vmem:[%s1 + $0x2e4] sm:$0xf]
  %v425 = vld [vmem:[%s1 + $0x2e8] sm:$0xf]
  %v426 = vld [vmem:[%s1 + $0x2ec] sm:$0xf]
  %v427 = vld [vmem:[%s1 + $0x2f0] sm:$0xf]
  %v428 = vld [vmem:[%s1 + $0x2f4] sm:$0xf]
  %v429 = vld [vmem:[%s1 + $0x2f8] sm:$0xf]
  %v430 = vld [vmem:[%s1 + $0x2fc] sm:$0xf]
  %v431 = vld [vmem:[%s1 + $0x300] sm:$0xf]
  %v432 = vld [vmem:[%s1 + $0x304] sm:$0xf]
  %v433 = vld [vmem:[%s1 + $0x308] sm:$0xf]
  %v434 = vld [vmem:[%s1 + $0x30c] sm:$0xf]
  %v435 = vld [vmem:[%s1 + $0x310] sm:$0xf]
  %v436 = vld [vmem:[%s1 + $0x314] sm:$0xf]
  %v437 = vld [vmem:[%s1 + $0x318] sm:$0xf]
  %v438 = vld [vmem:[%s1 + $0x31c] sm:$0xf]
  %v439 = vld [vmem:[%s1 + $0x320] sm:$0xf]
  %v440 = vld [vmem:[%s1 + $0x324] sm:$0xf]
  %v441 = vld [vmem:[%s1 + $0x328] sm:$0xf]
  %v442 = vld [vmem:[%s1 + $0x32c] sm:$0xf]
  %v443 = vld [vmem:[%s1 + $0x330] sm:$0xf]
  %v444 = vld [vmem:[%s1 + $0x334] sm:$0xf]
  %v445 = vld [vmem:[%s1 + $0x338] sm:$0xf]
  %v446 = vld [vmem:[%s1 + $0x33c] sm:$0xf]
  %v447 = vld [vmem:[%s1 + $0x340] sm:$0xf]
  %v448 = vld [vmem:[%s1 + $0x344] sm:$0xf]
  %v449 = vld [vmem:[%s1 + $0x348] sm:$0xf]
  %v450 = vld [vmem:[%s1 + $0x34c] sm:$0xf]
  %v451 = vld [vmem:[%s1 + $0x350] sm:$0xf]
  %v452 = vld [vmem:[%s1 + $0x354] sm:$0xf]
  %v453 = vld [vmem:[%s1 + $0x358] sm:$0xf]
  %v454 = vld [vmem:[%s1 + $0x35c] sm:$0xf]
  %v455 = vld [vmem:[%s1 + $0x360] sm:$0xf]
  %v456 = vld [vmem:[%s1 + $0x364] sm:$0xf]
  %v457 = vld [vmem:[%s1 + $0x368] sm:$0xf]
  %v458 = vld [vmem:[%s1 + $0x36c] sm:$0xf]
  %v459 = vld [vmem:[%s1 + $0x370] sm:$0xf]
  %v460 = vld [vmem:[%s1 + $0x374] sm:$0xf]
  %v461 = vld [vmem:[%s1 + $0x378] sm:$0xf]
  %v462 = vld [vmem:[%s1 + $0x37c] sm:$0xf]
  %v463 = vld [vmem:[%s1 + $0x380] sm:$0xf]
  %v464 = vld [vmem:[%s1 + $0x384] sm:$0xf]
  %v465 = vld [vmem:[%s1 + $0x388] sm:$0xf]
  %v466 = vld [vmem:[%s1 + $0x38c] sm:$0xf]
  %v467 = vld [vmem:[%s1 + $0x390] sm:$0xf]
  %v468 = vld [vmem:[%s1 + $0x394] sm:$0xf]
  %v469 = vld [vmem:[%s1 + $0x398] sm:$0xf]
  %v470 = vld [vmem:[%s1 + $0x39c] sm:$0xf]
  %v471 = vld [vmem:[%s1 + $0x3a0] sm:$0xf]
  %v472 = vld [vmem:[%s1 + $0x3a4] sm:$0xf]
  %v473 = vld [vmem:[%s1 + $0x3a8] sm:$0xf]
  %v474 = vld [vmem:[%s1 + $0x3ac] sm:$0xf]
  %v475 = vld [vmem:[%s1 + $0x3b0] sm:$0xf]
  %v476 = vld [vmem:[%s1 + $0x3b4] sm:$0xf]
  %v477 = vld [vmem:[%s1 + $0x3b8] sm:$0xf]
  %v478 = vld [vmem:[%s1 + $0x3bc] sm:$0xf]
  %v479 = vld [vmem:[%s1 + $0x3c0] sm:$0xf]
  %v480 = vld [vmem:[%s1 + $0x3c4] sm:$0xf]
  %v481 = vld [vmem:[%s1 + $0x3c8] sm:$0xf]
  %v482 = vld [vmem:[%s1 + $0x3cc] sm:$0xf]
  %v483 = vld [vmem:[%s1 + $0x3d0] sm:$0xf]
  %v484 = vld [vmem:[%s1 + $0x3d4] sm:$0xf]
  %v485 = vld [vmem:[%s1 + $0x3d8] sm:$0xf]
  %v486 = vld [vmem:[%s1 + $0x3dc] sm:$0xf]
  %v487 = vld [vmem:[%s1 + $0x3e0] sm:$0xf]
  %v488 = vld [vmem:[%s1 + $0x3e4] sm:$0xf]
  %v489 = vld [vmem:[%s1 + $0x3e8] sm:$0xf]
  %v490 = vld [vmem:[%s1 + $0x3ec] sm:$0xf]
  %v491 = vld [vmem:[%s1 + $0x3f0] sm:$0xf]
  %v492 = vld [vmem:[%s1 + $0x3f4] sm:$0xf]
  %v493 = vld [vmem:[%s1 + $0x3f8] sm:$0xf]
  %v494 = vld [vmem:[%s1 + $0x3fc] sm:$0xf]
  %v495 = vld [vmem:[%s1 + $0x400] sm:$0xf]
  %v496 = vld [vmem:[%s1 + $0x404] sm:$0xf]
  %v497 = vld [vmem:[%s1 + $0x408] sm:$0xf]
  %v498 = vld [vmem:[%s1 + $0x40c] sm:$0xf]
  %v499 = vld [vmem:[%s1 + $0x410] sm:$0xf]
  %v500 = vld [vmem:[%s1 + $0x414] sm:$0xf]
  %v501 = vld [vmem:[%s1 + $0x418] sm:$0xf]
  %v502 = vld [vmem:[%s1 + $0x41c] sm:$0xf]
  %v503 = vld [vmem:[%s1 + $0x420] sm:$0xf]
  %v504 = vld [vmem:[%s1 + $0x424] sm:$0xf]
  %v505 = vld [vmem:[%s1 + $0x428] sm:$0xf]
  %v506 = vld [vmem:[%s1 + $0x42c] sm:$0xf]
  %v507 = vld [vmem:[%s1 + $0x430] sm:$0xf]
  %v508 = vld [vmem:[%s1 + $0x434] sm:$0xf]
  %v509 = vld [vmem:[%s1 + $0x438] sm:$0xf]
  %v510 = vld [vmem:[%s1 + $0x43c] sm:$0xf]
  %v511 = vld [vmem:[%s1 + $0x440] sm:$0xf]
  %v512 = vld [vmem:[%s1 + $0x444] sm:$0xf]
  %v513 = vld [vmem:[%s1 + $0x448] sm:$0xf]
  %v514 = vld [vmem:[%s1 + $0x44c] sm:$0xf]
  %v515 = vld [vmem:[%s1 + $0x450] sm:$0xf]
  %v516 = vld [vmem:[%s1 + $0x454] sm:$0xf]
  %v517 = vld [vmem:[%s1 + $0x458] sm:$0xf]
  %v518 = vld [vmem:[%s1 + $0x45c] sm:$0xf]
  %v519 = vld [vmem:[%s1 + $0x460] sm:$0xf]
  %v520 = vld [vmem:[%s1 + $0x464] sm:$0xf]
  %v521 = vld [vmem:[%s1 + $0x468] sm:$0xf]
  %v522 = vld [vmem:[%s1 + $0x46c] sm:$0xf]
  %v523 = vld [vmem:[%s1 + $0x470] sm:$0xf]
  %v524 = vld [vmem:[%s1 + $0x474] sm:$0xf]
  %v525 = vld [vmem:[%s1 + $0x478] sm:$0xf]
  %v526 = vld [vmem:[%s1 + $0x47c] sm:$0xf]
  %v527 = vld [vmem:[%s1 + $0x480] sm:$0xf]
  %v528 = vld [vmem:[%s1 + $0x484] sm:$0xf]
  %v529 = vld [vmem:[%s1 + $0x488] sm:$0xf]
  %v530 = vld [vmem:[%s1 + $0x48c] sm:$0xf]
  %v531 = vld [vmem:[%s1 + $0x490] sm:$0xf]
  %v532 = vld [vmem:[%s1 + $0x494] sm:$0xf]
  %v533 = vld [vmem:[%s1 + $0x498] sm:$0xf]
  %v534 = vld [vmem:[%s1 + $0x49c] sm:$0xf]
  %v535 = vld [vmem:[%s1 + $0x4a0] sm:$0xf]
  %v536 = vld [vmem:[%s1 + $0x4a4] sm:$0xf]
  %v537 = vld [vmem:[%s1 + $0x4a8] sm:$0xf]
  %v538 = vld [vmem:[%s1 + $0x4ac] sm:$0xf]
  %v539 = vld [vmem:[%s1 + $0x4b0] sm:$0xf]
  %v540 = vld [vmem:[%s1 + $0x4b4] sm:$0xf]
  %v541 = vld [vmem:[%s1 + $0x4b8] sm:$0xf]
  %v542 = vld [vmem:[%s1 + $0x4bc] sm:$0xf]
  %v543 = vld [vmem:[%s1 + $0x4c0] sm:$0xf]
  %v544 = vld [vmem:[%s1 + $0x4c4] sm:$0xf]
  %v545 = vld [vmem:[%s1 + $0x4c8] sm:$0xf]
  %v546 = vld [vmem:[%s1 + $0x4cc] sm:$0xf]
  %v547 = vld [vmem:[%s1 + $0x4d0] sm:$0xf]
  %v548 = vld [vmem:[%s1 + $0x4d4] sm:$0xf]
  %v549 = vld [vmem:[%s1 + $0x4d8] sm:$0xf]
  %v550 = vld [vmem:[%s1 + $0x4dc] sm:$0xf]
  %v551 = vld [vmem:[%s1 + $0x4e0] sm:$0xf]
  %v552 = vld [vmem:[%s1 + $0x4e4] sm:$0xf]
  %v553 = vld [vmem:[%s1 + $0x4e8] sm:$0xf]
  %v554 = vld [vmem:[%s1 + $0x4ec] sm:$0xf]
  %v555 = vld [vmem:[%s1 + $0x4f0] sm:$0xf]
  %v556 = vld [vmem:[%s1 + $0x4f4] sm:$0xf]
  %v557 = vld [vmem:[%s1 + $0x4f8] sm:$0xf]
  %v558 = vld [vmem:[%s1 + $0x4fc] sm:$0xf]
  %v559 = vld [vmem:[%s1 + $0x500] sm:$0xf]
  %v560 = vld [vmem:[%s1 + $0x504] sm:$0xf]
  %v561 = vld [vmem:[%s1 + $0x508] sm:$0xf]
  %v562 = vld [vmem:[%s1 + $0x50c] sm:$0xf]
  %v563 = vld [vmem:[%s1 + $0x510] sm:$0xf]
  %v564 = vld [vmem:[%s1 + $0x514] sm:$0xf]
  %v565 = vld [vmem:[%s1 + $0x518] sm:$0xf]
  %v566 = vld [vmem:[%s1 + $0x51c] sm:$0xf]
  %v567 = vld [vmem:[%s1 + $0x520] sm:$0xf]
  %v568 = vld [vmem:[%s1 + $0x524] sm:$0xf]
  %v569 = vld [vmem:[%s1 + $0x528] sm:$0xf]
  %v570 = vld [vmem:[%s1 + $0x52c] sm:$0xf]
  %v571 = vld [vmem:[%s1 + $0x530] sm:$0xf]
  %v572 = vld [vmem:[%s1 + $0x534] sm:$0xf]
  %v573 = vld [vmem:[%s1 + $0x538] sm:$0xf]
  %v574 = vld [vmem:[%s1 + $0x53c] sm:$0xf]
  %v575 = vld [vmem:[%s1 + $0x540] sm:$0xf]
  %v576 = vld [vmem:[%s1 + $0x544] sm:$0xf]
  %v577 = vld [vmem:[%s1 + $0x548] sm:$0xf]
  %v578 = vld [vmem:[%s1 + $0x54c] sm:$0xf]
  %v579 = vld [vmem:[%s1 + $0x550] sm:$0xf]
  %v580 = vld [vmem:[%s1 + $0x554] sm:$0xf]
  %v581 = vld [vmem:[%s1 + $0x558] sm:$0xf]
  %v582 = vld [vmem:[%s1 + $0x55c] sm:$0xf]
  %v583 = vld [vmem:[%s1 + $0x560] sm:$0xf]
  %v584 = vld [vmem:[%s1 + $0x564] sm:$0xf]
  %v585 = vld [vmem:[%s1 + $0x568] sm:$0xf]
  %v586 = vld [vmem:[%s1 + $0x56c] sm:$0xf]
  %v587 = vld [vmem:[%s1 + $0x570] sm:$0xf]
  %v588 = vld [vmem:[%s1 + $0x574] sm:$0xf]
  %v589 = vld [vmem:[%s1 + $0x578] sm:$0xf]
  %v590 = vld [vmem:[%s1 + $0x57c] sm:$0xf]
  %v591 = vld [vmem:[%s1 + $0x580] sm:$0xf]
  %v592 = vld [vmem:[%s1 + $0x584] sm:$0xf]
  %v593 = vld [vmem:[%s1 + $0x588] sm:$0xf]
  %v594 = vld [vmem:[%s1 + $0x58c] sm:$0xf]
  %v595 = vld [vmem:[%s1 + $0x590] sm:$0xf]
  %v596 = vld [vmem:[%s1 + $0x594] sm:$0xf]
  %v597 = vld [vmem:[%s1 + $0x598] sm:$0xf]
  %v598 = vld [vmem:[%s1 + $0x59c] sm:$0xf]
  %v599 = vld [vmem:[%s1 + $0x5a0] sm:$0xf]
  %v600 = vld [vmem:[%s1 + $0x5a4] sm:$0xf]
  %v601 = vld [vmem:[%s1 + $0x5a8] sm:$0xf]
  %v602 = vld [vmem:[%s1 + $0x5ac] sm:$0xf]
  %v603 = vld [vmem:[%s1 + $0x5b0] sm:$0xf]
  %v604 = vld [vmem:[%s1 + $0x5b4] sm:$0xf]
  %v605 = vld [vmem:[%s1 + $0x5b8] sm:$0xf]
  %v606 = vld [vmem:[%s1 + $0x5bc] sm:$0xf]
  %v607 = vld [vmem:[%s1 + $0x5c0] sm:$0xf]
  %v608 = vld [vmem:[%s1 + $0x5c4] sm:$0xf]
  %v609 = vld [vmem:[%s1 + $0x5c8] sm:$0xf]
  %v610 = vld [vmem:[%s1 + $0x5cc] sm:$0xf]
  %v611 = vld [vmem:[%s1 + $0x5d0] sm:$0xf]
  %v612 = vld [vmem:[%s1 + $0x5d4] sm:$0xf]
  %v613 = vld [vmem:[%s1 + $0x5d8] sm:$0xf]
  %v614 = vld [vmem:[%s1 + $0x5dc] sm:$0xf]
  %v615 = vld [vmem:[%s1 + $0x5e0] sm:$0xf]
  %v616 = vld [vmem:[%s1 + $0x5e4] sm:$0xf]
  %v617 = vld [vmem:[%s1 + $0x5e8] sm:$0xf]
  %v618 = vld [vmem:[%s1 + $0x5ec] sm:$0xf]
  %v619 = vld [vmem:[%s1 + $0x5f0] sm:$0xf]
  %v620 = vld [vmem:[%s1 + $0x5f4] sm:$0xf]
  %v621 = vld [vmem:[%s1 + $0x5f8] sm:$0xf]
  %v622 = vld [vmem:[%s1 + $0x5fc] sm:$0xf]
  %v623 = vld [vmem:[%s1 + $0x600] sm:$0xf]
  %v624 = vld [vmem:[%s1 + $0x604] sm:$0xf]
  %v625 = vld [vmem:[%s1 + $0x608] sm:$0xf]
  %v626 = vld [vmem:[%s1 + $0x60c] sm:$0xf]
  %v627 = vld [vmem:[%s1 + $0x610] sm:$0xf]
  %v628 = vld [vmem:[%s1 + $0x614] sm:$0xf]
  %v629 = vld [vmem:[%s1 + $0x618] sm:$0xf]
  %v630 = vld [vmem:[%s1 + $0x61c] sm:$0xf]
  %v631 = vld [vmem:[%s1 + $0x620] sm:$0xf]
  %v632 = vld [vmem:[%s1 + $0x624] sm:$0xf]
  %v633 = vld [vmem:[%s1 + $0x628] sm:$0xf]
  %v634 = vld [vmem:[%s1 + $0x62c] sm:$0xf]
  %v635 = vld [vmem:[%s1 + $0x630] sm:$0xf]
  %v636 = vld [vmem:[%s1 + $0x634] sm:$0xf]
  %v637 = vld [vmem:[%s1 + $0x638] sm:$0xf]
  %v638 = vld [vmem:[%s1 + $0x63c] sm:$0xf]
  %v639 = vld [vmem:[%s1 + $0x640] sm:$0xf]
  %v640 = vld [vmem:[%s1 + $0x644] sm:$0xf]
  %v641 = vld [vmem:[%s1 + $0x648] sm:$0xf]
  %v642 = vld [vmem:[%s1 + $0x64c] sm:$0xf]
  %v643 = vld [vmem:[%s1 + $0x650] sm:$0xf]
  %v644 = vld [vmem:[%s1 + $0x654] sm:$0xf]
  %v645 = vld [vmem:[%s1 + $0x658] sm:$0xf]
  %v646 = vld [vmem:[%s1 + $0x65c] sm:$0xf]
  %v647 = vld [vmem:[%s1 + $0x660] sm:$0xf]
  %v648 = vld [vmem:[%s1 + $0x664] sm:$0xf]
  %v649 = vld [vmem:[%s1 + $0x668] sm:$0xf]
  %v650 = vld [vmem:[%s1 + $0x66c] sm:$0xf]
  %v651 = vld [vmem:[%s1 + $0x670] sm:$0xf]
  %v652 = vld [vmem:[%s1 + $0x674] sm:$0xf]
  %v653 = vld [vmem:[%s1 + $0x678] sm:$0xf]
  %v654 = vld [vmem:[%s1 + $0x67c] sm:$0xf]
  %v655 = vld [vmem:[%s1 + $0x680] sm:$0xf]
  %v656 = vld [vmem:[%s1 + $0x684] sm:$0xf]
  %v657 = vld [vmem:[%s1 + $0x688] sm:$0xf]
  %v658 = vld [vmem:[%s1 + $0x68c] sm:$0xf]
  %v659 = vld [vmem:[%s1 + $0x690] sm:$0xf]
  %v660 = vld [vmem:[%s1 + $0x694] sm:$0xf]
  %v661 = vld [vmem:[%s1 + $0x698] sm:$0xf]
  %v662 = vld [vmem:[%s1 + $0x69c] sm:$0xf]
  %v663 = vld [vmem:[%s1 + $0x6a0] sm:$0xf]
  %v664 = vld [vmem:[%s1 + $0x6a4] sm:$0xf]
  %v665 = vld [vmem:[%s1 + $0x6a8] sm:$0xf]
  %v666 = vld [vmem:[%s1 + $0x6ac] sm:$0xf]
  %v667 = vld [vmem:[%s1 + $0x6b0] sm:$0xf]
  %v668 = vld [vmem:[%s1 + $0x6b4] sm:$0xf]
  %v669 = vld [vmem:[%s1 + $0x6b8] sm:$0xf]
  %v670 = vld [vmem:[%s1 + $0x6bc] sm:$0xf]
  %v671 = vld [vmem:[%s2] sm:$0x1]
  %v673 = vlaneseq
  %v674 = vshrl.u32 %v673, 7
  %v675 = vsub.s32 0, %v674
  %v676 = vrot.slane %v671, %v675
  %v902 = vunpack.c.l.b16 %v15
  %v903 = vunpack.c.h.b16 %v15
  %v904 = vunpack.c.l.b16 %v16
  %v905 = vunpack.c.h.b16 %v16
  %v906 = vunpack.c.l.b16 %v17
  %v907 = vunpack.c.h.b16 %v17
  %v908 = vunpack.c.l.b16 %v18
  %v909 = vunpack.c.h.b16 %v18
  %v910 = vunpack.c.l.b16 %v19
  %v911 = vunpack.c.h.b16 %v19
  %v912 = vunpack.c.l.b16 %v20
  %v913 = vunpack.c.h.b16 %v20
  %v914 = vunpack.c.l.b16 %v21
  %v915 = vunpack.c.h.b16 %v21
  %v916 = vunpack.c.l.b16 %v22
  %v917 = vunpack.c.h.b16 %v22
  %v918 = vunpack.c.l.b16 %v23
  %v919 = vunpack.c.h.b16 %v23
  %v920 = vunpack.c.l.b16 %v24
  %v921 = vunpack.c.h.b16 %v24
  %v922 = vunpack.c.l.b16 %v25
  %v923 = vunpack.c.h.b16 %v25
  %v924 = vunpack.c.l.b16 %v26
  %v925 = vunpack.c.h.b16 %v26
  %v926 = vunpack.c.l.b16 %v27
  %v927 = vunpack.c.h.b16 %v27
  %v928 = vunpack.c.l.b16 %v28
  %v929 = vunpack.c.l.b16 %v29
  %v930 = vunpack.c.h.b16 %v29
  %v931 = vunpack.c.l.b16 %v30
  %v932 = vunpack.c.h.b16 %v30
  %v933 = vunpack.c.l.b16 %v31
  %v934 = vunpack.c.h.b16 %v31
  %v935 = vunpack.c.l.b16 %v32
  %v936 = vunpack.c.h.b16 %v32
  %v937 = vunpack.c.l.b16 %v33
  %v938 = vunpack.c.h.b16 %v33
  %v939 = vunpack.c.l.b16 %v34
  %v940 = vunpack.c.h.b16 %v34
  %v941 = vunpack.c.l.b16 %v35
  %v942 = vunpack.c.h.b16 %v35
  %v943 = vunpack.c.l.b16 %v36
  %v944 = vunpack.c.h.b16 %v36
  %v945 = vunpack.c.l.b16 %v37
  %v946 = vunpack.c.h.b16 %v37
  %v947 = vunpack.c.l.b16 %v38
  %v948 = vunpack.c.h.b16 %v38
  %v949 = vunpack.c.l.b16 %v39
  %v950 = vunpack.c.h.b16 %v39
  %v951 = vunpack.c.l.b16 %v40
  %v952 = vunpack.c.h.b16 %v40
  %v953 = vunpack.c.l.b16 %v41
  %v954 = vunpack.c.h.b16 %v41
  %v955 = vunpack.c.l.b16 %v42
  %v956 = vunpack.c.l.b16 %v43
  %v957 = vunpack.c.h.b16 %v43
  %v958 = vunpack.c.l.b16 %v44
  %v959 = vunpack.c.h.b16 %v44
  %v960 = vunpack.c.l.b16 %v45
  %v961 = vunpack.c.h.b16 %v45
  %v962 = vunpack.c.l.b16 %v46
  %v963 = vunpack.c.h.b16 %v46
  %v964 = vunpack.c.l.b16 %v47
  %v965 = vunpack.c.h.b16 %v47
  %v966 = vunpack.c.l.b16 %v48
  %v967 = vunpack.c.h.b16 %v48
  %v968 = vunpack.c.l.b16 %v49
  %v969 = vunpack.c.h.b16 %v49
  %v970 = vunpack.c.l.b16 %v50
  %v971 = vunpack.c.h.b16 %v50
  %v972 = vunpack.c.l.b16 %v51
  %v973 = vunpack.c.h.b16 %v51
  %v974 = vunpack.c.l.b16 %v52
  %v975 = vunpack.c.h.b16 %v52
  %v976 = vunpack.c.l.b16 %v53
  %v977 = vunpack.c.h.b16 %v53
  %v978 = vunpack.c.l.b16 %v54
  %v979 = vunpack.c.h.b16 %v54
  %v980 = vunpack.c.l.b16 %v55
  %v981 = vunpack.c.h.b16 %v55
  %v982 = vunpack.c.l.b16 %v56
  %v983 = vunpack.c.l.b16 %v57
  %v984 = vunpack.c.h.b16 %v57
  %v985 = vunpack.c.l.b16 %v58
  %v986 = vunpack.c.h.b16 %v58
  %v987 = vunpack.c.l.b16 %v59
  %v988 = vunpack.c.h.b16 %v59
  %v989 = vunpack.c.l.b16 %v60
  %v990 = vunpack.c.h.b16 %v60
  %v991 = vunpack.c.l.b16 %v61
  %v992 = vunpack.c.h.b16 %v61
  %v993 = vunpack.c.l.b16 %v62
  %v994 = vunpack.c.h.b16 %v62
  %v995 = vunpack.c.l.b16 %v63
  %v996 = vunpack.c.h.b16 %v63
  %v997 = vunpack.c.l.b16 %v64
  %v998 = vunpack.c.h.b16 %v64
  %v999 = vunpack.c.l.b16 %v65
  %v1000 = vunpack.c.h.b16 %v65
  %v1001 = vunpack.c.l.b16 %v66
  %v1002 = vunpack.c.h.b16 %v66
  %v1003 = vunpack.c.l.b16 %v67
  %v1004 = vunpack.c.h.b16 %v67
  %v1005 = vunpack.c.l.b16 %v68
  %v1006 = vunpack.c.h.b16 %v68
  %v1007 = vunpack.c.l.b16 %v69
  %v1008 = vunpack.c.h.b16 %v69
  %v1009 = vunpack.c.l.b16 %v70
  %v1010 = vunpack.c.l.b16 %v71
  %v1011 = vunpack.c.h.b16 %v71
  %v1012 = vunpack.c.l.b16 %v72
  %v1013 = vunpack.c.h.b16 %v72
  %v1014 = vunpack.c.l.b16 %v73
  %v1015 = vunpack.c.h.b16 %v73
  %v1016 = vunpack.c.l.b16 %v74
  %v1017 = vunpack.c.h.b16 %v74
  %v1018 = vunpack.c.l.b16 %v75
  %v1019 = vunpack.c.h.b16 %v75
  %v1020 = vunpack.c.l.b16 %v76
  %v1021 = vunpack.c.h.b16 %v76
  %v1022 = vunpack.c.l.b16 %v77
  %v1023 = vunpack.c.h.b16 %v77
  %v1024 = vunpack.c.l.b16 %v78
  %v1025 = vunpack.c.h.b16 %v78
  %v1026 = vunpack.c.l.b16 %v79
  %v1027 = vunpack.c.h.b16 %v79
  %v1028 = vunpack.c.l.b16 %v80
  %v1029 = vunpack.c.h.b16 %v80
  %v1030 = vunpack.c.l.b16 %v81
  %v1031 = vunpack.c.h.b16 %v81
  %v1032 = vunpack.c.l.b16 %v82
  %v1033 = vunpack.c.h.b16 %v82
  %v1034 = vunpack.c.l.b16 %v83
  %v1035 = vunpack.c.h.b16 %v83
  %v1036 = vunpack.c.l.b16 %v84
  %v1037 = vunpack.c.l.b16 %v85
  %v1038 = vunpack.c.h.b16 %v85
  %v1039 = vunpack.c.l.b16 %v86
  %v1040 = vunpack.c.h.b16 %v86
  %v1041 = vunpack.c.l.b16 %v87
  %v1042 = vunpack.c.h.b16 %v87
  %v1043 = vunpack.c.l.b16 %v88
  %v1044 = vunpack.c.h.b16 %v88
  %v1045 = vunpack.c.l.b16 %v89
  %v1046 = vunpack.c.h.b16 %v89
  %v1047 = vunpack.c.l.b16 %v90
  %v1048 = vunpack.c.h.b16 %v90
  %v1049 = vunpack.c.l.b16 %v91
  %v1050 = vunpack.c.h.b16 %v91
  %v1051 = vunpack.c.l.b16 %v92
  %v1052 = vunpack.c.h.b16 %v92
  %v1053 = vunpack.c.l.b16 %v93
  %v1054 = vunpack.c.h.b16 %v93
  %v1055 = vunpack.c.l.b16 %v94
  %v1056 = vunpack.c.h.b16 %v94
  %v1057 = vunpack.c.l.b16 %v95
  %v1058 = vunpack.c.h.b16 %v95
  %v1059 = vunpack.c.l.b16 %v96
  %v1060 = vunpack.c.h.b16 %v96
  %v1061 = vunpack.c.l.b16 %v97
  %v1062 = vunpack.c.h.b16 %v97
  %v1063 = vunpack.c.l.b16 %v98
  %v1064 = vunpack.c.l.b16 %v99
  %v1065 = vunpack.c.h.b16 %v99
  %v1066 = vunpack.c.l.b16 %v100
  %v1067 = vunpack.c.h.b16 %v100
  %v1068 = vunpack.c.l.b16 %v101
  %v1069 = vunpack.c.h.b16 %v101
  %v1070 = vunpack.c.l.b16 %v102
  %v1071 = vunpack.c.h.b16 %v102
  %v1072 = vunpack.c.l.b16 %v103
  %v1073 = vunpack.c.h.b16 %v103
  %v1074 = vunpack.c.l.b16 %v104
  %v1075 = vunpack.c.h.b16 %v104
  %v1076 = vunpack.c.l.b16 %v105
  %v1077 = vunpack.c.h.b16 %v105
  %v1078 = vunpack.c.l.b16 %v106
  %v1079 = vunpack.c.h.b16 %v106
  %v1080 = vunpack.c.l.b16 %v107
  %v1081 = vunpack.c.h.b16 %v107
  %v1082 = vunpack.c.l.b16 %v108
  %v1083 = vunpack.c.h.b16 %v108
  %v1084 = vunpack.c.l.b16 %v109
  %v1085 = vunpack.c.h.b16 %v109
  %v1086 = vunpack.c.l.b16 %v110
  %v1087 = vunpack.c.h.b16 %v110
  %v1088 = vunpack.c.l.b16 %v111
  %v1089 = vunpack.c.h.b16 %v111
  %v1090 = vunpack.c.l.b16 %v112
  %v1091 = vunpack.c.l.b16 %v113
  %v1092 = vunpack.c.h.b16 %v113
  %v1093 = vunpack.c.l.b16 %v114
  %v1094 = vunpack.c.h.b16 %v114
  %v1095 = vunpack.c.l.b16 %v115
  %v1096 = vunpack.c.h.b16 %v115
  %v1097 = vunpack.c.l.b16 %v116
  %v1098 = vunpack.c.h.b16 %v116
  %v1099 = vunpack.c.l.b16 %v117
  %v1100 = vunpack.c.h.b16 %v117
  %v1101 = vunpack.c.l.b16 %v118
  %v1102 = vunpack.c.h.b16 %v118
  %v1103 = vunpack.c.l.b16 %v119
  %v1104 = vunpack.c.h.b16 %v119
  %v1105 = vunpack.c.l.b16 %v120
  %v1106 = vunpack.c.h.b16 %v120
  %v1107 = vunpack.c.l.b16 %v121
  %v1108 = vunpack.c.h.b16 %v121
  %v1109 = vunpack.c.l.b16 %v122
  %v1110 = vunpack.c.h.b16 %v122
  %v1111 = vunpack.c.l.b16 %v123
  %v1112 = vunpack.c.h.b16 %v123
  %v1113 = vunpack.c.l.b16 %v124
  %v1114 = vunpack.c.h.b16 %v124
  %v1115 = vunpack.c.l.b16 %v125
  %v1116 = vunpack.c.h.b16 %v125
  %v1117 = vunpack.c.l.b16 %v126
  %v1118 = vunpack.c.l.b16 %v127
  %v1119 = vunpack.c.h.b16 %v127
  %v1120 = vunpack.c.l.b16 %v128
  %v1121 = vunpack.c.h.b16 %v128
  %v1122 = vunpack.c.l.b16 %v129
  %v1123 = vunpack.c.h.b16 %v129
  %v1124 = vunpack.c.l.b16 %v130
  %v1125 = vunpack.c.h.b16 %v130
  %v1126 = vunpack.c.l.b16 %v131
  %v1127 = vunpack.c.h.b16 %v131
  %v1128 = vunpack.c.l.b16 %v132
  %v1129 = vunpack.c.h.b16 %v132
  %v1130 = vunpack.c.l.b16 %v133
  %v1131 = vunpack.c.h.b16 %v133
  %v1132 = vunpack.c.l.b16 %v134
  %v1133 = vunpack.c.h.b16 %v134
  %v1134 = vunpack.c.l.b16 %v135
  %v1135 = vunpack.c.h.b16 %v135
  %v1136 = vunpack.c.l.b16 %v136
  %v1137 = vunpack.c.h.b16 %v136
  %v1138 = vunpack.c.l.b16 %v137
  %v1139 = vunpack.c.h.b16 %v137
  %v1140 = vunpack.c.l.b16 %v138
  %v1141 = vunpack.c.h.b16 %v138
  %v1142 = vunpack.c.l.b16 %v139
  %v1143 = vunpack.c.h.b16 %v139
  %v1144 = vunpack.c.l.b16 %v140
  %v1145 = vunpack.c.l.b16 %v141
  %v1146 = vunpack.c.h.b16 %v141
  %v1147 = vunpack.c.l.b16 %v142
  %v1148 = vunpack.c.h.b16 %v142
  %v1149 = vunpack.c.l.b16 %v143
  %v1150 = vunpack.c.h.b16 %v143
  %v1151 = vunpack.c.l.b16 %v144
  %v1152 = vunpack.c.h.b16 %v144
  %v1153 = vunpack.c.l.b16 %v145
  %v1154 = vunpack.c.h.b16 %v145
  %v1155 = vunpack.c.l.b16 %v146
  %v1156 = vunpack.c.h.b16 %v146
  %v1157 = vunpack.c.l.b16 %v147
  %v1158 = vunpack.c.h.b16 %v147
  %v1159 = vunpack.c.l.b16 %v148
  %v1160 = vunpack.c.h.b16 %v148
  %v1161 = vunpack.c.l.b16 %v149
  %v1162 = vunpack.c.h.b16 %v149
  %v1163 = vunpack.c.l.b16 %v150
  %v1164 = vunpack.c.h.b16 %v150
  %v1165 = vunpack.c.l.b16 %v151
  %v1166 = vunpack.c.h.b16 %v151
  %v1167 = vunpack.c.l.b16 %v152
  %v1168 = vunpack.c.h.b16 %v152
  %v1169 = vunpack.c.l.b16 %v153
  %v1170 = vunpack.c.h.b16 %v153
  %v1171 = vunpack.c.l.b16 %v154
  %v1172 = vunpack.c.l.b16 %v155
  %v1173 = vunpack.c.h.b16 %v155
  %v1174 = vunpack.c.l.b16 %v156
  %v1175 = vunpack.c.h.b16 %v156
  %v1176 = vunpack.c.l.b16 %v157
  %v1177 = vunpack.c.h.b16 %v157
  %v1178 = vunpack.c.l.b16 %v158
  %v1179 = vunpack.c.h.b16 %v158
  %v1180 = vunpack.c.l.b16 %v159
  %v1181 = vunpack.c.h.b16 %v159
  %v1182 = vunpack.c.l.b16 %v160
  %v1183 = vunpack.c.h.b16 %v160
  %v1184 = vunpack.c.l.b16 %v161
  %v1185 = vunpack.c.h.b16 %v161
  %v1186 = vunpack.c.l.b16 %v162
  %v1187 = vunpack.c.h.b16 %v162
  %v1188 = vunpack.c.l.b16 %v163
  %v1189 = vunpack.c.h.b16 %v163
  %v1190 = vunpack.c.l.b16 %v164
  %v1191 = vunpack.c.h.b16 %v164
  %v1192 = vunpack.c.l.b16 %v165
  %v1193 = vunpack.c.h.b16 %v165
  %v1194 = vunpack.c.l.b16 %v166
  %v1195 = vunpack.c.h.b16 %v166
  %v1196 = vunpack.c.l.b16 %v167
  %v1197 = vunpack.c.h.b16 %v167
  %v1198 = vunpack.c.l.b16 %v168
  %v1199 = vunpack.c.l.b16 %v169
  %v1200 = vunpack.c.h.b16 %v169
  %v1201 = vunpack.c.l.b16 %v170
  %v1202 = vunpack.c.h.b16 %v170
  %v1203 = vunpack.c.l.b16 %v171
  %v1204 = vunpack.c.h.b16 %v171
  %v1205 = vunpack.c.l.b16 %v172
  %v1206 = vunpack.c.h.b16 %v172
  %v1207 = vunpack.c.l.b16 %v173
  %v1208 = vunpack.c.h.b16 %v173
  %v1209 = vunpack.c.l.b16 %v174
  %v1210 = vunpack.c.h.b16 %v174
  %v1211 = vunpack.c.l.b16 %v175
  %v1212 = vunpack.c.h.b16 %v175
  %v1213 = vunpack.c.l.b16 %v176
  %v1214 = vunpack.c.h.b16 %v176
  %v1215 = vunpack.c.l.b16 %v177
  %v1216 = vunpack.c.h.b16 %v177
  %v1217 = vunpack.c.l.b16 %v178
  %v1218 = vunpack.c.h.b16 %v178
  %v1219 = vunpack.c.l.b16 %v179
  %v1220 = vunpack.c.h.b16 %v179
  %v1221 = vunpack.c.l.b16 %v180
  %v1222 = vunpack.c.h.b16 %v180
  %v1223 = vunpack.c.l.b16 %v181
  %v1224 = vunpack.c.h.b16 %v181
  %v1225 = vunpack.c.l.b16 %v182
  %v1226 = vunpack.c.l.b16 %v183
  %v1227 = vunpack.c.h.b16 %v183
  %v1228 = vunpack.c.l.b16 %v184
  %v1229 = vunpack.c.h.b16 %v184
  %v1230 = vunpack.c.l.b16 %v185
  %v1231 = vunpack.c.h.b16 %v185
  %v1232 = vunpack.c.l.b16 %v186
  %v1233 = vunpack.c.h.b16 %v186
  %v1234 = vunpack.c.l.b16 %v187
  %v1235 = vunpack.c.h.b16 %v187
  %v1236 = vunpack.c.l.b16 %v188
  %v1237 = vunpack.c.h.b16 %v188
  %v1238 = vunpack.c.l.b16 %v189
  %v1239 = vunpack.c.h.b16 %v189
  %v1240 = vunpack.c.l.b16 %v190
  %v1241 = vunpack.c.h.b16 %v190
  %v1242 = vunpack.c.l.b16 %v191
  %v1243 = vunpack.c.h.b16 %v191
  %v1244 = vunpack.c.l.b16 %v192
  %v1245 = vunpack.c.h.b16 %v192
  %v1246 = vunpack.c.l.b16 %v193
  %v1247 = vunpack.c.h.b16 %v193
  %v1248 = vunpack.c.l.b16 %v194
  %v1249 = vunpack.c.h.b16 %v194
  %v1250 = vunpack.c.l.b16 %v195
  %v1251 = vunpack.c.h.b16 %v195
  %v1252 = vunpack.c.l.b16 %v196
  %v1253 = vunpack.c.l.b16 %v197
  %v1254 = vunpack.c.h.b16 %v197
  %v1255 = vunpack.c.l.b16 %v198
  %v1256 = vunpack.c.h.b16 %v198
  %v1257 = vunpack.c.l.b16 %v199
  %v1258 = vunpack.c.h.b16 %v199
  %v1259 = vunpack.c.l.b16 %v200
  %v1260 = vunpack.c.h.b16 %v200
  %v1261 = vunpack.c.l.b16 %v201
  %v1262 = vunpack.c.h.b16 %v201
  %v1263 = vunpack.c.l.b16 %v202
  %v1264 = vunpack.c.h.b16 %v202
  %v1265 = vunpack.c.l.b16 %v203
  %v1266 = vunpack.c.h.b16 %v203
  %v1267 = vunpack.c.l.b16 %v204
  %v1268 = vunpack.c.h.b16 %v204
  %v1269 = vunpack.c.l.b16 %v205
  %v1270 = vunpack.c.h.b16 %v205
  %v1271 = vunpack.c.l.b16 %v206
  %v1272 = vunpack.c.h.b16 %v206
  %v1273 = vunpack.c.l.b16 %v207
  %v1274 = vunpack.c.h.b16 %v207
  %v1275 = vunpack.c.l.b16 %v208
  %v1276 = vunpack.c.h.b16 %v208
  %v1277 = vunpack.c.l.b16 %v209
  %v1278 = vunpack.c.h.b16 %v209
  %v1279 = vunpack.c.l.b16 %v210
  %v1280 = vunpack.c.l.b16 %v211
  %v1281 = vunpack.c.h.b16 %v211
  %v1282 = vunpack.c.l.b16 %v212
  %v1283 = vunpack.c.h.b16 %v212
  %v1284 = vunpack.c.l.b16 %v213
  %v1285 = vunpack.c.h.b16 %v213
  %v1286 = vunpack.c.l.b16 %v214
  %v1287 = vunpack.c.h.b16 %v214
  %v1288 = vunpack.c.l.b16 %v215
  %v1289 = vunpack.c.h.b16 %v215
  %v1290 = vunpack.c.l.b16 %v216
  %v1291 = vunpack.c.h.b16 %v216
  %v1292 = vunpack.c.l.b16 %v217
  %v1293 = vunpack.c.h.b16 %v217
  %v1294 = vunpack.c.l.b16 %v218
  %v1295 = vunpack.c.h.b16 %v218
  %v1296 = vunpack.c.l.b16 %v219
  %v1297 = vunpack.c.h.b16 %v219
  %v1298 = vunpack.c.l.b16 %v220
  %v1299 = vunpack.c.h.b16 %v220
  %v1300 = vunpack.c.l.b16 %v221
  %v1301 = vunpack.c.h.b16 %v221
  %v1302 = vunpack.c.l.b16 %v222
  %v1303 = vunpack.c.h.b16 %v222
  %v1304 = vunpack.c.l.b16 %v223
  %v1305 = vunpack.c.h.b16 %v223
  %v1306 = vunpack.c.l.b16 %v224
  %v1307 = vunpack.c.l.b16 %v225
  %v1308 = vunpack.c.h.b16 %v225
  %v1309 = vunpack.c.l.b16 %v226
  %v1310 = vunpack.c.h.b16 %v226
  %v1311 = vunpack.c.l.b16 %v227
  %v1312 = vunpack.c.h.b16 %v227
  %v1313 = vunpack.c.l.b16 %v228
  %v1314 = vunpack.c.h.b16 %v228
  %v1315 = vunpack.c.l.b16 %v229
  %v1316 = vunpack.c.h.b16 %v229
  %v1317 = vunpack.c.l.b16 %v230
  %v1318 = vunpack.c.h.b16 %v230
  %v1319 = vunpack.c.l.b16 %v231
  %v1320 = vunpack.c.h.b16 %v231
  %v1321 = vunpack.c.l.b16 %v232
  %v1322 = vunpack.c.h.b16 %v232
  %v1323 = vunpack.c.l.b16 %v233
  %v1324 = vunpack.c.h.b16 %v233
  %v1325 = vunpack.c.l.b16 %v234
  %v1326 = vunpack.c.h.b16 %v234
  %v1327 = vunpack.c.l.b16 %v235
  %v1328 = vunpack.c.h.b16 %v235
  %v1329 = vunpack.c.l.b16 %v236
  %v1330 = vunpack.c.h.b16 %v236
  %v1331 = vunpack.c.l.b16 %v237
  %v1332 = vunpack.c.h.b16 %v237
  %v1333 = vunpack.c.l.b16 %v238
  %v1334 = vpack.c.b16 %v929, %v902
  %v1335 = vpack.c.b16 %v930, %v903
  %v1336 = vpack.c.b16 %v931, %v904
  %v1337 = vpack.c.b16 %v932, %v905
  %v1338 = vpack.c.b16 %v933, %v906
  %v1339 = vpack.c.b16 %v934, %v907
  %v1340 = vpack.c.b16 %v935, %v908
  %v1341 = vpack.c.b16 %v936, %v909
  %v1342 = vpack.c.b16 %v937, %v910
  %v1343 = vpack.c.b16 %v938, %v911
  %v1344 = vpack.c.b16 %v939, %v912
  %v1345 = vpack.c.b16 %v940, %v913
  %v1346 = vpack.c.b16 %v941, %v914
  %v1347 = vpack.c.b16 %v942, %v915
  %v1348 = vpack.c.b16 %v943, %v916
  %v1349 = vpack.c.b16 %v944, %v917
  %v1350 = vpack.c.b16 %v945, %v918
  %v1351 = vpack.c.b16 %v946, %v919
  %v1352 = vpack.c.b16 %v947, %v920
  %v1353 = vpack.c.b16 %v948, %v921
  %v1354 = vpack.c.b16 %v949, %v922
  %v1355 = vpack.c.b16 %v950, %v923
  %v1356 = vpack.c.b16 %v951, %v924
  %v1357 = vpack.c.b16 %v952, %v925
  %v1358 = vpack.c.b16 %v953, %v926
  %v1359 = vpack.c.b16 %v954, %v927
  %v1360 = vpack.c.b16 %v955, %v928
  %v1361 = vpack.c.b16 %v983, %v956
  %v1362 = vpack.c.b16 %v984, %v957
  %v1363 = vpack.c.b16 %v985, %v958
  %v1364 = vpack.c.b16 %v986, %v959
  %v1365 = vpack.c.b16 %v987, %v960
  %v1366 = vpack.c.b16 %v988, %v961
  %v1367 = vpack.c.b16 %v989, %v962
  %v1368 = vpack.c.b16 %v990, %v963
  %v1369 = vpack.c.b16 %v991, %v964
  %v1370 = vpack.c.b16 %v992, %v965
  %v1371 = vpack.c.b16 %v993, %v966
  %v1372 = vpack.c.b16 %v994, %v967
  %v1373 = vpack.c.b16 %v995, %v968
  %v1374 = vpack.c.b16 %v996, %v969
  %v1375 = vpack.c.b16 %v997, %v970
  %v1376 = vpack.c.b16 %v998, %v971
  %v1377 = vpack.c.b16 %v999, %v972
  %v1378 = vpack.c.b16 %v1000, %v973
  %v1379 = vpack.c.b16 %v1001, %v974
  %v1380 = vpack.c.b16 %v1002, %v975
  %v1381 = vpack.c.b16 %v1003, %v976
  %v1382 = vpack.c.b16 %v1004, %v977
  %v1383 = vpack.c.b16 %v1005, %v978
  %v1384 = vpack.c.b16 %v1006, %v979
  %v1385 = vpack.c.b16 %v1007, %v980
  %v1386 = vpack.c.b16 %v1008, %v981
  %v1387 = vpack.c.b16 %v1009, %v982
  %v1388 = vpack.c.b16 %v1037, %v1010
  %v1389 = vpack.c.b16 %v1038, %v1011
  %v1390 = vpack.c.b16 %v1039, %v1012
  %v1391 = vpack.c.b16 %v1040, %v1013
  %v1392 = vpack.c.b16 %v1041, %v1014
  %v1393 = vpack.c.b16 %v1042, %v1015
  %v1394 = vpack.c.b16 %v1043, %v1016
  %v1395 = vpack.c.b16 %v1044, %v1017
  %v1396 = vpack.c.b16 %v1045, %v1018
  %v1397 = vpack.c.b16 %v1046, %v1019
  %v1398 = vpack.c.b16 %v1047, %v1020
  %v1399 = vpack.c.b16 %v1048, %v1021
  %v1400 = vpack.c.b16 %v1049, %v1022
  %v1401 = vpack.c.b16 %v1050, %v1023
  %v1402 = vpack.c.b16 %v1051, %v1024
  %v1403 = vpack.c.b16 %v1052, %v1025
  %v1404 = vpack.c.b16 %v1053, %v1026
  %v1405 = vpack.c.b16 %v1054, %v1027
  %v1406 = vpack.c.b16 %v1055, %v1028
  %v1407 = vpack.c.b16 %v1056, %v1029
  %v1408 = vpack.c.b16 %v1057, %v1030
  %v1409 = vpack.c.b16 %v1058, %v1031
  %v1410 = vpack.c.b16 %v1059, %v1032
  %v1411 = vpack.c.b16 %v1060, %v1033
  %v1412 = vpack.c.b16 %v1061, %v1034
  %v1413 = vpack.c.b16 %v1062, %v1035
  %v1414 = vpack.c.b16 %v1063, %v1036
  %v1415 = vpack.c.b16 %v1091, %v1064
  %v1416 = vpack.c.b16 %v1092, %v1065
  %v1417 = vpack.c.b16 %v1093, %v1066
  %v1418 = vpack.c.b16 %v1094, %v1067
  %v1419 = vpack.c.b16 %v1095, %v1068
  %v1420 = vpack.c.b16 %v1096, %v1069
  %v1421 = vpack.c.b16 %v1097, %v1070
  %v1422 = vpack.c.b16 %v1098, %v1071
  %v1423 = vpack.c.b16 %v1099, %v1072
  %v1424 = vpack.c.b16 %v1100, %v1073
  %v1425 = vpack.c.b16 %v1101, %v1074
  %v1426 = vpack.c.b16 %v1102, %v1075
  %v1427 = vpack.c.b16 %v1103, %v1076
  %v1428 = vpack.c.b16 %v1104, %v1077
  %v1429 = vpack.c.b16 %v1105, %v1078
  %v1430 = vpack.c.b16 %v1106, %v1079
  %v1431 = vpack.c.b16 %v1107, %v1080
  %v1432 = vpack.c.b16 %v1108, %v1081
  %v1433 = vpack.c.b16 %v1109, %v1082
  %v1434 = vpack.c.b16 %v1110, %v1083
  %v1435 = vpack.c.b16 %v1111, %v1084
  %v1436 = vpack.c.b16 %v1112, %v1085
  %v1437 = vpack.c.b16 %v1113, %v1086
  %v1438 = vpack.c.b16 %v1114, %v1087
  %v1439 = vpack.c.b16 %v1115, %v1088
  %v1440 = vpack.c.b16 %v1116, %v1089
  %v1441 = vpack.c.b16 %v1117, %v1090
  %v1442 = vpack.c.b16 %v1145, %v1118
  %v1443 = vpack.c.b16 %v1146, %v1119
  %v1444 = vpack.c.b16 %v1147, %v1120
  %v1445 = vpack.c.b16 %v1148, %v1121
  %v1446 = vpack.c.b16 %v1149, %v1122
  %v1447 = vpack.c.b16 %v1150, %v1123
  %v1448 = vpack.c.b16 %v1151, %v1124
  %v1449 = vpack.c.b16 %v1152, %v1125
  %v1450 = vpack.c.b16 %v1153, %v1126
  %v1451 = vpack.c.b16 %v1154, %v1127
  %v1452 = vpack.c.b16 %v1155, %v1128
  %v1453 = vpack.c.b16 %v1156, %v1129
  %v1454 = vpack.c.b16 %v1157, %v1130
  %v1455 = vpack.c.b16 %v1158, %v1131
  %v1456 = vpack.c.b16 %v1159, %v1132
  %v1457 = vpack.c.b16 %v1160, %v1133
  %v1458 = vpack.c.b16 %v1161, %v1134
  %v1459 = vpack.c.b16 %v1162, %v1135
  %v1460 = vpack.c.b16 %v1163, %v1136
  %v1461 = vpack.c.b16 %v1164, %v1137
  %v1462 = vpack.c.b16 %v1165, %v1138
  %v1463 = vpack.c.b16 %v1166, %v1139
  %v1464 = vpack.c.b16 %v1167, %v1140
  %v1465 = vpack.c.b16 %v1168, %v1141
  %v1466 = vpack.c.b16 %v1169, %v1142
  %v1467 = vpack.c.b16 %v1170, %v1143
  %v1468 = vpack.c.b16 %v1171, %v1144
  %v1469 = vpack.c.b16 %v1199, %v1172
  %v1470 = vpack.c.b16 %v1200, %v1173
  %v1471 = vpack.c.b16 %v1201, %v1174
  %v1472 = vpack.c.b16 %v1202, %v1175
  %v1473 = vpack.c.b16 %v1203, %v1176
  %v1474 = vpack.c.b16 %v1204, %v1177
  %v1475 = vpack.c.b16 %v1205, %v1178
  %v1476 = vpack.c.b16 %v1206, %v1179
  %v1477 = vpack.c.b16 %v1207, %v1180
  %v1478 = vpack.c.b16 %v1208, %v1181
  %v1479 = vpack.c.b16 %v1209, %v1182
  %v1480 = vpack.c.b16 %v1210, %v1183
  %v1481 = vpack.c.b16 %v1211, %v1184
  %v1482 = vpack.c.b16 %v1212, %v1185
  %v1483 = vpack.c.b16 %v1213, %v1186
  %v1484 = vpack.c.b16 %v1214, %v1187
  %v1485 = vpack.c.b16 %v1215, %v1188
  %v1486 = vpack.c.b16 %v1216, %v1189
  %v1487 = vpack.c.b16 %v1217, %v1190
  %v1488 = vpack.c.b16 %v1218, %v1191
  %v1489 = vpack.c.b16 %v1219, %v1192
  %v1490 = vpack.c.b16 %v1220, %v1193
  %v1491 = vpack.c.b16 %v1221, %v1194
  %v1492 = vpack.c.b16 %v1222, %v1195
  %v1493 = vpack.c.b16 %v1223, %v1196
  %v1494 = vpack.c.b16 %v1224, %v1197
  %v1495 = vpack.c.b16 %v1225, %v1198
  %v1496 = vpack.c.b16 %v1253, %v1226
  %v1497 = vpack.c.b16 %v1254, %v1227
  %v1498 = vpack.c.b16 %v1255, %v1228
  %v1499 = vpack.c.b16 %v1256, %v1229
  %v1500 = vpack.c.b16 %v1257, %v1230
  %v1501 = vpack.c.b16 %v1258, %v1231
  %v1502 = vpack.c.b16 %v1259, %v1232
  %v1503 = vpack.c.b16 %v1260, %v1233
  %v1504 = vpack.c.b16 %v1261, %v1234
  %v1505 = vpack.c.b16 %v1262, %v1235
  %v1506 = vpack.c.b16 %v1263, %v1236
  %v1507 = vpack.c.b16 %v1264, %v1237
  %v1508 = vpack.c.b16 %v1265, %v1238
  %v1509 = vpack.c.b16 %v1266, %v1239
  %v1510 = vpack.c.b16 %v1267, %v1240
  %v1511 = vpack.c.b16 %v1268, %v1241
  %v1512 = vpack.c.b16 %v1269, %v1242
  %v1513 = vpack.c.b16 %v1270, %v1243
  %v1514 = vpack.c.b16 %v1271, %v1244
  %v1515 = vpack.c.b16 %v1272, %v1245
  %v1516 = vpack.c.b16 %v1273, %v1246
  %v1517 = vpack.c.b16 %v1274, %v1247
  %v1518 = vpack.c.b16 %v1275, %v1248
  %v1519 = vpack.c.b16 %v1276, %v1249
  %v1520 = vpack.c.b16 %v1277, %v1250
  %v1521 = vpack.c.b16 %v1278, %v1251
  %v1522 = vpack.c.b16 %v1279, %v1252
  %v1523 = vpack.c.b16 %v1307, %v1280
  %v1524 = vpack.c.b16 %v1308, %v1281
  %v1525 = vpack.c.b16 %v1309, %v1282
  %v1526 = vpack.c.b16 %v1310, %v1283
  %v1527 = vpack.c.b16 %v1311, %v1284
  %v1528 = vpack.c.b16 %v1312, %v1285
  %v1529 = vpack.c.b16 %v1313, %v1286
  %v1530 = vpack.c.b16 %v1314, %v1287
  %v1531 = vpack.c.b16 %v1315, %v1288
  %v1532 = vpack.c.b16 %v1316, %v1289
  %v1533 = vpack.c.b16 %v1317, %v1290
  %v1534 = vpack.c.b16 %v1318, %v1291
  %v1535 = vpack.c.b16 %v1319, %v1292
  %v1536 = vpack.c.b16 %v1320, %v1293
  %v1537 = vpack.c.b16 %v1321, %v1294
  %v1538 = vpack.c.b16 %v1322, %v1295
  %v1539 = vpack.c.b16 %v1323, %v1296
  %v1540 = vpack.c.b16 %v1324, %v1297
  %v1541 = vpack.c.b16 %v1325, %v1298
  %v1542 = vpack.c.b16 %v1326, %v1299
  %v1543 = vpack.c.b16 %v1327, %v1300
  %v1544 = vpack.c.b16 %v1328, %v1301
  %v1545 = vpack.c.b16 %v1329, %v1302
  %v1546 = vpack.c.b16 %v1330, %v1303
  %v1547 = vpack.c.b16 %v1331, %v1304
  %v1548 = vpack.c.b16 %v1332, %v1305
  %v1549 = vpack.c.b16 %v1333, %v1306
  %v2198 = vunpack.c.l.b16 %v239
  %v2199 = vunpack.c.l.b16 %v240
  %v2200 = vunpack.c.l.b16 %v241
  %v2201 = vunpack.c.l.b16 %v242
  %v2202 = vunpack.c.l.b16 %v243
  %v2203 = vunpack.c.l.b16 %v244
  %v2204 = vunpack.c.l.b16 %v245
  %v2205 = vunpack.c.l.b16 %v246
  %v2206 = vunpack.c.l.b16 %v247
  %v2207 = vunpack.c.l.b16 %v248
  %v2208 = vunpack.c.l.b16 %v249
  %v2209 = vunpack.c.l.b16 %v250
  %v2210 = vunpack.c.l.b16 %v251
  %v2211 = vunpack.c.l.b16 %v252
  %v2212 = vunpack.c.l.b16 %v253
  %v2213 = vunpack.c.l.b16 %v254
  %v2214 = vunpack.c.l.b16 %v255
  %v2215 = vunpack.c.l.b16 %v256
  %v2216 = vunpack.c.l.b16 %v257
  %v2217 = vunpack.c.l.b16 %v258
  %v2218 = vunpack.c.l.b16 %v259
  %v2219 = vunpack.c.l.b16 %v260
  %v2220 = vunpack.c.l.b16 %v261
  %v2221 = vunpack.c.l.b16 %v262
  %v2222 = vunpack.c.l.b16 %v263
  %v2223 = vunpack.c.l.b16 %v264
  %v2224 = vunpack.c.l.b16 %v265
  %v2225 = vunpack.c.l.b16 %v266
  %v2226 = vunpack.c.l.b16 %v267
  %v2227 = vunpack.c.l.b16 %v268
  %v2228 = vunpack.c.l.b16 %v269
  %v2229 = vunpack.c.l.b16 %v270
  %v2230 = vunpack.c.l.b16 %v271
  %v2231 = vunpack.c.l.b16 %v272
  %v2232 = vunpack.c.l.b16 %v273
  %v2233 = vunpack.c.l.b16 %v274
  %v2234 = vunpack.c.l.b16 %v275
  %v2235 = vunpack.c.l.b16 %v276
  %v2236 = vunpack.c.l.b16 %v277
  %v2237 = vunpack.c.l.b16 %v278
  %v2238 = vunpack.c.l.b16 %v279
  %v2239 = vunpack.c.l.b16 %v280
  %v2240 = vunpack.c.l.b16 %v281
  %v2241 = vunpack.c.l.b16 %v282
  %v2242 = vunpack.c.l.b16 %v283
  %v2243 = vunpack.c.l.b16 %v284
  %v2244 = vunpack.c.l.b16 %v285
  %v2245 = vunpack.c.l.b16 %v286
  %v2246 = vunpack.c.l.b16 %v287
  %v2247 = vunpack.c.l.b16 %v288
  %v2248 = vunpack.c.l.b16 %v289
  %v2249 = vunpack.c.l.b16 %v290
  %v2250 = vunpack.c.l.b16 %v291
  %v2251 = vunpack.c.l.b16 %v292
  %v2252 = vunpack.c.l.b16 %v293
  %v2253 = vunpack.c.l.b16 %v294
  %v2254 = vunpack.c.l.b16 %v295
  %v2255 = vunpack.c.l.b16 %v296
  %v2256 = vunpack.c.l.b16 %v297
  %v2257 = vunpack.c.l.b16 %v298
  %v2258 = vunpack.c.l.b16 %v299
  %v2259 = vunpack.c.l.b16 %v300
  %v2260 = vunpack.c.l.b16 %v301
  %v2261 = vunpack.c.l.b16 %v302
  %v2262 = vunpack.c.l.b16 %v303
  %v2263 = vunpack.c.l.b16 %v304
  %v2264 = vunpack.c.l.b16 %v305
  %v2265 = vunpack.c.l.b16 %v306
  %v2266 = vunpack.c.l.b16 %v307
  %v2267 = vunpack.c.l.b16 %v308
  %v2268 = vunpack.c.l.b16 %v309
  %v2269 = vunpack.c.l.b16 %v310
  %v2270 = vunpack.c.l.b16 %v311
  %v2271 = vunpack.c.l.b16 %v312
  %v2272 = vunpack.c.l.b16 %v313
  %v2273 = vunpack.c.l.b16 %v314
  %v2274 = vunpack.c.l.b16 %v315
  %v2275 = vunpack.c.l.b16 %v316
  %v2276 = vunpack.c.l.b16 %v317
  %v2277 = vunpack.c.l.b16 %v318
  %v2278 = vunpack.c.l.b16 %v319
  %v2279 = vunpack.c.l.b16 %v320
  %v2280 = vunpack.c.l.b16 %v321
  %v2281 = vunpack.c.l.b16 %v322
  %v2282 = vunpack.c.l.b16 %v323
  %v2283 = vunpack.c.l.b16 %v324
  %v2284 = vunpack.c.l.b16 %v325
  %v2285 = vunpack.c.l.b16 %v326
  %v2286 = vunpack.c.l.b16 %v327
  %v2287 = vunpack.c.l.b16 %v328
  %v2288 = vunpack.c.l.b16 %v329
  %v2289 = vunpack.c.l.b16 %v330
  %v2290 = vunpack.c.l.b16 %v331
  %v2291 = vunpack.c.l.b16 %v332
  %v2292 = vunpack.c.l.b16 %v333
  %v2293 = vunpack.c.l.b16 %v334
  %v2294 = vunpack.c.l.b16 %v335
  %v2295 = vunpack.c.l.b16 %v336
  %v2296 = vunpack.c.l.b16 %v337
  %v2297 = vunpack.c.l.b16 %v338
  %v2298 = vunpack.c.l.b16 %v339
  %v2299 = vunpack.c.l.b16 %v340
  %v2300 = vunpack.c.l.b16 %v341
  %v2301 = vunpack.c.l.b16 %v342
  %v2302 = vunpack.c.l.b16 %v343
  %v2303 = vunpack.c.l.b16 %v344
  %v2304 = vunpack.c.l.b16 %v345
  %v2305 = vunpack.c.l.b16 %v346
  %v2306 = vunpack.c.l.b16 %v347
  %v2307 = vunpack.c.l.b16 %v348
  %v2308 = vunpack.c.l.b16 %v349
  %v2309 = vunpack.c.l.b16 %v350
  %v2310 = vunpack.c.l.b16 %v351
  %v2311 = vunpack.c.l.b16 %v352
  %v2312 = vunpack.c.l.b16 %v353
  %v2313 = vunpack.c.l.b16 %v354
  %v2314 = vunpack.c.l.b16 %v355
  %v2315 = vunpack.c.l.b16 %v356
  %v2316 = vunpack.c.l.b16 %v357
  %v2317 = vunpack.c.l.b16 %v358
  %v2318 = vunpack.c.l.b16 %v359
  %v2319 = vunpack.c.l.b16 %v360
  %v2320 = vunpack.c.l.b16 %v361
  %v2321 = vunpack.c.l.b16 %v362
  %v2322 = vunpack.c.l.b16 %v363
  %v2323 = vunpack.c.l.b16 %v364
  %v2324 = vunpack.c.l.b16 %v365
  %v2325 = vunpack.c.l.b16 %v366
  %v2326 = vunpack.c.l.b16 %v367
  %v2327 = vunpack.c.l.b16 %v368
  %v2328 = vunpack.c.l.b16 %v369
  %v2329 = vunpack.c.l.b16 %v370
  %v2330 = vunpack.c.l.b16 %v371
  %v2331 = vunpack.c.l.b16 %v372
  %v2332 = vunpack.c.l.b16 %v373
  %v2333 = vunpack.c.l.b16 %v374
  %v2334 = vunpack.c.l.b16 %v375
  %v2335 = vunpack.c.l.b16 %v376
  %v2336 = vunpack.c.l.b16 %v377
  %v2337 = vunpack.c.l.b16 %v378
  %v2338 = vunpack.c.l.b16 %v379
  %v2339 = vunpack.c.l.b16 %v380
  %v2340 = vunpack.c.l.b16 %v381
  %v2341 = vunpack.c.l.b16 %v382
  %v2342 = vunpack.c.l.b16 %v383
  %v2343 = vunpack.c.l.b16 %v384
  %v2344 = vunpack.c.l.b16 %v385
  %v2345 = vunpack.c.l.b16 %v386
  %v2346 = vunpack.c.l.b16 %v387
  %v2347 = vunpack.c.l.b16 %v388
  %v2348 = vunpack.c.l.b16 %v389
  %v2349 = vunpack.c.l.b16 %v390
  %v2350 = vunpack.c.l.b16 %v391
  %v2351 = vunpack.c.l.b16 %v392
  %v2352 = vunpack.c.l.b16 %v393
  %v2353 = vunpack.c.l.b16 %v394
  %v2354 = vunpack.c.l.b16 %v395
  %v2355 = vunpack.c.l.b16 %v396
  %v2356 = vunpack.c.l.b16 %v397
  %v2357 = vunpack.c.l.b16 %v398
  %v2358 = vunpack.c.l.b16 %v399
  %v2359 = vunpack.c.l.b16 %v400
  %v2360 = vunpack.c.l.b16 %v401
  %v2361 = vunpack.c.l.b16 %v402
  %v2362 = vunpack.c.l.b16 %v403
  %v2363 = vunpack.c.l.b16 %v404
  %v2364 = vunpack.c.l.b16 %v405
  %v2365 = vunpack.c.l.b16 %v406
  %v2366 = vunpack.c.l.b16 %v407
  %v2367 = vunpack.c.l.b16 %v408
  %v2368 = vunpack.c.l.b16 %v409
  %v2369 = vunpack.c.l.b16 %v410
  %v2370 = vunpack.c.l.b16 %v411
  %v2371 = vunpack.c.l.b16 %v412
  %v2372 = vunpack.c.l.b16 %v413
  %v2373 = vunpack.c.l.b16 %v414
  %v2374 = vunpack.c.l.b16 %v415
  %v2375 = vunpack.c.l.b16 %v416
  %v2376 = vunpack.c.l.b16 %v417
  %v2377 = vunpack.c.l.b16 %v418
  %v2378 = vunpack.c.l.b16 %v419
  %v2379 = vunpack.c.l.b16 %v420
  %v2380 = vunpack.c.l.b16 %v421
  %v2381 = vunpack.c.l.b16 %v422
  %v2382 = vunpack.c.l.b16 %v423
  %v2383 = vunpack.c.l.b16 %v424
  %v2384 = vunpack.c.l.b16 %v425
  %v2385 = vunpack.c.l.b16 %v426
  %v2386 = vunpack.c.l.b16 %v427
  %v2387 = vunpack.c.l.b16 %v428
  %v2388 = vunpack.c.l.b16 %v429
  %v2389 = vunpack.c.l.b16 %v430
  %v2390 = vunpack.c.l.b16 %v431
  %v2391 = vunpack.c.l.b16 %v432
  %v2392 = vunpack.c.l.b16 %v433
  %v2393 = vunpack.c.l.b16 %v434
  %v2394 = vunpack.c.l.b16 %v435
  %v2395 = vunpack.c.l.b16 %v436
  %v2396 = vunpack.c.l.b16 %v437
  %v2397 = vunpack.c.l.b16 %v438
  %v2398 = vunpack.c.l.b16 %v439
  %v2399 = vunpack.c.l.b16 %v440
  %v2400 = vunpack.c.l.b16 %v441
  %v2401 = vunpack.c.l.b16 %v442
  %v2402 = vunpack.c.l.b16 %v443
  %v2403 = vunpack.c.l.b16 %v444
  %v2404 = vunpack.c.l.b16 %v445
  %v2405 = vunpack.c.l.b16 %v446
  %v2406 = vunpack.c.l.b16 %v447
  %v2407 = vunpack.c.l.b16 %v448
  %v2408 = vunpack.c.l.b16 %v449
  %v2409 = vunpack.c.l.b16 %v450
  %v2410 = vunpack.c.l.b16 %v451
  %v2411 = vunpack.c.l.b16 %v452
  %v2412 = vunpack.c.l.b16 %v453
  %v2413 = vunpack.c.l.b16 %v454
  %v2414 = vunpack.c.l.b16 %v455
  %v2415 = vunpack.c.l.b16 %v456
  %v2416 = vunpack.c.l.b16 %v457
  %v2417 = vunpack.c.l.b16 %v458
  %v2418 = vunpack.c.l.b16 %v459
  %v2419 = vunpack.c.l.b16 %v460
  %v2420 = vunpack.c.l.b16 %v461
  %v2421 = vunpack.c.l.b16 %v462
  %v2422 = vunpack.c.l.b16 %v463
  %v2423 = vunpack.c.l.b16 %v464
  %v2424 = vunpack.c.l.b16 %v465
  %v2425 = vunpack.c.l.b16 %v466
  %v2426 = vunpack.c.l.b16 %v467
  %v2427 = vunpack.c.l.b16 %v468
  %v2428 = vunpack.c.l.b16 %v469
  %v2429 = vunpack.c.l.b16 %v470
  %v2430 = vunpack.c.l.b16 %v471
  %v2431 = vunpack.c.l.b16 %v472
  %v2432 = vunpack.c.l.b16 %v473
  %v2433 = vunpack.c.l.b16 %v474
  %v2434 = vunpack.c.l.b16 %v475
  %v2435 = vunpack.c.l.b16 %v476
  %v2436 = vunpack.c.l.b16 %v477
  %v2437 = vunpack.c.l.b16 %v478
  %v2438 = vunpack.c.l.b16 %v479
  %v2439 = vunpack.c.l.b16 %v480
  %v2440 = vunpack.c.l.b16 %v481
  %v2441 = vunpack.c.l.b16 %v482
  %v2442 = vunpack.c.l.b16 %v483
  %v2443 = vunpack.c.l.b16 %v484
  %v2444 = vunpack.c.l.b16 %v485
  %v2445 = vunpack.c.l.b16 %v486
  %v2446 = vunpack.c.l.b16 %v487
  %v2447 = vunpack.c.l.b16 %v488
  %v2448 = vunpack.c.l.b16 %v489
  %v2449 = vunpack.c.l.b16 %v490
  %v2450 = vunpack.c.l.b16 %v491
  %v2451 = vunpack.c.l.b16 %v492
  %v2452 = vunpack.c.l.b16 %v493
  %v2453 = vunpack.c.l.b16 %v494
  %v2454 = vunpack.c.l.b16 %v495
  %v2455 = vunpack.c.l.b16 %v496
  %v2456 = vunpack.c.l.b16 %v497
  %v2457 = vunpack.c.l.b16 %v498
  %v2458 = vunpack.c.l.b16 %v499
  %v2459 = vunpack.c.l.b16 %v500
  %v2460 = vunpack.c.l.b16 %v501
  %v2461 = vunpack.c.l.b16 %v502
  %v2462 = vunpack.c.l.b16 %v503
  %v2463 = vunpack.c.l.b16 %v504
  %v2464 = vunpack.c.l.b16 %v505
  %v2465 = vunpack.c.l.b16 %v506
  %v2466 = vunpack.c.l.b16 %v507
  %v2467 = vunpack.c.l.b16 %v508
  %v2468 = vunpack.c.l.b16 %v509
  %v2469 = vunpack.c.l.b16 %v510
  %v2470 = vunpack.c.l.b16 %v511
  %v2471 = vunpack.c.l.b16 %v512
  %v2472 = vunpack.c.l.b16 %v513
  %v2473 = vunpack.c.l.b16 %v514
  %v2474 = vunpack.c.l.b16 %v515
  %v2475 = vunpack.c.l.b16 %v516
  %v2476 = vunpack.c.l.b16 %v517
  %v2477 = vunpack.c.l.b16 %v518
  %v2478 = vunpack.c.l.b16 %v519
  %v2479 = vunpack.c.l.b16 %v520
  %v2480 = vunpack.c.l.b16 %v521
  %v2481 = vunpack.c.l.b16 %v522
  %v2482 = vunpack.c.l.b16 %v523
  %v2483 = vunpack.c.l.b16 %v524
  %v2484 = vunpack.c.l.b16 %v525
  %v2485 = vunpack.c.l.b16 %v526
  %v2486 = vunpack.c.l.b16 %v527
  %v2487 = vunpack.c.l.b16 %v528
  %v2488 = vunpack.c.l.b16 %v529
  %v2489 = vunpack.c.l.b16 %v530
  %v2490 = vunpack.c.l.b16 %v531
  %v2491 = vunpack.c.l.b16 %v532
  %v2492 = vunpack.c.l.b16 %v533
  %v2493 = vunpack.c.l.b16 %v534
  %v2494 = vunpack.c.l.b16 %v535
  %v2495 = vunpack.c.l.b16 %v536
  %v2496 = vunpack.c.l.b16 %v537
  %v2497 = vunpack.c.l.b16 %v538
  %v2498 = vunpack.c.l.b16 %v539
  %v2499 = vunpack.c.l.b16 %v540
  %v2500 = vunpack.c.l.b16 %v541
  %v2501 = vunpack.c.l.b16 %v542
  %v2502 = vunpack.c.l.b16 %v543
  %v2503 = vunpack.c.l.b16 %v544
  %v2504 = vunpack.c.l.b16 %v545
  %v2505 = vunpack.c.l.b16 %v546
  %v2506 = vunpack.c.l.b16 %v547
  %v2507 = vunpack.c.l.b16 %v548
  %v2508 = vunpack.c.l.b16 %v549
  %v2509 = vunpack.c.l.b16 %v550
  %v2510 = vunpack.c.l.b16 %v551
  %v2511 = vunpack.c.l.b16 %v552
  %v2512 = vunpack.c.l.b16 %v553
  %v2513 = vunpack.c.l.b16 %v554
  %v2514 = vunpack.c.l.b16 %v555
  %v2515 = vunpack.c.l.b16 %v556
  %v2516 = vunpack.c.l.b16 %v557
  %v2517 = vunpack.c.l.b16 %v558
  %v2518 = vunpack.c.l.b16 %v559
  %v2519 = vunpack.c.l.b16 %v560
  %v2520 = vunpack.c.l.b16 %v561
  %v2521 = vunpack.c.l.b16 %v562
  %v2522 = vunpack.c.l.b16 %v563
  %v2523 = vunpack.c.l.b16 %v564
  %v2524 = vunpack.c.l.b16 %v565
  %v2525 = vunpack.c.l.b16 %v566
  %v2526 = vunpack.c.l.b16 %v567
  %v2527 = vunpack.c.l.b16 %v568
  %v2528 = vunpack.c.l.b16 %v569
  %v2529 = vunpack.c.l.b16 %v570
  %v2530 = vunpack.c.l.b16 %v571
  %v2531 = vunpack.c.l.b16 %v572
  %v2532 = vunpack.c.l.b16 %v573
  %v2533 = vunpack.c.l.b16 %v574
  %v2534 = vunpack.c.l.b16 %v575
  %v2535 = vunpack.c.l.b16 %v576
  %v2536 = vunpack.c.l.b16 %v577
  %v2537 = vunpack.c.l.b16 %v578
  %v2538 = vunpack.c.l.b16 %v579
  %v2539 = vunpack.c.l.b16 %v580
  %v2540 = vunpack.c.l.b16 %v581
  %v2541 = vunpack.c.l.b16 %v582
  %v2542 = vunpack.c.l.b16 %v583
  %v2543 = vunpack.c.l.b16 %v584
  %v2544 = vunpack.c.l.b16 %v585
  %v2545 = vunpack.c.l.b16 %v586
  %v2546 = vunpack.c.l.b16 %v587
  %v2547 = vunpack.c.l.b16 %v588
  %v2548 = vunpack.c.l.b16 %v589
  %v2549 = vunpack.c.l.b16 %v590
  %v2550 = vunpack.c.l.b16 %v591
  %v2551 = vunpack.c.l.b16 %v592
  %v2552 = vunpack.c.l.b16 %v593
  %v2553 = vunpack.c.l.b16 %v594
  %v2554 = vunpack.c.l.b16 %v595
  %v2555 = vunpack.c.l.b16 %v596
  %v2556 = vunpack.c.l.b16 %v597
  %v2557 = vunpack.c.l.b16 %v598
  %v2558 = vunpack.c.l.b16 %v599
  %v2559 = vunpack.c.l.b16 %v600
  %v2560 = vunpack.c.l.b16 %v601
  %v2561 = vunpack.c.l.b16 %v602
  %v2562 = vunpack.c.l.b16 %v603
  %v2563 = vunpack.c.l.b16 %v604
  %v2564 = vunpack.c.l.b16 %v605
  %v2565 = vunpack.c.l.b16 %v606
  %v2566 = vunpack.c.l.b16 %v607
  %v2567 = vunpack.c.l.b16 %v608
  %v2568 = vunpack.c.l.b16 %v609
  %v2569 = vunpack.c.l.b16 %v610
  %v2570 = vunpack.c.l.b16 %v611
  %v2571 = vunpack.c.l.b16 %v612
  %v2572 = vunpack.c.l.b16 %v613
  %v2573 = vunpack.c.l.b16 %v614
  %v2574 = vunpack.c.l.b16 %v615
  %v2575 = vunpack.c.l.b16 %v616
  %v2576 = vunpack.c.l.b16 %v617
  %v2577 = vunpack.c.l.b16 %v618
  %v2578 = vunpack.c.l.b16 %v619
  %v2579 = vunpack.c.l.b16 %v620
  %v2580 = vunpack.c.l.b16 %v621
  %v2581 = vunpack.c.l.b16 %v622
  %v2582 = vunpack.c.l.b16 %v623
  %v2583 = vunpack.c.l.b16 %v624
  %v2584 = vunpack.c.l.b16 %v625
  %v2585 = vunpack.c.l.b16 %v626
  %v2586 = vunpack.c.l.b16 %v627
  %v2587 = vunpack.c.l.b16 %v628
  %v2588 = vunpack.c.l.b16 %v629
  %v2589 = vunpack.c.l.b16 %v630
  %v2590 = vunpack.c.l.b16 %v631
  %v2591 = vunpack.c.l.b16 %v632
  %v2592 = vunpack.c.l.b16 %v633
  %v2593 = vunpack.c.l.b16 %v634
  %v2594 = vunpack.c.l.b16 %v635
  %v2595 = vunpack.c.l.b16 %v636
  %v2596 = vunpack.c.l.b16 %v637
  %v2597 = vunpack.c.l.b16 %v638
  %v2598 = vunpack.c.l.b16 %v639
  %v2599 = vunpack.c.l.b16 %v640
  %v2600 = vunpack.c.l.b16 %v641
  %v2601 = vunpack.c.l.b16 %v642
  %v2602 = vunpack.c.l.b16 %v643
  %v2603 = vunpack.c.l.b16 %v644
  %v2604 = vunpack.c.l.b16 %v645
  %v2605 = vunpack.c.l.b16 %v646
  %v2606 = vunpack.c.l.b16 %v647
  %v2607 = vunpack.c.l.b16 %v648
  %v2608 = vunpack.c.l.b16 %v649
  %v2609 = vunpack.c.l.b16 %v650
  %v2610 = vunpack.c.l.b16 %v651
  %v2611 = vunpack.c.l.b16 %v652
  %v2612 = vunpack.c.l.b16 %v653
  %v2613 = vunpack.c.l.b16 %v654
  %v2614 = vunpack.c.l.b16 %v655
  %v2615 = vunpack.c.l.b16 %v656
  %v2616 = vunpack.c.l.b16 %v657
  %v2617 = vunpack.c.l.b16 %v658
  %v2618 = vunpack.c.l.b16 %v659
  %v2619 = vunpack.c.l.b16 %v660
  %v2620 = vunpack.c.l.b16 %v661
  %v2621 = vunpack.c.l.b16 %v662
  %v2622 = vunpack.c.l.b16 %v663
  %v2623 = vunpack.c.l.b16 %v664
  %v2624 = vunpack.c.l.b16 %v665
  %v2625 = vunpack.c.l.b16 %v666
  %v2626 = vunpack.c.l.b16 %v667
  %v2627 = vunpack.c.l.b16 %v668
  %v2628 = vunpack.c.l.b16 %v669
  %v2629 = vunpack.c.l.b16 %v670
  %v2630 = vpack.c.b16 %v2199, %v2198
  %v2631 = vpack.c.b16 %v2201, %v2200
  %v2632 = vpack.c.b16 %v2203, %v2202
  %v2633 = vpack.c.b16 %v2205, %v2204
  %v2634 = vpack.c.b16 %v2207, %v2206
  %v2635 = vpack.c.b16 %v2209, %v2208
  %v2636 = vpack.c.b16 %v2211, %v2210
  %v2637 = vpack.c.b16 %v2213, %v2212
  %v2638 = vpack.c.b16 %v2215, %v2214
  %v2639 = vpack.c.b16 %v2217, %v2216
  %v2640 = vpack.c.b16 %v2219, %v2218
  %v2641 = vpack.c.b16 %v2221, %v2220
  %v2642 = vpack.c.b16 %v2223, %v2222
  %v2643 = vpack.c.b16 %v2225, %v2224
  %v2644 = vpack.c.b16 %v2227, %v2226
  %v2645 = vpack.c.b16 %v2229, %v2228
  %v2646 = vpack.c.b16 %v2231, %v2230
  %v2647 = vpack.c.b16 %v2233, %v2232
  %v2648 = vpack.c.b16 %v2235, %v2234
  %v2649 = vpack.c.b16 %v2237, %v2236
  %v2650 = vpack.c.b16 %v2239, %v2238
  %v2651 = vpack.c.b16 %v2241, %v2240
  %v2652 = vpack.c.b16 %v2243, %v2242
  %v2653 = vpack.c.b16 %v2245, %v2244
  %v2654 = vpack.c.b16 %v2247, %v2246
  %v2655 = vpack.c.b16 %v2249, %v2248
  %v2656 = vpack.c.b16 %v2251, %v2250
  %v2657 = vpack.c.b16 %v2253, %v2252
  %v2658 = vpack.c.b16 %v2255, %v2254
  %v2659 = vpack.c.b16 %v2257, %v2256
  %v2660 = vpack.c.b16 %v2259, %v2258
  %v2661 = vpack.c.b16 %v2261, %v2260
  %v2662 = vpack.c.b16 %v2263, %v2262
  %v2663 = vpack.c.b16 %v2265, %v2264
  %v2664 = vpack.c.b16 %v2267, %v2266
  %v2665 = vpack.c.b16 %v2269, %v2268
  %v2666 = vpack.c.b16 %v2271, %v2270
  %v2667 = vpack.c.b16 %v2273, %v2272
  %v2668 = vpack.c.b16 %v2275, %v2274
  %v2669 = vpack.c.b16 %v2277, %v2276
  %v2670 = vpack.c.b16 %v2279, %v2278
  %v2671 = vpack.c.b16 %v2281, %v2280
  %v2672 = vpack.c.b16 %v2283, %v2282
  %v2673 = vpack.c.b16 %v2285, %v2284
  %v2674 = vpack.c.b16 %v2287, %v2286
  %v2675 = vpack.c.b16 %v2289, %v2288
  %v2676 = vpack.c.b16 %v2291, %v2290
  %v2677 = vpack.c.b16 %v2293, %v2292
  %v2678 = vpack.c.b16 %v2295, %v2294
  %v2679 = vpack.c.b16 %v2297, %v2296
  %v2680 = vpack.c.b16 %v2299, %v2298
  %v2681 = vpack.c.b16 %v2301, %v2300
  %v2682 = vpack.c.b16 %v2303, %v2302
  %v2683 = vpack.c.b16 %v2305, %v2304
  %v2684 = vpack.c.b16 %v2307, %v2306
  %v2685 = vpack.c.b16 %v2309, %v2308
  %v2686 = vpack.c.b16 %v2311, %v2310
  %v2687 = vpack.c.b16 %v2313, %v2312
  %v2688 = vpack.c.b16 %v2315, %v2314
  %v2689 = vpack.c.b16 %v2317, %v2316
  %v2690 = vpack.c.b16 %v2319, %v2318
  %v2691 = vpack.c.b16 %v2321, %v2320
  %v2692 = vpack.c.b16 %v2323, %v2322
  %v2693 = vpack.c.b16 %v2325, %v2324
  %v2694 = vpack.c.b16 %v2327, %v2326
  %v2695 = vpack.c.b16 %v2329, %v2328
  %v2696 = vpack.c.b16 %v2331, %v2330
  %v2697 = vpack.c.b16 %v2333, %v2332
  %v2698 = vpack.c.b16 %v2335, %v2334
  %v2699 = vpack.c.b16 %v2337, %v2336
  %v2700 = vpack.c.b16 %v2339, %v2338
  %v2701 = vpack.c.b16 %v2341, %v2340
  %v2702 = vpack.c.b16 %v2343, %v2342
  %v2703 = vpack.c.b16 %v2345, %v2344
  %v2704 = vpack.c.b16 %v2347, %v2346
  %v2705 = vpack.c.b16 %v2349, %v2348
  %v2706 = vpack.c.b16 %v2351, %v2350
  %v2707 = vpack.c.b16 %v2353, %v2352
  %v2708 = vpack.c.b16 %v2355, %v2354
  %v2709 = vpack.c.b16 %v2357, %v2356
  %v2710 = vpack.c.b16 %v2359, %v2358
  %v2711 = vpack.c.b16 %v2361, %v2360
  %v2712 = vpack.c.b16 %v2363, %v2362
  %v2713 = vpack.c.b16 %v2365, %v2364
  %v2714 = vpack.c.b16 %v2367, %v2366
  %v2715 = vpack.c.b16 %v2369, %v2368
  %v2716 = vpack.c.b16 %v2371, %v2370
  %v2717 = vpack.c.b16 %v2373, %v2372
  %v2718 = vpack.c.b16 %v2375, %v2374
  %v2719 = vpack.c.b16 %v2377, %v2376
  %v2720 = vpack.c.b16 %v2379, %v2378
  %v2721 = vpack.c.b16 %v2381, %v2380
  %v2722 = vpack.c.b16 %v2383, %v2382
  %v2723 = vpack.c.b16 %v2385, %v2384
  %v2724 = vpack.c.b16 %v2387, %v2386
  %v2725 = vpack.c.b16 %v2389, %v2388
  %v2726 = vpack.c.b16 %v2391, %v2390
  %v2727 = vpack.c.b16 %v2393, %v2392
  %v2728 = vpack.c.b16 %v2395, %v2394
  %v2729 = vpack.c.b16 %v2397, %v2396
  %v2730 = vpack.c.b16 %v2399, %v2398
  %v2731 = vpack.c.b16 %v2401, %v2400
  %v2732 = vpack.c.b16 %v2403, %v2402
  %v2733 = vpack.c.b16 %v2405, %v2404
  %v2734 = vpack.c.b16 %v2407, %v2406
  %v2735 = vpack.c.b16 %v2409, %v2408
  %v2736 = vpack.c.b16 %v2411, %v2410
  %v2737 = vpack.c.b16 %v2413, %v2412
  %v2738 = vpack.c.b16 %v2415, %v2414
  %v2739 = vpack.c.b16 %v2417, %v2416
  %v2740 = vpack.c.b16 %v2419, %v2418
  %v2741 = vpack.c.b16 %v2421, %v2420
  %v2742 = vpack.c.b16 %v2423, %v2422
  %v2743 = vpack.c.b16 %v2425, %v2424
  %v2744 = vpack.c.b16 %v2427, %v2426
  %v2745 = vpack.c.b16 %v2429, %v2428
  %v2746 = vpack.c.b16 %v2431, %v2430
  %v2747 = vpack.c.b16 %v2433, %v2432
  %v2748 = vpack.c.b16 %v2435, %v2434
  %v2749 = vpack.c.b16 %v2437, %v2436
  %v2750 = vpack.c.b16 %v2439, %v2438
  %v2751 = vpack.c.b16 %v2441, %v2440
  %v2752 = vpack.c.b16 %v2443, %v2442
  %v2753 = vpack.c.b16 %v2445, %v2444
  %v2754 = vpack.c.b16 %v2447, %v2446
  %v2755 = vpack.c.b16 %v2449, %v2448
  %v2756 = vpack.c.b16 %v2451, %v2450
  %v2757 = vpack.c.b16 %v2453, %v2452
  %v2758 = vpack.c.b16 %v2455, %v2454
  %v2759 = vpack.c.b16 %v2457, %v2456
  %v2760 = vpack.c.b16 %v2459, %v2458
  %v2761 = vpack.c.b16 %v2461, %v2460
  %v2762 = vpack.c.b16 %v2463, %v2462
  %v2763 = vpack.c.b16 %v2465, %v2464
  %v2764 = vpack.c.b16 %v2467, %v2466
  %v2765 = vpack.c.b16 %v2469, %v2468
  %v2766 = vpack.c.b16 %v2471, %v2470
  %v2767 = vpack.c.b16 %v2473, %v2472
  %v2768 = vpack.c.b16 %v2475, %v2474
  %v2769 = vpack.c.b16 %v2477, %v2476
  %v2770 = vpack.c.b16 %v2479, %v2478
  %v2771 = vpack.c.b16 %v2481, %v2480
  %v2772 = vpack.c.b16 %v2483, %v2482
  %v2773 = vpack.c.b16 %v2485, %v2484
  %v2774 = vpack.c.b16 %v2487, %v2486
  %v2775 = vpack.c.b16 %v2489, %v2488
  %v2776 = vpack.c.b16 %v2491, %v2490
  %v2777 = vpack.c.b16 %v2493, %v2492
  %v2778 = vpack.c.b16 %v2495, %v2494
  %v2779 = vpack.c.b16 %v2497, %v2496
  %v2780 = vpack.c.b16 %v2499, %v2498
  %v2781 = vpack.c.b16 %v2501, %v2500
  %v2782 = vpack.c.b16 %v2503, %v2502
  %v2783 = vpack.c.b16 %v2505, %v2504
  %v2784 = vpack.c.b16 %v2507, %v2506
  %v2785 = vpack.c.b16 %v2509, %v2508
  %v2786 = vpack.c.b16 %v2511, %v2510
  %v2787 = vpack.c.b16 %v2513, %v2512
  %v2788 = vpack.c.b16 %v2515, %v2514
  %v2789 = vpack.c.b16 %v2517, %v2516
  %v2790 = vpack.c.b16 %v2519, %v2518
  %v2791 = vpack.c.b16 %v2521, %v2520
  %v2792 = vpack.c.b16 %v2523, %v2522
  %v2793 = vpack.c.b16 %v2525, %v2524
  %v2794 = vpack.c.b16 %v2527, %v2526
  %v2795 = vpack.c.b16 %v2529, %v2528
  %v2796 = vpack.c.b16 %v2531, %v2530
  %v2797 = vpack.c.b16 %v2533, %v2532
  %v2798 = vpack.c.b16 %v2535, %v2534
  %v2799 = vpack.c.b16 %v2537, %v2536
  %v2800 = vpack.c.b16 %v2539, %v2538
  %v2801 = vpack.c.b16 %v2541, %v2540
  %v2802 = vpack.c.b16 %v2543, %v2542
  %v2803 = vpack.c.b16 %v2545, %v2544
  %v2804 = vpack.c.b16 %v2547, %v2546
  %v2805 = vpack.c.b16 %v2549, %v2548
  %v2806 = vpack.c.b16 %v2551, %v2550
  %v2807 = vpack.c.b16 %v2553, %v2552
  %v2808 = vpack.c.b16 %v2555, %v2554
  %v2809 = vpack.c.b16 %v2557, %v2556
  %v2810 = vpack.c.b16 %v2559, %v2558
  %v2811 = vpack.c.b16 %v2561, %v2560
  %v2812 = vpack.c.b16 %v2563, %v2562
  %v2813 = vpack.c.b16 %v2565, %v2564
  %v2814 = vpack.c.b16 %v2567, %v2566
  %v2815 = vpack.c.b16 %v2569, %v2568
  %v2816 = vpack.c.b16 %v2571, %v2570
  %v2817 = vpack.c.b16 %v2573, %v2572
  %v2818 = vpack.c.b16 %v2575, %v2574
  %v2819 = vpack.c.b16 %v2577, %v2576
  %v2820 = vpack.c.b16 %v2579, %v2578
  %v2821 = vpack.c.b16 %v2581, %v2580
  %v2822 = vpack.c.b16 %v2583, %v2582
  %v2823 = vpack.c.b16 %v2585, %v2584
  %v2824 = vpack.c.b16 %v2587, %v2586
  %v2825 = vpack.c.b16 %v2589, %v2588
  %v2826 = vpack.c.b16 %v2591, %v2590
  %v2827 = vpack.c.b16 %v2593, %v2592
  %v2828 = vpack.c.b16 %v2595, %v2594
  %v2829 = vpack.c.b16 %v2597, %v2596
  %v2830 = vpack.c.b16 %v2599, %v2598
  %v2831 = vpack.c.b16 %v2601, %v2600
  %v2832 = vpack.c.b16 %v2603, %v2602
  %v2833 = vpack.c.b16 %v2605, %v2604
  %v2834 = vpack.c.b16 %v2607, %v2606
  %v2835 = vpack.c.b16 %v2609, %v2608
  %v2836 = vpack.c.b16 %v2611, %v2610
  %v2837 = vpack.c.b16 %v2613, %v2612
  %v2838 = vpack.c.b16 %v2615, %v2614
  %v2839 = vpack.c.b16 %v2617, %v2616
  %v2840 = vpack.c.b16 %v2619, %v2618
  %v2841 = vpack.c.b16 %v2621, %v2620
  %v2842 = vpack.c.b16 %v2623, %v2622
  %v2843 = vpack.c.b16 %v2625, %v2624
  %v2844 = vpack.c.b16 %v2627, %v2626
  %v2845 = vpack.c.b16 %v2629, %v2628
  %3062 = vmatprep.subr.bf16.mxu0 0
  %3063 = vmatpush1.bf16.msra.mxu0 %v2630
  %3064 = vmatprep.subr.bf16.mxu0 0
  %3065 = vmatpush1.bf16.msra.mxu0 %v2631
  %3066 = vmatprep.subr.bf16.mxu0 0
  %3067 = vmatpush1.bf16.msra.mxu0 %v2632
  %3068 = vmatprep.subr.bf16.mxu0 0
  %3069 = vmatpush1.bf16.msra.mxu0 %v2633
  %3070 = vmatprep.subr.bf16.mxu0 0
  %3071 = vmatpush1.bf16.msra.mxu0 %v2634
  %3072 = vmatprep.subr.bf16.mxu0 0
  %3073 = vmatpush1.bf16.msra.mxu0 %v2635
  %3074 = vmatprep.subr.bf16.mxu0 0
  %3075 = vmatpush1.bf16.msra.mxu0 %v2636
  %3076 = vmatprep.subr.bf16.mxu0 0
  %3077 = vmatpush1.bf16.msra.mxu0 %v2637
  %3078 = vmatprep.subr.bf16.mxu0 0
  %3079 = vmatpush1.bf16.msra.mxu0 %v2638
  %3080 = vmatprep.subr.bf16.mxu0 0
  %3081 = vmatpush1.bf16.msra.mxu0 %v2639
  %3082 = vmatprep.subr.bf16.mxu0 0
  %3083 = vmatpush1.bf16.msra.mxu0 %v2640
  %3084 = vmatprep.subr.bf16.mxu0 0
  %3085 = vmatpush1.bf16.msra.mxu0 %v2641
  %3086 = vmatprep.subr.bf16.mxu0 0
  %3087 = vmatpush1.bf16.msra.mxu0 %v2642
  %3088 = vmatprep.subr.bf16.mxu0 0
  %3089 = vmatpush1.bf16.msra.mxu0 %v2643
  %3090 = vmatprep.subr.bf16.mxu0 0
  %3091 = vmatpush1.bf16.msra.mxu0 %v2644
  %3092 = vmatprep.subr.bf16.mxu0 0
  %3093 = vmatpush1.bf16.msra.mxu0 %v2645
  %3094 = vmatprep.mubr.bf16.mxu0 %v1335
  %3095 = vmatmul.mubr.bf16.gmra.mrb[0].mxu0 %v1334
  %v3096 = vpop.f32.mrb[0].mxu0
  %v3097 = vadd.f32 %v676, %v3096
  %v3098 = vpop.f32.mrb[0].mxu0
  %v3099 = vpop.f32.mrb[0].mxu0
  %v3100 = vadd.f32 %v676, %v3099
  %v3101 = vpop.f32.mrb[0].mxu0
  %3102 = vmatprep.mubr.bf16.mxu0 %v1362
  %3103 = vmatmul.mubr.bf16.gmra.mrb[0].mxu0 %v1361
  %v3104 = vpop.f32.mrb[0].mxu0
  %v3105 = vadd.f32 %v676, %v3104
  %v3106 = vpop.f32.mrb[0].mxu0
  %v3107 = vpop.f32.mrb[0].mxu0
  %v3108 = vadd.f32 %v676, %v3107
  %v3109 = vpop.f32.mrb[0].mxu0
  %3110 = vmatprep.mubr.bf16.mxu0 %v1389
  %3111 = vmatmul.mubr.bf16.gmra.mrb[0].mxu0 %v1388
  %v3112 = vpop.f32.mrb[0].mxu0
  %v3113 = vadd.f32 %v676, %v3112
  %v3114 = vpop.f32.mrb[0].mxu0
  %v3115 = vpop.f32.mrb[0].mxu0
  %v3116 = vadd.f32 %v676, %v3115
  %v3117 = vpop.f32.mrb[0].mxu0
  %3118 = vmatprep.mubr.bf16.mxu0 %v1416
  %3119 = vmatmul.mubr.bf16.gmra.mrb[0].mxu0 %v1415
  %v3120 = vpop.f32.mrb[0].mxu0
  %v3121 = vadd.f32 %v676, %v3120
  %v3122 = vpop.f32.mrb[0].mxu0
  %v3123 = vpop.f32.mrb[0].mxu0
  %v3124 = vadd.f32 %v676, %v3123
  %v3125 = vpop.f32.mrb[0].mxu0
  %3126 = vmatprep.mubr.bf16.mxu0 %v1443
  %3127 = vmatmul.mubr.bf16.gmra.mrb[0].mxu0 %v1442
  %v3128 = vpop.f32.mrb[0].mxu0
  %v3129 = vadd.f32 %v676, %v3128
  %v3130 = vpop.f32.mrb[0].mxu0
  %v3131 = vpop.f32.mrb[0].mxu0
  %v3132 = vadd.f32 %v676, %v3131
  %v3133 = vpop.f32.mrb[0].mxu0
  %3134 = vmatprep.mubr.bf16.mxu0 %v1470
  %3135 = vmatmul.mubr.bf16.gmra.mrb[0].mxu0 %v1469
  %v3136 = vpop.f32.mrb[0].mxu0
  %v3137 = vadd.f32 %v676, %v3136
  %v3138 = vpop.f32.mrb[0].mxu0
  %v3139 = vpop.f32.mrb[0].mxu0
  %v3140 = vadd.f32 %v676, %v3139
  %v3141 = vpop.f32.mrb[0].mxu0
  %3142 = vmatprep.mubr.bf16.mxu0 %v1497
  %3143 = vmatmul.mubr.bf16.gmra.mrb[0].mxu0 %v1496
  %v3144 = vpop.f32.mrb[0].mxu0
  %v3145 = vadd.f32 %v676, %v3144
  %v3146 = vpop.f32.mrb[0].mxu0
  %v3147 = vpop.f32.mrb[0].mxu0
  %v3148 = vadd.f32 %v676, %v3147
  %v3149 = vpop.f32.mrb[0].mxu0
  %3150 = vmatprep.mubr.bf16.mxu0 %v1524
  %3151 = vmatmul.mubr.bf16.gmra.mrb[0].mxu0 %v1523
  %v3152 = vpop.f32.mrb[0].mxu0
  %v3153 = vadd.f32 %v676, %v3152
  %v3154 = vpop.f32.mrb[0].mxu0
  %v3155 = vpop.f32.mrb[0].mxu0
  %v3156 = vadd.f32 %v676, %v3155
  %v3157 = vpop.f32.mrb[0].mxu0
  %3158 = vdwg.mxu0
  %3159 = vmatprep.subr.bf16.mxu0 0
  %3160 = vmatpush1.bf16.msra.mxu0 %v2646
  %3161 = vmatprep.subr.bf16.mxu0 0
  %3162 = vmatpush1.bf16.msra.mxu0 %v2647
  %3163 = vmatprep.subr.bf16.mxu0 0
  %3164 = vmatpush1.bf16.msra.mxu0 %v2648
  %3165 = vmatprep.subr.bf16.mxu0 0
  %3166 = vmatpush1.bf16.msra.mxu0 %v2649
  %3167 = vmatprep.subr.bf16.mxu0 0
  %3168 = vmatpush1.bf16.msra.mxu0 %v2650
  %3169 = vmatprep.subr.bf16.mxu0 0
  %3170 = vmatpush1.bf16.msra.mxu0 %v2651
  %3171 = vmatprep.subr.bf16.mxu0 0
  %3172 = vmatpush1.bf16.msra.mxu0 %v2652
  %3173 = vmatprep.subr.bf16.mxu0 0
  %3174 = vmatpush1.bf16.msra.mxu0 %v2653
  %3175 = vmatprep.subr.bf16.mxu0 0
  %3176 = vmatpush1.bf16.msra.mxu0 %v2654
  %3177 = vmatprep.subr.bf16.mxu0 0
  %3178 = vmatpush1.bf16.msra.mxu0 %v2655
  %3179 = vmatprep.subr.bf16.mxu0 0
  %3180 = vmatpush1.bf16.msra.mxu0 %v2656
  %3181 = vmatprep.subr.bf16.mxu0 0
  %3182 = vmatpush1.bf16.msra.mxu0 %v2657
  %3183 = vmatprep.subr.bf16.mxu0 0
  %3184 = vmatpush1.bf16.msra.mxu0 %v2658
  %3185 = vmatprep.subr.bf16.mxu0 0
  %3186 = vmatpush1.bf16.msra.mxu0 %v2659
  %3187 = vmatprep.subr.bf16.mxu0 0
  %3188 = vmatpush1.bf16.msra.mxu0 %v2660
  %3189 = vmatprep.subr.bf16.mxu0 0
  %3190 = vmatpush1.bf16.msra.mxu0 %v2661
  %3191 = vmatprep.mubr.bf16.mxu0 %v1337
  %3192 = vmatmul.mubr.bf16.gmra.mrb[0].mxu0 %v1336
  %v3193 = vpop.f32.mrb[0].mxu0
  %v3194 = vadd.f32 %v3097, %v3193
  %v3195 = vpop.f32.mrb[0].mxu0
  %v3196 = vpop.f32.mrb[0].mxu0
  %v3197 = vadd.f32 %v3100, %v3196
  %v3198 = vpop.f32.mrb[0].mxu0
  %3199 = vmatprep.mubr.bf16.mxu0 %v1364
  %3200 = vmatmul.mubr.bf16.gmra.mrb[0].mxu0 %v1363
  %v3201 = vpop.f32.mrb[0].mxu0
  %v3202 = vadd.f32 %v3105, %v3201
  %v3203 = vpop.f32.mrb[0].mxu0
  %v3204 = vpop.f32.mrb[0].mxu0
  %v3205 = vadd.f32 %v3108, %v3204
  %v3206 = vpop.f32.mrb[0].mxu0
  %3207 = vmatprep.mubr.bf16.mxu0 %v1391
  %3208 = vmatmul.mubr.bf16.gmra.mrb[0].mxu0 %v1390
  %v3209 = vpop.f32.mrb[0].mxu0
  %v3210 = vadd.f32 %v3113, %v3209
  %v3211 = vpop.f32.mrb[0].mxu0
  %v3212 = vpop.f32.mrb[0].mxu0
  %v3213 = vadd.f32 %v3116, %v3212
  %v3214 = vpop.f32.mrb[0].mxu0
  %3215 = vmatprep.mubr.bf16.mxu0 %v1418
  %3216 = vmatmul.mubr.bf16.gmra.mrb[0].mxu0 %v1417
  %v3217 = vpop.f32.mrb[0].mxu0
  %v3218 = vadd.f32 %v3121, %v3217
  %v3219 = vpop.f32.mrb[0].mxu0
  %v3220 = vpop.f32.mrb[0].mxu0
  %v3221 = vadd.f32 %v3124, %v3220
  %v3222 = vpop.f32.mrb[0].mxu0
  %3223 = vmatprep.mubr.bf16.mxu0 %v1445
  %3224 = vmatmul.mubr.bf16.gmra.mrb[0].mxu0 %v1444
  %v3225 = vpop.f32.mrb[0].mxu0
  %v3226 = vadd.f32 %v3129, %v3225
  %v3227 = vpop.f32.mrb[0].mxu0
  %v3228 = vpop.f32.mrb[0].mxu0
  %v3229 = vadd.f32 %v3132, %v3228
  %v3230 = vpop.f32.mrb[0].mxu0
  %3231 = vmatprep.mubr.bf16.mxu0 %v1472
  %3232 = vmatmul.mubr.bf16.gmra.mrb[0].mxu0 %v1471
  %v3233 = vpop.f32.mrb[0].mxu0
  %v3234 = vadd.f32 %v3137, %v3233
  %v3235 = vpop.f32.mrb[0].mxu0
  %v3236 = vpop.f32.mrb[0].mxu0
  %v3237 = vadd.f32 %v3140, %v3236
  %v3238 = vpop.f32.mrb[0].mxu0
  %3239 = vmatprep.mubr.bf16.mxu0 %v1499
  %3240 = vmatmul.mubr.bf16.gmra.mrb[0].mxu0 %v1498
  %v3241 = vpop.f32.mrb[0].mxu0
  %v3242 = vadd.f32 %v3145, %v3241
  %v3243 = vpop.f32.mrb[0].mxu0
  %v3244 = vpop.f32.mrb[0].mxu0
  %v3245 = vadd.f32 %v3148, %v3244
  %v3246 = vpop.f32.mrb[0].mxu0
  %3247 = vmatprep.mubr.bf16.mxu0 %v1526
  %3248 = vmatmul.mubr.bf16.gmra.mrb[0].mxu0 %v1525
  %v3249 = vpop.f32.mrb[0].mxu0
  %v3250 = vadd.f32 %v3153, %v3249
  %v3251 = vpop.f32.mrb[0].mxu0
  %v3252 = vpop.f32.mrb[0].mxu0
  %v3253 = vadd.f32 %v3156, %v3252
  %v3254 = vpop.f32.mrb[0].mxu0
  %3255 = vdwg.mxu0
  %3256 = vmatprep.subr.bf16.mxu0 0
  %3257 = vmatpush1.bf16.msra.mxu0 %v2662
  %3258 = vmatprep.subr.bf16.mxu0 0
  %3259 = vmatpush1.bf16.msra.mxu0 %v2663
  %3260 = vmatprep.subr.bf16.mxu0 0
  %3261 = vmatpush1.bf16.msra.mxu0 %v2664
  %3262 = vmatprep.subr.bf16.mxu0 0
  %3263 = vmatpush1.bf16.msra.mxu0 %v2665
  %3264 = vmatprep.subr.bf16.mxu0 0
  %3265 = vmatpush1.bf16.msra.mxu0 %v2666
  %3266 = vmatprep.subr.bf16.mxu0 0
  %3267 = vmatpush1.bf16.msra.mxu0 %v2667
  %3268 = vmatprep.subr.bf16.mxu0 0
  %3269 = vmatpush1.bf16.msra.mxu0 %v2668
  %3270 = vmatprep.subr.bf16.mxu0 0
  %3271 = vmatpush1.bf16.msra.mxu0 %v2669
  %3272 = vmatprep.subr.bf16.mxu0 0
  %3273 = vmatpush1.bf16.msra.mxu0 %v2670
  %3274 = vmatprep.subr.bf16.mxu0 0
  %3275 = vmatpush1.bf16.msra.mxu0 %v2671
  %3276 = vmatprep.subr.bf16.mxu0 0
  %3277 = vmatpush1.bf16.msra.mxu0 %v2672
  %3278 = vmatprep.subr.bf16.mxu0 0
  %3279 = vmatpush1.bf16.msra.mxu0 %v2673
  %3280 = vmatprep.subr.bf16.mxu0 0
  %3281 = vmatpush1.bf16.msra.mxu0 %v2674
  %3282 = vmatprep.subr.bf16.mxu0 0
  %3283 = vmatpush1.bf16.msra.mxu0 %v2675
  %3284 = vmatprep.subr.bf16.mxu0 0
  %3285 = vmatpush1.bf16.msra.mxu0 %v2676
  %3286 = vmatprep.subr.bf16.mxu0 0
  %3287 = vmatpush1.bf16.msra.mxu0 %v2677
  %3288 = vmatprep.mubr.bf16.mxu0 %v1339
  %3289 = vmatmul.mubr.bf16.gmra.mrb[0].mxu0 %v1338
  %v3290 = vpop.f32.mrb[0].mxu0
  %v3291 = vadd.f32 %v3194, %v3290
  %v3292 = vpop.f32.mrb[0].mxu0
  %v3293 = vpop.f32.mrb[0].mxu0
  %v3294 = vadd.f32 %v3197, %v3293
  %v3295 = vpop.f32.mrb[0].mxu0
  %3296 = vmatprep.mubr.bf16.mxu0 %v1366
  %3297 = vmatmul.mubr.bf16.gmra.mrb[0].mxu0 %v1365
  %v3298 = vpop.f32.mrb[0].mxu0
  %v3299 = vadd.f32 %v3202, %v3298
  %v3300 = vpop.f32.mrb[0].mxu0
  %v3301 = vpop.f32.mrb[0].mxu0
  %v3302 = vadd.f32 %v3205, %v3301
  %v3303 = vpop.f32.mrb[0].mxu0
  %3304 = vmatprep.mubr.bf16.mxu0 %v1393
  %3305 = vmatmul.mubr.bf16.gmra.mrb[0].mxu0 %v1392
  %v3306 = vpop.f32.mrb[0].mxu0
  %v3307 = vadd.f32 %v3210, %v3306
  %v3308 = vpop.f32.mrb[0].mxu0
  %v3309 = vpop.f32.mrb[0].mxu0
  %v3310 = vadd.f32 %v3213, %v3309
  %v3311 = vpop.f32.mrb[0].mxu0
  %3312 = vmatprep.mubr.bf16.mxu0 %v1420
  %3313 = vmatmul.mubr.bf16.gmra.mrb[0].mxu0 %v1419
  %v3314 = vpop.f32.mrb[0].mxu0
  %v3315 = vadd.f32 %v3218, %v3314
  %v3316 = vpop.f32.mrb[0].mxu0
  %v3317 = vpop.f32.mrb[0].mxu0
  %v3318 = vadd.f32 %v3221, %v3317
  %v3319 = vpop.f32.mrb[0].mxu0
  %3320 = vmatprep.mubr.bf16.mxu0 %v1447
  %3321 = vmatmul.mubr.bf16.gmra.mrb[0].mxu0 %v1446
  %v3322 = vpop.f32.mrb[0].mxu0
  %v3323 = vadd.f32 %v3226, %v3322
  %v3324 = vpop.f32.mrb[0].mxu0
  %v3325 = vpop.f32.mrb[0].mxu0
  %v3326 = vadd.f32 %v3229, %v3325
  %v3327 = vpop.f32.mrb[0].mxu0
  %3328 = vmatprep.mubr.bf16.mxu0 %v1474
  %3329 = vmatmul.mubr.bf16.gmra.mrb[0].mxu0 %v1473
  %v3330 = vpop.f32.mrb[0].mxu0
  %v3331 = vadd.f32 %v3234, %v3330
  %v3332 = vpop.f32.mrb[0].mxu0
  %v3333 = vpop.f32.mrb[0].mxu0
  %v3334 = vadd.f32 %v3237, %v3333
  %v3335 = vpop.f32.mrb[0].mxu0
  %3336 = vmatprep.mubr.bf16.mxu0 %v1501
  %3337 = vmatmul.mubr.bf16.gmra.mrb[0].mxu0 %v1500
  %v3338 = vpop.f32.mrb[0].mxu0
  %v3339 = vadd.f32 %v3242, %v3338
  %v3340 = vpop.f32.mrb[0].mxu0
  %v3341 = vpop.f32.mrb[0].mxu0
  %v3342 = vadd.f32 %v3245, %v3341
  %v3343 = vpop.f32.mrb[0].mxu0
  %3344 = vmatprep.mubr.bf16.mxu0 %v1528
  %3345 = vmatmul.mubr.bf16.gmra.mrb[0].mxu0 %v1527
  %v3346 = vpop.f32.mrb[0].mxu0
  %v3347 = vadd.f32 %v3250, %v3346
  %v3348 = vpop.f32.mrb[0].mxu0
  %v3349 = vpop.f32.mrb[0].mxu0
  %v3350 = vadd.f32 %v3253, %v3349
  %v3351 = vpop.f32.mrb[0].mxu0
  %3352 = vdwg.mxu0
  %3353 = vmatprep.subr.bf16.mxu0 0
  %3354 = vmatpush1.bf16.msra.mxu0 %v2678
  %3355 = vmatprep.subr.bf16.mxu0 0
  %3356 = vmatpush1.bf16.msra.mxu0 %v2679
  %3357 = vmatprep.subr.bf16.mxu0 0
  %3358 = vmatpush1.bf16.msra.mxu0 %v2680
  %3359 = vmatprep.subr.bf16.mxu0 0
  %3360 = vmatpush1.bf16.msra.mxu0 %v2681
  %3361 = vmatprep.subr.bf16.mxu0 0
  %3362 = vmatpush1.bf16.msra.mxu0 %v2682
  %3363 = vmatprep.subr.bf16.mxu0 0
  %3364 = vmatpush1.bf16.msra.mxu0 %v2683
  %3365 = vmatprep.subr.bf16.mxu0 0
  %3366 = vmatpush1.bf16.msra.mxu0 %v2684
  %3367 = vmatprep.subr.bf16.mxu0 0
  %3368 = vmatpush1.bf16.msra.mxu0 %v2685
  %3369 = vmatprep.subr.bf16.mxu0 0
  %3370 = vmatpush1.bf16.msra.mxu0 %v2686
  %3371 = vmatprep.subr.bf16.mxu0 0
  %3372 = vmatpush1.bf16.msra.mxu0 %v2687
  %3373 = vmatprep.subr.bf16.mxu0 0
  %3374 = vmatpush1.bf16.msra.mxu0 %v2688
  %3375 = vmatprep.subr.bf16.mxu0 0
  %3376 = vmatpush1.bf16.msra.mxu0 %v2689
  %3377 = vmatprep.subr.bf16.mxu0 0
  %3378 = vmatpush1.bf16.msra.mxu0 %v2690
  %3379 = vmatprep.subr.bf16.mxu0 0
  %3380 = vmatpush1.bf16.msra.mxu0 %v2691
  %3381 = vmatprep.subr.bf16.mxu0 0
  %3382 = vmatpush1.bf16.msra.mxu0 %v2692
  %3383 = vmatprep.subr.bf16.mxu0 0
  %3384 = vmatpush1.bf16.msra.mxu0 %v2693
  %3385 = vmatprep.mubr.bf16.mxu0 %v1341
  %3386 = vmatmul.mubr.bf16.gmra.mrb[0].mxu0 %v1340
  %v3387 = vpop.f32.mrb[0].mxu0
  %v3388 = vadd.f32 %v3291, %v3387
  %v3389 = vpop.f32.mrb[0].mxu0
  %v3390 = vpop.f32.mrb[0].mxu0
  %v3391 = vadd.f32 %v3294, %v3390
  %v3392 = vpop.f32.mrb[0].mxu0
  %3393 = vmatprep.mubr.bf16.mxu0 %v1368
  %3394 = vmatmul.mubr.bf16.gmra.mrb[0].mxu0 %v1367
  %v3395 = vpop.f32.mrb[0].mxu0
  %v3396 = vadd.f32 %v3299, %v3395
  %v3397 = vpop.f32.mrb[0].mxu0
  %v3398 = vpop.f32.mrb[0].mxu0
  %v3399 = vadd.f32 %v3302, %v3398
  %v3400 = vpop.f32.mrb[0].mxu0
  %3401 = vmatprep.mubr.bf16.mxu0 %v1395
  %3402 = vmatmul.mubr.bf16.gmra.mrb[0].mxu0 %v1394
  %v3403 = vpop.f32.mrb[0].mxu0
  %v3404 = vadd.f32 %v3307, %v3403
  %v3405 = vpop.f32.mrb[0].mxu0
  %v3406 = vpop.f32.mrb[0].mxu0
  %v3407 = vadd.f32 %v3310, %v3406
  %v3408 = vpop.f32.mrb[0].mxu0
  %3409 = vmatprep.mubr.bf16.mxu0 %v1422
  %3410 = vmatmul.mubr.bf16.gmra.mrb[0].mxu0 %v1421
  %v3411 = vpop.f32.mrb[0].mxu0
  %v3412 = vadd.f32 %v3315, %v3411
  %v3413 = vpop.f32.mrb[0].mxu0
  %v3414 = vpop.f32.mrb[0].mxu0
  %v3415 = vadd.f32 %v3318, %v3414
  %v3416 = vpop.f32.mrb[0].mxu0
  %3417 = vmatprep.mubr.bf16.mxu0 %v1449
  %3418 = vmatmul.mubr.bf16.gmra.mrb[0].mxu0 %v1448
  %v3419 = vpop.f32.mrb[0].mxu0
  %v3420 = vadd.f32 %v3323, %v3419
  %v3421 = vpop.f32.mrb[0].mxu0
  %v3422 = vpop.f32.mrb[0].mxu0
  %v3423 = vadd.f32 %v3326, %v3422
  %v3424 = vpop.f32.mrb[0].mxu0
  %3425 = vmatprep.mubr.bf16.mxu0 %v1476
  %3426 = vmatmul.mubr.bf16.gmra.mrb[0].mxu0 %v1475
  %v3427 = vpop.f32.mrb[0].mxu0
  %v3428 = vadd.f32 %v3331, %v3427
  %v3429 = vpop.f32.mrb[0].mxu0
  %v3430 = vpop.f32.mrb[0].mxu0
  %v3431 = vadd.f32 %v3334, %v3430
  %v3432 = vpop.f32.mrb[0].mxu0
  %3433 = vmatprep.mubr.bf16.mxu0 %v1503
  %3434 = vmatmul.mubr.bf16.gmra.mrb[0].mxu0 %v1502
  %v3435 = vpop.f32.mrb[0].mxu0
  %v3436 = vadd.f32 %v3339, %v3435
  %v3437 = vpop.f32.mrb[0].mxu0
  %v3438 = vpop.f32.mrb[0].mxu0
  %v3439 = vadd.f32 %v3342, %v3438
  %v3440 = vpop.f32.mrb[0].mxu0
  %3441 = vmatprep.mubr.bf16.mxu0 %v1530
  %3442 = vmatmul.mubr.bf16.gmra.mrb[0].mxu0 %v1529
  %v3443 = vpop.f32.mrb[0].mxu0
  %v3444 = vadd.f32 %v3347, %v3443
  %v3445 = vpop.f32.mrb[0].mxu0
  %v3446 = vpop.f32.mrb[0].mxu0
  %v3447 = vadd.f32 %v3350, %v3446
  %v3448 = vpop.f32.mrb[0].mxu0
  %3449 = vdwg.mxu0
  %3450 = vmatprep.subr.bf16.mxu0 0
  %3451 = vmatpush1.bf16.msra.mxu0 %v2694
  %3452 = vmatprep.subr.bf16.mxu0 0
  %3453 = vmatpush1.bf16.msra.mxu0 %v2695
  %3454 = vmatprep.subr.bf16.mxu0 0
  %3455 = vmatpush1.bf16.msra.mxu0 %v2696
  %3456 = vmatprep.subr.bf16.mxu0 0
  %3457 = vmatpush1.bf16.msra.mxu0 %v2697
  %3458 = vmatprep.subr.bf16.mxu0 0
  %3459 = vmatpush1.bf16.msra.mxu0 %v2698
  %3460 = vmatprep.subr.bf16.mxu0 0
  %3461 = vmatpush1.bf16.msra.mxu0 %v2699
  %3462 = vmatprep.subr.bf16.mxu0 0
  %3463 = vmatpush1.bf16.msra.mxu0 %v2700
  %3464 = vmatprep.subr.bf16.mxu0 0
  %3465 = vmatpush1.bf16.msra.mxu0 %v2701
  %3466 = vmatprep.subr.bf16.mxu0 0
  %3467 = vmatpush1.bf16.msra.mxu0 %v2702
  %3468 = vmatprep.subr.bf16.mxu0 0
  %3469 = vmatpush1.bf16.msra.mxu0 %v2703
  %3470 = vmatprep.subr.bf16.mxu0 0
  %3471 = vmatpush1.bf16.msra.mxu0 %v2704
  %3472 = vmatprep.subr.bf16.mxu0 0
  %3473 = vmatpush1.bf16.msra.mxu0 %v2705
  %3474 = vmatprep.subr.bf16.mxu0 0
  %3475 = vmatpush1.bf16.msra.mxu0 %v2706
  %3476 = vmatprep.subr.bf16.mxu0 0
  %3477 = vmatpush1.bf16.msra.mxu0 %v2707
  %3478 = vmatprep.subr.bf16.mxu0 0
  %3479 = vmatpush1.bf16.msra.mxu0 %v2708
  %3480 = vmatprep.subr.bf16.mxu0 0
  %3481 = vmatpush1.bf16.msra.mxu0 %v2709
  %3482 = vmatprep.mubr.bf16.mxu0 %v1343
  %3483 = vmatmul.mubr.bf16.gmra.mrb[0].mxu0 %v1342
  %v3484 = vpop.f32.mrb[0].mxu0
  %v3485 = vadd.f32 %v3388, %v3484
  %v3486 = vpop.f32.mrb[0].mxu0
  %v3487 = vpop.f32.mrb[0].mxu0
  %v3488 = vadd.f32 %v3391, %v3487
  %v3489 = vpop.f32.mrb[0].mxu0
  %3490 = vmatprep.mubr.bf16.mxu0 %v1370
  %3491 = vmatmul.mubr.bf16.gmra.mrb[0].mxu0 %v1369
  %v3492 = vpop.f32.mrb[0].mxu0
  %v3493 = vadd.f32 %v3396, %v3492
  %v3494 = vpop.f32.mrb[0].mxu0
  %v3495 = vpop.f32.mrb[0].mxu0
  %v3496 = vadd.f32 %v3399, %v3495
  %v3497 = vpop.f32.mrb[0].mxu0
  %3498 = vmatprep.mubr.bf16.mxu0 %v1397
  %3499 = vmatmul.mubr.bf16.gmra.mrb[0].mxu0 %v1396
  %v3500 = vpop.f32.mrb[0].mxu0
  %v3501 = vadd.f32 %v3404, %v3500
  %v3502 = vpop.f32.mrb[0].mxu0
  %v3503 = vpop.f32.mrb[0].mxu0
  %v3504 = vadd.f32 %v3407, %v3503
  %v3505 = vpop.f32.mrb[0].mxu0
  %3506 = vmatprep.mubr.bf16.mxu0 %v1424
  %3507 = vmatmul.mubr.bf16.gmra.mrb[0].mxu0 %v1423
  %v3508 = vpop.f32.mrb[0].mxu0
  %v3509 = vadd.f32 %v3412, %v3508
  %v3510 = vpop.f32.mrb[0].mxu0
  %v3511 = vpop.f32.mrb[0].mxu0
  %v3512 = vadd.f32 %v3415, %v3511
  %v3513 = vpop.f32.mrb[0].mxu0
  %3514 = vmatprep.mubr.bf16.mxu0 %v1451
  %3515 = vmatmul.mubr.bf16.gmra.mrb[0].mxu0 %v1450
  %v3516 = vpop.f32.mrb[0].mxu0
  %v3517 = vadd.f32 %v3420, %v3516
  %v3518 = vpop.f32.mrb[0].mxu0
  %v3519 = vpop.f32.mrb[0].mxu0
  %v3520 = vadd.f32 %v3423, %v3519
  %v3521 = vpop.f32.mrb[0].mxu0
  %3522 = vmatprep.mubr.bf16.mxu0 %v1478
  %3523 = vmatmul.mubr.bf16.gmra.mrb[0].mxu0 %v1477
  %v3524 = vpop.f32.mrb[0].mxu0
  %v3525 = vadd.f32 %v3428, %v3524
  %v3526 = vpop.f32.mrb[0].mxu0
  %v3527 = vpop.f32.mrb[0].mxu0
  %v3528 = vadd.f32 %v3431, %v3527
  %v3529 = vpop.f32.mrb[0].mxu0
  %3530 = vmatprep.mubr.bf16.mxu0 %v1505
  %3531 = vmatmul.mubr.bf16.gmra.mrb[0].mxu0 %v1504
  %v3532 = vpop.f32.mrb[0].mxu0
  %v3533 = vadd.f32 %v3436, %v3532
  %v3534 = vpop.f32.mrb[0].mxu0
  %v3535 = vpop.f32.mrb[0].mxu0
  %v3536 = vadd.f32 %v3439, %v3535
  %v3537 = vpop.f32.mrb[0].mxu0
  %3538 = vmatprep.mubr.bf16.mxu0 %v1532
  %3539 = vmatmul.mubr.bf16.gmra.mrb[0].mxu0 %v1531
  %v3540 = vpop.f32.mrb[0].mxu0
  %v3541 = vadd.f32 %v3444, %v3540
  %v3542 = vpop.f32.mrb[0].mxu0
  %v3543 = vpop.f32.mrb[0].mxu0
  %v3544 = vadd.f32 %v3447, %v3543
  %v3545 = vpop.f32.mrb[0].mxu0
  %3546 = vdwg.mxu0
  %3547 = vmatprep.subr.bf16.mxu0 0
  %3548 = vmatpush1.bf16.msra.mxu0 %v2710
  %3549 = vmatprep.subr.bf16.mxu0 0
  %3550 = vmatpush1.bf16.msra.mxu0 %v2711
  %3551 = vmatprep.subr.bf16.mxu0 0
  %3552 = vmatpush1.bf16.msra.mxu0 %v2712
  %3553 = vmatprep.subr.bf16.mxu0 0
  %3554 = vmatpush1.bf16.msra.mxu0 %v2713
  %3555 = vmatprep.subr.bf16.mxu0 0
  %3556 = vmatpush1.bf16.msra.mxu0 %v2714
  %3557 = vmatprep.subr.bf16.mxu0 0
  %3558 = vmatpush1.bf16.msra.mxu0 %v2715
  %3559 = vmatprep.subr.bf16.mxu0 0
  %3560 = vmatpush1.bf16.msra.mxu0 %v2716
  %3561 = vmatprep.subr.bf16.mxu0 0
  %3562 = vmatpush1.bf16.msra.mxu0 %v2717
  %3563 = vmatprep.subr.bf16.mxu0 0
  %3564 = vmatpush1.bf16.msra.mxu0 %v2718
  %3565 = vmatprep.subr.bf16.mxu0 0
  %3566 = vmatpush1.bf16.msra.mxu0 %v2719
  %3567 = vmatprep.subr.bf16.mxu0 0
  %3568 = vmatpush1.bf16.msra.mxu0 %v2720
  %3569 = vmatprep.subr.bf16.mxu0 0
  %3570 = vmatpush1.bf16.msra.mxu0 %v2721
  %3571 = vmatprep.subr.bf16.mxu0 0
  %3572 = vmatpush1.bf16.msra.mxu0 %v2722
  %3573 = vmatprep.subr.bf16.mxu0 0
  %3574 = vmatpush1.bf16.msra.mxu0 %v2723
  %3575 = vmatprep.subr.bf16.mxu0 0
  %3576 = vmatpush1.bf16.msra.mxu0 %v2724
  %3577 = vmatprep.subr.bf16.mxu0 0
  %3578 = vmatpush1.bf16.msra.mxu0 %v2725
  %3579 = vmatprep.mubr.bf16.mxu0 %v1345
  %3580 = vmatmul.mubr.bf16.gmra.mrb[0].mxu0 %v1344
  %v3581 = vpop.f32.mrb[0].mxu0
  %v3582 = vadd.f32 %v3485, %v3581
  %v3583 = vpop.f32.mrb[0].mxu0
  %v3584 = vpop.f32.mrb[0].mxu0
  %v3585 = vadd.f32 %v3488, %v3584
  %v3586 = vpop.f32.mrb[0].mxu0
  %3587 = vmatprep.mubr.bf16.mxu0 %v1372
  %3588 = vmatmul.mubr.bf16.gmra.mrb[0].mxu0 %v1371
  %v3589 = vpop.f32.mrb[0].mxu0
  %v3590 = vadd.f32 %v3493, %v3589
  %v3591 = vpop.f32.mrb[0].mxu0
  %v3592 = vpop.f32.mrb[0].mxu0
  %v3593 = vadd.f32 %v3496, %v3592
  %v3594 = vpop.f32.mrb[0].mxu0
  %3595 = vmatprep.mubr.bf16.mxu0 %v1399
  %3596 = vmatmul.mubr.bf16.gmra.mrb[0].mxu0 %v1398
  %v3597 = vpop.f32.mrb[0].mxu0
  %v3598 = vadd.f32 %v3501, %v3597
  %v3599 = vpop.f32.mrb[0].mxu0
  %v3600 = vpop.f32.mrb[0].mxu0
  %v3601 = vadd.f32 %v3504, %v3600
  %v3602 = vpop.f32.mrb[0].mxu0
  %3603 = vmatprep.mubr.bf16.mxu0 %v1426
  %3604 = vmatmul.mubr.bf16.gmra.mrb[0].mxu0 %v1425
  %v3605 = vpop.f32.mrb[0].mxu0
  %v3606 = vadd.f32 %v3509, %v3605
  %v3607 = vpop.f32.mrb[0].mxu0
  %v3608 = vpop.f32.mrb[0].mxu0
  %v3609 = vadd.f32 %v3512, %v3608
  %v3610 = vpop.f32.mrb[0].mxu0
  %3611 = vmatprep.mubr.bf16.mxu0 %v1453
  %3612 = vmatmul.mubr.bf16.gmra.mrb[0].mxu0 %v1452
  %v3613 = vpop.f32.mrb[0].mxu0
  %v3614 = vadd.f32 %v3517, %v3613
  %v3615 = vpop.f32.mrb[0].mxu0
  %v3616 = vpop.f32.mrb[0].mxu0
  %v3617 = vadd.f32 %v3520, %v3616
  %v3618 = vpop.f32.mrb[0].mxu0
  %3619 = vmatprep.mubr.bf16.mxu0 %v1480
  %3620 = vmatmul.mubr.bf16.gmra.mrb[0].mxu0 %v1479
  %v3621 = vpop.f32.mrb[0].mxu0
  %v3622 = vadd.f32 %v3525, %v3621
  %v3623 = vpop.f32.mrb[0].mxu0
  %v3624 = vpop.f32.mrb[0].mxu0
  %v3625 = vadd.f32 %v3528, %v3624
  %v3626 = vpop.f32.mrb[0].mxu0
  %3627 = vmatprep.mubr.bf16.mxu0 %v1507
  %3628 = vmatmul.mubr.bf16.gmra.mrb[0].mxu0 %v1506
  %v3629 = vpop.f32.mrb[0].mxu0
  %v3630 = vadd.f32 %v3533, %v3629
  %v3631 = vpop.f32.mrb[0].mxu0
  %v3632 = vpop.f32.mrb[0].mxu0
  %v3633 = vadd.f32 %v3536, %v3632
  %v3634 = vpop.f32.mrb[0].mxu0
  %3635 = vmatprep.mubr.bf16.mxu0 %v1534
  %3636 = vmatmul.mubr.bf16.gmra.mrb[0].mxu0 %v1533
  %v3637 = vpop.f32.mrb[0].mxu0
  %v3638 = vadd.f32 %v3541, %v3637
  %v3639 = vpop.f32.mrb[0].mxu0
  %v3640 = vpop.f32.mrb[0].mxu0
  %v3641 = vadd.f32 %v3544, %v3640
  %v3642 = vpop.f32.mrb[0].mxu0
  %3643 = vdwg.mxu0
  %3644 = vmatprep.subr.bf16.mxu0 0
  %3645 = vmatpush1.bf16.msra.mxu0 %v2726
  %3646 = vmatprep.subr.bf16.mxu0 0
  %3647 = vmatpush1.bf16.msra.mxu0 %v2727
  %3648 = vmatprep.subr.bf16.mxu0 0
  %3649 = vmatpush1.bf16.msra.mxu0 %v2728
  %3650 = vmatprep.subr.bf16.mxu0 0
  %3651 = vmatpush1.bf16.msra.mxu0 %v2729
  %3652 = vmatprep.subr.bf16.mxu0 0
  %3653 = vmatpush1.bf16.msra.mxu0 %v2730
  %3654 = vmatprep.subr.bf16.mxu0 0
  %3655 = vmatpush1.bf16.msra.mxu0 %v2731
  %3656 = vmatprep.subr.bf16.mxu0 0
  %3657 = vmatpush1.bf16.msra.mxu0 %v2732
  %3658 = vmatprep.subr.bf16.mxu0 0
  %3659 = vmatpush1.bf16.msra.mxu0 %v2733
  %3660 = vmatprep.subr.bf16.mxu0 0
  %3661 = vmatpush1.bf16.msra.mxu0 %v2734
  %3662 = vmatprep.subr.bf16.mxu0 0
  %3663 = vmatpush1.bf16.msra.mxu0 %v2735
  %3664 = vmatprep.subr.bf16.mxu0 0
  %3665 = vmatpush1.bf16.msra.mxu0 %v2736
  %3666 = vmatprep.subr.bf16.mxu0 0
  %3667 = vmatpush1.bf16.msra.mxu0 %v2737
  %3668 = vmatprep.subr.bf16.mxu0 0
  %3669 = vmatpush1.bf16.msra.mxu0 %v2738
  %3670 = vmatprep.subr.bf16.mxu0 0
  %3671 = vmatpush1.bf16.msra.mxu0 %v2739
  %3672 = vmatprep.subr.bf16.mxu0 0
  %3673 = vmatpush1.bf16.msra.mxu0 %v2740
  %3674 = vmatprep.subr.bf16.mxu0 0
  %3675 = vmatpush1.bf16.msra.mxu0 %v2741
  %3676 = vmatprep.mubr.bf16.mxu0 %v1347
  %3677 = vmatmul.mubr.bf16.gmra.mrb[0].mxu0 %v1346
  %v3678 = vpop.f32.mrb[0].mxu0
  %v3679 = vadd.f32 %v3582, %v3678
  %v3680 = vpop.f32.mrb[0].mxu0
  %v3681 = vpop.f32.mrb[0].mxu0
  %v3682 = vadd.f32 %v3585, %v3681
  %v3683 = vpop.f32.mrb[0].mxu0
  %3684 = vmatprep.mubr.bf16.mxu0 %v1374
  %3685 = vmatmul.mubr.bf16.gmra.mrb[0].mxu0 %v1373
  %v3686 = vpop.f32.mrb[0].mxu0
  %v3687 = vadd.f32 %v3590, %v3686
  %v3688 = vpop.f32.mrb[0].mxu0
  %v3689 = vpop.f32.mrb[0].mxu0
  %v3690 = vadd.f32 %v3593, %v3689
  %v3691 = vpop.f32.mrb[0].mxu0
  %3692 = vmatprep.mubr.bf16.mxu0 %v1401
  %3693 = vmatmul.mubr.bf16.gmra.mrb[0].mxu0 %v1400
  %v3694 = vpop.f32.mrb[0].mxu0
  %v3695 = vadd.f32 %v3598, %v3694
  %v3696 = vpop.f32.mrb[0].mxu0
  %v3697 = vpop.f32.mrb[0].mxu0
  %v3698 = vadd.f32 %v3601, %v3697
  %v3699 = vpop.f32.mrb[0].mxu0
  %3700 = vmatprep.mubr.bf16.mxu0 %v1428
  %3701 = vmatmul.mubr.bf16.gmra.mrb[0].mxu0 %v1427
  %v3702 = vpop.f32.mrb[0].mxu0
  %v3703 = vadd.f32 %v3606, %v3702
  %v3704 = vpop.f32.mrb[0].mxu0
  %v3705 = vpop.f32.mrb[0].mxu0
  %v3706 = vadd.f32 %v3609, %v3705
  %v3707 = vpop.f32.mrb[0].mxu0
  %3708 = vmatprep.mubr.bf16.mxu0 %v1455
  %3709 = vmatmul.mubr.bf16.gmra.mrb[0].mxu0 %v1454
  %v3710 = vpop.f32.mrb[0].mxu0
  %v3711 = vadd.f32 %v3614, %v3710
  %v3712 = vpop.f32.mrb[0].mxu0
  %v3713 = vpop.f32.mrb[0].mxu0
  %v3714 = vadd.f32 %v3617, %v3713
  %v3715 = vpop.f32.mrb[0].mxu0
  %3716 = vmatprep.mubr.bf16.mxu0 %v1482
  %3717 = vmatmul.mubr.bf16.gmra.mrb[0].mxu0 %v1481
  %v3718 = vpop.f32.mrb[0].mxu0
  %v3719 = vadd.f32 %v3622, %v3718
  %v3720 = vpop.f32.mrb[0].mxu0
  %v3721 = vpop.f32.mrb[0].mxu0
  %v3722 = vadd.f32 %v3625, %v3721
  %v3723 = vpop.f32.mrb[0].mxu0
  %3724 = vmatprep.mubr.bf16.mxu0 %v1509
  %3725 = vmatmul.mubr.bf16.gmra.mrb[0].mxu0 %v1508
  %v3726 = vpop.f32.mrb[0].mxu0
  %v3727 = vadd.f32 %v3630, %v3726
  %v3728 = vpop.f32.mrb[0].mxu0
  %v3729 = vpop.f32.mrb[0].mxu0
  %v3730 = vadd.f32 %v3633, %v3729
  %v3731 = vpop.f32.mrb[0].mxu0
  %3732 = vmatprep.mubr.bf16.mxu0 %v1536
  %3733 = vmatmul.mubr.bf16.gmra.mrb[0].mxu0 %v1535
  %v3734 = vpop.f32.mrb[0].mxu0
  %v3735 = vadd.f32 %v3638, %v3734
  %v3736 = vpop.f32.mrb[0].mxu0
  %v3737 = vpop.f32.mrb[0].mxu0
  %v3738 = vadd.f32 %v3641, %v3737
  %v3739 = vpop.f32.mrb[0].mxu0
  %3740 = vdwg.mxu0
  %3741 = vmatprep.subr.bf16.mxu0 0
  %3742 = vmatpush1.bf16.msra.mxu0 %v2742
  %3743 = vmatprep.subr.bf16.mxu0 0
  %3744 = vmatpush1.bf16.msra.mxu0 %v2743
  %3745 = vmatprep.subr.bf16.mxu0 0
  %3746 = vmatpush1.bf16.msra.mxu0 %v2744
  %3747 = vmatprep.subr.bf16.mxu0 0
  %3748 = vmatpush1.bf16.msra.mxu0 %v2745
  %3749 = vmatprep.subr.bf16.mxu0 0
  %3750 = vmatpush1.bf16.msra.mxu0 %v2746
  %3751 = vmatprep.subr.bf16.mxu0 0
  %3752 = vmatpush1.bf16.msra.mxu0 %v2747
  %3753 = vmatprep.subr.bf16.mxu0 0
  %3754 = vmatpush1.bf16.msra.mxu0 %v2748
  %3755 = vmatprep.subr.bf16.mxu0 0
  %3756 = vmatpush1.bf16.msra.mxu0 %v2749
  %3757 = vmatprep.subr.bf16.mxu0 0
  %3758 = vmatpush1.bf16.msra.mxu0 %v2750
  %3759 = vmatprep.subr.bf16.mxu0 0
  %3760 = vmatpush1.bf16.msra.mxu0 %v2751
  %3761 = vmatprep.subr.bf16.mxu0 0
  %3762 = vmatpush1.bf16.msra.mxu0 %v2752
  %3763 = vmatprep.subr.bf16.mxu0 0
  %3764 = vmatpush1.bf16.msra.mxu0 %v2753
  %3765 = vmatprep.subr.bf16.mxu0 0
  %3766 = vmatpush1.bf16.msra.mxu0 %v2754
  %3767 = vmatprep.subr.bf16.mxu0 0
  %3768 = vmatpush1.bf16.msra.mxu0 %v2755
  %3769 = vmatprep.subr.bf16.mxu0 0
  %3770 = vmatpush1.bf16.msra.mxu0 %v2756
  %3771 = vmatprep.subr.bf16.mxu0 0
  %3772 = vmatpush1.bf16.msra.mxu0 %v2757
  %3773 = vmatprep.mubr.bf16.mxu0 %v1349
  %3774 = vmatmul.mubr.bf16.gmra.mrb[0].mxu0 %v1348
  %v3775 = vpop.f32.mrb[0].mxu0
  %v3776 = vadd.f32 %v3679, %v3775
  %v3777 = vpop.f32.mrb[0].mxu0
  %v3778 = vpop.f32.mrb[0].mxu0
  %v3779 = vadd.f32 %v3682, %v3778
  %v3780 = vpop.f32.mrb[0].mxu0
  %3781 = vmatprep.mubr.bf16.mxu0 %v1376
  %3782 = vmatmul.mubr.bf16.gmra.mrb[0].mxu0 %v1375
  %v3783 = vpop.f32.mrb[0].mxu0
  %v3784 = vadd.f32 %v3687, %v3783
  %v3785 = vpop.f32.mrb[0].mxu0
  %v3786 = vpop.f32.mrb[0].mxu0
  %v3787 = vadd.f32 %v3690, %v3786
  %v3788 = vpop.f32.mrb[0].mxu0
  %3789 = vmatprep.mubr.bf16.mxu0 %v1403
  %3790 = vmatmul.mubr.bf16.gmra.mrb[0].mxu0 %v1402
  %v3791 = vpop.f32.mrb[0].mxu0
  %v3792 = vadd.f32 %v3695, %v3791
  %v3793 = vpop.f32.mrb[0].mxu0
  %v3794 = vpop.f32.mrb[0].mxu0
  %v3795 = vadd.f32 %v3698, %v3794
  %v3796 = vpop.f32.mrb[0].mxu0
  %3797 = vmatprep.mubr.bf16.mxu0 %v1430
  %3798 = vmatmul.mubr.bf16.gmra.mrb[0].mxu0 %v1429
  %v3799 = vpop.f32.mrb[0].mxu0
  %v3800 = vadd.f32 %v3703, %v3799
  %v3801 = vpop.f32.mrb[0].mxu0
  %v3802 = vpop.f32.mrb[0].mxu0
  %v3803 = vadd.f32 %v3706, %v3802
  %v3804 = vpop.f32.mrb[0].mxu0
  %3805 = vmatprep.mubr.bf16.mxu0 %v1457
  %3806 = vmatmul.mubr.bf16.gmra.mrb[0].mxu0 %v1456
  %v3807 = vpop.f32.mrb[0].mxu0
  %v3808 = vadd.f32 %v3711, %v3807
  %v3809 = vpop.f32.mrb[0].mxu0
  %v3810 = vpop.f32.mrb[0].mxu0
  %v3811 = vadd.f32 %v3714, %v3810
  %v3812 = vpop.f32.mrb[0].mxu0
  %3813 = vmatprep.mubr.bf16.mxu0 %v1484
  %3814 = vmatmul.mubr.bf16.gmra.mrb[0].mxu0 %v1483
  %v3815 = vpop.f32.mrb[0].mxu0
  %v3816 = vadd.f32 %v3719, %v3815
  %v3817 = vpop.f32.mrb[0].mxu0
  %v3818 = vpop.f32.mrb[0].mxu0
  %v3819 = vadd.f32 %v3722, %v3818
  %v3820 = vpop.f32.mrb[0].mxu0
  %3821 = vmatprep.mubr.bf16.mxu0 %v1511
  %3822 = vmatmul.mubr.bf16.gmra.mrb[0].mxu0 %v1510
  %v3823 = vpop.f32.mrb[0].mxu0
  %v3824 = vadd.f32 %v3727, %v3823
  %v3825 = vpop.f32.mrb[0].mxu0
  %v3826 = vpop.f32.mrb[0].mxu0
  %v3827 = vadd.f32 %v3730, %v3826
  %v3828 = vpop.f32.mrb[0].mxu0
  %3829 = vmatprep.mubr.bf16.mxu0 %v1538
  %3830 = vmatmul.mubr.bf16.gmra.mrb[0].mxu0 %v1537
  %v3831 = vpop.f32.mrb[0].mxu0
  %v3832 = vadd.f32 %v3735, %v3831
  %v3833 = vpop.f32.mrb[0].mxu0
  %v3834 = vpop.f32.mrb[0].mxu0
  %v3835 = vadd.f32 %v3738, %v3834
  %v3836 = vpop.f32.mrb[0].mxu0
  %3837 = vdwg.mxu0
  %3838 = vmatprep.subr.bf16.mxu0 0
  %3839 = vmatpush1.bf16.msra.mxu0 %v2758
  %3840 = vmatprep.subr.bf16.mxu0 0
  %3841 = vmatpush1.bf16.msra.mxu0 %v2759
  %3842 = vmatprep.subr.bf16.mxu0 0
  %3843 = vmatpush1.bf16.msra.mxu0 %v2760
  %3844 = vmatprep.subr.bf16.mxu0 0
  %3845 = vmatpush1.bf16.msra.mxu0 %v2761
  %3846 = vmatprep.subr.bf16.mxu0 0
  %3847 = vmatpush1.bf16.msra.mxu0 %v2762
  %3848 = vmatprep.subr.bf16.mxu0 0
  %3849 = vmatpush1.bf16.msra.mxu0 %v2763
  %3850 = vmatprep.subr.bf16.mxu0 0
  %3851 = vmatpush1.bf16.msra.mxu0 %v2764
  %3852 = vmatprep.subr.bf16.mxu0 0
  %3853 = vmatpush1.bf16.msra.mxu0 %v2765
  %3854 = vmatprep.subr.bf16.mxu0 0
  %3855 = vmatpush1.bf16.msra.mxu0 %v2766
  %3856 = vmatprep.subr.bf16.mxu0 0
  %3857 = vmatpush1.bf16.msra.mxu0 %v2767
  %3858 = vmatprep.subr.bf16.mxu0 0
  %3859 = vmatpush1.bf16.msra.mxu0 %v2768
  %3860 = vmatprep.subr.bf16.mxu0 0
  %3861 = vmatpush1.bf16.msra.mxu0 %v2769
  %3862 = vmatprep.subr.bf16.mxu0 0
  %3863 = vmatpush1.bf16.msra.mxu0 %v2770
  %3864 = vmatprep.subr.bf16.mxu0 0
  %3865 = vmatpush1.bf16.msra.mxu0 %v2771
  %3866 = vmatprep.subr.bf16.mxu0 0
  %3867 = vmatpush1.bf16.msra.mxu0 %v2772
  %3868 = vmatprep.subr.bf16.mxu0 0
  %3869 = vmatpush1.bf16.msra.mxu0 %v2773
  %3870 = vmatprep.mubr.bf16.mxu0 %v1351
  %3871 = vmatmul.mubr.bf16.gmra.mrb[0].mxu0 %v1350
  %v3872 = vpop.f32.mrb[0].mxu0
  %v3873 = vadd.f32 %v3776, %v3872
  %v3874 = vpop.f32.mrb[0].mxu0
  %v3875 = vpop.f32.mrb[0].mxu0
  %v3876 = vadd.f32 %v3779, %v3875
  %v3877 = vpop.f32.mrb[0].mxu0
  %3878 = vmatprep.mubr.bf16.mxu0 %v1378
  %3879 = vmatmul.mubr.bf16.gmra.mrb[0].mxu0 %v1377
  %v3880 = vpop.f32.mrb[0].mxu0
  %v3881 = vadd.f32 %v3784, %v3880
  %v3882 = vpop.f32.mrb[0].mxu0
  %v3883 = vpop.f32.mrb[0].mxu0
  %v3884 = vadd.f32 %v3787, %v3883
  %v3885 = vpop.f32.mrb[0].mxu0
  %3886 = vmatprep.mubr.bf16.mxu0 %v1405
  %3887 = vmatmul.mubr.bf16.gmra.mrb[0].mxu0 %v1404
  %v3888 = vpop.f32.mrb[0].mxu0
  %v3889 = vadd.f32 %v3792, %v3888
  %v3890 = vpop.f32.mrb[0].mxu0
  %v3891 = vpop.f32.mrb[0].mxu0
  %v3892 = vadd.f32 %v3795, %v3891
  %v3893 = vpop.f32.mrb[0].mxu0
  %3894 = vmatprep.mubr.bf16.mxu0 %v1432
  %3895 = vmatmul.mubr.bf16.gmra.mrb[0].mxu0 %v1431
  %v3896 = vpop.f32.mrb[0].mxu0
  %v3897 = vadd.f32 %v3800, %v3896
  %v3898 = vpop.f32.mrb[0].mxu0
  %v3899 = vpop.f32.mrb[0].mxu0
  %v3900 = vadd.f32 %v3803, %v3899
  %v3901 = vpop.f32.mrb[0].mxu0
  %3902 = vmatprep.mubr.bf16.mxu0 %v1459
  %3903 = vmatmul.mubr.bf16.gmra.mrb[0].mxu0 %v1458
  %v3904 = vpop.f32.mrb[0].mxu0
  %v3905 = vadd.f32 %v3808, %v3904
  %v3906 = vpop.f32.mrb[0].mxu0
  %v3907 = vpop.f32.mrb[0].mxu0
  %v3908 = vadd.f32 %v3811, %v3907
  %v3909 = vpop.f32.mrb[0].mxu0
  %3910 = vmatprep.mubr.bf16.mxu0 %v1486
  %3911 = vmatmul.mubr.bf16.gmra.mrb[0].mxu0 %v1485
  %v3912 = vpop.f32.mrb[0].mxu0
  %v3913 = vadd.f32 %v3816, %v3912
  %v3914 = vpop.f32.mrb[0].mxu0
  %v3915 = vpop.f32.mrb[0].mxu0
  %v3916 = vadd.f32 %v3819, %v3915
  %v3917 = vpop.f32.mrb[0].mxu0
  %3918 = vmatprep.mubr.bf16.mxu0 %v1513
  %3919 = vmatmul.mubr.bf16.gmra.mrb[0].mxu0 %v1512
  %v3920 = vpop.f32.mrb[0].mxu0
  %v3921 = vadd.f32 %v3824, %v3920
  %v3922 = vpop.f32.mrb[0].mxu0
  %v3923 = vpop.f32.mrb[0].mxu0
  %v3924 = vadd.f32 %v3827, %v3923
  %v3925 = vpop.f32.mrb[0].mxu0
  %3926 = vmatprep.mubr.bf16.mxu0 %v1540
  %3927 = vmatmul.mubr.bf16.gmra.mrb[0].mxu0 %v1539
  %v3928 = vpop.f32.mrb[0].mxu0
  %v3929 = vadd.f32 %v3832, %v3928
  %v3930 = vpop.f32.mrb[0].mxu0
  %v3931 = vpop.f32.mrb[0].mxu0
  %v3932 = vadd.f32 %v3835, %v3931
  %v3933 = vpop.f32.mrb[0].mxu0
  %3934 = vdwg.mxu0
  %3935 = vmatprep.subr.bf16.mxu0 0
  %3936 = vmatpush1.bf16.msra.mxu0 %v2774
  %3937 = vmatprep.subr.bf16.mxu0 0
  %3938 = vmatpush1.bf16.msra.mxu0 %v2775
  %3939 = vmatprep.subr.bf16.mxu0 0
  %3940 = vmatpush1.bf16.msra.mxu0 %v2776
  %3941 = vmatprep.subr.bf16.mxu0 0
  %3942 = vmatpush1.bf16.msra.mxu0 %v2777
  %3943 = vmatprep.subr.bf16.mxu0 0
  %3944 = vmatpush1.bf16.msra.mxu0 %v2778
  %3945 = vmatprep.subr.bf16.mxu0 0
  %3946 = vmatpush1.bf16.msra.mxu0 %v2779
  %3947 = vmatprep.subr.bf16.mxu0 0
  %3948 = vmatpush1.bf16.msra.mxu0 %v2780
  %3949 = vmatprep.subr.bf16.mxu0 0
  %3950 = vmatpush1.bf16.msra.mxu0 %v2781
  %3951 = vmatprep.subr.bf16.mxu0 0
  %3952 = vmatpush1.bf16.msra.mxu0 %v2782
  %3953 = vmatprep.subr.bf16.mxu0 0
  %3954 = vmatpush1.bf16.msra.mxu0 %v2783
  %3955 = vmatprep.subr.bf16.mxu0 0
  %3956 = vmatpush1.bf16.msra.mxu0 %v2784
  %3957 = vmatprep.subr.bf16.mxu0 0
  %3958 = vmatpush1.bf16.msra.mxu0 %v2785
  %3959 = vmatprep.subr.bf16.mxu0 0
  %3960 = vmatpush1.bf16.msra.mxu0 %v2786
  %3961 = vmatprep.subr.bf16.mxu0 0
  %3962 = vmatpush1.bf16.msra.mxu0 %v2787
  %3963 = vmatprep.subr.bf16.mxu0 0
  %3964 = vmatpush1.bf16.msra.mxu0 %v2788
  %3965 = vmatprep.subr.bf16.mxu0 0
  %3966 = vmatpush1.bf16.msra.mxu0 %v2789
  %3967 = vmatprep.mubr.bf16.mxu0 %v1353
  %3968 = vmatmul.mubr.bf16.gmra.mrb[0].mxu0 %v1352
  %v3969 = vpop.f32.mrb[0].mxu0
  %v3970 = vadd.f32 %v3873, %v3969
  %v3971 = vpop.f32.mrb[0].mxu0
  %v3972 = vpop.f32.mrb[0].mxu0
  %v3973 = vadd.f32 %v3876, %v3972
  %v3974 = vpop.f32.mrb[0].mxu0
  %3975 = vmatprep.mubr.bf16.mxu0 %v1380
  %3976 = vmatmul.mubr.bf16.gmra.mrb[0].mxu0 %v1379
  %v3977 = vpop.f32.mrb[0].mxu0
  %v3978 = vadd.f32 %v3881, %v3977
  %v3979 = vpop.f32.mrb[0].mxu0
  %v3980 = vpop.f32.mrb[0].mxu0
  %v3981 = vadd.f32 %v3884, %v3980
  %v3982 = vpop.f32.mrb[0].mxu0
  %3983 = vmatprep.mubr.bf16.mxu0 %v1407
  %3984 = vmatmul.mubr.bf16.gmra.mrb[0].mxu0 %v1406
  %v3985 = vpop.f32.mrb[0].mxu0
  %v3986 = vadd.f32 %v3889, %v3985
  %v3987 = vpop.f32.mrb[0].mxu0
  %v3988 = vpop.f32.mrb[0].mxu0
  %v3989 = vadd.f32 %v3892, %v3988
  %v3990 = vpop.f32.mrb[0].mxu0
  %3991 = vmatprep.mubr.bf16.mxu0 %v1434
  %3992 = vmatmul.mubr.bf16.gmra.mrb[0].mxu0 %v1433
  %v3993 = vpop.f32.mrb[0].mxu0
  %v3994 = vadd.f32 %v3897, %v3993
  %v3995 = vpop.f32.mrb[0].mxu0
  %v3996 = vpop.f32.mrb[0].mxu0
  %v3997 = vadd.f32 %v3900, %v3996
  %v3998 = vpop.f32.mrb[0].mxu0
  %3999 = vmatprep.mubr.bf16.mxu0 %v1461
  %4000 = vmatmul.mubr.bf16.gmra.mrb[0].mxu0 %v1460
  %v4001 = vpop.f32.mrb[0].mxu0
  %v4002 = vadd.f32 %v3905, %v4001
  %v4003 = vpop.f32.mrb[0].mxu0
  %v4004 = vpop.f32.mrb[0].mxu0
  %v4005 = vadd.f32 %v3908, %v4004
  %v4006 = vpop.f32.mrb[0].mxu0
  %4007 = vmatprep.mubr.bf16.mxu0 %v1488
  %4008 = vmatmul.mubr.bf16.gmra.mrb[0].mxu0 %v1487
  %v4009 = vpop.f32.mrb[0].mxu0
  %v4010 = vadd.f32 %v3913, %v4009
  %v4011 = vpop.f32.mrb[0].mxu0
  %v4012 = vpop.f32.mrb[0].mxu0
  %v4013 = vadd.f32 %v3916, %v4012
  %v4014 = vpop.f32.mrb[0].mxu0
  %4015 = vmatprep.mubr.bf16.mxu0 %v1515
  %4016 = vmatmul.mubr.bf16.gmra.mrb[0].mxu0 %v1514
  %v4017 = vpop.f32.mrb[0].mxu0
  %v4018 = vadd.f32 %v3921, %v4017
  %v4019 = vpop.f32.mrb[0].mxu0
  %v4020 = vpop.f32.mrb[0].mxu0
  %v4021 = vadd.f32 %v3924, %v4020
  %v4022 = vpop.f32.mrb[0].mxu0
  %4023 = vmatprep.mubr.bf16.mxu0 %v1542
  %4024 = vmatmul.mubr.bf16.gmra.mrb[0].mxu0 %v1541
  %v4025 = vpop.f32.mrb[0].mxu0
  %v4026 = vadd.f32 %v3929, %v4025
  %v4027 = vpop.f32.mrb[0].mxu0
  %v4028 = vpop.f32.mrb[0].mxu0
  %v4029 = vadd.f32 %v3932, %v4028
  %v4030 = vpop.f32.mrb[0].mxu0
  %4031 = vdwg.mxu0
  %4032 = vmatprep.subr.bf16.mxu0 0
  %4033 = vmatpush1.bf16.msra.mxu0 %v2790
  %4034 = vmatprep.subr.bf16.mxu0 0
  %4035 = vmatpush1.bf16.msra.mxu0 %v2791
  %4036 = vmatprep.subr.bf16.mxu0 0
  %4037 = vmatpush1.bf16.msra.mxu0 %v2792
  %4038 = vmatprep.subr.bf16.mxu0 0
  %4039 = vmatpush1.bf16.msra.mxu0 %v2793
  %4040 = vmatprep.subr.bf16.mxu0 0
  %4041 = vmatpush1.bf16.msra.mxu0 %v2794
  %4042 = vmatprep.subr.bf16.mxu0 0
  %4043 = vmatpush1.bf16.msra.mxu0 %v2795
  %4044 = vmatprep.subr.bf16.mxu0 0
  %4045 = vmatpush1.bf16.msra.mxu0 %v2796
  %4046 = vmatprep.subr.bf16.mxu0 0
  %4047 = vmatpush1.bf16.msra.mxu0 %v2797
  %4048 = vmatprep.subr.bf16.mxu0 0
  %4049 = vmatpush1.bf16.msra.mxu0 %v2798
  %4050 = vmatprep.subr.bf16.mxu0 0
  %4051 = vmatpush1.bf16.msra.mxu0 %v2799
  %4052 = vmatprep.subr.bf16.mxu0 0
  %4053 = vmatpush1.bf16.msra.mxu0 %v2800
  %4054 = vmatprep.subr.bf16.mxu0 0
  %4055 = vmatpush1.bf16.msra.mxu0 %v2801
  %4056 = vmatprep.subr.bf16.mxu0 0
  %4057 = vmatpush1.bf16.msra.mxu0 %v2802
  %4058 = vmatprep.subr.bf16.mxu0 0
  %4059 = vmatpush1.bf16.msra.mxu0 %v2803
  %4060 = vmatprep.subr.bf16.mxu0 0
  %4061 = vmatpush1.bf16.msra.mxu0 %v2804
  %4062 = vmatprep.subr.bf16.mxu0 0
  %4063 = vmatpush1.bf16.msra.mxu0 %v2805
  %4064 = vmatprep.mubr.bf16.mxu0 %v1355
  %4065 = vmatmul.mubr.bf16.gmra.mrb[0].mxu0 %v1354
  %v4066 = vpop.f32.mrb[0].mxu0
  %v4067 = vadd.f32 %v3970, %v4066
  %v4068 = vpop.f32.mrb[0].mxu0
  %v4069 = vpop.f32.mrb[0].mxu0
  %v4070 = vadd.f32 %v3973, %v4069
  %v4071 = vpop.f32.mrb[0].mxu0
  %4072 = vmatprep.mubr.bf16.mxu0 %v1382
  %4073 = vmatmul.mubr.bf16.gmra.mrb[0].mxu0 %v1381
  %v4074 = vpop.f32.mrb[0].mxu0
  %v4075 = vadd.f32 %v3978, %v4074
  %v4076 = vpop.f32.mrb[0].mxu0
  %v4077 = vpop.f32.mrb[0].mxu0
  %v4078 = vadd.f32 %v3981, %v4077
  %v4079 = vpop.f32.mrb[0].mxu0
  %4080 = vmatprep.mubr.bf16.mxu0 %v1409
  %4081 = vmatmul.mubr.bf16.gmra.mrb[0].mxu0 %v1408
  %v4082 = vpop.f32.mrb[0].mxu0
  %v4083 = vadd.f32 %v3986, %v4082
  %v4084 = vpop.f32.mrb[0].mxu0
  %v4085 = vpop.f32.mrb[0].mxu0
  %v4086 = vadd.f32 %v3989, %v4085
  %v4087 = vpop.f32.mrb[0].mxu0
  %4088 = vmatprep.mubr.bf16.mxu0 %v1436
  %4089 = vmatmul.mubr.bf16.gmra.mrb[0].mxu0 %v1435
  %v4090 = vpop.f32.mrb[0].mxu0
  %v4091 = vadd.f32 %v3994, %v4090
  %v4092 = vpop.f32.mrb[0].mxu0
  %v4093 = vpop.f32.mrb[0].mxu0
  %v4094 = vadd.f32 %v3997, %v4093
  %v4095 = vpop.f32.mrb[0].mxu0
  %4096 = vmatprep.mubr.bf16.mxu0 %v1463
  %4097 = vmatmul.mubr.bf16.gmra.mrb[0].mxu0 %v1462
  %v4098 = vpop.f32.mrb[0].mxu0
  %v4099 = vadd.f32 %v4002, %v4098
  %v4100 = vpop.f32.mrb[0].mxu0
  %v4101 = vpop.f32.mrb[0].mxu0
  %v4102 = vadd.f32 %v4005, %v4101
  %v4103 = vpop.f32.mrb[0].mxu0
  %4104 = vmatprep.mubr.bf16.mxu0 %v1490
  %4105 = vmatmul.mubr.bf16.gmra.mrb[0].mxu0 %v1489
  %v4106 = vpop.f32.mrb[0].mxu0
  %v4107 = vadd.f32 %v4010, %v4106
  %v4108 = vpop.f32.mrb[0].mxu0
  %v4109 = vpop.f32.mrb[0].mxu0
  %v4110 = vadd.f32 %v4013, %v4109
  %v4111 = vpop.f32.mrb[0].mxu0
  %4112 = vmatprep.mubr.bf16.mxu0 %v1517
  %4113 = vmatmul.mubr.bf16.gmra.mrb[0].mxu0 %v1516
  %v4114 = vpop.f32.mrb[0].mxu0
  %v4115 = vadd.f32 %v4018, %v4114
  %v4116 = vpop.f32.mrb[0].mxu0
  %v4117 = vpop.f32.mrb[0].mxu0
  %v4118 = vadd.f32 %v4021, %v4117
  %v4119 = vpop.f32.mrb[0].mxu0
  %4120 = vmatprep.mubr.bf16.mxu0 %v1544
  %4121 = vmatmul.mubr.bf16.gmra.mrb[0].mxu0 %v1543
  %v4122 = vpop.f32.mrb[0].mxu0
  %v4123 = vadd.f32 %v4026, %v4122
  %v4124 = vpop.f32.mrb[0].mxu0
  %v4125 = vpop.f32.mrb[0].mxu0
  %v4126 = vadd.f32 %v4029, %v4125
  %v4127 = vpop.f32.mrb[0].mxu0
  %4128 = vdwg.mxu0
  %4129 = vmatprep.subr.bf16.mxu0 0
  %4130 = vmatpush1.bf16.msra.mxu0 %v2806
  %4131 = vmatprep.subr.bf16.mxu0 0
  %4132 = vmatpush1.bf16.msra.mxu0 %v2807
  %4133 = vmatprep.subr.bf16.mxu0 0
  %4134 = vmatpush1.bf16.msra.mxu0 %v2808
  %4135 = vmatprep.subr.bf16.mxu0 0
  %4136 = vmatpush1.bf16.msra.mxu0 %v2809
  %4137 = vmatprep.subr.bf16.mxu0 0
  %4138 = vmatpush1.bf16.msra.mxu0 %v2810
  %4139 = vmatprep.subr.bf16.mxu0 0
  %4140 = vmatpush1.bf16.msra.mxu0 %v2811
  %4141 = vmatprep.subr.bf16.mxu0 0
  %4142 = vmatpush1.bf16.msra.mxu0 %v2812
  %4143 = vmatprep.subr.bf16.mxu0 0
  %4144 = vmatpush1.bf16.msra.mxu0 %v2813
  %4145 = vmatprep.subr.bf16.mxu0 0
  %4146 = vmatpush1.bf16.msra.mxu0 %v2814
  %4147 = vmatprep.subr.bf16.mxu0 0
  %4148 = vmatpush1.bf16.msra.mxu0 %v2815
  %4149 = vmatprep.subr.bf16.mxu0 0
  %4150 = vmatpush1.bf16.msra.mxu0 %v2816
  %4151 = vmatprep.subr.bf16.mxu0 0
  %4152 = vmatpush1.bf16.msra.mxu0 %v2817
  %4153 = vmatprep.subr.bf16.mxu0 0
  %4154 = vmatpush1.bf16.msra.mxu0 %v2818
  %4155 = vmatprep.subr.bf16.mxu0 0
  %4156 = vmatpush1.bf16.msra.mxu0 %v2819
  %4157 = vmatprep.subr.bf16.mxu0 0
  %4158 = vmatpush1.bf16.msra.mxu0 %v2820
  %4159 = vmatprep.subr.bf16.mxu0 0
  %4160 = vmatpush1.bf16.msra.mxu0 %v2821
  %4161 = vmatprep.mubr.bf16.mxu0 %v1357
  %4162 = vmatmul.mubr.bf16.gmra.mrb[0].mxu0 %v1356
  %v4163 = vpop.f32.mrb[0].mxu0
  %v4164 = vadd.f32 %v4067, %v4163
  %v4165 = vpop.f32.mrb[0].mxu0
  %v4166 = vpop.f32.mrb[0].mxu0
  %v4167 = vadd.f32 %v4070, %v4166
  %v4168 = vpop.f32.mrb[0].mxu0
  %4169 = vmatprep.mubr.bf16.mxu0 %v1384
  %4170 = vmatmul.mubr.bf16.gmra.mrb[0].mxu0 %v1383
  %v4171 = vpop.f32.mrb[0].mxu0
  %v4172 = vadd.f32 %v4075, %v4171
  %v4173 = vpop.f32.mrb[0].mxu0
  %v4174 = vpop.f32.mrb[0].mxu0
  %v4175 = vadd.f32 %v4078, %v4174
  %v4176 = vpop.f32.mrb[0].mxu0
  %4177 = vmatprep.mubr.bf16.mxu0 %v1411
  %4178 = vmatmul.mubr.bf16.gmra.mrb[0].mxu0 %v1410
  %v4179 = vpop.f32.mrb[0].mxu0
  %v4180 = vadd.f32 %v4083, %v4179
  %v4181 = vpop.f32.mrb[0].mxu0
  %v4182 = vpop.f32.mrb[0].mxu0
  %v4183 = vadd.f32 %v4086, %v4182
  %v4184 = vpop.f32.mrb[0].mxu0
  %4185 = vmatprep.mubr.bf16.mxu0 %v1438
  %4186 = vmatmul.mubr.bf16.gmra.mrb[0].mxu0 %v1437
  %v4187 = vpop.f32.mrb[0].mxu0
  %v4188 = vadd.f32 %v4091, %v4187
  %v4189 = vpop.f32.mrb[0].mxu0
  %v4190 = vpop.f32.mrb[0].mxu0
  %v4191 = vadd.f32 %v4094, %v4190
  %v4192 = vpop.f32.mrb[0].mxu0
  %4193 = vmatprep.mubr.bf16.mxu0 %v1465
  %4194 = vmatmul.mubr.bf16.gmra.mrb[0].mxu0 %v1464
  %v4195 = vpop.f32.mrb[0].mxu0
  %v4196 = vadd.f32 %v4099, %v4195
  %v4197 = vpop.f32.mrb[0].mxu0
  %v4198 = vpop.f32.mrb[0].mxu0
  %v4199 = vadd.f32 %v4102, %v4198
  %v4200 = vpop.f32.mrb[0].mxu0
  %4201 = vmatprep.mubr.bf16.mxu0 %v1492
  %4202 = vmatmul.mubr.bf16.gmra.mrb[0].mxu0 %v1491
  %v4203 = vpop.f32.mrb[0].mxu0
  %v4204 = vadd.f32 %v4107, %v4203
  %v4205 = vpop.f32.mrb[0].mxu0
  %v4206 = vpop.f32.mrb[0].mxu0
  %v4207 = vadd.f32 %v4110, %v4206
  %v4208 = vpop.f32.mrb[0].mxu0
  %4209 = vmatprep.mubr.bf16.mxu0 %v1519
  %4210 = vmatmul.mubr.bf16.gmra.mrb[0].mxu0 %v1518
  %v4211 = vpop.f32.mrb[0].mxu0
  %v4212 = vadd.f32 %v4115, %v4211
  %v4213 = vpop.f32.mrb[0].mxu0
  %v4214 = vpop.f32.mrb[0].mxu0
  %v4215 = vadd.f32 %v4118, %v4214
  %v4216 = vpop.f32.mrb[0].mxu0
  %4217 = vmatprep.mubr.bf16.mxu0 %v1546
  %4218 = vmatmul.mubr.bf16.gmra.mrb[0].mxu0 %v1545
  %v4219 = vpop.f32.mrb[0].mxu0
  %v4220 = vadd.f32 %v4123, %v4219
  %v4221 = vpop.f32.mrb[0].mxu0
  %v4222 = vpop.f32.mrb[0].mxu0
  %v4223 = vadd.f32 %v4126, %v4222
  %v4224 = vpop.f32.mrb[0].mxu0
  %4225 = vdwg.mxu0
  %4226 = vmatprep.subr.bf16.mxu0 0
  %4227 = vmatpush1.bf16.msra.mxu0 %v2822
  %4228 = vmatprep.subr.bf16.mxu0 0
  %4229 = vmatpush1.bf16.msra.mxu0 %v2823
  %4230 = vmatprep.subr.bf16.mxu0 0
  %4231 = vmatpush1.bf16.msra.mxu0 %v2824
  %4232 = vmatprep.subr.bf16.mxu0 0
  %4233 = vmatpush1.bf16.msra.mxu0 %v2825
  %4234 = vmatprep.subr.bf16.mxu0 0
  %4235 = vmatpush1.bf16.msra.mxu0 %v2826
  %4236 = vmatprep.subr.bf16.mxu0 0
  %4237 = vmatpush1.bf16.msra.mxu0 %v2827
  %4238 = vmatprep.subr.bf16.mxu0 0
  %4239 = vmatpush1.bf16.msra.mxu0 %v2828
  %4240 = vmatprep.subr.bf16.mxu0 0
  %4241 = vmatpush1.bf16.msra.mxu0 %v2829
  %4242 = vmatprep.subr.bf16.mxu0 0
  %4243 = vmatpush1.bf16.msra.mxu0 %v2830
  %4244 = vmatprep.subr.bf16.mxu0 0
  %4245 = vmatpush1.bf16.msra.mxu0 %v2831
  %4246 = vmatprep.subr.bf16.mxu0 0
  %4247 = vmatpush1.bf16.msra.mxu0 %v2832
  %4248 = vmatprep.subr.bf16.mxu0 0
  %4249 = vmatpush1.bf16.msra.mxu0 %v2833
  %4250 = vmatprep.subr.bf16.mxu0 0
  %4251 = vmatpush1.bf16.msra.mxu0 %v2834
  %4252 = vmatprep.subr.bf16.mxu0 0
  %4253 = vmatpush1.bf16.msra.mxu0 %v2835
  %4254 = vmatprep.subr.bf16.mxu0 0
  %4255 = vmatpush1.bf16.msra.mxu0 %v2836
  %4256 = vmatprep.subr.bf16.mxu0 0
  %4257 = vmatpush1.bf16.msra.mxu0 %v2837
  %4258 = vmatprep.mubr.bf16.mxu0 %v1359
  %4259 = vmatmul.mubr.bf16.gmra.mrb[0].mxu0 %v1358
  %v4260 = vpop.f32.mrb[0].mxu0
  %v4261 = vadd.f32 %v4164, %v4260
  %v4262 = vpop.f32.mrb[0].mxu0
  %v4263 = vpop.f32.mrb[0].mxu0
  %v4264 = vadd.f32 %v4167, %v4263
  %v4265 = vpop.f32.mrb[0].mxu0
  %4266 = vmatprep.mubr.bf16.mxu0 %v1386
  %4267 = vmatmul.mubr.bf16.gmra.mrb[0].mxu0 %v1385
  %v4268 = vpop.f32.mrb[0].mxu0
  %v4269 = vadd.f32 %v4172, %v4268
  %v4270 = vpop.f32.mrb[0].mxu0
  %v4271 = vpop.f32.mrb[0].mxu0
  %v4272 = vadd.f32 %v4175, %v4271
  %v4273 = vpop.f32.mrb[0].mxu0
  %4274 = vmatprep.mubr.bf16.mxu0 %v1413
  %4275 = vmatmul.mubr.bf16.gmra.mrb[0].mxu0 %v1412
  %v4276 = vpop.f32.mrb[0].mxu0
  %v4277 = vadd.f32 %v4180, %v4276
  %v4278 = vpop.f32.mrb[0].mxu0
  %v4279 = vpop.f32.mrb[0].mxu0
  %v4280 = vadd.f32 %v4183, %v4279
  %v4281 = vpop.f32.mrb[0].mxu0
  %4282 = vmatprep.mubr.bf16.mxu0 %v1440
  %4283 = vmatmul.mubr.bf16.gmra.mrb[0].mxu0 %v1439
  %v4284 = vpop.f32.mrb[0].mxu0
  %v4285 = vadd.f32 %v4188, %v4284
  %v4286 = vpop.f32.mrb[0].mxu0
  %v4287 = vpop.f32.mrb[0].mxu0
  %v4288 = vadd.f32 %v4191, %v4287
  %v4289 = vpop.f32.mrb[0].mxu0
  %4290 = vmatprep.mubr.bf16.mxu0 %v1467
  %4291 = vmatmul.mubr.bf16.gmra.mrb[0].mxu0 %v1466
  %v4292 = vpop.f32.mrb[0].mxu0
  %v4293 = vadd.f32 %v4196, %v4292
  %v4294 = vpop.f32.mrb[0].mxu0
  %v4295 = vpop.f32.mrb[0].mxu0
  %v4296 = vadd.f32 %v4199, %v4295
  %v4297 = vpop.f32.mrb[0].mxu0
  %4298 = vmatprep.mubr.bf16.mxu0 %v1494
  %4299 = vmatmul.mubr.bf16.gmra.mrb[0].mxu0 %v1493
  %v4300 = vpop.f32.mrb[0].mxu0
  %v4301 = vadd.f32 %v4204, %v4300
  %v4302 = vpop.f32.mrb[0].mxu0
  %v4303 = vpop.f32.mrb[0].mxu0
  %v4304 = vadd.f32 %v4207, %v4303
  %v4305 = vpop.f32.mrb[0].mxu0
  %4306 = vmatprep.mubr.bf16.mxu0 %v1521
  %4307 = vmatmul.mubr.bf16.gmra.mrb[0].mxu0 %v1520
  %v4308 = vpop.f32.mrb[0].mxu0
  %v4309 = vadd.f32 %v4212, %v4308
  %v4310 = vpop.f32.mrb[0].mxu0
  %v4311 = vpop.f32.mrb[0].mxu0
  %v4312 = vadd.f32 %v4215, %v4311
  %v4313 = vpop.f32.mrb[0].mxu0
  %4314 = vmatprep.mubr.bf16.mxu0 %v1548
  %4315 = vmatmul.mubr.bf16.gmra.mrb[0].mxu0 %v1547
  %v4316 = vpop.f32.mrb[0].mxu0
  %v4317 = vadd.f32 %v4220, %v4316
  %v4318 = vpop.f32.mrb[0].mxu0
  %v4319 = vpop.f32.mrb[0].mxu0
  %v4320 = vadd.f32 %v4223, %v4319
  %v4321 = vpop.f32.mrb[0].mxu0
  %4322 = vdwg.mxu0
  %4323 = vmatprep.subr.bf16.mxu0 0
  %4324 = vmatpush1.bf16.msra.mxu0 %v2838
  %4325 = vmatprep.subr.bf16.mxu0 0
  %4326 = vmatpush1.bf16.msra.mxu0 %v2839
  %4327 = vmatprep.subr.bf16.mxu0 0
  %4328 = vmatpush1.bf16.msra.mxu0 %v2840
  %4329 = vmatprep.subr.bf16.mxu0 0
  %4330 = vmatpush1.bf16.msra.mxu0 %v2841
  %4331 = vmatprep.subr.bf16.mxu0 0
  %4332 = vmatpush1.bf16.msra.mxu0 %v2842
  %4333 = vmatprep.subr.bf16.mxu0 0
  %4334 = vmatpush1.bf16.msra.mxu0 %v2843
  %4335 = vmatprep.subr.bf16.mxu0 0
  %4336 = vmatpush1.bf16.msra.mxu0 %v2844
  %4337 = vmatprep.subr.bf16.mxu0 0
  %4338 = vmatpush1.bf16.msra.mxu0 %v2845
  %4339 = vmatprep.subr.bf16.mxu0 0
  %4340 = vmatpush1.bf16.msra.mxu0 0
  %4341 = vmatprep.subr.bf16.mxu0 0
  %4342 = vmatpush1.bf16.msra.mxu0 0
  %4343 = vmatprep.subr.bf16.mxu0 0
  %4344 = vmatpush1.bf16.msra.mxu0 0
  %4345 = vmatprep.subr.bf16.mxu0 0
  %4346 = vmatpush1.bf16.msra.mxu0 0
  %4347 = vmatprep.subr.bf16.mxu0 0
  %4348 = vmatpush1.bf16.msra.mxu0 0
  %4349 = vmatprep.subr.bf16.mxu0 0
  %4350 = vmatpush1.bf16.msra.mxu0 0
  %4351 = vmatprep.subr.bf16.mxu0 0
  %4352 = vmatpush1.bf16.msra.mxu0 0
  %4353 = vmatprep.subr.bf16.mxu0 0
  %4354 = vmatpush1.bf16.msra.mxu0 0
  %4355 = vmatprep.mubr.bf16.mxu0 0
  %4356 = vmatmul.mubr.bf16.gmra.mrb[0].mxu0 %v1360
  %v4357 = vpop.f32.mrb[0].mxu0
  %v4358 = vadd.f32 %v4261, %v4357
  %v4359 = vpop.f32.mrb[0].mxu0
  %v4360 = vpop.f32.mrb[0].mxu0
  %v4361 = vadd.f32 %v4264, %v4360
  %v4362 = vpop.f32.mrb[0].mxu0
  %4363 = vmatprep.mubr.bf16.mxu0 0
  %4364 = vmatmul.mubr.bf16.gmra.mrb[0].mxu0 %v1387
  %v4365 = vpop.f32.mrb[0].mxu0
  %v4366 = vadd.f32 %v4269, %v4365
  %v4367 = vpop.f32.mrb[0].mxu0
  %v4368 = vpop.f32.mrb[0].mxu0
  %v4369 = vadd.f32 %v4272, %v4368
  %v4370 = vpop.f32.mrb[0].mxu0
  %4371 = vmatprep.mubr.bf16.mxu0 0
  %4372 = vmatmul.mubr.bf16.gmra.mrb[0].mxu0 %v1414
  %v4373 = vpop.f32.mrb[0].mxu0
  %v4374 = vadd.f32 %v4277, %v4373
  %v4375 = vpop.f32.mrb[0].mxu0
  %v4376 = vpop.f32.mrb[0].mxu0
  %v4377 = vadd.f32 %v4280, %v4376
  %v4378 = vpop.f32.mrb[0].mxu0
  %4379 = vmatprep.mubr.bf16.mxu0 0
  %4380 = vmatmul.mubr.bf16.gmra.mrb[0].mxu0 %v1441
  %v4381 = vpop.f32.mrb[0].mxu0
  %v4382 = vadd.f32 %v4285, %v4381
  %v4383 = vpop.f32.mrb[0].mxu0
  %v4384 = vpop.f32.mrb[0].mxu0
  %v4385 = vadd.f32 %v4288, %v4384
  %v4386 = vpop.f32.mrb[0].mxu0
  %4387 = vmatprep.mubr.bf16.mxu0 0
  %4388 = vmatmul.mubr.bf16.gmra.mrb[0].mxu0 %v1468
  %v4389 = vpop.f32.mrb[0].mxu0
  %v4390 = vadd.f32 %v4293, %v4389
  %v4391 = vpop.f32.mrb[0].mxu0
  %v4392 = vpop.f32.mrb[0].mxu0
  %v4393 = vadd.f32 %v4296, %v4392
  %v4394 = vpop.f32.mrb[0].mxu0
  %4395 = vmatprep.mubr.bf16.mxu0 0
  %4396 = vmatmul.mubr.bf16.gmra.mrb[0].mxu0 %v1495
  %v4397 = vpop.f32.mrb[0].mxu0
  %v4398 = vadd.f32 %v4301, %v4397
  %v4399 = vpop.f32.mrb[0].mxu0
  %v4400 = vpop.f32.mrb[0].mxu0
  %v4401 = vadd.f32 %v4304, %v4400
  %v4402 = vpop.f32.mrb[0].mxu0
  %4403 = vmatprep.mubr.bf16.mxu0 0
  %4404 = vmatmul.mubr.bf16.gmra.mrb[0].mxu0 %v1522
  %v4405 = vpop.f32.mrb[0].mxu0
  %v4406 = vadd.f32 %v4309, %v4405
  %v4407 = vpop.f32.mrb[0].mxu0
  %v4408 = vpop.f32.mrb[0].mxu0
  %v4409 = vadd.f32 %v4312, %v4408
  %v4410 = vpop.f32.mrb[0].mxu0
  %4411 = vmatprep.mubr.bf16.mxu0 0
  %4412 = vmatmul.mubr.bf16.gmra.mrb[0].mxu0 %v1549
  %v4413 = vpop.f32.mrb[0].mxu0
  %v4414 = vadd.f32 %v4317, %v4413
  %v4415 = vpop.f32.mrb[0].mxu0
  %v4416 = vpop.f32.mrb[0].mxu0
  %v4417 = vadd.f32 %v4320, %v4416
  %v4418 = vpop.f32.mrb[0].mxu0
  %4419 = vdwg.mxu0
  %vm4420 = vcmp.ge.f32.partialorder %v4358, 0.0
  %vm4421 = vcmp.ge.f32.partialorder %v4361, 0.0
  %vm4422 = vcmp.ge.f32.partialorder %v4366, 0.0
  %vm4423 = vcmp.ge.f32.partialorder %v4369, 0.0
  %vm4424 = vcmp.ge.f32.partialorder %v4374, 0.0
  %vm4425 = vcmp.ge.f32.partialorder %v4377, 0.0
  %vm4426 = vcmp.ge.f32.partialorder %v4382, 0.0
  %vm4427 = vcmp.ge.f32.partialorder %v4385, 0.0
  %vm4428 = vcmp.ge.f32.partialorder %v4390, 0.0
  %vm4429 = vcmp.ge.f32.partialorder %v4393, 0.0
  %vm4430 = vcmp.ge.f32.partialorder %v4398, 0.0
  %vm4431 = vcmp.ge.f32.partialorder %v4401, 0.0
  %vm4432 = vcmp.ge.f32.partialorder %v4406, 0.0
  %vm4433 = vcmp.ge.f32.partialorder %v4409, 0.0
  %vm4434 = vcmp.ge.f32.partialorder %v4414, 0.0
  %vm4435 = vcmp.ge.f32.partialorder %v4417, 0.0
  %v4436 = vmul.f32 %v4358, 0.01
  %v4437 = vmul.f32 %v4361, 0.01
  %v4438 = vmul.f32 %v4366, 0.01
  %v4439 = vmul.f32 %v4369, 0.01
  %v4440 = vmul.f32 %v4374, 0.01
  %v4441 = vmul.f32 %v4377, 0.01
  %v4442 = vmul.f32 %v4382, 0.01
  %v4443 = vmul.f32 %v4385, 0.01
  %v4444 = vmul.f32 %v4390, 0.01
  %v4445 = vmul.f32 %v4393, 0.01
  %v4446 = vmul.f32 %v4398, 0.01
  %v4447 = vmul.f32 %v4401, 0.01
  %v4448 = vmul.f32 %v4406, 0.01
  %v4449 = vmul.f32 %v4409, 0.01
  %v4450 = vmul.f32 %v4414, 0.01
  %v4451 = vmul.f32 %v4417, 0.01
  %v4452 = vsel %vm4420, %v4358, %v4436
  %v4453 = vsel %vm4421, %v4361, %v4437
  %v4454 = vsel %vm4422, %v4366, %v4438
  %v4455 = vsel %vm4423, %v4369, %v4439
  %v4456 = vsel %vm4424, %v4374, %v4440
  %v4457 = vsel %vm4425, %v4377, %v4441
  %v4458 = vsel %vm4426, %v4382, %v4442
  %v4459 = vsel %vm4427, %v4385, %v4443
  %v4460 = vsel %vm4428, %v4390, %v4444
  %v4461 = vsel %vm4429, %v4393, %v4445
  %v4462 = vsel %vm4430, %v4398, %v4446
  %v4463 = vsel %vm4431, %v4401, %v4447
  %v4464 = vsel %vm4432, %v4406, %v4448
  %v4465 = vsel %vm4433, %v4409, %v4449
  %v4466 = vsel %vm4434, %v4414, %v4450
  %v4467 = vsel %vm4435, %v4417, %v4451
  %4468 = vst [vmem:[%s3] sm:$0xff] %v4452
  %4469 = vst [vmem:[%s3 + $0x8] sm:$0xff] %v4453
  %4470 = vst [vmem:[%s3 + $0x10] sm:$0xff] %v4454
  %4471 = vst [vmem:[%s3 + $0x18] sm:$0xff] %v4455
  %4472 = vst [vmem:[%s3 + $0x20] sm:$0xff] %v4456
  %4473 = vst [vmem:[%s3 + $0x28] sm:$0xff] %v4457
  %4474 = vst [vmem:[%s3 + $0x30] sm:$0xff] %v4458
  %4475 = vst [vmem:[%s3 + $0x38] sm:$0xff] %v4459
  %4476 = vst [vmem:[%s3 + $0x40] sm:$0xff] %v4460
  %4477 = vst [vmem:[%s3 + $0x48] sm:$0xff] %v4461
  %4478 = vst [vmem:[%s3 + $0x50] sm:$0xff] %v4462
  %4479 = vst [vmem:[%s3 + $0x58] sm:$0xff] %v4463
  %4480 = vst [vmem:[%s3 + $0x60] sm:$0xff] %v4464
  %4481 = vst [vmem:[%s3 + $0x68] sm:$0xff] %v4465
  %4482 = vst [vmem:[%s3 + $0x70] sm:$0xff] %v4466
  %4483 = vst [vmem:[%s3 + $0x78] sm:$0xff] %v4467
  // Predicated region
  $region14: #{test_model_forward.7} parent=0 // pred_check
    _
  $region15: #{test_model_forward.7} parent=0 // pred_check_branch
    %4485 = sbr.rel (0) target = $region17
  $region16: #{test_model_forward.7} parent=0 // pred_region
    _
  $region17: #{test_model_forward.7} parent=0 // pred_fallthru
    _
  // Predicated region
  $region18: #{test_model_forward.7} parent=0 // pred_check
    _
  $region19: #{test_model_forward.7} parent=0 // pred_check_branch
    %4487 = sbr.rel (0) target = $region21
  $region20: #{test_model_forward.7} parent=0 // pred_region
    _
  $region21: #{test_model_forward.7} parent=0 // pred_fallthru
    _

// kernel: test_model_forward.8
$region0: #{test_model_forward.8}
  #allocation0 [shape = 'u32[]', space=smem, size = 0x4, offset = 0x4, fixed_abs, tag = 'smem constant byte address 0x4 - core index']
  #allocation1 [shape = 'u32[144,128]{1,0:T(1,128)}', space=vmem, size = 0x12000, scoped, tag = 'internal scratch']
  %s0 = inlined_call_operand.vmem [shape: f32[4,2,2,2,2,2,128], index: 0, kind: input, shape index: {}]
  %s1 = inlined_call_operand.vmem [shape: f32[4,2,2,128], index: 1, kind: output, shape index: {}]
  %s2 = sld [smem:[#allocation0]]
  $region37: #{test_model_forward.8} parent=0
    _
  %s4 = ssub.s32 1, %s2
  %s5 = scalar_select 0, %s4, %s2
  loop: start=0, step=1, limit=6
  $region2: #{test_model_forward.8} parent=0 // loop_pre_header
    _
  $region3: #{test_model_forward.8} parent=0 // loop_header
    %s7 = sphi 0, %s11
    %p8 = scmp.ge.s32.totalorder %s7, 6
    %s17 = sphi 0, %s19
    %s20 = sphi 0, %s17
    %s21 = sphi 0, %s20
    %s37 = sphi 0, %s21
    %s43 = sphi 0, %s45
    %s46 = sphi 0, %s43
    %s47 = sphi 0, %s46
    %s63 = sphi 0, %s47
  $region4: #{test_model_forward.8} parent=0 // loop_header_branch
    %10 = sbr.rel (%p8) target = $region8
  $region5: #{test_model_forward.8} parent=0 // loop_body
    %s12 = ssub.s32 %s7, 1
    %s13 = ssub.s32 %s7, 2
    %s14 = sadd.s32 %s7, 1
    %s15 = ssub.s32 %s7, %s14
    %p16 = scmp.eq.s32.totalorder %s15, 0
    %s18 = sadd.s32 %s17, 1
    %s19 = scalar_select %p16, %s17, %s18
    %p22 = pneg %p16
    %p23 = scmp.eq.s32.totalorder %s7, 3
    %p24 = por %p22, %p23
    %p25 = scmp.ne.s32.totalorder %s17, %s20
    %p26 = scmp.eq.s32.totalorder %s7, 0
    %p27 = por %p25, %p26
    %p28 = scmp.ne.s32.totalorder %s17, %s20
    %p29 = scmp.eq.s32.totalorder %s12, 3
    %p30 = por %p28, %p29
    %p31 = scmp.ne.s32.totalorder %s20, %s21
    %p32 = scmp.eq.s32.totalorder %s12, 0
    %p33 = por %p31, %p32
    %p34 = scmp.ne.s32.totalorder %s20, %s21
    %p35 = scmp.eq.s32.totalorder %s13, 3
    %p36 = por %p34, %p35
    %p38 = scmp.ne.s32.totalorder %s21, %s37
    %p39 = scmp.eq.s32.totalorder %s13, 0
    %p40 = por %p38, %p39
    %s41 = ssub.s32 %s7, %s14
    %p42 = scmp.eq.s32.totalorder %s41, 0
    %s44 = sadd.s32 %s43, 1
    %s45 = scalar_select %p42, %s43, %s44
    %p48 = pneg %p42
    %p49 = scmp.eq.s32.totalorder %s7, 3
    %p50 = por %p48, %p49
    %p51 = scmp.ne.s32.totalorder %s43, %s46
    %p52 = scmp.eq.s32.totalorder %s7, 0
    %p53 = por %p51, %p52
    %p54 = scmp.ne.s32.totalorder %s43, %s46
    %p55 = scmp.eq.s32.totalorder %s12, 3
    %p56 = por %p54, %p55
    %p57 = scmp.ne.s32.totalorder %s46, %s47
    %p58 = scmp.eq.s32.totalorder %s12, 0
    %p59 = por %p57, %p58
    %p60 = scmp.ne.s32.totalorder %s46, %s47
    %p61 = scmp.eq.s32.totalorder %s13, 3
    %p62 = por %p60, %p61
    %p64 = scmp.ne.s32.totalorder %s47, %s63
    %p65 = scmp.eq.s32.totalorder %s13, 0
    %p66 = por %p64, %p65
    %p67 = scmp.le.s32.totalorder 1, %s7
    %p68 = scmp.lt.s32.totalorder %s7, 5
    %p69 = pnand %p67, %p68
    %p70 = pneg %p69
    // Predicated region
    $region9: #{test_model_forward.8} parent=5 // pred_check
      _
    $region10: #{test_model_forward.8} parent=5 // pred_check_branch
      %72 = sbr.rel (%p69) target = $region12
    $region11: #{test_model_forward.8} parent=5 // pred_region
      %s73 = ssub.s32 %s7, 1
    $region12: #{test_model_forward.8} parent=5 // pred_fallthru
      _
    %p74 = scmp.lt.s32.totalorder %s7, 4
    // Predicated region
    $region13: #{test_model_forward.8} parent=5 // pred_check
      %p75 = pneg %p74
    $region14: #{test_model_forward.8} parent=5 // pred_check_branch
      %77 = sbr.rel (%p75) target = $region16
    $region15: #{test_model_forward.8} parent=5 // pred_region
      // Predicated region
      $region17: #{test_model_forward.8} parent=15 // pred_check
        %p78 = pneg %p27
      $region18: #{test_model_forward.8} parent=15 // pred_check_branch
        %80 = sbr.rel (%p78) target = $region20
      $region19: #{test_model_forward.8} parent=15 // pred_region
        %p81 = scmp.lt.s32.totalorder %s7, 3
        %s82 = scalar_select %p81, %s7, 3
        %s83 = smul.addr %s82, 16
        %s84 = smul.addr %s83, 2
        %s85 = scalar_lea.vmem %s0, %s84
      $region20: #{test_model_forward.8} parent=15 // pred_fallthru
        _
    $region16: #{test_model_forward.8} parent=5 // pred_fallthru
      _
    %p86 = scmp.le.s32.totalorder 1, %s7
    %p87 = scmp.lt.s32.totalorder %s7, 5
    %p88 = pnand %p86, %p87
    %p89 = pneg %p88
    // Predicated region
    $region21: #{test_model_forward.8} parent=5 // pred_check
      _
    $region22: #{test_model_forward.8} parent=5 // pred_check_branch
      %91 = sbr.rel (%p88) target = $region24
    $region23: #{test_model_forward.8} parent=5 // pred_region
      %s92 = ssub.s32 %s7, 1
      %p93 = scmp.lt.s32.totalorder %s12, 3
      %s94 = scalar_select %p93, %s12, 3
      %s95 = smul.addr %s94, 16
      %s96 = smul.addr %s95, 2
      %s97 = scalar_lea.vmem %s0, %s96
      %p98 = pneg %p33
      %p99 = pneg %p30
      %p100 = pneg %p59
      %p101 = pneg %p56
      %p102 = scmp.lt.s32.totalorder %s12, 3
      %s103 = scalar_select %p102, %s12, 3
      %s104 = smul.addr %s103, 2
      %s105 = smul.addr %s104, 2
      %s106 = scalar_lea.vmem %s1, %s105
      %p107 = scmp.lt.s32.totalorder %s12, 3
      %s108 = scalar_select %p107, %s12, 3
      %s109 = smul.addr %s108, 16
      %s110 = smul.addr %s109, 2
      %s111 = scalar_lea.vmem %s0, %s110
      %p112 = scmp.lt.s32.totalorder %s12, 3
      %s113 = scalar_select %p112, %s12, 3
      %s114 = smul.addr %s113, 2
      %s115 = smul.addr %s114, 2
      %s116 = scalar_lea.vmem %s1, %s115
      %v117 = vld [vmem:[%s111] sm:$0x3]
      %v118 = vld [vmem:[%s111 + $0x2] sm:$0x3]
      %v119 = vld [vmem:[%s111 + $0x4] sm:$0x3]
      %v120 = vld [vmem:[%s111 + $0x6] sm:$0x3]
      %v121 = vld [vmem:[%s111 + $0x8] sm:$0x3]
      %v122 = vld [vmem:[%s111 + $0xa] sm:$0x3]
      %v123 = vld [vmem:[%s111 + $0xc] sm:$0x3]
      %v124 = vld [vmem:[%s111 + $0xe] sm:$0x3]
      %v125 = vld [vmem:[%s111 + $0x10] sm:$0x3]
      %v126 = vld [vmem:[%s111 + $0x12] sm:$0x3]
      %v127 = vld [vmem:[%s111 + $0x14] sm:$0x3]
      %v128 = vld [vmem:[%s111 + $0x16] sm:$0x3]
      %v129 = vld [vmem:[%s111 + $0x18] sm:$0x3]
      %v130 = vld [vmem:[%s111 + $0x1a] sm:$0x3]
      %v131 = vld [vmem:[%s111 + $0x1c] sm:$0x3]
      %v132 = vld [vmem:[%s111 + $0x1e] sm:$0x3]
      %vm133 = vcmask 1041408
      %v134 = vsel %vm133, %v117, -inf
      %v135 = vsel %vm133, %v125, -inf
      %v136 = vmax.f32 %v134, %v135
      %v137 = vsel %vm133, %v118, -inf
      %v138 = vsel %vm133, %v126, -inf
      %v139 = vmax.f32 %v137, %v138
      %v140 = vsel %vm133, %v119, -inf
      %v141 = vsel %vm133, %v127, -inf
      %v142 = vmax.f32 %v140, %v141
      %v143 = vsel %vm133, %v120, -inf
      %v144 = vsel %vm133, %v128, -inf
      %v145 = vmax.f32 %v143, %v144
      %v146 = vsel %vm133, %v121, -inf
      %v147 = vsel %vm133, %v129, -inf
      %v148 = vmax.f32 %v146, %v147
      %v149 = vsel %vm133, %v122, -inf
      %v150 = vsel %vm133, %v130, -inf
      %v151 = vmax.f32 %v149, %v150
      %v152 = vsel %vm133, %v123, -inf
      %v153 = vsel %vm133, %v131, -inf
      %v154 = vmax.f32 %v152, %v153
      %v155 = vsel %vm133, %v124, -inf
      %v156 = vsel %vm133, %v132, -inf
      %v157 = vmax.f32 %v155, %v156
      %v158 = vsel %vm133, %v136, -inf
      %v159 = vsel %vm133, %v142, -inf
      %v160 = vmax.f32 %v158, %v159
      %v161 = vsel %vm133, %v139, -inf
      %v162 = vsel %vm133, %v145, -inf
      %v163 = vmax.f32 %v161, %v162
      %v164 = vsel %vm133, %v148, -inf
      %v165 = vsel %vm133, %v154, -inf
      %v166 = vmax.f32 %v164, %v165
      %v167 = vsel %vm133, %v151, -inf
      %v168 = vsel %vm133, %v157, -inf
      %v169 = vmax.f32 %v167, %v168
      %v170 = vsel %vm133, %v160, -inf
      %v171 = vrot.slane %v170, 4
      %v172 = vmax.f32 %v170, %v171
      %v173 = vrot.slane %v172, 2
      %v174 = vmax.f32 %v172, %v173
      %v175 = vrot.slane %v174, 1
      %v176 = vmax.f32 %v174, %v175
      %v177 = vsel %vm133, %v163, -inf
      %v178 = vrot.slane %v177, 4
      %v179 = vmax.f32 %v177, %v178
      %v180 = vrot.slane %v179, 2
      %v181 = vmax.f32 %v179, %v180
      %v182 = vrot.slane %v181, 1
      %v183 = vmax.f32 %v181, %v182
      %v184 = vsel %vm133, %v166, -inf
      %v185 = vrot.slane %v184, 4
      %v186 = vmax.f32 %v184, %v185
      %v187 = vrot.slane %v186, 2
      %v188 = vmax.f32 %v186, %v187
      %v189 = vrot.slane %v188, 1
      %v190 = vmax.f32 %v188, %v189
      %v191 = vsel %vm133, %v169, -inf
      %v192 = vrot.slane %v191, 4
      %v193 = vmax.f32 %v191, %v192
      %v194 = vrot.slane %v193, 2
      %v195 = vmax.f32 %v193, %v194
      %v196 = vrot.slane %v195, 1
      %v197 = vmax.f32 %v195, %v196
      %vm202 = vcmask 1041409
      %v203 = vsel %vm202, %v183, %v176
      %v204 = vsel %vm202, %v197, %v190
      %207 = vst [vmem:[%s116] sm:$0x3] %v203
      %208 = vst [vmem:[%s116 + $0x2] sm:$0x3] %v204
      %p209 = scmp.lt.s32.totalorder %s12, 3
      %s210 = scalar_select %p209, %s12, 3
      %s211 = smul.addr %s210, 2
      %s212 = smul.addr %s211, 2
      %s213 = scalar_lea.vmem %s1, %s212
      // Predicated region
      $region25: #{test_model_forward.8} parent=23 // pred_check
        %p214 = pneg %p56
      $region26: #{test_model_forward.8} parent=23 // pred_check_branch
        %216 = sbr.rel (%p214) target = $region28
      $region27: #{test_model_forward.8} parent=23 // pred_region
        _
      $region28: #{test_model_forward.8} parent=23 // pred_fallthru
        _
    $region24: #{test_model_forward.8} parent=5 // pred_fallthru
      _
    %p217 = scmp.le.s32.totalorder 2, %s7
    // Predicated region
    $region29: #{test_model_forward.8} parent=5 // pred_check
      %p218 = pneg %p217
    $region30: #{test_model_forward.8} parent=5 // pred_check_branch
      %220 = sbr.rel (%p218) target = $region32
    $region31: #{test_model_forward.8} parent=5 // pred_region
      %s221 = ssub.s32 %s7, 2
      // Predicated region
      $region33: #{test_model_forward.8} parent=31 // pred_check
        %p222 = pneg %p62
      $region34: #{test_model_forward.8} parent=31 // pred_check_branch
        %224 = sbr.rel (%p222) target = $region36
      $region35: #{test_model_forward.8} parent=31 // pred_region
        %p225 = scmp.lt.s32.totalorder %s13, 3
        %s226 = scalar_select %p225, %s13, 3
        %s227 = smul.addr %s226, 2
        %s228 = smul.addr %s227, 2
        %s229 = scalar_lea.vmem %s1, %s228
      $region36: #{test_model_forward.8} parent=31 // pred_fallthru
        _
    $region32: #{test_model_forward.8} parent=5 // pred_fallthru
      _
  $region6: #{test_model_forward.8} parent=0 // loop_footer
    %s11 = sadd.s32 1, %s7
  $region7: #{test_model_forward.8} parent=0 // loop_footer_branch
    %6 = sbr.rel target = $region3
  $region8: #{test_model_forward.8} parent=0 // loop_exit
    _

// kernel: test_model_forward.9
$region0: #{test_model_forward.9}
  #allocation0 [shape = 'u32[]', space=smem, size = 0x4, offset = 0x4, fixed_abs, tag = 'smem constant byte address 0x4 - core index']
  #allocation1 [shape = 'u32[144,128]{1,0:T(1,128)}', space=vmem, size = 0x12000, scoped, tag = 'internal scratch']
  %s0 = inlined_call_operand.vmem [shape: bf16[8,1024], index: 0, kind: input, shape index: {}]
  %s1 = inlined_call_operand.vmem [shape: bf16[1024,128], index: 1, kind: input, shape index: {}]
  %s2 = inlined_call_operand.vmem [shape: f32[1,128], index: 2, kind: input, shape index: {}]
  %s3 = inlined_call_operand.vmem [shape: bf16[128,128], index: 3, kind: input, shape index: {}]
  %s4 = inlined_call_operand.vmem [shape: f32[1,128], index: 4, kind: input, shape index: {}]
  %s5 = inlined_call_operand.vmem [shape: f32[8,128], index: 5, kind: output, shape index: {}]
  %s6 = sld [smem:[#allocation0]]
  $region30: #{test_model_forward.9} parent=0
    _
  %s8 = ssub.s32 1, %s6
  %s9 = scalar_select 0, %s8, %s6
  // Predicated region
  $region2: #{test_model_forward.9} parent=0 // pred_check
    _
  $region3: #{test_model_forward.9} parent=0 // pred_check_branch
    %11 = sbr.rel (0) target = $region5
  $region4: #{test_model_forward.9} parent=0 // pred_region
    _
  $region5: #{test_model_forward.9} parent=0 // pred_fallthru
    _
  // Predicated region
  $region6: #{test_model_forward.9} parent=0 // pred_check
    _
  $region7: #{test_model_forward.9} parent=0 // pred_check_branch
    %13 = sbr.rel (0) target = $region9
  $region8: #{test_model_forward.9} parent=0 // pred_region
    _
  $region9: #{test_model_forward.9} parent=0 // pred_fallthru
    _
  // Predicated region
  $region10: #{test_model_forward.9} parent=0 // pred_check
    _
  $region11: #{test_model_forward.9} parent=0 // pred_check_branch
    %15 = sbr.rel (0) target = $region13
  $region12: #{test_model_forward.9} parent=0 // pred_region
    _
  $region13: #{test_model_forward.9} parent=0 // pred_fallthru
    _
  // Predicated region
  $region14: #{test_model_forward.9} parent=0 // pred_check
    _
  $region15: #{test_model_forward.9} parent=0 // pred_check_branch
    %17 = sbr.rel (0) target = $region17
  $region16: #{test_model_forward.9} parent=0 // pred_region
    _
  $region17: #{test_model_forward.9} parent=0 // pred_fallthru
    _
  // Predicated region
  $region18: #{test_model_forward.9} parent=0 // pred_check
    _
  $region19: #{test_model_forward.9} parent=0 // pred_check_branch
    %19 = sbr.rel (0) target = $region21
  $region20: #{test_model_forward.9} parent=0 // pred_region
    _
  $region21: #{test_model_forward.9} parent=0 // pred_fallthru
    _
  %v21 = vld [vmem:[%s0] sm:$0xff]
  %v22 = vld [vmem:[%s0 + $0x8] sm:$0xff]
  %v23 = vld [vmem:[%s0 + $0x10] sm:$0xff]
  %v24 = vld [vmem:[%s0 + $0x18] sm:$0xff]
  %v25 = vld [vmem:[%s1] sm:$0xf]
  %v26 = vld [vmem:[%s1 + $0x4] sm:$0xf]
  %v27 = vld [vmem:[%s1 + $0x8] sm:$0xf]
  %v28 = vld [vmem:[%s1 + $0xc] sm:$0xf]
  %v29 = vld [vmem:[%s1 + $0x10] sm:$0xf]
  %v30 = vld [vmem:[%s1 + $0x14] sm:$0xf]
  %v31 = vld [vmem:[%s1 + $0x18] sm:$0xf]
  %v32 = vld [vmem:[%s1 + $0x1c] sm:$0xf]
  %v33 = vld [vmem:[%s1 + $0x20] sm:$0xf]
  %v34 = vld [vmem:[%s1 + $0x24] sm:$0xf]
  %v35 = vld [vmem:[%s1 + $0x28] sm:$0xf]
  %v36 = vld [vmem:[%s1 + $0x2c] sm:$0xf]
  %v37 = vld [vmem:[%s1 + $0x30] sm:$0xf]
  %v38 = vld [vmem:[%s1 + $0x34] sm:$0xf]
  %v39 = vld [vmem:[%s1 + $0x38] sm:$0xf]
  %v40 = vld [vmem:[%s1 + $0x3c] sm:$0xf]
  %v41 = vld [vmem:[%s1 + $0x40] sm:$0xf]
  %v42 = vld [vmem:[%s1 + $0x44] sm:$0xf]
  %v43 = vld [vmem:[%s1 + $0x48] sm:$0xf]
  %v44 = vld [vmem:[%s1 + $0x4c] sm:$0xf]
  %v45 = vld [vmem:[%s1 + $0x50] sm:$0xf]
  %v46 = vld [vmem:[%s1 + $0x54] sm:$0xf]
  %v47 = vld [vmem:[%s1 + $0x58] sm:$0xf]
  %v48 = vld [vmem:[%s1 + $0x5c] sm:$0xf]
  %v49 = vld [vmem:[%s1 + $0x60] sm:$0xf]
  %v50 = vld [vmem:[%s1 + $0x64] sm:$0xf]
  %v51 = vld [vmem:[%s1 + $0x68] sm:$0xf]
  %v52 = vld [vmem:[%s1 + $0x6c] sm:$0xf]
  %v53 = vld [vmem:[%s1 + $0x70] sm:$0xf]
  %v54 = vld [vmem:[%s1 + $0x74] sm:$0xf]
  %v55 = vld [vmem:[%s1 + $0x78] sm:$0xf]
  %v56 = vld [vmem:[%s1 + $0x7c] sm:$0xf]
  %v57 = vld [vmem:[%s1 + $0x80] sm:$0xf]
  %v58 = vld [vmem:[%s1 + $0x84] sm:$0xf]
  %v59 = vld [vmem:[%s1 + $0x88] sm:$0xf]
  %v60 = vld [vmem:[%s1 + $0x8c] sm:$0xf]
  %v61 = vld [vmem:[%s1 + $0x90] sm:$0xf]
  %v62 = vld [vmem:[%s1 + $0x94] sm:$0xf]
  %v63 = vld [vmem:[%s1 + $0x98] sm:$0xf]
  %v64 = vld [vmem:[%s1 + $0x9c] sm:$0xf]
  %v65 = vld [vmem:[%s1 + $0xa0] sm:$0xf]
  %v66 = vld [vmem:[%s1 + $0xa4] sm:$0xf]
  %v67 = vld [vmem:[%s1 + $0xa8] sm:$0xf]
  %v68 = vld [vmem:[%s1 + $0xac] sm:$0xf]
  %v69 = vld [vmem:[%s1 + $0xb0] sm:$0xf]
  %v70 = vld [vmem:[%s1 + $0xb4] sm:$0xf]
  %v71 = vld [vmem:[%s1 + $0xb8] sm:$0xf]
  %v72 = vld [vmem:[%s1 + $0xbc] sm:$0xf]
  %v73 = vld [vmem:[%s1 + $0xc0] sm:$0xf]
  %v74 = vld [vmem:[%s1 + $0xc4] sm:$0xf]
  %v75 = vld [vmem:[%s1 + $0xc8] sm:$0xf]
  %v76 = vld [vmem:[%s1 + $0xcc] sm:$0xf]
  %v77 = vld [vmem:[%s1 + $0xd0] sm:$0xf]
  %v78 = vld [vmem:[%s1 + $0xd4] sm:$0xf]
  %v79 = vld [vmem:[%s1 + $0xd8] sm:$0xf]
  %v80 = vld [vmem:[%s1 + $0xdc] sm:$0xf]
  %v81 = vld [vmem:[%s1 + $0xe0] sm:$0xf]
  %v82 = vld [vmem:[%s1 + $0xe4] sm:$0xf]
  %v83 = vld [vmem:[%s1 + $0xe8] sm:$0xf]
  %v84 = vld [vmem:[%s1 + $0xec] sm:$0xf]
  %v85 = vld [vmem:[%s1 + $0xf0] sm:$0xf]
  %v86 = vld [vmem:[%s1 + $0xf4] sm:$0xf]
  %v87 = vld [vmem:[%s1 + $0xf8] sm:$0xf]
  %v88 = vld [vmem:[%s1 + $0xfc] sm:$0xf]
  %v89 = vld [vmem:[%s1 + $0x100] sm:$0xf]
  %v90 = vld [vmem:[%s1 + $0x104] sm:$0xf]
  %v91 = vld [vmem:[%s1 + $0x108] sm:$0xf]
  %v92 = vld [vmem:[%s1 + $0x10c] sm:$0xf]
  %v93 = vld [vmem:[%s1 + $0x110] sm:$0xf]
  %v94 = vld [vmem:[%s1 + $0x114] sm:$0xf]
  %v95 = vld [vmem:[%s1 + $0x118] sm:$0xf]
  %v96 = vld [vmem:[%s1 + $0x11c] sm:$0xf]
  %v97 = vld [vmem:[%s1 + $0x120] sm:$0xf]
  %v98 = vld [vmem:[%s1 + $0x124] sm:$0xf]
  %v99 = vld [vmem:[%s1 + $0x128] sm:$0xf]
  %v100 = vld [vmem:[%s1 + $0x12c] sm:$0xf]
  %v101 = vld [vmem:[%s1 + $0x130] sm:$0xf]
  %v102 = vld [vmem:[%s1 + $0x134] sm:$0xf]
  %v103 = vld [vmem:[%s1 + $0x138] sm:$0xf]
  %v104 = vld [vmem:[%s1 + $0x13c] sm:$0xf]
  %v105 = vld [vmem:[%s1 + $0x140] sm:$0xf]
  %v106 = vld [vmem:[%s1 + $0x144] sm:$0xf]
  %v107 = vld [vmem:[%s1 + $0x148] sm:$0xf]
  %v108 = vld [vmem:[%s1 + $0x14c] sm:$0xf]
  %v109 = vld [vmem:[%s1 + $0x150] sm:$0xf]
  %v110 = vld [vmem:[%s1 + $0x154] sm:$0xf]
  %v111 = vld [vmem:[%s1 + $0x158] sm:$0xf]
  %v112 = vld [vmem:[%s1 + $0x15c] sm:$0xf]
  %v113 = vld [vmem:[%s1 + $0x160] sm:$0xf]
  %v114 = vld [vmem:[%s1 + $0x164] sm:$0xf]
  %v115 = vld [vmem:[%s1 + $0x168] sm:$0xf]
  %v116 = vld [vmem:[%s1 + $0x16c] sm:$0xf]
  %v117 = vld [vmem:[%s1 + $0x170] sm:$0xf]
  %v118 = vld [vmem:[%s1 + $0x174] sm:$0xf]
  %v119 = vld [vmem:[%s1 + $0x178] sm:$0xf]
  %v120 = vld [vmem:[%s1 + $0x17c] sm:$0xf]
  %v121 = vld [vmem:[%s1 + $0x180] sm:$0xf]
  %v122 = vld [vmem:[%s1 + $0x184] sm:$0xf]
  %v123 = vld [vmem:[%s1 + $0x188] sm:$0xf]
  %v124 = vld [vmem:[%s1 + $0x18c] sm:$0xf]
  %v125 = vld [vmem:[%s1 + $0x190] sm:$0xf]
  %v126 = vld [vmem:[%s1 + $0x194] sm:$0xf]
  %v127 = vld [vmem:[%s1 + $0x198] sm:$0xf]
  %v128 = vld [vmem:[%s1 + $0x19c] sm:$0xf]
  %v129 = vld [vmem:[%s1 + $0x1a0] sm:$0xf]
  %v130 = vld [vmem:[%s1 + $0x1a4] sm:$0xf]
  %v131 = vld [vmem:[%s1 + $0x1a8] sm:$0xf]
  %v132 = vld [vmem:[%s1 + $0x1ac] sm:$0xf]
  %v133 = vld [vmem:[%s1 + $0x1b0] sm:$0xf]
  %v134 = vld [vmem:[%s1 + $0x1b4] sm:$0xf]
  %v135 = vld [vmem:[%s1 + $0x1b8] sm:$0xf]
  %v136 = vld [vmem:[%s1 + $0x1bc] sm:$0xf]
  %v137 = vld [vmem:[%s1 + $0x1c0] sm:$0xf]
  %v138 = vld [vmem:[%s1 + $0x1c4] sm:$0xf]
  %v139 = vld [vmem:[%s1 + $0x1c8] sm:$0xf]
  %v140 = vld [vmem:[%s1 + $0x1cc] sm:$0xf]
  %v141 = vld [vmem:[%s1 + $0x1d0] sm:$0xf]
  %v142 = vld [vmem:[%s1 + $0x1d4] sm:$0xf]
  %v143 = vld [vmem:[%s1 + $0x1d8] sm:$0xf]
  %v144 = vld [vmem:[%s1 + $0x1dc] sm:$0xf]
  %v145 = vld [vmem:[%s1 + $0x1e0] sm:$0xf]
  %v146 = vld [vmem:[%s1 + $0x1e4] sm:$0xf]
  %v147 = vld [vmem:[%s1 + $0x1e8] sm:$0xf]
  %v148 = vld [vmem:[%s1 + $0x1ec] sm:$0xf]
  %v149 = vld [vmem:[%s1 + $0x1f0] sm:$0xf]
  %v150 = vld [vmem:[%s1 + $0x1f4] sm:$0xf]
  %v151 = vld [vmem:[%s1 + $0x1f8] sm:$0xf]
  %v152 = vld [vmem:[%s1 + $0x1fc] sm:$0xf]
  %v153 = vld [vmem:[%s2] sm:$0x1]
  %v155 = vlaneseq
  %v156 = vshrl.u32 %v155, 7
  %v157 = vsub.s32 0, %v156
  %v158 = vrot.slane %v153, %v157
  %v164 = vunpack.c.l.b16 %v21
  %v165 = vunpack.c.h.b16 %v21
  %v166 = vunpack.c.l.b16 %v22
  %v167 = vunpack.c.h.b16 %v22
  %v168 = vunpack.c.l.b16 %v23
  %v169 = vunpack.c.h.b16 %v23
  %v170 = vunpack.c.l.b16 %v24
  %v171 = vunpack.c.h.b16 %v24
  %v172 = vpack.c.b16 %v164, %v164
  %v173 = vpack.c.b16 %v165, %v165
  %v174 = vpack.c.b16 %v166, %v166
  %v175 = vpack.c.b16 %v167, %v167
  %v176 = vpack.c.b16 %v168, %v168
  %v177 = vpack.c.b16 %v169, %v169
  %v178 = vpack.c.b16 %v170, %v170
  %v179 = vpack.c.b16 %v171, %v171
  %v316 = vunpack.c.l.b16 %v25
  %v317 = vunpack.c.l.b16 %v26
  %v318 = vunpack.c.l.b16 %v27
  %v319 = vunpack.c.l.b16 %v28
  %v320 = vunpack.c.l.b16 %v29
  %v321 = vunpack.c.l.b16 %v30
  %v322 = vunpack.c.l.b16 %v31
  %v323 = vunpack.c.l.b16 %v32
  %v324 = vunpack.c.l.b16 %v33
  %v325 = vunpack.c.l.b16 %v34
  %v326 = vunpack.c.l.b16 %v35
  %v327 = vunpack.c.l.b16 %v36
  %v328 = vunpack.c.l.b16 %v37
  %v329 = vunpack.c.l.b16 %v38
  %v330 = vunpack.c.l.b16 %v39
  %v331 = vunpack.c.l.b16 %v40
  %v332 = vunpack.c.l.b16 %v41
  %v333 = vunpack.c.l.b16 %v42
  %v334 = vunpack.c.l.b16 %v43
  %v335 = vunpack.c.l.b16 %v44
  %v336 = vunpack.c.l.b16 %v45
  %v337 = vunpack.c.l.b16 %v46
  %v338 = vunpack.c.l.b16 %v47
  %v339 = vunpack.c.l.b16 %v48
  %v340 = vunpack.c.l.b16 %v49
  %v341 = vunpack.c.l.b16 %v50
  %v342 = vunpack.c.l.b16 %v51
  %v343 = vunpack.c.l.b16 %v52
  %v344 = vunpack.c.l.b16 %v53
  %v345 = vunpack.c.l.b16 %v54
  %v346 = vunpack.c.l.b16 %v55
  %v347 = vunpack.c.l.b16 %v56
  %v348 = vunpack.c.l.b16 %v57
  %v349 = vunpack.c.l.b16 %v58
  %v350 = vunpack.c.l.b16 %v59
  %v351 = vunpack.c.l.b16 %v60
  %v352 = vunpack.c.l.b16 %v61
  %v353 = vunpack.c.l.b16 %v62
  %v354 = vunpack.c.l.b16 %v63
  %v355 = vunpack.c.l.b16 %v64
  %v356 = vunpack.c.l.b16 %v65
  %v357 = vunpack.c.l.b16 %v66
  %v358 = vunpack.c.l.b16 %v67
  %v359 = vunpack.c.l.b16 %v68
  %v360 = vunpack.c.l.b16 %v69
  %v361 = vunpack.c.l.b16 %v70
  %v362 = vunpack.c.l.b16 %v71
  %v363 = vunpack.c.l.b16 %v72
  %v364 = vunpack.c.l.b16 %v73
  %v365 = vunpack.c.l.b16 %v74
  %v366 = vunpack.c.l.b16 %v75
  %v367 = vunpack.c.l.b16 %v76
  %v368 = vunpack.c.l.b16 %v77
  %v369 = vunpack.c.l.b16 %v78
  %v370 = vunpack.c.l.b16 %v79
  %v371 = vunpack.c.l.b16 %v80
  %v372 = vunpack.c.l.b16 %v81
  %v373 = vunpack.c.l.b16 %v82
  %v374 = vunpack.c.l.b16 %v83
  %v375 = vunpack.c.l.b16 %v84
  %v376 = vunpack.c.l.b16 %v85
  %v377 = vunpack.c.l.b16 %v86
  %v378 = vunpack.c.l.b16 %v87
  %v379 = vunpack.c.l.b16 %v88
  %v380 = vunpack.c.l.b16 %v89
  %v381 = vunpack.c.l.b16 %v90
  %v382 = vunpack.c.l.b16 %v91
  %v383 = vunpack.c.l.b16 %v92
  %v384 = vunpack.c.l.b16 %v93
  %v385 = vunpack.c.l.b16 %v94
  %v386 = vunpack.c.l.b16 %v95
  %v387 = vunpack.c.l.b16 %v96
  %v388 = vunpack.c.l.b16 %v97
  %v389 = vunpack.c.l.b16 %v98
  %v390 = vunpack.c.l.b16 %v99
  %v391 = vunpack.c.l.b16 %v100
  %v392 = vunpack.c.l.b16 %v101
  %v393 = vunpack.c.l.b16 %v102
  %v394 = vunpack.c.l.b16 %v103
  %v395 = vunpack.c.l.b16 %v104
  %v396 = vunpack.c.l.b16 %v105
  %v397 = vunpack.c.l.b16 %v106
  %v398 = vunpack.c.l.b16 %v107
  %v399 = vunpack.c.l.b16 %v108
  %v400 = vunpack.c.l.b16 %v109
  %v401 = vunpack.c.l.b16 %v110
  %v402 = vunpack.c.l.b16 %v111
  %v403 = vunpack.c.l.b16 %v112
  %v404 = vunpack.c.l.b16 %v113
  %v405 = vunpack.c.l.b16 %v114
  %v406 = vunpack.c.l.b16 %v115
  %v407 = vunpack.c.l.b16 %v116
  %v408 = vunpack.c.l.b16 %v117
  %v409 = vunpack.c.l.b16 %v118
  %v410 = vunpack.c.l.b16 %v119
  %v411 = vunpack.c.l.b16 %v120
  %v412 = vunpack.c.l.b16 %v121
  %v413 = vunpack.c.l.b16 %v122
  %v414 = vunpack.c.l.b16 %v123
  %v415 = vunpack.c.l.b16 %v124
  %v416 = vunpack.c.l.b16 %v125
  %v417 = vunpack.c.l.b16 %v126
  %v418 = vunpack.c.l.b16 %v127
  %v419 = vunpack.c.l.b16 %v128
  %v420 = vunpack.c.l.b16 %v129
  %v421 = vunpack.c.l.b16 %v130
  %v422 = vunpack.c.l.b16 %v131
  %v423 = vunpack.c.l.b16 %v132
  %v424 = vunpack.c.l.b16 %v133
  %v425 = vunpack.c.l.b16 %v134
  %v426 = vunpack.c.l.b16 %v135
  %v427 = vunpack.c.l.b16 %v136
  %v428 = vunpack.c.l.b16 %v137
  %v429 = vunpack.c.l.b16 %v138
  %v430 = vunpack.c.l.b16 %v139
  %v431 = vunpack.c.l.b16 %v140
  %v432 = vunpack.c.l.b16 %v141
  %v433 = vunpack.c.l.b16 %v142
  %v434 = vunpack.c.l.b16 %v143
  %v435 = vunpack.c.l.b16 %v144
  %v436 = vunpack.c.l.b16 %v145
  %v437 = vunpack.c.l.b16 %v146
  %v438 = vunpack.c.l.b16 %v147
  %v439 = vunpack.c.l.b16 %v148
  %v440 = vunpack.c.l.b16 %v149
  %v441 = vunpack.c.l.b16 %v150
  %v442 = vunpack.c.l.b16 %v151
  %v443 = vunpack.c.l.b16 %v152
  %v444 = vpack.c.b16 %v317, %v316
  %v445 = vpack.c.b16 %v319, %v318
  %v446 = vpack.c.b16 %v321, %v320
  %v447 = vpack.c.b16 %v323, %v322
  %v448 = vpack.c.b16 %v325, %v324
  %v449 = vpack.c.b16 %v327, %v326
  %v450 = vpack.c.b16 %v329, %v328
  %v451 = vpack.c.b16 %v331, %v330
  %v452 = vpack.c.b16 %v333, %v332
  %v453 = vpack.c.b16 %v335, %v334
  %v454 = vpack.c.b16 %v337, %v336
  %v455 = vpack.c.b16 %v339, %v338
  %v456 = vpack.c.b16 %v341, %v340
  %v457 = vpack.c.b16 %v343, %v342
  %v458 = vpack.c.b16 %v345, %v344
  %v459 = vpack.c.b16 %v347, %v346
  %v460 = vpack.c.b16 %v349, %v348
  %v461 = vpack.c.b16 %v351, %v350
  %v462 = vpack.c.b16 %v353, %v352
  %v463 = vpack.c.b16 %v355, %v354
  %v464 = vpack.c.b16 %v357, %v356
  %v465 = vpack.c.b16 %v359, %v358
  %v466 = vpack.c.b16 %v361, %v360
  %v467 = vpack.c.b16 %v363, %v362
  %v468 = vpack.c.b16 %v365, %v364
  %v469 = vpack.c.b16 %v367, %v366
  %v470 = vpack.c.b16 %v369, %v368
  %v471 = vpack.c.b16 %v371, %v370
  %v472 = vpack.c.b16 %v373, %v372
  %v473 = vpack.c.b16 %v375, %v374
  %v474 = vpack.c.b16 %v377, %v376
  %v475 = vpack.c.b16 %v379, %v378
  %v476 = vpack.c.b16 %v381, %v380
  %v477 = vpack.c.b16 %v383, %v382
  %v478 = vpack.c.b16 %v385, %v384
  %v479 = vpack.c.b16 %v387, %v386
  %v480 = vpack.c.b16 %v389, %v388
  %v481 = vpack.c.b16 %v391, %v390
  %v482 = vpack.c.b16 %v393, %v392
  %v483 = vpack.c.b16 %v395, %v394
  %v484 = vpack.c.b16 %v397, %v396
  %v485 = vpack.c.b16 %v399, %v398
  %v486 = vpack.c.b16 %v401, %v400
  %v487 = vpack.c.b16 %v403, %v402
  %v488 = vpack.c.b16 %v405, %v404
  %v489 = vpack.c.b16 %v407, %v406
  %v490 = vpack.c.b16 %v409, %v408
  %v491 = vpack.c.b16 %v411, %v410
  %v492 = vpack.c.b16 %v413, %v412
  %v493 = vpack.c.b16 %v415, %v414
  %v494 = vpack.c.b16 %v417, %v416
  %v495 = vpack.c.b16 %v419, %v418
  %v496 = vpack.c.b16 %v421, %v420
  %v497 = vpack.c.b16 %v423, %v422
  %v498 = vpack.c.b16 %v425, %v424
  %v499 = vpack.c.b16 %v427, %v426
  %v500 = vpack.c.b16 %v429, %v428
  %v501 = vpack.c.b16 %v431, %v430
  %v502 = vpack.c.b16 %v433, %v432
  %v503 = vpack.c.b16 %v435, %v434
  %v504 = vpack.c.b16 %v437, %v436
  %v505 = vpack.c.b16 %v439, %v438
  %v506 = vpack.c.b16 %v441, %v440
  %v507 = vpack.c.b16 %v443, %v442
  %572 = vmatprep.subr.bf16.mxu0 0
  %573 = vmatpush1.bf16.msra.mxu0 %v444
  %574 = vmatprep.subr.bf16.mxu0 0
  %575 = vmatpush1.bf16.msra.mxu0 %v445
  %576 = vmatprep.subr.bf16.mxu0 0
  %577 = vmatpush1.bf16.msra.mxu0 %v446
  %578 = vmatprep.subr.bf16.mxu0 0
  %579 = vmatpush1.bf16.msra.mxu0 %v447
  %580 = vmatprep.subr.bf16.mxu0 0
  %581 = vmatpush1.bf16.msra.mxu0 %v448
  %582 = vmatprep.subr.bf16.mxu0 0
  %583 = vmatpush1.bf16.msra.mxu0 %v449
  %584 = vmatprep.subr.bf16.mxu0 0
  %585 = vmatpush1.bf16.msra.mxu0 %v450
  %586 = vmatprep.subr.bf16.mxu0 0
  %587 = vmatpush1.bf16.msra.mxu0 %v451
  %588 = vmatprep.subr.bf16.mxu0 0
  %589 = vmatpush1.bf16.msra.mxu0 %v452
  %590 = vmatprep.subr.bf16.mxu0 0
  %591 = vmatpush1.bf16.msra.mxu0 %v453
  %592 = vmatprep.subr.bf16.mxu0 0
  %593 = vmatpush1.bf16.msra.mxu0 %v454
  %594 = vmatprep.subr.bf16.mxu0 0
  %595 = vmatpush1.bf16.msra.mxu0 %v455
  %596 = vmatprep.subr.bf16.mxu0 0
  %597 = vmatpush1.bf16.msra.mxu0 %v456
  %598 = vmatprep.subr.bf16.mxu0 0
  %599 = vmatpush1.bf16.msra.mxu0 %v457
  %600 = vmatprep.subr.bf16.mxu0 0
  %601 = vmatpush1.bf16.msra.mxu0 %v458
  %602 = vmatprep.subr.bf16.mxu0 0
  %603 = vmatpush1.bf16.msra.mxu0 %v459
  %604 = vmatprep.mubr.bf16.mxu0 %v173
  %605 = vmatmul.mubr.bf16.gmra.mrb[0].mxu0 %v172
  %v606 = vpop.f32.mrb[0].mxu0
  %v607 = vadd.f32 %v158, %v606
  %v608 = vpop.f32.mrb[0].mxu0
  %v609 = vpop.f32.mrb[0].mxu0
  %v610 = vpop.f32.mrb[0].mxu0
  %611 = vdwg.mxu0
  %612 = vmatprep.subr.bf16.mxu0 0
  %613 = vmatpush1.bf16.msra.mxu0 %v460
  %614 = vmatprep.subr.bf16.mxu0 0
  %615 = vmatpush1.bf16.msra.mxu0 %v461
  %616 = vmatprep.subr.bf16.mxu0 0
  %617 = vmatpush1.bf16.msra.mxu0 %v462
  %618 = vmatprep.subr.bf16.mxu0 0
  %619 = vmatpush1.bf16.msra.mxu0 %v463
  %620 = vmatprep.subr.bf16.mxu0 0
  %621 = vmatpush1.bf16.msra.mxu0 %v464
  %622 = vmatprep.subr.bf16.mxu0 0
  %623 = vmatpush1.bf16.msra.mxu0 %v465
  %624 = vmatprep.subr.bf16.mxu0 0
  %625 = vmatpush1.bf16.msra.mxu0 %v466
  %626 = vmatprep.subr.bf16.mxu0 0
  %627 = vmatpush1.bf16.msra.mxu0 %v467
  %628 = vmatprep.subr.bf16.mxu0 0
  %629 = vmatpush1.bf16.msra.mxu0 %v468
  %630 = vmatprep.subr.bf16.mxu0 0
  %631 = vmatpush1.bf16.msra.mxu0 %v469
  %632 = vmatprep.subr.bf16.mxu0 0
  %633 = vmatpush1.bf16.msra.mxu0 %v470
  %634 = vmatprep.subr.bf16.mxu0 0
  %635 = vmatpush1.bf16.msra.mxu0 %v471
  %636 = vmatprep.subr.bf16.mxu0 0
  %637 = vmatpush1.bf16.msra.mxu0 %v472
  %638 = vmatprep.subr.bf16.mxu0 0
  %639 = vmatpush1.bf16.msra.mxu0 %v473
  %640 = vmatprep.subr.bf16.mxu0 0
  %641 = vmatpush1.bf16.msra.mxu0 %v474
  %642 = vmatprep.subr.bf16.mxu0 0
  %643 = vmatpush1.bf16.msra.mxu0 %v475
  %644 = vmatprep.mubr.bf16.mxu0 %v175
  %645 = vmatmul.mubr.bf16.gmra.mrb[0].mxu0 %v174
  %v646 = vpop.f32.mrb[0].mxu0
  %v647 = vadd.f32 %v607, %v646
  %v648 = vpop.f32.mrb[0].mxu0
  %v649 = vpop.f32.mrb[0].mxu0
  %v650 = vpop.f32.mrb[0].mxu0
  %651 = vdwg.mxu0
  %652 = vmatprep.subr.bf16.mxu0 0
  %653 = vmatpush1.bf16.msra.mxu0 %v476
  %654 = vmatprep.subr.bf16.mxu0 0
  %655 = vmatpush1.bf16.msra.mxu0 %v477
  %656 = vmatprep.subr.bf16.mxu0 0
  %657 = vmatpush1.bf16.msra.mxu0 %v478
  %658 = vmatprep.subr.bf16.mxu0 0
  %659 = vmatpush1.bf16.msra.mxu0 %v479
  %660 = vmatprep.subr.bf16.mxu0 0
  %661 = vmatpush1.bf16.msra.mxu0 %v480
  %662 = vmatprep.subr.bf16.mxu0 0
  %663 = vmatpush1.bf16.msra.mxu0 %v481
  %664 = vmatprep.subr.bf16.mxu0 0
  %665 = vmatpush1.bf16.msra.mxu0 %v482
  %666 = vmatprep.subr.bf16.mxu0 0
  %667 = vmatpush1.bf16.msra.mxu0 %v483
  %668 = vmatprep.subr.bf16.mxu0 0
  %669 = vmatpush1.bf16.msra.mxu0 %v484
  %670 = vmatprep.subr.bf16.mxu0 0
  %671 = vmatpush1.bf16.msra.mxu0 %v485
  %672 = vmatprep.subr.bf16.mxu0 0
  %673 = vmatpush1.bf16.msra.mxu0 %v486
  %674 = vmatprep.subr.bf16.mxu0 0
  %675 = vmatpush1.bf16.msra.mxu0 %v487
  %676 = vmatprep.subr.bf16.mxu0 0
  %677 = vmatpush1.bf16.msra.mxu0 %v488
  %678 = vmatprep.subr.bf16.mxu0 0
  %679 = vmatpush1.bf16.msra.mxu0 %v489
  %680 = vmatprep.subr.bf16.mxu0 0
  %681 = vmatpush1.bf16.msra.mxu0 %v490
  %682 = vmatprep.subr.bf16.mxu0 0
  %683 = vmatpush1.bf16.msra.mxu0 %v491
  %684 = vmatprep.mubr.bf16.mxu0 %v177
  %685 = vmatmul.mubr.bf16.gmra.mrb[0].mxu0 %v176
  %v686 = vpop.f32.mrb[0].mxu0
  %v687 = vadd.f32 %v647, %v686
  %v688 = vpop.f32.mrb[0].mxu0
  %v689 = vpop.f32.mrb[0].mxu0
  %v690 = vpop.f32.mrb[0].mxu0
  %691 = vdwg.mxu0
  %692 = vmatprep.subr.bf16.mxu0 0
  %693 = vmatpush1.bf16.msra.mxu0 %v492
  %694 = vmatprep.subr.bf16.mxu0 0
  %695 = vmatpush1.bf16.msra.mxu0 %v493
  %696 = vmatprep.subr.bf16.mxu0 0
  %697 = vmatpush1.bf16.msra.mxu0 %v494
  %698 = vmatprep.subr.bf16.mxu0 0
  %699 = vmatpush1.bf16.msra.mxu0 %v495
  %700 = vmatprep.subr.bf16.mxu0 0
  %701 = vmatpush1.bf16.msra.mxu0 %v496
  %702 = vmatprep.subr.bf16.mxu0 0
  %703 = vmatpush1.bf16.msra.mxu0 %v497
  %704 = vmatprep.subr.bf16.mxu0 0
  %705 = vmatpush1.bf16.msra.mxu0 %v498
  %706 = vmatprep.subr.bf16.mxu0 0
  %707 = vmatpush1.bf16.msra.mxu0 %v499
  %708 = vmatprep.subr.bf16.mxu0 0
  %709 = vmatpush1.bf16.msra.mxu0 %v500
  %710 = vmatprep.subr.bf16.mxu0 0
  %711 = vmatpush1.bf16.msra.mxu0 %v501
  %712 = vmatprep.subr.bf16.mxu0 0
  %713 = vmatpush1.bf16.msra.mxu0 %v502
  %714 = vmatprep.subr.bf16.mxu0 0
  %715 = vmatpush1.bf16.msra.mxu0 %v503
  %716 = vmatprep.subr.bf16.mxu0 0
  %717 = vmatpush1.bf16.msra.mxu0 %v504
  %718 = vmatprep.subr.bf16.mxu0 0
  %719 = vmatpush1.bf16.msra.mxu0 %v505
  %720 = vmatprep.subr.bf16.mxu0 0
  %721 = vmatpush1.bf16.msra.mxu0 %v506
  %722 = vmatprep.subr.bf16.mxu0 0
  %723 = vmatpush1.bf16.msra.mxu0 %v507
  %724 = vmatprep.mubr.bf16.mxu0 %v179
  %725 = vmatmul.mubr.bf16.gmra.mrb[0].mxu0 %v178
  %v726 = vpop.f32.mrb[0].mxu0
  %v727 = vadd.f32 %v687, %v726
  %v728 = vpop.f32.mrb[0].mxu0
  %v729 = vpop.f32.mrb[0].mxu0
  %v730 = vpop.f32.mrb[0].mxu0
  %731 = vdwg.mxu0
  %v732 = vpack.c.bf16 %v727, %v727
  %v733 = vld [vmem:[%s3] sm:$0xf]
  %v734 = vld [vmem:[%s3 + $0x4] sm:$0xf]
  %v735 = vld [vmem:[%s3 + $0x8] sm:$0xf]
  %v736 = vld [vmem:[%s3 + $0xc] sm:$0xf]
  %v737 = vld [vmem:[%s3 + $0x10] sm:$0xf]
  %v738 = vld [vmem:[%s3 + $0x14] sm:$0xf]
  %v739 = vld [vmem:[%s3 + $0x18] sm:$0xf]
  %v740 = vld [vmem:[%s3 + $0x1c] sm:$0xf]
  %v741 = vld [vmem:[%s3 + $0x20] sm:$0xf]
  %v742 = vld [vmem:[%s3 + $0x24] sm:$0xf]
  %v743 = vld [vmem:[%s3 + $0x28] sm:$0xf]
  %v744 = vld [vmem:[%s3 + $0x2c] sm:$0xf]
  %v745 = vld [vmem:[%s3 + $0x30] sm:$0xf]
  %v746 = vld [vmem:[%s3 + $0x34] sm:$0xf]
  %v747 = vld [vmem:[%s3 + $0x38] sm:$0xf]
  %v748 = vld [vmem:[%s3 + $0x3c] sm:$0xf]
  %v749 = vld [vmem:[%s4] sm:$0x1]
  %v751 = vlaneseq
  %v752 = vshrl.u32 %v751, 7
  %v753 = vsub.s32 0, %v752
  %v754 = vrot.slane %v749, %v753
  %v772 = vunpack.c.l.b16 %v733
  %v773 = vunpack.c.l.b16 %v734
  %v774 = vunpack.c.l.b16 %v735
  %v775 = vunpack.c.l.b16 %v736
  %v776 = vunpack.c.l.b16 %v737
  %v777 = vunpack.c.l.b16 %v738
  %v778 = vunpack.c.l.b16 %v739
  %v779 = vunpack.c.l.b16 %v740
  %v780 = vunpack.c.l.b16 %v741
  %v781 = vunpack.c.l.b16 %v742
  %v782 = vunpack.c.l.b16 %v743
  %v783 = vunpack.c.l.b16 %v744
  %v784 = vunpack.c.l.b16 %v745
  %v785 = vunpack.c.l.b16 %v746
  %v786 = vunpack.c.l.b16 %v747
  %v787 = vunpack.c.l.b16 %v748
  %v788 = vpack.c.b16 %v773, %v772
  %v789 = vpack.c.b16 %v775, %v774
  %v790 = vpack.c.b16 %v777, %v776
  %v791 = vpack.c.b16 %v779, %v778
  %v792 = vpack.c.b16 %v781, %v780
  %v793 = vpack.c.b16 %v783, %v782
  %v794 = vpack.c.b16 %v785, %v784
  %v795 = vpack.c.b16 %v787, %v786
  %804 = vmatprep.subr.bf16.mxu0 0
  %805 = vmatpush1.bf16.msra.mxu0 %v788
  %806 = vmatprep.subr.bf16.mxu0 0
  %807 = vmatpush1.bf16.msra.mxu0 %v789
  %808 = vmatprep.subr.bf16.mxu0 0
  %809 = vmatpush1.bf16.msra.mxu0 %v790
  %810 = vmatprep.subr.bf16.mxu0 0
  %811 = vmatpush1.bf16.msra.mxu0 %v791
  %812 = vmatprep.subr.bf16.mxu0 0
  %813 = vmatpush1.bf16.msra.mxu0 %v792
  %814 = vmatprep.subr.bf16.mxu0 0
  %815 = vmatpush1.bf16.msra.mxu0 %v793
  %816 = vmatprep.subr.bf16.mxu0 0
  %817 = vmatpush1.bf16.msra.mxu0 %v794
  %818 = vmatprep.subr.bf16.mxu0 0
  %819 = vmatpush1.bf16.msra.mxu0 %v795
  %820 = vmatprep.subr.bf16.mxu0 0
  %821 = vmatpush1.bf16.msra.mxu0 0
  %822 = vmatprep.subr.bf16.mxu0 0
  %823 = vmatpush1.bf16.msra.mxu0 0
  %824 = vmatprep.subr.bf16.mxu0 0
  %825 = vmatpush1.bf16.msra.mxu0 0
  %826 = vmatprep.subr.bf16.mxu0 0
  %827 = vmatpush1.bf16.msra.mxu0 0
  %828 = vmatprep.subr.bf16.mxu0 0
  %829 = vmatpush1.bf16.msra.mxu0 0
  %830 = vmatprep.subr.bf16.mxu0 0
  %831 = vmatpush1.bf16.msra.mxu0 0
  %832 = vmatprep.subr.bf16.mxu0 0
  %833 = vmatpush1.bf16.msra.mxu0 0
  %834 = vmatprep.subr.bf16.mxu0 0
  %835 = vmatpush1.bf16.msra.mxu0 0
  %836 = vmatprep.mubr.bf16.mxu0 0
  %837 = vmatmul.mubr.bf16.gmra.mrb[0].mxu0 %v732
  %v838 = vpop.f32.mrb[0].mxu0
  %v839 = vadd.f32 %v754, %v838
  %v840 = vpop.f32.mrb[0].mxu0
  %v841 = vpop.f32.mrb[0].mxu0
  %v842 = vpop.f32.mrb[0].mxu0
  %843 = vdwg.mxu0
  %844 = vst [vmem:[%s5] sm:$0xff] %v839
  // Predicated region
  $region22: #{test_model_forward.9} parent=0 // pred_check
    _
  $region23: #{test_model_forward.9} parent=0 // pred_check_branch
    %846 = sbr.rel (0) target = $region25
  $region24: #{test_model_forward.9} parent=0 // pred_region
    _
  $region25: #{test_model_forward.9} parent=0 // pred_fallthru
    _
  // Predicated region
  $region26: #{test_model_forward.9} parent=0 // pred_check
    _
  $region27: #{test_model_forward.9} parent=0 // pred_check_branch
    %848 = sbr.rel (0) target = $region29
  $region28: #{test_model_forward.9} parent=0 // pred_region
    _
  $region29: #{test_model_forward.9} parent=0 // pred_fallthru
    _

</llo_original>
